<compile_context>
chip_gen: v7x
topology: tpu7x:2x2x1
jax: 0.10.0
libtpu: 0.0.40
codegen_flags: <defaults>
</compile_context>

<pallas_src>
import functools

import numpy as np
import jax
import jax.numpy as jnp
from jax.experimental import pallas as pl
from jax.experimental.pallas import tpu as pltpu


# ----------------------------------------------------------------------------
# Fused ResBlock kernel.
# ----------------------------------------------------------------------------
def _resblock_kernel(x_ref, w1_ref, b1_ref, w2_ref, b2_ref, mw_ref,
                     w7_ref, w5_ref, wfc1_ref, bfc1_ref, wfc2_ref, bfc2_ref,
                     o_ref, *, B, C, H, W, eps):
    f32 = jnp.float32
    HW = H * W
    BC = B * C

    x = x_ref[...]                                    # (B*C, H*W), lane dense
    mask_l = mw_ref[0:1, :]                           # 1 where source (w-1) is valid
    mask_r = mw_ref[1:2, :]                           # 1 where source (w+1) is valid

    def shifted(v, d):
        # t[:, p] = v[:, p + d]   (zero where p + d is out of [0, HW))
        if d == 0:
            return v
        if d > 0:
            return jnp.concatenate([v[:, d:], jnp.zeros((BC, d), f32)], axis=1)
        return jnp.concatenate([jnp.zeros((BC, -d), f32), v[:, :HW + d]], axis=1)

    def conv3x3(v, wbig_ref, bias_ref):
        # In-register im2col on the flat (row = b*C + ci) activation, then one MXU
        # matmul covering every batch element and every output channel.
        taps = []
        for kh in range(3):
            for kw in range(3):
                t = shifted(v, (kh - 1) * W + (kw - 1))
                if kw == 0:
                    t = t * mask_l
                elif kw == 2:
                    t = t * mask_r
                taps.append(t)
        tmat = jnp.concatenate(taps, axis=0)                         # (9*B*C, H*W)
        y = jnp.dot(wbig_ref[...], tmat, preferred_element_type=f32)  # (B*C, H*W)
        return y + bias_ref[...]

    y1 = jnp.maximum(conv3x3(x, w1_ref, b1_ref), 0.0)                # conv1 + ReLU
    x1 = conv3x3(y1, w2_ref, b2_ref)                                 # conv2 (no ReLU)

    # ---------------- ZPool reductions + SE global average pool -----------------
    rows = [x1[:, h * W:(h + 1) * W] for h in range(H)]              # each (B*C, W)
    zh_max = functools.reduce(jnp.maximum, rows)                     # (B*C, W): max over h
    zh_mean = functools.reduce(jnp.add, rows) * (1.0 / H)            # (B*C, W): mean over h

    hot = jax.lax.broadcasted_iota(jnp.int32, (1, H), 1)
    zc_max = jnp.zeros((BC, H), f32)
    zc_sum = jnp.zeros((BC, H), f32)
    for h in range(H):
        sel = jnp.where(hot == h, 1.0, 0.0)                          # (1, H) one-hot
        zc_max = zc_max + sel * jnp.max(rows[h], axis=1, keepdims=True)
        zc_sum = zc_sum + sel * jnp.sum(rows[h], axis=1, keepdims=True)
    zc_mean = zc_sum * (1.0 / W)                                     # (B*C, H): mean over w
    pooled = jnp.sum(x1, axis=1, keepdims=True) * (1.0 / HW)         # (B*C, 1)

    # ---------------- raw (pre-BN) triplet-attention gate convs ------------------
    def pad2(a, p):
        r, c = a.shape
        a = jnp.concatenate(
            [jnp.zeros((p, c), f32), a, jnp.zeros((p, c), f32)], axis=0)
        return jnp.concatenate(
            [jnp.zeros((r + 2 * p, p), f32), a, jnp.zeros((r + 2 * p, p), f32)],
            axis=1)

    acw, ahc = [], []
    for b in range(B):
        s = slice(b * C, (b + 1) * C)
        # cw branch: 7x7 conv over the (h, c) plane, held transposed as (c, h).
        p7 = (pad2(zc_max[s, :], 3), pad2(zc_mean[s, :], 3))
        g = jnp.zeros((C, H), f32)
        for i in range(2):
            for ky in range(7):
                for kx in range(7):
                    g = g + w7_ref[(i * 7 + ky) * 7 + kx] * p7[i][kx:kx + C, ky:ky + H]
        acw.append(g)
        # hc branch: 5x5 conv over the (c, w) plane.
        p5 = (pad2(zh_max[s, :], 2), pad2(zh_mean[s, :], 2))
        g = jnp.zeros((C, W), f32)
        for i in range(2):
            for ky in range(5):
                for kx in range(5):
                    g = g + w5_ref[(i * 5 + ky) * 5 + kx] * p5[i][ky:ky + C, kx:kx + W]
        ahc.append(g)

    acw_all = jnp.concatenate(acw, axis=0)                           # (B*C, H)
    ahc_all = jnp.concatenate(ahc, axis=0)                           # (B*C, W)

    # --------- gate BatchNorm (training-mode biased batch stats, computed once) --
    def mean_all(a):
        m = jnp.sum(a, axis=1, keepdims=True)
        m = jnp.sum(m, axis=0, keepdims=True)
        return m * (1.0 / (a.shape[0] * a.shape[1]))

    mu_cw = mean_all(acw_all)
    var_cw = mean_all((acw_all - mu_cw) ** 2)
    gcw = (acw_all - mu_cw) * jax.lax.rsqrt(var_cw + eps)            # (B*C, H)
    mu_hc = mean_all(ahc_all)
    var_hc = mean_all((ahc_all - mu_hc) ** 2)
    ghc = (ahc_all - mu_hc) * jax.lax.rsqrt(var_hc + eps)            # (B*C, W)

    # --------------------- SE: fc(C->1) -> ReLU -> fc(1->C) -> sigmoid -----------
    se_cols = []
    for b in range(B):
        pb = pooled[b * C:(b + 1) * C, :]                            # (C, 1)
        hmid = jnp.sum(pb * wfc1_ref[...], axis=0, keepdims=True) + bfc1_ref[...]
        hmid = jnp.maximum(hmid, 0.0)                                # (1, 1)
        se_cols.append(jax.nn.sigmoid(hmid * wfc2_ref[...] + bfc2_ref[...]))
    se_all = jnp.concatenate(se_cols, axis=0)                        # (B*C, 1)

    # ------------- fused combine + residual: ONE lane-dense full store -----------
    gcw_flat = jnp.concatenate(
        [jnp.broadcast_to(gcw[:, h:h + 1], (BC, W)) for h in range(H)], axis=1)
    ghc_flat = jnp.concatenate([ghc for _ in range(H)], axis=1)      # (B*C, H*W)
    o_ref[...] = x1 * (se_all + gcw_flat + ghc_flat) + x


# ----------------------------------------------------------------------------
# Full ResBlock forward (stride=1, in_channel == out_channel for the residual).
# ----------------------------------------------------------------------------
def resblock_pallas(x, p):
    B, C, H, W = x.shape
    HW, BC = H * W, B * C
    f32 = jnp.float32

    x_flat = x.reshape(BC, HW).astype(f32)

    # Block-diagonal conv weights so one MXU matmul handles the whole batch.
    eye_b = jnp.eye(B, dtype=f32)

    def big_w(w):                                        # w: (Cout, Cin, 3, 3)
        wk = jnp.transpose(w, (2, 3, 0, 1)).reshape(9, C, C)        # [k, co, ci]
        a = jnp.einsum("ab,koi->aokbi", eye_b, wk)                  # [b, co, k, b', ci]
        return a.reshape(BC, 9 * BC)

    w1_big = big_w(p["w_c1"])
    w2_big = big_w(p["w_c2"])
    b1_big = jnp.tile(p["b_c1"], B).reshape(BC, 1)
    b2_big = jnp.tile(p["b_c2"], B).reshape(BC, 1)

    # w-boundary masks for the im2col lane shifts (host constants).
    wcol = np.arange(HW) % W
    maskw = jnp.asarray(
        np.stack([(wcol >= 1), (wcol <= W - 2)]).astype(np.float32))  # (2, HW)

    mid = p["w_fc1"].shape[0]
    assert mid == 1, "SE specialization assumes mid = C // 4 == 1"
    # TODO(synk): generalize the SE FC stack to mid > 1 (needs a small in-kernel matmul).

    def vmem(shape):
        return pl.BlockSpec(shape, lambda i, _s=shape: (0,) * len(_s))

    smem = pl.BlockSpec(memory_space=pltpu.MemorySpace.SMEM)

    out_flat = pl.pallas_call(
        functools.partial(_resblock_kernel, B=B, C=C, H=H, W=W, eps=1e-5),
        out_shape=jax.ShapeDtypeStruct((BC, HW), f32),
        grid=(1,),
        in_specs=[
            vmem((BC, HW)),          # x (conv input and residual)
            vmem((BC, 9 * BC)),      # conv1 block-diagonal weight
            vmem((BC, 1)),           # conv1 bias
            vmem((BC, 9 * BC)),      # conv2 block-diagonal weight
            vmem((BC, 1)),           # conv2 bias
            vmem((2, HW)),           # w-boundary masks
            smem,                    # 7x7 gate conv weights (flat)
            smem,                    # 5x5 gate conv weights (flat)
            vmem((C, 1)),            # SE fc1 weight (as column)
            vmem((1, 1)),            # SE fc1 bias
            vmem((C, 1)),            # SE fc2 weight
            vmem((C, 1)),            # SE fc2 bias
        ],
        out_specs=vmem((BC, HW)),
        compiler_params=pltpu.CompilerParams(
            dimension_semantics=("arbitrary",),
            vmem_limit_bytes=32 * 1024 * 1024),
    )(x_flat, w1_big, b1_big, w2_big, b2_big, maskw,
      p["w_cw"].reshape(-1), p["w_hc"].reshape(-1),
      p["w_fc1"].reshape(C, 1), p["b_fc1"].reshape(1, 1),
      p["w_fc2"].reshape(C, 1), p["b_fc2"].reshape(C, 1))

    return out_flat.reshape(B, C, H, W)


# ----------------------------------------------------------------------------
# Pure-JAX reference (for validation only).
# ----------------------------------------------------------------------------
def _conv2d_ref(x, w, b, pad):
    out = jax.lax.conv_general_dilated(
        x, w, window_strides=(1, 1), padding=[(pad, pad), (pad, pad)],
        dimension_numbers=("NCHW", "OIHW", "NCHW"),
        precision=jax.lax.Precision.HIGHEST)
    if b is not None:
        out = out + b[None, :, None, None]
    return out


def _gate_ref(xp, w, K, eps=1e-5):
    zp = jnp.concatenate([jnp.max(xp, axis=1, keepdims=True),
                          jnp.mean(xp, axis=1, keepdims=True)], axis=1)
    y = _conv2d_ref(zp, w, None, (K - 1) // 2)
    mu = jnp.mean(y)
    var = jnp.mean((y - mu) ** 2)
    yn = (y - mu) / jnp.sqrt(var + eps)      # gamma=1, beta=0 (init), training stats
    return xp * yn


def resblock_ref(x, p):
    y1 = jax.nn.relu(_conv2d_ref(x, p["w_c1"], p["b_c1"], 1))
    x1 = _conv2d_ref(y1, p["w_c2"], p["b_c2"], 1)
    cw = jnp.transpose(_gate_ref(jnp.transpose(x1, (0, 3, 2, 1)), p["w_cw"], 7), (0, 3, 2, 1))
    hc = jnp.transpose(_gate_ref(jnp.transpose(x1, (0, 2, 1, 3)), p["w_hc"], 5), (0, 2, 1, 3))
    x2 = cw + hc
    pooled = jnp.mean(x1, axis=(2, 3))
    h = jax.nn.relu(pooled @ p["w_fc1"].T + p["b_fc1"])
    s = jax.nn.sigmoid(h @ p["w_fc2"].T + p["b_fc2"])
    x3 = x1 * s[:, :, None, None] + x2
    return x3 + x


def init_params(key, C, K):
    mid = C // 4
    assert mid == 1
    ks = jax.random.split(key, 9)

    def rn(k, shape, fan_in):
        return jax.random.normal(k, shape, jnp.float32) / np.sqrt(fan_in)

    return dict(
        w_c1=rn(ks[0], (C, C, K, K), C * K * K), b_c1=rn(ks[1], (C,), C),
        w_c2=rn(ks[2], (C, C, K, K), C * K * K), b_c2=rn(ks[3], (C,), C),
        w_cw=rn(ks[4], (1, 2, 7, 7), 2 * 49),    # AttentionGate1 conv (bias=False)
        w_hc=rn(ks[5], (1, 2, 5, 5), 2 * 25),    # AttentionGate2 conv (bias=False)
        w_fc1=rn(ks[6], (mid, C), C), b_fc1=jnp.zeros((mid,), jnp.float32),
        w_fc2=rn(ks[7], (C, mid), mid), b_fc2=jnp.zeros((C,), jnp.float32),
    )


if __name__ == "__main__":
    key = jax.random.PRNGKey(0)
    kx, kp = jax.random.split(key)
    B, C, H, W = 2, 4, 16, 16            # in_channel=out_channel=4, kernel=3, stride=1
    x = jax.random.normal(kx, (B, C, H, W), jnp.float32)
    params = init_params(kp, C, 3)

    fwd = jax.jit(resblock_pallas)
    out = jax.block_until_ready(fwd(x, params))

    ref = jax.block_until_ready(resblock_ref(x, params))
    np.testing.assert_allclose(np.asarray(out), np.asarray(ref), rtol=5e-3, atol=5e-3)
    print("KERNEL_OK")
</pallas_src>

<mosaic_0001>
module attributes {stable_mosaic.version = 11 : i64} {
  func.func @_resblock_kernel(%arg0: i32, %arg1: memref<8x256xf32, #tpu.memory_space<vmem>>, %arg2: memref<8x72xf32, #tpu.memory_space<vmem>>, %arg3: memref<8x1xf32, #tpu.memory_space<vmem>>, %arg4: memref<8x72xf32, #tpu.memory_space<vmem>>, %arg5: memref<8x1xf32, #tpu.memory_space<vmem>>, %arg6: memref<2x256xf32, #tpu.memory_space<vmem>>, %arg7: memref<98xf32, #tpu.memory_space<smem>>, %arg8: memref<50xf32, #tpu.memory_space<smem>>, %arg9: memref<4x1xf32, #tpu.memory_space<vmem>>, %arg10: memref<1x1xf32, #tpu.memory_space<vmem>>, %arg11: memref<4x1xf32, #tpu.memory_space<vmem>>, %arg12: memref<4x1xf32, #tpu.memory_space<vmem>>, %arg13: memref<8x256xf32, #tpu.memory_space<vmem>>) attributes {dimension_semantics = [#tpu.dimension_semantics<arbitrary>], iteration_bounds = array<i64: 1>, scalar_prefetch = 0 : i64, scratch_operands = 0 : i64, tpu.core_type = #tpu.core_type<tc>, window_params = [{pipeline_mode = #tpu.pipeline_mode<synchronous>, transform_indices = @transform_0, window_bounds = array<i64: 8, 256>}, {pipeline_mode = #tpu.pipeline_mode<synchronous>, transform_indices = @transform_1, window_bounds = array<i64: 8, 72>}, {pipeline_mode = #tpu.pipeline_mode<synchronous>, transform_indices = @transform_2, window_bounds = array<i64: 8, 1>}, {pipeline_mode = #tpu.pipeline_mode<synchronous>, transform_indices = @transform_3, window_bounds = array<i64: 8, 72>}, {pipeline_mode = #tpu.pipeline_mode<synchronous>, transform_indices = @transform_4, window_bounds = array<i64: 8, 1>}, {pipeline_mode = #tpu.pipeline_mode<synchronous>, transform_indices = @transform_5, window_bounds = array<i64: 2, 256>}, {transform_indices = @transform_6, window_bounds = array<i64: 98>}, {transform_indices = @transform_7, window_bounds = array<i64: 50>}, {pipeline_mode = #tpu.pipeline_mode<synchronous>, transform_indices = @transform_8, window_bounds = array<i64: 4, 1>}, {pipeline_mode = #tpu.pipeline_mode<synchronous>, transform_indices = @transform_9, window_bounds = array<i64: 1, 1>}, {pipeline_mode = #tpu.pipeline_mode<synchronous>, transform_indices = @transform_10, window_bounds = array<i64: 4, 1>}, {pipeline_mode = #tpu.pipeline_mode<synchronous>, transform_indices = @transform_11, window_bounds = array<i64: 4, 1>}, {pipeline_mode = #tpu.pipeline_mode<synchronous>, transform_indices = @transform_12, window_bounds = array<i64: 8, 256>}]} {
    %c0 = arith.constant 0 : index
    %c0_0 = arith.constant 0 : index
    %0 = vector.load %arg1[%c0, %c0_0] : memref<8x256xf32, #tpu.memory_space<vmem>>, vector<8x256xf32>
    %c0_1 = arith.constant 0 : index
    %c0_2 = arith.constant 0 : index
    %1 = vector.load %arg6[%c0_1, %c0_2] : memref<2x256xf32, #tpu.memory_space<vmem>>, vector<1x256xf32>
    %c1 = arith.constant 1 : index
    %c0_3 = arith.constant 0 : index
    %2 = vector.load %arg6[%c1, %c0_3] : memref<2x256xf32, #tpu.memory_space<vmem>>, vector<1x256xf32>
    %cst = arith.constant 0.000000e+00 : f32
    %3 = vector.broadcast %cst : f32 to vector<8x17xf32>
    %4 = vector.extract_strided_slice %0 {offsets = [0, 0], sizes = [8, 239], strides = [1, 1]} : vector<8x256xf32> to vector<8x239xf32>
    %5 = tpu.concatenate %3, %4 in 1 : vector<8x17xf32>, vector<8x239xf32> -> vector<8x256xf32>
    %6 = vector.broadcast %1 : vector<1x256xf32> to vector<8x256xf32>
    %7 = arith.mulf %5, %6 : vector<8x256xf32>
    %cst_4 = arith.constant 0.000000e+00 : f32
    %8 = vector.broadcast %cst_4 : f32 to vector<8x16xf32>
    %9 = vector.extract_strided_slice %0 {offsets = [0, 0], sizes = [8, 240], strides = [1, 1]} : vector<8x256xf32> to vector<8x240xf32>
    %10 = tpu.concatenate %8, %9 in 1 : vector<8x16xf32>, vector<8x240xf32> -> vector<8x256xf32>
    %cst_5 = arith.constant 0.000000e+00 : f32
    %11 = vector.broadcast %cst_5 : f32 to vector<8x15xf32>
    %12 = vector.extract_strided_slice %0 {offsets = [0, 0], sizes = [8, 241], strides = [1, 1]} : vector<8x256xf32> to vector<8x241xf32>
    %13 = tpu.concatenate %11, %12 in 1 : vector<8x15xf32>, vector<8x241xf32> -> vector<8x256xf32>
    %14 = vector.broadcast %2 : vector<1x256xf32> to vector<8x256xf32>
    %15 = arith.mulf %13, %14 : vector<8x256xf32>
    %cst_6 = arith.constant 0.000000e+00 : f32
    %16 = vector.broadcast %cst_6 : f32 to vector<8x1xf32>
    %17 = vector.extract_strided_slice %0 {offsets = [0, 0], sizes = [8, 255], strides = [1, 1]} : vector<8x256xf32> to vector<8x255xf32>
    %18 = tpu.concatenate %16, %17 in 1 : vector<8x1xf32>, vector<8x255xf32> -> vector<8x256xf32>
    %19 = vector.broadcast %1 : vector<1x256xf32> to vector<8x256xf32>
    %20 = arith.mulf %18, %19 : vector<8x256xf32>
    %21 = vector.extract_strided_slice %0 {offsets = [0, 1], sizes = [8, 255], strides = [1, 1]} : vector<8x256xf32> to vector<8x255xf32>
    %cst_7 = arith.constant 0.000000e+00 : f32
    %22 = vector.broadcast %cst_7 : f32 to vector<8x1xf32>
    %23 = tpu.concatenate %21, %22 in 1 : vector<8x255xf32>, vector<8x1xf32> -> vector<8x256xf32>
    %24 = vector.broadcast %2 : vector<1x256xf32> to vector<8x256xf32>
    %25 = arith.mulf %23, %24 : vector<8x256xf32>
    %26 = vector.extract_strided_slice %0 {offsets = [0, 15], sizes = [8, 241], strides = [1, 1]} : vector<8x256xf32> to vector<8x241xf32>
    %cst_8 = arith.constant 0.000000e+00 : f32
    %27 = vector.broadcast %cst_8 : f32 to vector<8x15xf32>
    %28 = tpu.concatenate %26, %27 in 1 : vector<8x241xf32>, vector<8x15xf32> -> vector<8x256xf32>
    %29 = vector.broadcast %1 : vector<1x256xf32> to vector<8x256xf32>
    %30 = arith.mulf %28, %29 : vector<8x256xf32>
    %31 = vector.extract_strided_slice %0 {offsets = [0, 16], sizes = [8, 240], strides = [1, 1]} : vector<8x256xf32> to vector<8x240xf32>
    %cst_9 = arith.constant 0.000000e+00 : f32
    %32 = vector.broadcast %cst_9 : f32 to vector<8x16xf32>
    %33 = tpu.concatenate %31, %32 in 1 : vector<8x240xf32>, vector<8x16xf32> -> vector<8x256xf32>
    %34 = vector.extract_strided_slice %0 {offsets = [0, 17], sizes = [8, 239], strides = [1, 1]} : vector<8x256xf32> to vector<8x239xf32>
    %cst_10 = arith.constant 0.000000e+00 : f32
    %35 = vector.broadcast %cst_10 : f32 to vector<8x17xf32>
    %36 = tpu.concatenate %34, %35 in 1 : vector<8x239xf32>, vector<8x17xf32> -> vector<8x256xf32>
    %37 = vector.broadcast %2 : vector<1x256xf32> to vector<8x256xf32>
    %38 = arith.mulf %36, %37 : vector<8x256xf32>
    %39 = tpu.concatenate %7, %10, %15, %20, %0, %25, %30, %33, %38 in 0 : vector<8x256xf32>, vector<8x256xf32>, vector<8x256xf32>, vector<8x256xf32>, vector<8x256xf32>, vector<8x256xf32>, vector<8x256xf32>, vector<8x256xf32>, vector<8x256xf32> -> vector<72x256xf32>
    %c0_11 = arith.constant 0 : index
    %c0_12 = arith.constant 0 : index
    %40 = vector.load %arg2[%c0_11, %c0_12] : memref<8x72xf32, #tpu.memory_space<vmem>>, vector<8x72xf32>
    %cst_13 = arith.constant dense<0.000000e+00> : vector<8x256xf32>
    %41 = tpu.matmul %40, %39, %cst_13 {dimension_numbers = #tpu.dot_dimension_numbers<[1], [0], [0], [1], [0, 0, 1, 1], [], []>} : vector<8x72xf32>, vector<72x256xf32>, vector<8x256xf32> -> vector<8x256xf32>
    %c0_14 = arith.constant 0 : index
    %c0_15 = arith.constant 0 : index
    %42 = vector.load %arg3[%c0_14, %c0_15] : memref<8x1xf32, #tpu.memory_space<vmem>>, vector<8x1xf32>
    %43 = vector.broadcast %42 : vector<8x1xf32> to vector<8x256xf32>
    %44 = arith.addf %41, %43 : vector<8x256xf32>
    %cst_16 = arith.constant 0.000000e+00 : f32
    %45 = vector.broadcast %cst_16 : f32 to vector<8x256xf32>
    %46 = arith.maximumf %44, %45 : vector<8x256xf32>
    %cst_17 = arith.constant 0.000000e+00 : f32
    %47 = vector.broadcast %cst_17 : f32 to vector<8x17xf32>
    %48 = vector.extract_strided_slice %46 {offsets = [0, 0], sizes = [8, 239], strides = [1, 1]} : vector<8x256xf32> to vector<8x239xf32>
    %49 = tpu.concatenate %47, %48 in 1 : vector<8x17xf32>, vector<8x239xf32> -> vector<8x256xf32>
    %50 = vector.broadcast %1 : vector<1x256xf32> to vector<8x256xf32>
    %51 = arith.mulf %49, %50 : vector<8x256xf32>
    %cst_18 = arith.constant 0.000000e+00 : f32
    %52 = vector.broadcast %cst_18 : f32 to vector<8x16xf32>
    %53 = vector.extract_strided_slice %46 {offsets = [0, 0], sizes = [8, 240], strides = [1, 1]} : vector<8x256xf32> to vector<8x240xf32>
    %54 = tpu.concatenate %52, %53 in 1 : vector<8x16xf32>, vector<8x240xf32> -> vector<8x256xf32>
    %cst_19 = arith.constant 0.000000e+00 : f32
    %55 = vector.broadcast %cst_19 : f32 to vector<8x15xf32>
    %56 = vector.extract_strided_slice %46 {offsets = [0, 0], sizes = [8, 241], strides = [1, 1]} : vector<8x256xf32> to vector<8x241xf32>
    %57 = tpu.concatenate %55, %56 in 1 : vector<8x15xf32>, vector<8x241xf32> -> vector<8x256xf32>
    %58 = vector.broadcast %2 : vector<1x256xf32> to vector<8x256xf32>
    %59 = arith.mulf %57, %58 : vector<8x256xf32>
    %cst_20 = arith.constant 0.000000e+00 : f32
    %60 = vector.broadcast %cst_20 : f32 to vector<8x1xf32>
    %61 = vector.extract_strided_slice %46 {offsets = [0, 0], sizes = [8, 255], strides = [1, 1]} : vector<8x256xf32> to vector<8x255xf32>
    %62 = tpu.concatenate %60, %61 in 1 : vector<8x1xf32>, vector<8x255xf32> -> vector<8x256xf32>
    %63 = vector.broadcast %1 : vector<1x256xf32> to vector<8x256xf32>
    %64 = arith.mulf %62, %63 : vector<8x256xf32>
    %65 = vector.extract_strided_slice %46 {offsets = [0, 1], sizes = [8, 255], strides = [1, 1]} : vector<8x256xf32> to vector<8x255xf32>
    %cst_21 = arith.constant 0.000000e+00 : f32
    %66 = vector.broadcast %cst_21 : f32 to vector<8x1xf32>
    %67 = tpu.concatenate %65, %66 in 1 : vector<8x255xf32>, vector<8x1xf32> -> vector<8x256xf32>
    %68 = vector.broadcast %2 : vector<1x256xf32> to vector<8x256xf32>
    %69 = arith.mulf %67, %68 : vector<8x256xf32>
    %70 = vector.extract_strided_slice %46 {offsets = [0, 15], sizes = [8, 241], strides = [1, 1]} : vector<8x256xf32> to vector<8x241xf32>
    %cst_22 = arith.constant 0.000000e+00 : f32
    %71 = vector.broadcast %cst_22 : f32 to vector<8x15xf32>
    %72 = tpu.concatenate %70, %71 in 1 : vector<8x241xf32>, vector<8x15xf32> -> vector<8x256xf32>
    %73 = vector.broadcast %1 : vector<1x256xf32> to vector<8x256xf32>
    %74 = arith.mulf %72, %73 : vector<8x256xf32>
    %75 = vector.extract_strided_slice %46 {offsets = [0, 16], sizes = [8, 240], strides = [1, 1]} : vector<8x256xf32> to vector<8x240xf32>
    %cst_23 = arith.constant 0.000000e+00 : f32
    %76 = vector.broadcast %cst_23 : f32 to vector<8x16xf32>
    %77 = tpu.concatenate %75, %76 in 1 : vector<8x240xf32>, vector<8x16xf32> -> vector<8x256xf32>
    %78 = vector.extract_strided_slice %46 {offsets = [0, 17], sizes = [8, 239], strides = [1, 1]} : vector<8x256xf32> to vector<8x239xf32>
    %cst_24 = arith.constant 0.000000e+00 : f32
    %79 = vector.broadcast %cst_24 : f32 to vector<8x17xf32>
    %80 = tpu.concatenate %78, %79 in 1 : vector<8x239xf32>, vector<8x17xf32> -> vector<8x256xf32>
    %81 = vector.broadcast %2 : vector<1x256xf32> to vector<8x256xf32>
    %82 = arith.mulf %80, %81 : vector<8x256xf32>
    %83 = tpu.concatenate %51, %54, %59, %64, %46, %69, %74, %77, %82 in 0 : vector<8x256xf32>, vector<8x256xf32>, vector<8x256xf32>, vector<8x256xf32>, vector<8x256xf32>, vector<8x256xf32>, vector<8x256xf32>, vector<8x256xf32>, vector<8x256xf32> -> vector<72x256xf32>
    %c0_25 = arith.constant 0 : index
    %c0_26 = arith.constant 0 : index
    %84 = vector.load %arg4[%c0_25, %c0_26] : memref<8x72xf32, #tpu.memory_space<vmem>>, vector<8x72xf32>
    %cst_27 = arith.constant dense<0.000000e+00> : vector<8x256xf32>
    %85 = tpu.matmul %84, %83, %cst_27 {dimension_numbers = #tpu.dot_dimension_numbers<[1], [0], [0], [1], [0, 0, 1, 1], [], []>} : vector<8x72xf32>, vector<72x256xf32>, vector<8x256xf32> -> vector<8x256xf32>
    %c0_28 = arith.constant 0 : index
    %c0_29 = arith.constant 0 : index
    %86 = vector.load %arg5[%c0_28, %c0_29] : memref<8x1xf32, #tpu.memory_space<vmem>>, vector<8x1xf32>
    %87 = vector.broadcast %86 : vector<8x1xf32> to vector<8x256xf32>
    %88 = arith.addf %85, %87 : vector<8x256xf32>
    %89 = vector.extract_strided_slice %88 {offsets = [0, 0], sizes = [8, 16], strides = [1, 1]} : vector<8x256xf32> to vector<8x16xf32>
    %90 = vector.extract_strided_slice %88 {offsets = [0, 16], sizes = [8, 16], strides = [1, 1]} : vector<8x256xf32> to vector<8x16xf32>
    %91 = vector.extract_strided_slice %88 {offsets = [0, 32], sizes = [8, 16], strides = [1, 1]} : vector<8x256xf32> to vector<8x16xf32>
    %92 = vector.extract_strided_slice %88 {offsets = [0, 48], sizes = [8, 16], strides = [1, 1]} : vector<8x256xf32> to vector<8x16xf32>
    %93 = vector.extract_strided_slice %88 {offsets = [0, 64], sizes = [8, 16], strides = [1, 1]} : vector<8x256xf32> to vector<8x16xf32>
    %94 = vector.extract_strided_slice %88 {offsets = [0, 80], sizes = [8, 16], strides = [1, 1]} : vector<8x256xf32> to vector<8x16xf32>
    %95 = vector.extract_strided_slice %88 {offsets = [0, 96], sizes = [8, 16], strides = [1, 1]} : vector<8x256xf32> to vector<8x16xf32>
    %96 = vector.extract_strided_slice %88 {offsets = [0, 112], sizes = [8, 16], strides = [1, 1]} : vector<8x256xf32> to vector<8x16xf32>
    %97 = vector.extract_strided_slice %88 {offsets = [0, 128], sizes = [8, 16], strides = [1, 1]} : vector<8x256xf32> to vector<8x16xf32>
    %98 = vector.extract_strided_slice %88 {offsets = [0, 144], sizes = [8, 16], strides = [1, 1]} : vector<8x256xf32> to vector<8x16xf32>
    %99 = vector.extract_strided_slice %88 {offsets = [0, 160], sizes = [8, 16], strides = [1, 1]} : vector<8x256xf32> to vector<8x16xf32>
    %100 = vector.extract_strided_slice %88 {offsets = [0, 176], sizes = [8, 16], strides = [1, 1]} : vector<8x256xf32> to vector<8x16xf32>
    %101 = vector.extract_strided_slice %88 {offsets = [0, 192], sizes = [8, 16], strides = [1, 1]} : vector<8x256xf32> to vector<8x16xf32>
    %102 = vector.extract_strided_slice %88 {offsets = [0, 208], sizes = [8, 16], strides = [1, 1]} : vector<8x256xf32> to vector<8x16xf32>
    %103 = vector.extract_strided_slice %88 {offsets = [0, 224], sizes = [8, 16], strides = [1, 1]} : vector<8x256xf32> to vector<8x16xf32>
    %104 = vector.extract_strided_slice %88 {offsets = [0, 240], sizes = [8, 16], strides = [1, 1]} : vector<8x256xf32> to vector<8x16xf32>
    %105 = arith.maximumf %89, %90 : vector<8x16xf32>
    %106 = arith.maximumf %105, %91 : vector<8x16xf32>
    %107 = arith.maximumf %106, %92 : vector<8x16xf32>
    %108 = arith.maximumf %107, %93 : vector<8x16xf32>
    %109 = arith.maximumf %108, %94 : vector<8x16xf32>
    %110 = arith.maximumf %109, %95 : vector<8x16xf32>
    %111 = arith.maximumf %110, %96 : vector<8x16xf32>
    %112 = arith.maximumf %111, %97 : vector<8x16xf32>
    %113 = arith.maximumf %112, %98 : vector<8x16xf32>
    %114 = arith.maximumf %113, %99 : vector<8x16xf32>
    %115 = arith.maximumf %114, %100 : vector<8x16xf32>
    %116 = arith.maximumf %115, %101 : vector<8x16xf32>
    %117 = arith.maximumf %116, %102 : vector<8x16xf32>
    %118 = arith.maximumf %117, %103 : vector<8x16xf32>
    %119 = arith.maximumf %118, %104 : vector<8x16xf32>
    %120 = arith.addf %89, %90 : vector<8x16xf32>
    %121 = arith.addf %120, %91 : vector<8x16xf32>
    %122 = arith.addf %121, %92 : vector<8x16xf32>
    %123 = arith.addf %122, %93 : vector<8x16xf32>
    %124 = arith.addf %123, %94 : vector<8x16xf32>
    %125 = arith.addf %124, %95 : vector<8x16xf32>
    %126 = arith.addf %125, %96 : vector<8x16xf32>
    %127 = arith.addf %126, %97 : vector<8x16xf32>
    %128 = arith.addf %127, %98 : vector<8x16xf32>
    %129 = arith.addf %128, %99 : vector<8x16xf32>
    %130 = arith.addf %129, %100 : vector<8x16xf32>
    %131 = arith.addf %130, %101 : vector<8x16xf32>
    %132 = arith.addf %131, %102 : vector<8x16xf32>
    %133 = arith.addf %132, %103 : vector<8x16xf32>
    %134 = arith.addf %133, %104 : vector<8x16xf32>
    %cst_30 = arith.constant 6.250000e-02 : f32
    %135 = vector.broadcast %cst_30 : f32 to vector<8x16xf32>
    %136 = arith.mulf %134, %135 : vector<8x16xf32>
    %137 = tpu.iota {dimensions = array<i32: 1>} : vector<1x16xi32>
    %cst_31 = arith.constant 0.000000e+00 : f32
    %138 = vector.broadcast %cst_31 : f32 to vector<8x16xf32>
    %cst_32 = arith.constant 0.000000e+00 : f32
    %139 = vector.broadcast %cst_32 : f32 to vector<8x16xf32>
    %c0_i32 = arith.constant 0 : i32
    %140 = vector.broadcast %c0_i32 : i32 to vector<1x16xi32>
    %141 = arith.cmpi eq, %137, %140 : vector<1x16xi32>
    %cst_33 = arith.constant 1.000000e+00 : f32
    %cst_34 = arith.constant 0.000000e+00 : f32
    %142 = vector.broadcast %cst_33 : f32 to vector<1x16xf32>
    %143 = vector.broadcast %cst_34 : f32 to vector<1x16xf32>
    %144 = arith.select %141, %142, %143 : vector<1x16xi1>, vector<1x16xf32>
    %cst_35 = arith.constant dense<0xFF800000> : vector<8xf32>
    %145 = vector.multi_reduction <maximumf>, %89, %cst_35 [1] : vector<8x16xf32> to vector<8xf32>
    %146 = vector.shape_cast %145 : vector<8xf32> to vector<8x1xf32>
    %147 = vector.broadcast %144 : vector<1x16xf32> to vector<8x16xf32>
    %148 = vector.broadcast %146 : vector<8x1xf32> to vector<8x16xf32>
    %149 = arith.mulf %147, %148 : vector<8x16xf32>
    %150 = arith.addf %138, %149 : vector<8x16xf32>
    %cst_36 = arith.constant dense<0.000000e+00> : vector<8xf32>
    %151 = vector.multi_reduction <add>, %89, %cst_36 [1] : vector<8x16xf32> to vector<8xf32>
    %152 = vector.shape_cast %151 : vector<8xf32> to vector<8x1xf32>
    %153 = vector.broadcast %144 : vector<1x16xf32> to vector<8x16xf32>
    %154 = vector.broadcast %152 : vector<8x1xf32> to vector<8x16xf32>
    %155 = arith.mulf %153, %154 : vector<8x16xf32>
    %156 = arith.addf %139, %155 : vector<8x16xf32>
    %c1_i32 = arith.constant 1 : i32
    %157 = vector.broadcast %c1_i32 : i32 to vector<1x16xi32>
    %158 = arith.cmpi eq, %137, %157 : vector<1x16xi32>
    %cst_37 = arith.constant 1.000000e+00 : f32
    %cst_38 = arith.constant 0.000000e+00 : f32
    %159 = vector.broadcast %cst_37 : f32 to vector<1x16xf32>
    %160 = vector.broadcast %cst_38 : f32 to vector<1x16xf32>
    %161 = arith.select %158, %159, %160 : vector<1x16xi1>, vector<1x16xf32>
    %cst_39 = arith.constant dense<0xFF800000> : vector<8xf32>
    %162 = vector.multi_reduction <maximumf>, %90, %cst_39 [1] : vector<8x16xf32> to vector<8xf32>
    %163 = vector.shape_cast %162 : vector<8xf32> to vector<8x1xf32>
    %164 = vector.broadcast %161 : vector<1x16xf32> to vector<8x16xf32>
    %165 = vector.broadcast %163 : vector<8x1xf32> to vector<8x16xf32>
    %166 = arith.mulf %164, %165 : vector<8x16xf32>
    %167 = arith.addf %150, %166 : vector<8x16xf32>
    %cst_40 = arith.constant dense<0.000000e+00> : vector<8xf32>
    %168 = vector.multi_reduction <add>, %90, %cst_40 [1] : vector<8x16xf32> to vector<8xf32>
    %169 = vector.shape_cast %168 : vector<8xf32> to vector<8x1xf32>
    %170 = vector.broadcast %161 : vector<1x16xf32> to vector<8x16xf32>
    %171 = vector.broadcast %169 : vector<8x1xf32> to vector<8x16xf32>
    %172 = arith.mulf %170, %171 : vector<8x16xf32>
    %173 = arith.addf %156, %172 : vector<8x16xf32>
    %c2_i32 = arith.constant 2 : i32
    %174 = vector.broadcast %c2_i32 : i32 to vector<1x16xi32>
    %175 = arith.cmpi eq, %137, %174 : vector<1x16xi32>
    %cst_41 = arith.constant 1.000000e+00 : f32
    %cst_42 = arith.constant 0.000000e+00 : f32
    %176 = vector.broadcast %cst_41 : f32 to vector<1x16xf32>
    %177 = vector.broadcast %cst_42 : f32 to vector<1x16xf32>
    %178 = arith.select %175, %176, %177 : vector<1x16xi1>, vector<1x16xf32>
    %cst_43 = arith.constant dense<0xFF800000> : vector<8xf32>
    %179 = vector.multi_reduction <maximumf>, %91, %cst_43 [1] : vector<8x16xf32> to vector<8xf32>
    %180 = vector.shape_cast %179 : vector<8xf32> to vector<8x1xf32>
    %181 = vector.broadcast %178 : vector<1x16xf32> to vector<8x16xf32>
    %182 = vector.broadcast %180 : vector<8x1xf32> to vector<8x16xf32>
    %183 = arith.mulf %181, %182 : vector<8x16xf32>
    %184 = arith.addf %167, %183 : vector<8x16xf32>
    %cst_44 = arith.constant dense<0.000000e+00> : vector<8xf32>
    %185 = vector.multi_reduction <add>, %91, %cst_44 [1] : vector<8x16xf32> to vector<8xf32>
    %186 = vector.shape_cast %185 : vector<8xf32> to vector<8x1xf32>
    %187 = vector.broadcast %178 : vector<1x16xf32> to vector<8x16xf32>
    %188 = vector.broadcast %186 : vector<8x1xf32> to vector<8x16xf32>
    %189 = arith.mulf %187, %188 : vector<8x16xf32>
    %190 = arith.addf %173, %189 : vector<8x16xf32>
    %c3_i32 = arith.constant 3 : i32
    %191 = vector.broadcast %c3_i32 : i32 to vector<1x16xi32>
    %192 = arith.cmpi eq, %137, %191 : vector<1x16xi32>
    %cst_45 = arith.constant 1.000000e+00 : f32
    %cst_46 = arith.constant 0.000000e+00 : f32
    %193 = vector.broadcast %cst_45 : f32 to vector<1x16xf32>
    %194 = vector.broadcast %cst_46 : f32 to vector<1x16xf32>
    %195 = arith.select %192, %193, %194 : vector<1x16xi1>, vector<1x16xf32>
    %cst_47 = arith.constant dense<0xFF800000> : vector<8xf32>
    %196 = vector.multi_reduction <maximumf>, %92, %cst_47 [1] : vector<8x16xf32> to vector<8xf32>
    %197 = vector.shape_cast %196 : vector<8xf32> to vector<8x1xf32>
    %198 = vector.broadcast %195 : vector<1x16xf32> to vector<8x16xf32>
    %199 = vector.broadcast %197 : vector<8x1xf32> to vector<8x16xf32>
    %200 = arith.mulf %198, %199 : vector<8x16xf32>
    %201 = arith.addf %184, %200 : vector<8x16xf32>
    %cst_48 = arith.constant dense<0.000000e+00> : vector<8xf32>
    %202 = vector.multi_reduction <add>, %92, %cst_48 [1] : vector<8x16xf32> to vector<8xf32>
    %203 = vector.shape_cast %202 : vector<8xf32> to vector<8x1xf32>
    %204 = vector.broadcast %195 : vector<1x16xf32> to vector<8x16xf32>
    %205 = vector.broadcast %203 : vector<8x1xf32> to vector<8x16xf32>
    %206 = arith.mulf %204, %205 : vector<8x16xf32>
    %207 = arith.addf %190, %206 : vector<8x16xf32>
    %c4_i32 = arith.constant 4 : i32
    %208 = vector.broadcast %c4_i32 : i32 to vector<1x16xi32>
    %209 = arith.cmpi eq, %137, %208 : vector<1x16xi32>
    %cst_49 = arith.constant 1.000000e+00 : f32
    %cst_50 = arith.constant 0.000000e+00 : f32
    %210 = vector.broadcast %cst_49 : f32 to vector<1x16xf32>
    %211 = vector.broadcast %cst_50 : f32 to vector<1x16xf32>
    %212 = arith.select %209, %210, %211 : vector<1x16xi1>, vector<1x16xf32>
    %cst_51 = arith.constant dense<0xFF800000> : vector<8xf32>
    %213 = vector.multi_reduction <maximumf>, %93, %cst_51 [1] : vector<8x16xf32> to vector<8xf32>
    %214 = vector.shape_cast %213 : vector<8xf32> to vector<8x1xf32>
    %215 = vector.broadcast %212 : vector<1x16xf32> to vector<8x16xf32>
    %216 = vector.broadcast %214 : vector<8x1xf32> to vector<8x16xf32>
    %217 = arith.mulf %215, %216 : vector<8x16xf32>
    %218 = arith.addf %201, %217 : vector<8x16xf32>
    %cst_52 = arith.constant dense<0.000000e+00> : vector<8xf32>
    %219 = vector.multi_reduction <add>, %93, %cst_52 [1] : vector<8x16xf32> to vector<8xf32>
    %220 = vector.shape_cast %219 : vector<8xf32> to vector<8x1xf32>
    %221 = vector.broadcast %212 : vector<1x16xf32> to vector<8x16xf32>
    %222 = vector.broadcast %220 : vector<8x1xf32> to vector<8x16xf32>
    %223 = arith.mulf %221, %222 : vector<8x16xf32>
    %224 = arith.addf %207, %223 : vector<8x16xf32>
    %c5_i32 = arith.constant 5 : i32
    %225 = vector.broadcast %c5_i32 : i32 to vector<1x16xi32>
    %226 = arith.cmpi eq, %137, %225 : vector<1x16xi32>
    %cst_53 = arith.constant 1.000000e+00 : f32
    %cst_54 = arith.constant 0.000000e+00 : f32
    %227 = vector.broadcast %cst_53 : f32 to vector<1x16xf32>
    %228 = vector.broadcast %cst_54 : f32 to vector<1x16xf32>
    %229 = arith.select %226, %227, %228 : vector<1x16xi1>, vector<1x16xf32>
    %cst_55 = arith.constant dense<0xFF800000> : vector<8xf32>
    %230 = vector.multi_reduction <maximumf>, %94, %cst_55 [1] : vector<8x16xf32> to vector<8xf32>
    %231 = vector.shape_cast %230 : vector<8xf32> to vector<8x1xf32>
    %232 = vector.broadcast %229 : vector<1x16xf32> to vector<8x16xf32>
    %233 = vector.broadcast %231 : vector<8x1xf32> to vector<8x16xf32>
    %234 = arith.mulf %232, %233 : vector<8x16xf32>
    %235 = arith.addf %218, %234 : vector<8x16xf32>
    %cst_56 = arith.constant dense<0.000000e+00> : vector<8xf32>
    %236 = vector.multi_reduction <add>, %94, %cst_56 [1] : vector<8x16xf32> to vector<8xf32>
    %237 = vector.shape_cast %236 : vector<8xf32> to vector<8x1xf32>
    %238 = vector.broadcast %229 : vector<1x16xf32> to vector<8x16xf32>
    %239 = vector.broadcast %237 : vector<8x1xf32> to vector<8x16xf32>
    %240 = arith.mulf %238, %239 : vector<8x16xf32>
    %241 = arith.addf %224, %240 : vector<8x16xf32>
    %c6_i32 = arith.constant 6 : i32
    %242 = vector.broadcast %c6_i32 : i32 to vector<1x16xi32>
    %243 = arith.cmpi eq, %137, %242 : vector<1x16xi32>
    %cst_57 = arith.constant 1.000000e+00 : f32
    %cst_58 = arith.constant 0.000000e+00 : f32
    %244 = vector.broadcast %cst_57 : f32 to vector<1x16xf32>
    %245 = vector.broadcast %cst_58 : f32 to vector<1x16xf32>
    %246 = arith.select %243, %244, %245 : vector<1x16xi1>, vector<1x16xf32>
    %cst_59 = arith.constant dense<0xFF800000> : vector<8xf32>
    %247 = vector.multi_reduction <maximumf>, %95, %cst_59 [1] : vector<8x16xf32> to vector<8xf32>
    %248 = vector.shape_cast %247 : vector<8xf32> to vector<8x1xf32>
    %249 = vector.broadcast %246 : vector<1x16xf32> to vector<8x16xf32>
    %250 = vector.broadcast %248 : vector<8x1xf32> to vector<8x16xf32>
    %251 = arith.mulf %249, %250 : vector<8x16xf32>
    %252 = arith.addf %235, %251 : vector<8x16xf32>
    %cst_60 = arith.constant dense<0.000000e+00> : vector<8xf32>
    %253 = vector.multi_reduction <add>, %95, %cst_60 [1] : vector<8x16xf32> to vector<8xf32>
    %254 = vector.shape_cast %253 : vector<8xf32> to vector<8x1xf32>
    %255 = vector.broadcast %246 : vector<1x16xf32> to vector<8x16xf32>
    %256 = vector.broadcast %254 : vector<8x1xf32> to vector<8x16xf32>
    %257 = arith.mulf %255, %256 : vector<8x16xf32>
    %258 = arith.addf %241, %257 : vector<8x16xf32>
    %c7_i32 = arith.constant 7 : i32
    %259 = vector.broadcast %c7_i32 : i32 to vector<1x16xi32>
    %260 = arith.cmpi eq, %137, %259 : vector<1x16xi32>
    %cst_61 = arith.constant 1.000000e+00 : f32
    %cst_62 = arith.constant 0.000000e+00 : f32
    %261 = vector.broadcast %cst_61 : f32 to vector<1x16xf32>
    %262 = vector.broadcast %cst_62 : f32 to vector<1x16xf32>
    %263 = arith.select %260, %261, %262 : vector<1x16xi1>, vector<1x16xf32>
    %cst_63 = arith.constant dense<0xFF800000> : vector<8xf32>
    %264 = vector.multi_reduction <maximumf>, %96, %cst_63 [1] : vector<8x16xf32> to vector<8xf32>
    %265 = vector.shape_cast %264 : vector<8xf32> to vector<8x1xf32>
    %266 = vector.broadcast %263 : vector<1x16xf32> to vector<8x16xf32>
    %267 = vector.broadcast %265 : vector<8x1xf32> to vector<8x16xf32>
    %268 = arith.mulf %266, %267 : vector<8x16xf32>
    %269 = arith.addf %252, %268 : vector<8x16xf32>
    %cst_64 = arith.constant dense<0.000000e+00> : vector<8xf32>
    %270 = vector.multi_reduction <add>, %96, %cst_64 [1] : vector<8x16xf32> to vector<8xf32>
    %271 = vector.shape_cast %270 : vector<8xf32> to vector<8x1xf32>
    %272 = vector.broadcast %263 : vector<1x16xf32> to vector<8x16xf32>
    %273 = vector.broadcast %271 : vector<8x1xf32> to vector<8x16xf32>
    %274 = arith.mulf %272, %273 : vector<8x16xf32>
    %275 = arith.addf %258, %274 : vector<8x16xf32>
    %c8_i32 = arith.constant 8 : i32
    %276 = vector.broadcast %c8_i32 : i32 to vector<1x16xi32>
    %277 = arith.cmpi eq, %137, %276 : vector<1x16xi32>
    %cst_65 = arith.constant 1.000000e+00 : f32
    %cst_66 = arith.constant 0.000000e+00 : f32
    %278 = vector.broadcast %cst_65 : f32 to vector<1x16xf32>
    %279 = vector.broadcast %cst_66 : f32 to vector<1x16xf32>
    %280 = arith.select %277, %278, %279 : vector<1x16xi1>, vector<1x16xf32>
    %cst_67 = arith.constant dense<0xFF800000> : vector<8xf32>
    %281 = vector.multi_reduction <maximumf>, %97, %cst_67 [1] : vector<8x16xf32> to vector<8xf32>
    %282 = vector.shape_cast %281 : vector<8xf32> to vector<8x1xf32>
    %283 = vector.broadcast %280 : vector<1x16xf32> to vector<8x16xf32>
    %284 = vector.broadcast %282 : vector<8x1xf32> to vector<8x16xf32>
    %285 = arith.mulf %283, %284 : vector<8x16xf32>
    %286 = arith.addf %269, %285 : vector<8x16xf32>
    %cst_68 = arith.constant dense<0.000000e+00> : vector<8xf32>
    %287 = vector.multi_reduction <add>, %97, %cst_68 [1] : vector<8x16xf32> to vector<8xf32>
    %288 = vector.shape_cast %287 : vector<8xf32> to vector<8x1xf32>
    %289 = vector.broadcast %280 : vector<1x16xf32> to vector<8x16xf32>
    %290 = vector.broadcast %288 : vector<8x1xf32> to vector<8x16xf32>
    %291 = arith.mulf %289, %290 : vector<8x16xf32>
    %292 = arith.addf %275, %291 : vector<8x16xf32>
    %c9_i32 = arith.constant 9 : i32
    %293 = vector.broadcast %c9_i32 : i32 to vector<1x16xi32>
    %294 = arith.cmpi eq, %137, %293 : vector<1x16xi32>
    %cst_69 = arith.constant 1.000000e+00 : f32
    %cst_70 = arith.constant 0.000000e+00 : f32
    %295 = vector.broadcast %cst_69 : f32 to vector<1x16xf32>
    %296 = vector.broadcast %cst_70 : f32 to vector<1x16xf32>
    %297 = arith.select %294, %295, %296 : vector<1x16xi1>, vector<1x16xf32>
    %cst_71 = arith.constant dense<0xFF800000> : vector<8xf32>
    %298 = vector.multi_reduction <maximumf>, %98, %cst_71 [1] : vector<8x16xf32> to vector<8xf32>
    %299 = vector.shape_cast %298 : vector<8xf32> to vector<8x1xf32>
    %300 = vector.broadcast %297 : vector<1x16xf32> to vector<8x16xf32>
    %301 = vector.broadcast %299 : vector<8x1xf32> to vector<8x16xf32>
    %302 = arith.mulf %300, %301 : vector<8x16xf32>
    %303 = arith.addf %286, %302 : vector<8x16xf32>
    %cst_72 = arith.constant dense<0.000000e+00> : vector<8xf32>
    %304 = vector.multi_reduction <add>, %98, %cst_72 [1] : vector<8x16xf32> to vector<8xf32>
    %305 = vector.shape_cast %304 : vector<8xf32> to vector<8x1xf32>
    %306 = vector.broadcast %297 : vector<1x16xf32> to vector<8x16xf32>
    %307 = vector.broadcast %305 : vector<8x1xf32> to vector<8x16xf32>
    %308 = arith.mulf %306, %307 : vector<8x16xf32>
    %309 = arith.addf %292, %308 : vector<8x16xf32>
    %c10_i32 = arith.constant 10 : i32
    %310 = vector.broadcast %c10_i32 : i32 to vector<1x16xi32>
    %311 = arith.cmpi eq, %137, %310 : vector<1x16xi32>
    %cst_73 = arith.constant 1.000000e+00 : f32
    %cst_74 = arith.constant 0.000000e+00 : f32
    %312 = vector.broadcast %cst_73 : f32 to vector<1x16xf32>
    %313 = vector.broadcast %cst_74 : f32 to vector<1x16xf32>
    %314 = arith.select %311, %312, %313 : vector<1x16xi1>, vector<1x16xf32>
    %cst_75 = arith.constant dense<0xFF800000> : vector<8xf32>
    %315 = vector.multi_reduction <maximumf>, %99, %cst_75 [1] : vector<8x16xf32> to vector<8xf32>
    %316 = vector.shape_cast %315 : vector<8xf32> to vector<8x1xf32>
    %317 = vector.broadcast %314 : vector<1x16xf32> to vector<8x16xf32>
    %318 = vector.broadcast %316 : vector<8x1xf32> to vector<8x16xf32>
    %319 = arith.mulf %317, %318 : vector<8x16xf32>
    %320 = arith.addf %303, %319 : vector<8x16xf32>
    %cst_76 = arith.constant dense<0.000000e+00> : vector<8xf32>
    %321 = vector.multi_reduction <add>, %99, %cst_76 [1] : vector<8x16xf32> to vector<8xf32>
    %322 = vector.shape_cast %321 : vector<8xf32> to vector<8x1xf32>
    %323 = vector.broadcast %314 : vector<1x16xf32> to vector<8x16xf32>
    %324 = vector.broadcast %322 : vector<8x1xf32> to vector<8x16xf32>
    %325 = arith.mulf %323, %324 : vector<8x16xf32>
    %326 = arith.addf %309, %325 : vector<8x16xf32>
    %c11_i32 = arith.constant 11 : i32
    %327 = vector.broadcast %c11_i32 : i32 to vector<1x16xi32>
    %328 = arith.cmpi eq, %137, %327 : vector<1x16xi32>
    %cst_77 = arith.constant 1.000000e+00 : f32
    %cst_78 = arith.constant 0.000000e+00 : f32
    %329 = vector.broadcast %cst_77 : f32 to vector<1x16xf32>
    %330 = vector.broadcast %cst_78 : f32 to vector<1x16xf32>
    %331 = arith.select %328, %329, %330 : vector<1x16xi1>, vector<1x16xf32>
    %cst_79 = arith.constant dense<0xFF800000> : vector<8xf32>
    %332 = vector.multi_reduction <maximumf>, %100, %cst_79 [1] : vector<8x16xf32> to vector<8xf32>
    %333 = vector.shape_cast %332 : vector<8xf32> to vector<8x1xf32>
    %334 = vector.broadcast %331 : vector<1x16xf32> to vector<8x16xf32>
    %335 = vector.broadcast %333 : vector<8x1xf32> to vector<8x16xf32>
    %336 = arith.mulf %334, %335 : vector<8x16xf32>
    %337 = arith.addf %320, %336 : vector<8x16xf32>
    %cst_80 = arith.constant dense<0.000000e+00> : vector<8xf32>
    %338 = vector.multi_reduction <add>, %100, %cst_80 [1] : vector<8x16xf32> to vector<8xf32>
    %339 = vector.shape_cast %338 : vector<8xf32> to vector<8x1xf32>
    %340 = vector.broadcast %331 : vector<1x16xf32> to vector<8x16xf32>
    %341 = vector.broadcast %339 : vector<8x1xf32> to vector<8x16xf32>
    %342 = arith.mulf %340, %341 : vector<8x16xf32>
    %343 = arith.addf %326, %342 : vector<8x16xf32>
    %c12_i32 = arith.constant 12 : i32
    %344 = vector.broadcast %c12_i32 : i32 to vector<1x16xi32>
    %345 = arith.cmpi eq, %137, %344 : vector<1x16xi32>
    %cst_81 = arith.constant 1.000000e+00 : f32
    %cst_82 = arith.constant 0.000000e+00 : f32
    %346 = vector.broadcast %cst_81 : f32 to vector<1x16xf32>
    %347 = vector.broadcast %cst_82 : f32 to vector<1x16xf32>
    %348 = arith.select %345, %346, %347 : vector<1x16xi1>, vector<1x16xf32>
    %cst_83 = arith.constant dense<0xFF800000> : vector<8xf32>
    %349 = vector.multi_reduction <maximumf>, %101, %cst_83 [1] : vector<8x16xf32> to vector<8xf32>
    %350 = vector.shape_cast %349 : vector<8xf32> to vector<8x1xf32>
    %351 = vector.broadcast %348 : vector<1x16xf32> to vector<8x16xf32>
    %352 = vector.broadcast %350 : vector<8x1xf32> to vector<8x16xf32>
    %353 = arith.mulf %351, %352 : vector<8x16xf32>
    %354 = arith.addf %337, %353 : vector<8x16xf32>
    %cst_84 = arith.constant dense<0.000000e+00> : vector<8xf32>
    %355 = vector.multi_reduction <add>, %101, %cst_84 [1] : vector<8x16xf32> to vector<8xf32>
    %356 = vector.shape_cast %355 : vector<8xf32> to vector<8x1xf32>
    %357 = vector.broadcast %348 : vector<1x16xf32> to vector<8x16xf32>
    %358 = vector.broadcast %356 : vector<8x1xf32> to vector<8x16xf32>
    %359 = arith.mulf %357, %358 : vector<8x16xf32>
    %360 = arith.addf %343, %359 : vector<8x16xf32>
    %c13_i32 = arith.constant 13 : i32
    %361 = vector.broadcast %c13_i32 : i32 to vector<1x16xi32>
    %362 = arith.cmpi eq, %137, %361 : vector<1x16xi32>
    %cst_85 = arith.constant 1.000000e+00 : f32
    %cst_86 = arith.constant 0.000000e+00 : f32
    %363 = vector.broadcast %cst_85 : f32 to vector<1x16xf32>
    %364 = vector.broadcast %cst_86 : f32 to vector<1x16xf32>
    %365 = arith.select %362, %363, %364 : vector<1x16xi1>, vector<1x16xf32>
    %cst_87 = arith.constant dense<0xFF800000> : vector<8xf32>
    %366 = vector.multi_reduction <maximumf>, %102, %cst_87 [1] : vector<8x16xf32> to vector<8xf32>
    %367 = vector.shape_cast %366 : vector<8xf32> to vector<8x1xf32>
    %368 = vector.broadcast %365 : vector<1x16xf32> to vector<8x16xf32>
    %369 = vector.broadcast %367 : vector<8x1xf32> to vector<8x16xf32>
    %370 = arith.mulf %368, %369 : vector<8x16xf32>
    %371 = arith.addf %354, %370 : vector<8x16xf32>
    %cst_88 = arith.constant dense<0.000000e+00> : vector<8xf32>
    %372 = vector.multi_reduction <add>, %102, %cst_88 [1] : vector<8x16xf32> to vector<8xf32>
    %373 = vector.shape_cast %372 : vector<8xf32> to vector<8x1xf32>
    %374 = vector.broadcast %365 : vector<1x16xf32> to vector<8x16xf32>
    %375 = vector.broadcast %373 : vector<8x1xf32> to vector<8x16xf32>
    %376 = arith.mulf %374, %375 : vector<8x16xf32>
    %377 = arith.addf %360, %376 : vector<8x16xf32>
    %c14_i32 = arith.constant 14 : i32
    %378 = vector.broadcast %c14_i32 : i32 to vector<1x16xi32>
    %379 = arith.cmpi eq, %137, %378 : vector<1x16xi32>
    %cst_89 = arith.constant 1.000000e+00 : f32
    %cst_90 = arith.constant 0.000000e+00 : f32
    %380 = vector.broadcast %cst_89 : f32 to vector<1x16xf32>
    %381 = vector.broadcast %cst_90 : f32 to vector<1x16xf32>
    %382 = arith.select %379, %380, %381 : vector<1x16xi1>, vector<1x16xf32>
    %cst_91 = arith.constant dense<0xFF800000> : vector<8xf32>
    %383 = vector.multi_reduction <maximumf>, %103, %cst_91 [1] : vector<8x16xf32> to vector<8xf32>
    %384 = vector.shape_cast %383 : vector<8xf32> to vector<8x1xf32>
    %385 = vector.broadcast %382 : vector<1x16xf32> to vector<8x16xf32>
    %386 = vector.broadcast %384 : vector<8x1xf32> to vector<8x16xf32>
    %387 = arith.mulf %385, %386 : vector<8x16xf32>
    %388 = arith.addf %371, %387 : vector<8x16xf32>
    %cst_92 = arith.constant dense<0.000000e+00> : vector<8xf32>
    %389 = vector.multi_reduction <add>, %103, %cst_92 [1] : vector<8x16xf32> to vector<8xf32>
    %390 = vector.shape_cast %389 : vector<8xf32> to vector<8x1xf32>
    %391 = vector.broadcast %382 : vector<1x16xf32> to vector<8x16xf32>
    %392 = vector.broadcast %390 : vector<8x1xf32> to vector<8x16xf32>
    %393 = arith.mulf %391, %392 : vector<8x16xf32>
    %394 = arith.addf %377, %393 : vector<8x16xf32>
    %c15_i32 = arith.constant 15 : i32
    %395 = vector.broadcast %c15_i32 : i32 to vector<1x16xi32>
    %396 = arith.cmpi eq, %137, %395 : vector<1x16xi32>
    %cst_93 = arith.constant 1.000000e+00 : f32
    %cst_94 = arith.constant 0.000000e+00 : f32
    %397 = vector.broadcast %cst_93 : f32 to vector<1x16xf32>
    %398 = vector.broadcast %cst_94 : f32 to vector<1x16xf32>
    %399 = arith.select %396, %397, %398 : vector<1x16xi1>, vector<1x16xf32>
    %cst_95 = arith.constant dense<0xFF800000> : vector<8xf32>
    %400 = vector.multi_reduction <maximumf>, %104, %cst_95 [1] : vector<8x16xf32> to vector<8xf32>
    %401 = vector.shape_cast %400 : vector<8xf32> to vector<8x1xf32>
    %402 = vector.broadcast %399 : vector<1x16xf32> to vector<8x16xf32>
    %403 = vector.broadcast %401 : vector<8x1xf32> to vector<8x16xf32>
    %404 = arith.mulf %402, %403 : vector<8x16xf32>
    %405 = arith.addf %388, %404 : vector<8x16xf32>
    %cst_96 = arith.constant dense<0.000000e+00> : vector<8xf32>
    %406 = vector.multi_reduction <add>, %104, %cst_96 [1] : vector<8x16xf32> to vector<8xf32>
    %407 = vector.shape_cast %406 : vector<8xf32> to vector<8x1xf32>
    %408 = vector.broadcast %399 : vector<1x16xf32> to vector<8x16xf32>
    %409 = vector.broadcast %407 : vector<8x1xf32> to vector<8x16xf32>
    %410 = arith.mulf %408, %409 : vector<8x16xf32>
    %411 = arith.addf %394, %410 : vector<8x16xf32>
    %cst_97 = arith.constant 6.250000e-02 : f32
    %412 = vector.broadcast %cst_97 : f32 to vector<8x16xf32>
    %413 = arith.mulf %411, %412 : vector<8x16xf32>
    %cst_98 = arith.constant dense<0.000000e+00> : vector<8xf32>
    %414 = vector.multi_reduction <add>, %88, %cst_98 [1] : vector<8x256xf32> to vector<8xf32>
    %415 = vector.shape_cast %414 : vector<8xf32> to vector<8x1xf32>
    %cst_99 = arith.constant 3.906250e-03 : f32
    %416 = vector.broadcast %cst_99 : f32 to vector<8x1xf32>
    %417 = arith.mulf %415, %416 : vector<8x1xf32>
    %418 = vector.extract_strided_slice %405 {offsets = [0, 0], sizes = [4, 16], strides = [1, 1]} : vector<8x16xf32> to vector<4x16xf32>
    %cst_100 = arith.constant 0.000000e+00 : f32
    %419 = vector.broadcast %cst_100 : f32 to vector<3x16xf32>
    %cst_101 = arith.constant 0.000000e+00 : f32
    %420 = vector.broadcast %cst_101 : f32 to vector<3x16xf32>
    %421 = tpu.concatenate %419, %418, %420 in 0 : vector<3x16xf32>, vector<4x16xf32>, vector<3x16xf32> -> vector<10x16xf32>
    %cst_102 = arith.constant 0.000000e+00 : f32
    %422 = vector.broadcast %cst_102 : f32 to vector<10x3xf32>
    %cst_103 = arith.constant 0.000000e+00 : f32
    %423 = vector.broadcast %cst_103 : f32 to vector<10x3xf32>
    %424 = tpu.concatenate %422, %421, %423 in 1 : vector<10x3xf32>, vector<10x16xf32>, vector<10x3xf32> -> vector<10x22xf32>
    %425 = vector.extract_strided_slice %413 {offsets = [0, 0], sizes = [4, 16], strides = [1, 1]} : vector<8x16xf32> to vector<4x16xf32>
    %cst_104 = arith.constant 0.000000e+00 : f32
    %426 = vector.broadcast %cst_104 : f32 to vector<3x16xf32>
    %cst_105 = arith.constant 0.000000e+00 : f32
    %427 = vector.broadcast %cst_105 : f32 to vector<3x16xf32>
    %428 = tpu.concatenate %426, %425, %427 in 0 : vector<3x16xf32>, vector<4x16xf32>, vector<3x16xf32> -> vector<10x16xf32>
    %cst_106 = arith.constant 0.000000e+00 : f32
    %429 = vector.broadcast %cst_106 : f32 to vector<10x3xf32>
    %cst_107 = arith.constant 0.000000e+00 : f32
    %430 = vector.broadcast %cst_107 : f32 to vector<10x3xf32>
    %431 = tpu.concatenate %429, %428, %430 in 1 : vector<10x3xf32>, vector<10x16xf32>, vector<10x3xf32> -> vector<10x22xf32>
    %cst_108 = arith.constant 0.000000e+00 : f32
    %432 = vector.broadcast %cst_108 : f32 to vector<4x16xf32>
    %c0_109 = arith.constant 0 : index
    %433 = memref.load %arg7[%c0_109] : memref<98xf32, #tpu.memory_space<smem>>
    %434 = vector.extract_strided_slice %424 {offsets = [0, 0], sizes = [4, 16], strides = [1, 1]} : vector<10x22xf32> to vector<4x16xf32>
    %435 = vector.broadcast %433 : f32 to vector<4x16xf32>
    %436 = arith.mulf %435, %434 : vector<4x16xf32>
    %437 = arith.addf %432, %436 : vector<4x16xf32>
    %c1_110 = arith.constant 1 : index
    %438 = memref.load %arg7[%c1_110] : memref<98xf32, #tpu.memory_space<smem>>
    %439 = vector.extract_strided_slice %424 {offsets = [1, 0], sizes = [4, 16], strides = [1, 1]} : vector<10x22xf32> to vector<4x16xf32>
    %440 = vector.broadcast %438 : f32 to vector<4x16xf32>
    %441 = arith.mulf %440, %439 : vector<4x16xf32>
    %442 = arith.addf %437, %441 : vector<4x16xf32>
    %c2 = arith.constant 2 : index
    %443 = memref.load %arg7[%c2] : memref<98xf32, #tpu.memory_space<smem>>
    %444 = vector.extract_strided_slice %424 {offsets = [2, 0], sizes = [4, 16], strides = [1, 1]} : vector<10x22xf32> to vector<4x16xf32>
    %445 = vector.broadcast %443 : f32 to vector<4x16xf32>
    %446 = arith.mulf %445, %444 : vector<4x16xf32>
    %447 = arith.addf %442, %446 : vector<4x16xf32>
    %c3 = arith.constant 3 : index
    %448 = memref.load %arg7[%c3] : memref<98xf32, #tpu.memory_space<smem>>
    %449 = vector.extract_strided_slice %424 {offsets = [3, 0], sizes = [4, 16], strides = [1, 1]} : vector<10x22xf32> to vector<4x16xf32>
    %450 = vector.broadcast %448 : f32 to vector<4x16xf32>
    %451 = arith.mulf %450, %449 : vector<4x16xf32>
    %452 = arith.addf %447, %451 : vector<4x16xf32>
    %c4 = arith.constant 4 : index
    %453 = memref.load %arg7[%c4] : memref<98xf32, #tpu.memory_space<smem>>
    %454 = vector.extract_strided_slice %424 {offsets = [4, 0], sizes = [4, 16], strides = [1, 1]} : vector<10x22xf32> to vector<4x16xf32>
    %455 = vector.broadcast %453 : f32 to vector<4x16xf32>
    %456 = arith.mulf %455, %454 : vector<4x16xf32>
    %457 = arith.addf %452, %456 : vector<4x16xf32>
    %c5 = arith.constant 5 : index
    %458 = memref.load %arg7[%c5] : memref<98xf32, #tpu.memory_space<smem>>
    %459 = vector.extract_strided_slice %424 {offsets = [5, 0], sizes = [4, 16], strides = [1, 1]} : vector<10x22xf32> to vector<4x16xf32>
    %460 = vector.broadcast %458 : f32 to vector<4x16xf32>
    %461 = arith.mulf %460, %459 : vector<4x16xf32>
    %462 = arith.addf %457, %461 : vector<4x16xf32>
    %c6 = arith.constant 6 : index
    %463 = memref.load %arg7[%c6] : memref<98xf32, #tpu.memory_space<smem>>
    %464 = vector.extract_strided_slice %424 {offsets = [6, 0], sizes = [4, 16], strides = [1, 1]} : vector<10x22xf32> to vector<4x16xf32>
    %465 = vector.broadcast %463 : f32 to vector<4x16xf32>
    %466 = arith.mulf %465, %464 : vector<4x16xf32>
    %467 = arith.addf %462, %466 : vector<4x16xf32>
    %c7 = arith.constant 7 : index
    %468 = memref.load %arg7[%c7] : memref<98xf32, #tpu.memory_space<smem>>
    %469 = vector.extract_strided_slice %424 {offsets = [0, 1], sizes = [4, 16], strides = [1, 1]} : vector<10x22xf32> to vector<4x16xf32>
    %470 = vector.broadcast %468 : f32 to vector<4x16xf32>
    %471 = arith.mulf %470, %469 : vector<4x16xf32>
    %472 = arith.addf %467, %471 : vector<4x16xf32>
    %c8 = arith.constant 8 : index
    %473 = memref.load %arg7[%c8] : memref<98xf32, #tpu.memory_space<smem>>
    %474 = vector.extract_strided_slice %424 {offsets = [1, 1], sizes = [4, 16], strides = [1, 1]} : vector<10x22xf32> to vector<4x16xf32>
    %475 = vector.broadcast %473 : f32 to vector<4x16xf32>
    %476 = arith.mulf %475, %474 : vector<4x16xf32>
    %477 = arith.addf %472, %476 : vector<4x16xf32>
    %c9 = arith.constant 9 : index
    %478 = memref.load %arg7[%c9] : memref<98xf32, #tpu.memory_space<smem>>
    %479 = vector.extract_strided_slice %424 {offsets = [2, 1], sizes = [4, 16], strides = [1, 1]} : vector<10x22xf32> to vector<4x16xf32>
    %480 = vector.broadcast %478 : f32 to vector<4x16xf32>
    %481 = arith.mulf %480, %479 : vector<4x16xf32>
    %482 = arith.addf %477, %481 : vector<4x16xf32>
    %c10 = arith.constant 10 : index
    %483 = memref.load %arg7[%c10] : memref<98xf32, #tpu.memory_space<smem>>
    %484 = vector.extract_strided_slice %424 {offsets = [3, 1], sizes = [4, 16], strides = [1, 1]} : vector<10x22xf32> to vector<4x16xf32>
    %485 = vector.broadcast %483 : f32 to vector<4x16xf32>
    %486 = arith.mulf %485, %484 : vector<4x16xf32>
    %487 = arith.addf %482, %486 : vector<4x16xf32>
    %c11 = arith.constant 11 : index
    %488 = memref.load %arg7[%c11] : memref<98xf32, #tpu.memory_space<smem>>
    %489 = vector.extract_strided_slice %424 {offsets = [4, 1], sizes = [4, 16], strides = [1, 1]} : vector<10x22xf32> to vector<4x16xf32>
    %490 = vector.broadcast %488 : f32 to vector<4x16xf32>
    %491 = arith.mulf %490, %489 : vector<4x16xf32>
    %492 = arith.addf %487, %491 : vector<4x16xf32>
    %c12 = arith.constant 12 : index
    %493 = memref.load %arg7[%c12] : memref<98xf32, #tpu.memory_space<smem>>
    %494 = vector.extract_strided_slice %424 {offsets = [5, 1], sizes = [4, 16], strides = [1, 1]} : vector<10x22xf32> to vector<4x16xf32>
    %495 = vector.broadcast %493 : f32 to vector<4x16xf32>
    %496 = arith.mulf %495, %494 : vector<4x16xf32>
    %497 = arith.addf %492, %496 : vector<4x16xf32>
    %c13 = arith.constant 13 : index
    %498 = memref.load %arg7[%c13] : memref<98xf32, #tpu.memory_space<smem>>
    %499 = vector.extract_strided_slice %424 {offsets = [6, 1], sizes = [4, 16], strides = [1, 1]} : vector<10x22xf32> to vector<4x16xf32>
    %500 = vector.broadcast %498 : f32 to vector<4x16xf32>
    %501 = arith.mulf %500, %499 : vector<4x16xf32>
    %502 = arith.addf %497, %501 : vector<4x16xf32>
    %c14 = arith.constant 14 : index
    %503 = memref.load %arg7[%c14] : memref<98xf32, #tpu.memory_space<smem>>
    %504 = vector.extract_strided_slice %424 {offsets = [0, 2], sizes = [4, 16], strides = [1, 1]} : vector<10x22xf32> to vector<4x16xf32>
    %505 = vector.broadcast %503 : f32 to vector<4x16xf32>
    %506 = arith.mulf %505, %504 : vector<4x16xf32>
    %507 = arith.addf %502, %506 : vector<4x16xf32>
    %c15 = arith.constant 15 : index
    %508 = memref.load %arg7[%c15] : memref<98xf32, #tpu.memory_space<smem>>
    %509 = vector.extract_strided_slice %424 {offsets = [1, 2], sizes = [4, 16], strides = [1, 1]} : vector<10x22xf32> to vector<4x16xf32>
    %510 = vector.broadcast %508 : f32 to vector<4x16xf32>
    %511 = arith.mulf %510, %509 : vector<4x16xf32>
    %512 = arith.addf %507, %511 : vector<4x16xf32>
    %c16 = arith.constant 16 : index
    %513 = memref.load %arg7[%c16] : memref<98xf32, #tpu.memory_space<smem>>
    %514 = vector.extract_strided_slice %424 {offsets = [2, 2], sizes = [4, 16], strides = [1, 1]} : vector<10x22xf32> to vector<4x16xf32>
    %515 = vector.broadcast %513 : f32 to vector<4x16xf32>
    %516 = arith.mulf %515, %514 : vector<4x16xf32>
    %517 = arith.addf %512, %516 : vector<4x16xf32>
    %c17 = arith.constant 17 : index
    %518 = memref.load %arg7[%c17] : memref<98xf32, #tpu.memory_space<smem>>
    %519 = vector.extract_strided_slice %424 {offsets = [3, 2], sizes = [4, 16], strides = [1, 1]} : vector<10x22xf32> to vector<4x16xf32>
    %520 = vector.broadcast %518 : f32 to vector<4x16xf32>
    %521 = arith.mulf %520, %519 : vector<4x16xf32>
    %522 = arith.addf %517, %521 : vector<4x16xf32>
    %c18 = arith.constant 18 : index
    %523 = memref.load %arg7[%c18] : memref<98xf32, #tpu.memory_space<smem>>
    %524 = vector.extract_strided_slice %424 {offsets = [4, 2], sizes = [4, 16], strides = [1, 1]} : vector<10x22xf32> to vector<4x16xf32>
    %525 = vector.broadcast %523 : f32 to vector<4x16xf32>
    %526 = arith.mulf %525, %524 : vector<4x16xf32>
    %527 = arith.addf %522, %526 : vector<4x16xf32>
    %c19 = arith.constant 19 : index
    %528 = memref.load %arg7[%c19] : memref<98xf32, #tpu.memory_space<smem>>
    %529 = vector.extract_strided_slice %424 {offsets = [5, 2], sizes = [4, 16], strides = [1, 1]} : vector<10x22xf32> to vector<4x16xf32>
    %530 = vector.broadcast %528 : f32 to vector<4x16xf32>
    %531 = arith.mulf %530, %529 : vector<4x16xf32>
    %532 = arith.addf %527, %531 : vector<4x16xf32>
    %c20 = arith.constant 20 : index
    %533 = memref.load %arg7[%c20] : memref<98xf32, #tpu.memory_space<smem>>
    %534 = vector.extract_strided_slice %424 {offsets = [6, 2], sizes = [4, 16], strides = [1, 1]} : vector<10x22xf32> to vector<4x16xf32>
    %535 = vector.broadcast %533 : f32 to vector<4x16xf32>
    %536 = arith.mulf %535, %534 : vector<4x16xf32>
    %537 = arith.addf %532, %536 : vector<4x16xf32>
    %c21 = arith.constant 21 : index
    %538 = memref.load %arg7[%c21] : memref<98xf32, #tpu.memory_space<smem>>
    %539 = vector.extract_strided_slice %424 {offsets = [0, 3], sizes = [4, 16], strides = [1, 1]} : vector<10x22xf32> to vector<4x16xf32>
    %540 = vector.broadcast %538 : f32 to vector<4x16xf32>
    %541 = arith.mulf %540, %539 : vector<4x16xf32>
    %542 = arith.addf %537, %541 : vector<4x16xf32>
    %c22 = arith.constant 22 : index
    %543 = memref.load %arg7[%c22] : memref<98xf32, #tpu.memory_space<smem>>
    %544 = vector.extract_strided_slice %424 {offsets = [1, 3], sizes = [4, 16], strides = [1, 1]} : vector<10x22xf32> to vector<4x16xf32>
    %545 = vector.broadcast %543 : f32 to vector<4x16xf32>
    %546 = arith.mulf %545, %544 : vector<4x16xf32>
    %547 = arith.addf %542, %546 : vector<4x16xf32>
    %c23 = arith.constant 23 : index
    %548 = memref.load %arg7[%c23] : memref<98xf32, #tpu.memory_space<smem>>
    %549 = vector.extract_strided_slice %424 {offsets = [2, 3], sizes = [4, 16], strides = [1, 1]} : vector<10x22xf32> to vector<4x16xf32>
    %550 = vector.broadcast %548 : f32 to vector<4x16xf32>
    %551 = arith.mulf %550, %549 : vector<4x16xf32>
    %552 = arith.addf %547, %551 : vector<4x16xf32>
    %c24 = arith.constant 24 : index
    %553 = memref.load %arg7[%c24] : memref<98xf32, #tpu.memory_space<smem>>
    %554 = vector.extract_strided_slice %424 {offsets = [3, 3], sizes = [4, 16], strides = [1, 1]} : vector<10x22xf32> to vector<4x16xf32>
    %555 = vector.broadcast %553 : f32 to vector<4x16xf32>
    %556 = arith.mulf %555, %554 : vector<4x16xf32>
    %557 = arith.addf %552, %556 : vector<4x16xf32>
    %c25 = arith.constant 25 : index
    %558 = memref.load %arg7[%c25] : memref<98xf32, #tpu.memory_space<smem>>
    %559 = vector.extract_strided_slice %424 {offsets = [4, 3], sizes = [4, 16], strides = [1, 1]} : vector<10x22xf32> to vector<4x16xf32>
    %560 = vector.broadcast %558 : f32 to vector<4x16xf32>
    %561 = arith.mulf %560, %559 : vector<4x16xf32>
    %562 = arith.addf %557, %561 : vector<4x16xf32>
    %c26 = arith.constant 26 : index
    %563 = memref.load %arg7[%c26] : memref<98xf32, #tpu.memory_space<smem>>
    %564 = vector.extract_strided_slice %424 {offsets = [5, 3], sizes = [4, 16], strides = [1, 1]} : vector<10x22xf32> to vector<4x16xf32>
    %565 = vector.broadcast %563 : f32 to vector<4x16xf32>
    %566 = arith.mulf %565, %564 : vector<4x16xf32>
    %567 = arith.addf %562, %566 : vector<4x16xf32>
    %c27 = arith.constant 27 : index
    %568 = memref.load %arg7[%c27] : memref<98xf32, #tpu.memory_space<smem>>
    %569 = vector.extract_strided_slice %424 {offsets = [6, 3], sizes = [4, 16], strides = [1, 1]} : vector<10x22xf32> to vector<4x16xf32>
    %570 = vector.broadcast %568 : f32 to vector<4x16xf32>
    %571 = arith.mulf %570, %569 : vector<4x16xf32>
    %572 = arith.addf %567, %571 : vector<4x16xf32>
    %c28 = arith.constant 28 : index
    %573 = memref.load %arg7[%c28] : memref<98xf32, #tpu.memory_space<smem>>
    %574 = vector.extract_strided_slice %424 {offsets = [0, 4], sizes = [4, 16], strides = [1, 1]} : vector<10x22xf32> to vector<4x16xf32>
    %575 = vector.broadcast %573 : f32 to vector<4x16xf32>
    %576 = arith.mulf %575, %574 : vector<4x16xf32>
    %577 = arith.addf %572, %576 : vector<4x16xf32>
    %c29 = arith.constant 29 : index
    %578 = memref.load %arg7[%c29] : memref<98xf32, #tpu.memory_space<smem>>
    %579 = vector.extract_strided_slice %424 {offsets = [1, 4], sizes = [4, 16], strides = [1, 1]} : vector<10x22xf32> to vector<4x16xf32>
    %580 = vector.broadcast %578 : f32 to vector<4x16xf32>
    %581 = arith.mulf %580, %579 : vector<4x16xf32>
    %582 = arith.addf %577, %581 : vector<4x16xf32>
    %c30 = arith.constant 30 : index
    %583 = memref.load %arg7[%c30] : memref<98xf32, #tpu.memory_space<smem>>
    %584 = vector.extract_strided_slice %424 {offsets = [2, 4], sizes = [4, 16], strides = [1, 1]} : vector<10x22xf32> to vector<4x16xf32>
    %585 = vector.broadcast %583 : f32 to vector<4x16xf32>
    %586 = arith.mulf %585, %584 : vector<4x16xf32>
    %587 = arith.addf %582, %586 : vector<4x16xf32>
    %c31 = arith.constant 31 : index
    %588 = memref.load %arg7[%c31] : memref<98xf32, #tpu.memory_space<smem>>
    %589 = vector.extract_strided_slice %424 {offsets = [3, 4], sizes = [4, 16], strides = [1, 1]} : vector<10x22xf32> to vector<4x16xf32>
    %590 = vector.broadcast %588 : f32 to vector<4x16xf32>
    %591 = arith.mulf %590, %589 : vector<4x16xf32>
    %592 = arith.addf %587, %591 : vector<4x16xf32>
    %c32 = arith.constant 32 : index
    %593 = memref.load %arg7[%c32] : memref<98xf32, #tpu.memory_space<smem>>
    %594 = vector.extract_strided_slice %424 {offsets = [4, 4], sizes = [4, 16], strides = [1, 1]} : vector<10x22xf32> to vector<4x16xf32>
    %595 = vector.broadcast %593 : f32 to vector<4x16xf32>
    %596 = arith.mulf %595, %594 : vector<4x16xf32>
    %597 = arith.addf %592, %596 : vector<4x16xf32>
    %c33 = arith.constant 33 : index
    %598 = memref.load %arg7[%c33] : memref<98xf32, #tpu.memory_space<smem>>
    %599 = vector.extract_strided_slice %424 {offsets = [5, 4], sizes = [4, 16], strides = [1, 1]} : vector<10x22xf32> to vector<4x16xf32>
    %600 = vector.broadcast %598 : f32 to vector<4x16xf32>
    %601 = arith.mulf %600, %599 : vector<4x16xf32>
    %602 = arith.addf %597, %601 : vector<4x16xf32>
    %c34 = arith.constant 34 : index
    %603 = memref.load %arg7[%c34] : memref<98xf32, #tpu.memory_space<smem>>
    %604 = vector.extract_strided_slice %424 {offsets = [6, 4], sizes = [4, 16], strides = [1, 1]} : vector<10x22xf32> to vector<4x16xf32>
    %605 = vector.broadcast %603 : f32 to vector<4x16xf32>
    %606 = arith.mulf %605, %604 : vector<4x16xf32>
    %607 = arith.addf %602, %606 : vector<4x16xf32>
    %c35 = arith.constant 35 : index
    %608 = memref.load %arg7[%c35] : memref<98xf32, #tpu.memory_space<smem>>
    %609 = vector.extract_strided_slice %424 {offsets = [0, 5], sizes = [4, 16], strides = [1, 1]} : vector<10x22xf32> to vector<4x16xf32>
    %610 = vector.broadcast %608 : f32 to vector<4x16xf32>
    %611 = arith.mulf %610, %609 : vector<4x16xf32>
    %612 = arith.addf %607, %611 : vector<4x16xf32>
    %c36 = arith.constant 36 : index
    %613 = memref.load %arg7[%c36] : memref<98xf32, #tpu.memory_space<smem>>
    %614 = vector.extract_strided_slice %424 {offsets = [1, 5], sizes = [4, 16], strides = [1, 1]} : vector<10x22xf32> to vector<4x16xf32>
    %615 = vector.broadcast %613 : f32 to vector<4x16xf32>
    %616 = arith.mulf %615, %614 : vector<4x16xf32>
    %617 = arith.addf %612, %616 : vector<4x16xf32>
    %c37 = arith.constant 37 : index
    %618 = memref.load %arg7[%c37] : memref<98xf32, #tpu.memory_space<smem>>
    %619 = vector.extract_strided_slice %424 {offsets = [2, 5], sizes = [4, 16], strides = [1, 1]} : vector<10x22xf32> to vector<4x16xf32>
    %620 = vector.broadcast %618 : f32 to vector<4x16xf32>
    %621 = arith.mulf %620, %619 : vector<4x16xf32>
    %622 = arith.addf %617, %621 : vector<4x16xf32>
    %c38 = arith.constant 38 : index
    %623 = memref.load %arg7[%c38] : memref<98xf32, #tpu.memory_space<smem>>
    %624 = vector.extract_strided_slice %424 {offsets = [3, 5], sizes = [4, 16], strides = [1, 1]} : vector<10x22xf32> to vector<4x16xf32>
    %625 = vector.broadcast %623 : f32 to vector<4x16xf32>
    %626 = arith.mulf %625, %624 : vector<4x16xf32>
    %627 = arith.addf %622, %626 : vector<4x16xf32>
    %c39 = arith.constant 39 : index
    %628 = memref.load %arg7[%c39] : memref<98xf32, #tpu.memory_space<smem>>
    %629 = vector.extract_strided_slice %424 {offsets = [4, 5], sizes = [4, 16], strides = [1, 1]} : vector<10x22xf32> to vector<4x16xf32>
    %630 = vector.broadcast %628 : f32 to vector<4x16xf32>
    %631 = arith.mulf %630, %629 : vector<4x16xf32>
    %632 = arith.addf %627, %631 : vector<4x16xf32>
    %c40 = arith.constant 40 : index
    %633 = memref.load %arg7[%c40] : memref<98xf32, #tpu.memory_space<smem>>
    %634 = vector.extract_strided_slice %424 {offsets = [5, 5], sizes = [4, 16], strides = [1, 1]} : vector<10x22xf32> to vector<4x16xf32>
    %635 = vector.broadcast %633 : f32 to vector<4x16xf32>
    %636 = arith.mulf %635, %634 : vector<4x16xf32>
    %637 = arith.addf %632, %636 : vector<4x16xf32>
    %c41 = arith.constant 41 : index
    %638 = memref.load %arg7[%c41] : memref<98xf32, #tpu.memory_space<smem>>
    %639 = vector.extract_strided_slice %424 {offsets = [6, 5], sizes = [4, 16], strides = [1, 1]} : vector<10x22xf32> to vector<4x16xf32>
    %640 = vector.broadcast %638 : f32 to vector<4x16xf32>
    %641 = arith.mulf %640, %639 : vector<4x16xf32>
    %642 = arith.addf %637, %641 : vector<4x16xf32>
    %c42 = arith.constant 42 : index
    %643 = memref.load %arg7[%c42] : memref<98xf32, #tpu.memory_space<smem>>
    %644 = vector.extract_strided_slice %424 {offsets = [0, 6], sizes = [4, 16], strides = [1, 1]} : vector<10x22xf32> to vector<4x16xf32>
    %645 = vector.broadcast %643 : f32 to vector<4x16xf32>
    %646 = arith.mulf %645, %644 : vector<4x16xf32>
    %647 = arith.addf %642, %646 : vector<4x16xf32>
    %c43 = arith.constant 43 : index
    %648 = memref.load %arg7[%c43] : memref<98xf32, #tpu.memory_space<smem>>
    %649 = vector.extract_strided_slice %424 {offsets = [1, 6], sizes = [4, 16], strides = [1, 1]} : vector<10x22xf32> to vector<4x16xf32>
    %650 = vector.broadcast %648 : f32 to vector<4x16xf32>
    %651 = arith.mulf %650, %649 : vector<4x16xf32>
    %652 = arith.addf %647, %651 : vector<4x16xf32>
    %c44 = arith.constant 44 : index
    %653 = memref.load %arg7[%c44] : memref<98xf32, #tpu.memory_space<smem>>
    %654 = vector.extract_strided_slice %424 {offsets = [2, 6], sizes = [4, 16], strides = [1, 1]} : vector<10x22xf32> to vector<4x16xf32>
    %655 = vector.broadcast %653 : f32 to vector<4x16xf32>
    %656 = arith.mulf %655, %654 : vector<4x16xf32>
    %657 = arith.addf %652, %656 : vector<4x16xf32>
    %c45 = arith.constant 45 : index
    %658 = memref.load %arg7[%c45] : memref<98xf32, #tpu.memory_space<smem>>
    %659 = vector.extract_strided_slice %424 {offsets = [3, 6], sizes = [4, 16], strides = [1, 1]} : vector<10x22xf32> to vector<4x16xf32>
    %660 = vector.broadcast %658 : f32 to vector<4x16xf32>
    %661 = arith.mulf %660, %659 : vector<4x16xf32>
    %662 = arith.addf %657, %661 : vector<4x16xf32>
    %c46 = arith.constant 46 : index
    %663 = memref.load %arg7[%c46] : memref<98xf32, #tpu.memory_space<smem>>
    %664 = vector.extract_strided_slice %424 {offsets = [4, 6], sizes = [4, 16], strides = [1, 1]} : vector<10x22xf32> to vector<4x16xf32>
    %665 = vector.broadcast %663 : f32 to vector<4x16xf32>
    %666 = arith.mulf %665, %664 : vector<4x16xf32>
    %667 = arith.addf %662, %666 : vector<4x16xf32>
    %c47 = arith.constant 47 : index
    %668 = memref.load %arg7[%c47] : memref<98xf32, #tpu.memory_space<smem>>
    %669 = vector.extract_strided_slice %424 {offsets = [5, 6], sizes = [4, 16], strides = [1, 1]} : vector<10x22xf32> to vector<4x16xf32>
    %670 = vector.broadcast %668 : f32 to vector<4x16xf32>
    %671 = arith.mulf %670, %669 : vector<4x16xf32>
    %672 = arith.addf %667, %671 : vector<4x16xf32>
    %c48 = arith.constant 48 : index
    %673 = memref.load %arg7[%c48] : memref<98xf32, #tpu.memory_space<smem>>
    %674 = vector.extract_strided_slice %424 {offsets = [6, 6], sizes = [4, 16], strides = [1, 1]} : vector<10x22xf32> to vector<4x16xf32>
    %675 = vector.broadcast %673 : f32 to vector<4x16xf32>
    %676 = arith.mulf %675, %674 : vector<4x16xf32>
    %677 = arith.addf %672, %676 : vector<4x16xf32>
    %c49 = arith.constant 49 : index
    %678 = memref.load %arg7[%c49] : memref<98xf32, #tpu.memory_space<smem>>
    %679 = vector.extract_strided_slice %431 {offsets = [0, 0], sizes = [4, 16], strides = [1, 1]} : vector<10x22xf32> to vector<4x16xf32>
    %680 = vector.broadcast %678 : f32 to vector<4x16xf32>
    %681 = arith.mulf %680, %679 : vector<4x16xf32>
    %682 = arith.addf %677, %681 : vector<4x16xf32>
    %c50 = arith.constant 50 : index
    %683 = memref.load %arg7[%c50] : memref<98xf32, #tpu.memory_space<smem>>
    %684 = vector.extract_strided_slice %431 {offsets = [1, 0], sizes = [4, 16], strides = [1, 1]} : vector<10x22xf32> to vector<4x16xf32>
    %685 = vector.broadcast %683 : f32 to vector<4x16xf32>
    %686 = arith.mulf %685, %684 : vector<4x16xf32>
    %687 = arith.addf %682, %686 : vector<4x16xf32>
    %c51 = arith.constant 51 : index
    %688 = memref.load %arg7[%c51] : memref<98xf32, #tpu.memory_space<smem>>
    %689 = vector.extract_strided_slice %431 {offsets = [2, 0], sizes = [4, 16], strides = [1, 1]} : vector<10x22xf32> to vector<4x16xf32>
    %690 = vector.broadcast %688 : f32 to vector<4x16xf32>
    %691 = arith.mulf %690, %689 : vector<4x16xf32>
    %692 = arith.addf %687, %691 : vector<4x16xf32>
    %c52 = arith.constant 52 : index
    %693 = memref.load %arg7[%c52] : memref<98xf32, #tpu.memory_space<smem>>
    %694 = vector.extract_strided_slice %431 {offsets = [3, 0], sizes = [4, 16], strides = [1, 1]} : vector<10x22xf32> to vector<4x16xf32>
    %695 = vector.broadcast %693 : f32 to vector<4x16xf32>
    %696 = arith.mulf %695, %694 : vector<4x16xf32>
    %697 = arith.addf %692, %696 : vector<4x16xf32>
    %c53 = arith.constant 53 : index
    %698 = memref.load %arg7[%c53] : memref<98xf32, #tpu.memory_space<smem>>
    %699 = vector.extract_strided_slice %431 {offsets = [4, 0], sizes = [4, 16], strides = [1, 1]} : vector<10x22xf32> to vector<4x16xf32>
    %700 = vector.broadcast %698 : f32 to vector<4x16xf32>
    %701 = arith.mulf %700, %699 : vector<4x16xf32>
    %702 = arith.addf %697, %701 : vector<4x16xf32>
    %c54 = arith.constant 54 : index
    %703 = memref.load %arg7[%c54] : memref<98xf32, #tpu.memory_space<smem>>
    %704 = vector.extract_strided_slice %431 {offsets = [5, 0], sizes = [4, 16], strides = [1, 1]} : vector<10x22xf32> to vector<4x16xf32>
    %705 = vector.broadcast %703 : f32 to vector<4x16xf32>
    %706 = arith.mulf %705, %704 : vector<4x16xf32>
    %707 = arith.addf %702, %706 : vector<4x16xf32>
    %c55 = arith.constant 55 : index
    %708 = memref.load %arg7[%c55] : memref<98xf32, #tpu.memory_space<smem>>
    %709 = vector.extract_strided_slice %431 {offsets = [6, 0], sizes = [4, 16], strides = [1, 1]} : vector<10x22xf32> to vector<4x16xf32>
    %710 = vector.broadcast %708 : f32 to vector<4x16xf32>
    %711 = arith.mulf %710, %709 : vector<4x16xf32>
    %712 = arith.addf %707, %711 : vector<4x16xf32>
    %c56 = arith.constant 56 : index
    %713 = memref.load %arg7[%c56] : memref<98xf32, #tpu.memory_space<smem>>
    %714 = vector.extract_strided_slice %431 {offsets = [0, 1], sizes = [4, 16], strides = [1, 1]} : vector<10x22xf32> to vector<4x16xf32>
    %715 = vector.broadcast %713 : f32 to vector<4x16xf32>
    %716 = arith.mulf %715, %714 : vector<4x16xf32>
    %717 = arith.addf %712, %716 : vector<4x16xf32>
    %c57 = arith.constant 57 : index
    %718 = memref.load %arg7[%c57] : memref<98xf32, #tpu.memory_space<smem>>
    %719 = vector.extract_strided_slice %431 {offsets = [1, 1], sizes = [4, 16], strides = [1, 1]} : vector<10x22xf32> to vector<4x16xf32>
    %720 = vector.broadcast %718 : f32 to vector<4x16xf32>
    %721 = arith.mulf %720, %719 : vector<4x16xf32>
    %722 = arith.addf %717, %721 : vector<4x16xf32>
    %c58 = arith.constant 58 : index
    %723 = memref.load %arg7[%c58] : memref<98xf32, #tpu.memory_space<smem>>
    %724 = vector.extract_strided_slice %431 {offsets = [2, 1], sizes = [4, 16], strides = [1, 1]} : vector<10x22xf32> to vector<4x16xf32>
    %725 = vector.broadcast %723 : f32 to vector<4x16xf32>
    %726 = arith.mulf %725, %724 : vector<4x16xf32>
    %727 = arith.addf %722, %726 : vector<4x16xf32>
    %c59 = arith.constant 59 : index
    %728 = memref.load %arg7[%c59] : memref<98xf32, #tpu.memory_space<smem>>
    %729 = vector.extract_strided_slice %431 {offsets = [3, 1], sizes = [4, 16], strides = [1, 1]} : vector<10x22xf32> to vector<4x16xf32>
    %730 = vector.broadcast %728 : f32 to vector<4x16xf32>
    %731 = arith.mulf %730, %729 : vector<4x16xf32>
    %732 = arith.addf %727, %731 : vector<4x16xf32>
    %c60 = arith.constant 60 : index
    %733 = memref.load %arg7[%c60] : memref<98xf32, #tpu.memory_space<smem>>
    %734 = vector.extract_strided_slice %431 {offsets = [4, 1], sizes = [4, 16], strides = [1, 1]} : vector<10x22xf32> to vector<4x16xf32>
    %735 = vector.broadcast %733 : f32 to vector<4x16xf32>
    %736 = arith.mulf %735, %734 : vector<4x16xf32>
    %737 = arith.addf %732, %736 : vector<4x16xf32>
    %c61 = arith.constant 61 : index
    %738 = memref.load %arg7[%c61] : memref<98xf32, #tpu.memory_space<smem>>
    %739 = vector.extract_strided_slice %431 {offsets = [5, 1], sizes = [4, 16], strides = [1, 1]} : vector<10x22xf32> to vector<4x16xf32>
    %740 = vector.broadcast %738 : f32 to vector<4x16xf32>
    %741 = arith.mulf %740, %739 : vector<4x16xf32>
    %742 = arith.addf %737, %741 : vector<4x16xf32>
    %c62 = arith.constant 62 : index
    %743 = memref.load %arg7[%c62] : memref<98xf32, #tpu.memory_space<smem>>
    %744 = vector.extract_strided_slice %431 {offsets = [6, 1], sizes = [4, 16], strides = [1, 1]} : vector<10x22xf32> to vector<4x16xf32>
    %745 = vector.broadcast %743 : f32 to vector<4x16xf32>
    %746 = arith.mulf %745, %744 : vector<4x16xf32>
    %747 = arith.addf %742, %746 : vector<4x16xf32>
    %c63 = arith.constant 63 : index
    %748 = memref.load %arg7[%c63] : memref<98xf32, #tpu.memory_space<smem>>
    %749 = vector.extract_strided_slice %431 {offsets = [0, 2], sizes = [4, 16], strides = [1, 1]} : vector<10x22xf32> to vector<4x16xf32>
    %750 = vector.broadcast %748 : f32 to vector<4x16xf32>
    %751 = arith.mulf %750, %749 : vector<4x16xf32>
    %752 = arith.addf %747, %751 : vector<4x16xf32>
    %c64 = arith.constant 64 : index
    %753 = memref.load %arg7[%c64] : memref<98xf32, #tpu.memory_space<smem>>
    %754 = vector.extract_strided_slice %431 {offsets = [1, 2], sizes = [4, 16], strides = [1, 1]} : vector<10x22xf32> to vector<4x16xf32>
    %755 = vector.broadcast %753 : f32 to vector<4x16xf32>
    %756 = arith.mulf %755, %754 : vector<4x16xf32>
    %757 = arith.addf %752, %756 : vector<4x16xf32>
    %c65 = arith.constant 65 : index
    %758 = memref.load %arg7[%c65] : memref<98xf32, #tpu.memory_space<smem>>
    %759 = vector.extract_strided_slice %431 {offsets = [2, 2], sizes = [4, 16], strides = [1, 1]} : vector<10x22xf32> to vector<4x16xf32>
    %760 = vector.broadcast %758 : f32 to vector<4x16xf32>
    %761 = arith.mulf %760, %759 : vector<4x16xf32>
    %762 = arith.addf %757, %761 : vector<4x16xf32>
    %c66 = arith.constant 66 : index
    %763 = memref.load %arg7[%c66] : memref<98xf32, #tpu.memory_space<smem>>
    %764 = vector.extract_strided_slice %431 {offsets = [3, 2], sizes = [4, 16], strides = [1, 1]} : vector<10x22xf32> to vector<4x16xf32>
    %765 = vector.broadcast %763 : f32 to vector<4x16xf32>
    %766 = arith.mulf %765, %764 : vector<4x16xf32>
    %767 = arith.addf %762, %766 : vector<4x16xf32>
    %c67 = arith.constant 67 : index
    %768 = memref.load %arg7[%c67] : memref<98xf32, #tpu.memory_space<smem>>
    %769 = vector.extract_strided_slice %431 {offsets = [4, 2], sizes = [4, 16], strides = [1, 1]} : vector<10x22xf32> to vector<4x16xf32>
    %770 = vector.broadcast %768 : f32 to vector<4x16xf32>
    %771 = arith.mulf %770, %769 : vector<4x16xf32>
    %772 = arith.addf %767, %771 : vector<4x16xf32>
    %c68 = arith.constant 68 : index
    %773 = memref.load %arg7[%c68] : memref<98xf32, #tpu.memory_space<smem>>
    %774 = vector.extract_strided_slice %431 {offsets = [5, 2], sizes = [4, 16], strides = [1, 1]} : vector<10x22xf32> to vector<4x16xf32>
    %775 = vector.broadcast %773 : f32 to vector<4x16xf32>
    %776 = arith.mulf %775, %774 : vector<4x16xf32>
    %777 = arith.addf %772, %776 : vector<4x16xf32>
    %c69 = arith.constant 69 : index
    %778 = memref.load %arg7[%c69] : memref<98xf32, #tpu.memory_space<smem>>
    %779 = vector.extract_strided_slice %431 {offsets = [6, 2], sizes = [4, 16], strides = [1, 1]} : vector<10x22xf32> to vector<4x16xf32>
    %780 = vector.broadcast %778 : f32 to vector<4x16xf32>
    %781 = arith.mulf %780, %779 : vector<4x16xf32>
    %782 = arith.addf %777, %781 : vector<4x16xf32>
    %c70 = arith.constant 70 : index
    %783 = memref.load %arg7[%c70] : memref<98xf32, #tpu.memory_space<smem>>
    %784 = vector.extract_strided_slice %431 {offsets = [0, 3], sizes = [4, 16], strides = [1, 1]} : vector<10x22xf32> to vector<4x16xf32>
    %785 = vector.broadcast %783 : f32 to vector<4x16xf32>
    %786 = arith.mulf %785, %784 : vector<4x16xf32>
    %787 = arith.addf %782, %786 : vector<4x16xf32>
    %c71 = arith.constant 71 : index
    %788 = memref.load %arg7[%c71] : memref<98xf32, #tpu.memory_space<smem>>
    %789 = vector.extract_strided_slice %431 {offsets = [1, 3], sizes = [4, 16], strides = [1, 1]} : vector<10x22xf32> to vector<4x16xf32>
    %790 = vector.broadcast %788 : f32 to vector<4x16xf32>
    %791 = arith.mulf %790, %789 : vector<4x16xf32>
    %792 = arith.addf %787, %791 : vector<4x16xf32>
    %c72 = arith.constant 72 : index
    %793 = memref.load %arg7[%c72] : memref<98xf32, #tpu.memory_space<smem>>
    %794 = vector.extract_strided_slice %431 {offsets = [2, 3], sizes = [4, 16], strides = [1, 1]} : vector<10x22xf32> to vector<4x16xf32>
    %795 = vector.broadcast %793 : f32 to vector<4x16xf32>
    %796 = arith.mulf %795, %794 : vector<4x16xf32>
    %797 = arith.addf %792, %796 : vector<4x16xf32>
    %c73 = arith.constant 73 : index
    %798 = memref.load %arg7[%c73] : memref<98xf32, #tpu.memory_space<smem>>
    %799 = vector.extract_strided_slice %431 {offsets = [3, 3], sizes = [4, 16], strides = [1, 1]} : vector<10x22xf32> to vector<4x16xf32>
    %800 = vector.broadcast %798 : f32 to vector<4x16xf32>
    %801 = arith.mulf %800, %799 : vector<4x16xf32>
    %802 = arith.addf %797, %801 : vector<4x16xf32>
    %c74 = arith.constant 74 : index
    %803 = memref.load %arg7[%c74] : memref<98xf32, #tpu.memory_space<smem>>
    %804 = vector.extract_strided_slice %431 {offsets = [4, 3], sizes = [4, 16], strides = [1, 1]} : vector<10x22xf32> to vector<4x16xf32>
    %805 = vector.broadcast %803 : f32 to vector<4x16xf32>
    %806 = arith.mulf %805, %804 : vector<4x16xf32>
    %807 = arith.addf %802, %806 : vector<4x16xf32>
    %c75 = arith.constant 75 : index
    %808 = memref.load %arg7[%c75] : memref<98xf32, #tpu.memory_space<smem>>
    %809 = vector.extract_strided_slice %431 {offsets = [5, 3], sizes = [4, 16], strides = [1, 1]} : vector<10x22xf32> to vector<4x16xf32>
    %810 = vector.broadcast %808 : f32 to vector<4x16xf32>
    %811 = arith.mulf %810, %809 : vector<4x16xf32>
    %812 = arith.addf %807, %811 : vector<4x16xf32>
    %c76 = arith.constant 76 : index
    %813 = memref.load %arg7[%c76] : memref<98xf32, #tpu.memory_space<smem>>
    %814 = vector.extract_strided_slice %431 {offsets = [6, 3], sizes = [4, 16], strides = [1, 1]} : vector<10x22xf32> to vector<4x16xf32>
    %815 = vector.broadcast %813 : f32 to vector<4x16xf32>
    %816 = arith.mulf %815, %814 : vector<4x16xf32>
    %817 = arith.addf %812, %816 : vector<4x16xf32>
    %c77 = arith.constant 77 : index
    %818 = memref.load %arg7[%c77] : memref<98xf32, #tpu.memory_space<smem>>
    %819 = vector.extract_strided_slice %431 {offsets = [0, 4], sizes = [4, 16], strides = [1, 1]} : vector<10x22xf32> to vector<4x16xf32>
    %820 = vector.broadcast %818 : f32 to vector<4x16xf32>
    %821 = arith.mulf %820, %819 : vector<4x16xf32>
    %822 = arith.addf %817, %821 : vector<4x16xf32>
    %c78 = arith.constant 78 : index
    %823 = memref.load %arg7[%c78] : memref<98xf32, #tpu.memory_space<smem>>
    %824 = vector.extract_strided_slice %431 {offsets = [1, 4], sizes = [4, 16], strides = [1, 1]} : vector<10x22xf32> to vector<4x16xf32>
    %825 = vector.broadcast %823 : f32 to vector<4x16xf32>
    %826 = arith.mulf %825, %824 : vector<4x16xf32>
    %827 = arith.addf %822, %826 : vector<4x16xf32>
    %c79 = arith.constant 79 : index
    %828 = memref.load %arg7[%c79] : memref<98xf32, #tpu.memory_space<smem>>
    %829 = vector.extract_strided_slice %431 {offsets = [2, 4], sizes = [4, 16], strides = [1, 1]} : vector<10x22xf32> to vector<4x16xf32>
    %830 = vector.broadcast %828 : f32 to vector<4x16xf32>
    %831 = arith.mulf %830, %829 : vector<4x16xf32>
    %832 = arith.addf %827, %831 : vector<4x16xf32>
    %c80 = arith.constant 80 : index
    %833 = memref.load %arg7[%c80] : memref<98xf32, #tpu.memory_space<smem>>
    %834 = vector.extract_strided_slice %431 {offsets = [3, 4], sizes = [4, 16], strides = [1, 1]} : vector<10x22xf32> to vector<4x16xf32>
    %835 = vector.broadcast %833 : f32 to vector<4x16xf32>
    %836 = arith.mulf %835, %834 : vector<4x16xf32>
    %837 = arith.addf %832, %836 : vector<4x16xf32>
    %c81 = arith.constant 81 : index
    %838 = memref.load %arg7[%c81] : memref<98xf32, #tpu.memory_space<smem>>
    %839 = vector.extract_strided_slice %431 {offsets = [4, 4], sizes = [4, 16], strides = [1, 1]} : vector<10x22xf32> to vector<4x16xf32>
    %840 = vector.broadcast %838 : f32 to vector<4x16xf32>
    %841 = arith.mulf %840, %839 : vector<4x16xf32>
    %842 = arith.addf %837, %841 : vector<4x16xf32>
    %c82 = arith.constant 82 : index
    %843 = memref.load %arg7[%c82] : memref<98xf32, #tpu.memory_space<smem>>
    %844 = vector.extract_strided_slice %431 {offsets = [5, 4], sizes = [4, 16], strides = [1, 1]} : vector<10x22xf32> to vector<4x16xf32>
    %845 = vector.broadcast %843 : f32 to vector<4x16xf32>
    %846 = arith.mulf %845, %844 : vector<4x16xf32>
    %847 = arith.addf %842, %846 : vector<4x16xf32>
    %c83 = arith.constant 83 : index
    %848 = memref.load %arg7[%c83] : memref<98xf32, #tpu.memory_space<smem>>
    %849 = vector.extract_strided_slice %431 {offsets = [6, 4], sizes = [4, 16], strides = [1, 1]} : vector<10x22xf32> to vector<4x16xf32>
    %850 = vector.broadcast %848 : f32 to vector<4x16xf32>
    %851 = arith.mulf %850, %849 : vector<4x16xf32>
    %852 = arith.addf %847, %851 : vector<4x16xf32>
    %c84 = arith.constant 84 : index
    %853 = memref.load %arg7[%c84] : memref<98xf32, #tpu.memory_space<smem>>
    %854 = vector.extract_strided_slice %431 {offsets = [0, 5], sizes = [4, 16], strides = [1, 1]} : vector<10x22xf32> to vector<4x16xf32>
    %855 = vector.broadcast %853 : f32 to vector<4x16xf32>
    %856 = arith.mulf %855, %854 : vector<4x16xf32>
    %857 = arith.addf %852, %856 : vector<4x16xf32>
    %c85 = arith.constant 85 : index
    %858 = memref.load %arg7[%c85] : memref<98xf32, #tpu.memory_space<smem>>
    %859 = vector.extract_strided_slice %431 {offsets = [1, 5], sizes = [4, 16], strides = [1, 1]} : vector<10x22xf32> to vector<4x16xf32>
    %860 = vector.broadcast %858 : f32 to vector<4x16xf32>
    %861 = arith.mulf %860, %859 : vector<4x16xf32>
    %862 = arith.addf %857, %861 : vector<4x16xf32>
    %c86 = arith.constant 86 : index
    %863 = memref.load %arg7[%c86] : memref<98xf32, #tpu.memory_space<smem>>
    %864 = vector.extract_strided_slice %431 {offsets = [2, 5], sizes = [4, 16], strides = [1, 1]} : vector<10x22xf32> to vector<4x16xf32>
    %865 = vector.broadcast %863 : f32 to vector<4x16xf32>
    %866 = arith.mulf %865, %864 : vector<4x16xf32>
    %867 = arith.addf %862, %866 : vector<4x16xf32>
    %c87 = arith.constant 87 : index
    %868 = memref.load %arg7[%c87] : memref<98xf32, #tpu.memory_space<smem>>
    %869 = vector.extract_strided_slice %431 {offsets = [3, 5], sizes = [4, 16], strides = [1, 1]} : vector<10x22xf32> to vector<4x16xf32>
    %870 = vector.broadcast %868 : f32 to vector<4x16xf32>
    %871 = arith.mulf %870, %869 : vector<4x16xf32>
    %872 = arith.addf %867, %871 : vector<4x16xf32>
    %c88 = arith.constant 88 : index
    %873 = memref.load %arg7[%c88] : memref<98xf32, #tpu.memory_space<smem>>
    %874 = vector.extract_strided_slice %431 {offsets = [4, 5], sizes = [4, 16], strides = [1, 1]} : vector<10x22xf32> to vector<4x16xf32>
    %875 = vector.broadcast %873 : f32 to vector<4x16xf32>
    %876 = arith.mulf %875, %874 : vector<4x16xf32>
    %877 = arith.addf %872, %876 : vector<4x16xf32>
    %c89 = arith.constant 89 : index
    %878 = memref.load %arg7[%c89] : memref<98xf32, #tpu.memory_space<smem>>
    %879 = vector.extract_strided_slice %431 {offsets = [5, 5], sizes = [4, 16], strides = [1, 1]} : vector<10x22xf32> to vector<4x16xf32>
    %880 = vector.broadcast %878 : f32 to vector<4x16xf32>
    %881 = arith.mulf %880, %879 : vector<4x16xf32>
    %882 = arith.addf %877, %881 : vector<4x16xf32>
    %c90 = arith.constant 90 : index
    %883 = memref.load %arg7[%c90] : memref<98xf32, #tpu.memory_space<smem>>
    %884 = vector.extract_strided_slice %431 {offsets = [6, 5], sizes = [4, 16], strides = [1, 1]} : vector<10x22xf32> to vector<4x16xf32>
    %885 = vector.broadcast %883 : f32 to vector<4x16xf32>
    %886 = arith.mulf %885, %884 : vector<4x16xf32>
    %887 = arith.addf %882, %886 : vector<4x16xf32>
    %c91 = arith.constant 91 : index
    %888 = memref.load %arg7[%c91] : memref<98xf32, #tpu.memory_space<smem>>
    %889 = vector.extract_strided_slice %431 {offsets = [0, 6], sizes = [4, 16], strides = [1, 1]} : vector<10x22xf32> to vector<4x16xf32>
    %890 = vector.broadcast %888 : f32 to vector<4x16xf32>
    %891 = arith.mulf %890, %889 : vector<4x16xf32>
    %892 = arith.addf %887, %891 : vector<4x16xf32>
    %c92 = arith.constant 92 : index
    %893 = memref.load %arg7[%c92] : memref<98xf32, #tpu.memory_space<smem>>
    %894 = vector.extract_strided_slice %431 {offsets = [1, 6], sizes = [4, 16], strides = [1, 1]} : vector<10x22xf32> to vector<4x16xf32>
    %895 = vector.broadcast %893 : f32 to vector<4x16xf32>
    %896 = arith.mulf %895, %894 : vector<4x16xf32>
    %897 = arith.addf %892, %896 : vector<4x16xf32>
    %c93 = arith.constant 93 : index
    %898 = memref.load %arg7[%c93] : memref<98xf32, #tpu.memory_space<smem>>
    %899 = vector.extract_strided_slice %431 {offsets = [2, 6], sizes = [4, 16], strides = [1, 1]} : vector<10x22xf32> to vector<4x16xf32>
    %900 = vector.broadcast %898 : f32 to vector<4x16xf32>
    %901 = arith.mulf %900, %899 : vector<4x16xf32>
    %902 = arith.addf %897, %901 : vector<4x16xf32>
    %c94 = arith.constant 94 : index
    %903 = memref.load %arg7[%c94] : memref<98xf32, #tpu.memory_space<smem>>
    %904 = vector.extract_strided_slice %431 {offsets = [3, 6], sizes = [4, 16], strides = [1, 1]} : vector<10x22xf32> to vector<4x16xf32>
    %905 = vector.broadcast %903 : f32 to vector<4x16xf32>
    %906 = arith.mulf %905, %904 : vector<4x16xf32>
    %907 = arith.addf %902, %906 : vector<4x16xf32>
    %c95 = arith.constant 95 : index
    %908 = memref.load %arg7[%c95] : memref<98xf32, #tpu.memory_space<smem>>
    %909 = vector.extract_strided_slice %431 {offsets = [4, 6], sizes = [4, 16], strides = [1, 1]} : vector<10x22xf32> to vector<4x16xf32>
    %910 = vector.broadcast %908 : f32 to vector<4x16xf32>
    %911 = arith.mulf %910, %909 : vector<4x16xf32>
    %912 = arith.addf %907, %911 : vector<4x16xf32>
    %c96 = arith.constant 96 : index
    %913 = memref.load %arg7[%c96] : memref<98xf32, #tpu.memory_space<smem>>
    %914 = vector.extract_strided_slice %431 {offsets = [5, 6], sizes = [4, 16], strides = [1, 1]} : vector<10x22xf32> to vector<4x16xf32>
    %915 = vector.broadcast %913 : f32 to vector<4x16xf32>
    %916 = arith.mulf %915, %914 : vector<4x16xf32>
    %917 = arith.addf %912, %916 : vector<4x16xf32>
    %c97 = arith.constant 97 : index
    %918 = memref.load %arg7[%c97] : memref<98xf32, #tpu.memory_space<smem>>
    %919 = vector.extract_strided_slice %431 {offsets = [6, 6], sizes = [4, 16], strides = [1, 1]} : vector<10x22xf32> to vector<4x16xf32>
    %920 = vector.broadcast %918 : f32 to vector<4x16xf32>
    %921 = arith.mulf %920, %919 : vector<4x16xf32>
    %922 = arith.addf %917, %921 : vector<4x16xf32>
    %923 = vector.extract_strided_slice %119 {offsets = [0, 0], sizes = [4, 16], strides = [1, 1]} : vector<8x16xf32> to vector<4x16xf32>
    %cst_111 = arith.constant 0.000000e+00 : f32
    %924 = vector.broadcast %cst_111 : f32 to vector<2x16xf32>
    %cst_112 = arith.constant 0.000000e+00 : f32
    %925 = vector.broadcast %cst_112 : f32 to vector<2x16xf32>
    %926 = tpu.concatenate %924, %923, %925 in 0 : vector<2x16xf32>, vector<4x16xf32>, vector<2x16xf32> -> vector<8x16xf32>
    %cst_113 = arith.constant 0.000000e+00 : f32
    %927 = vector.broadcast %cst_113 : f32 to vector<8x2xf32>
    %cst_114 = arith.constant 0.000000e+00 : f32
    %928 = vector.broadcast %cst_114 : f32 to vector<8x2xf32>
    %929 = tpu.concatenate %927, %926, %928 in 1 : vector<8x2xf32>, vector<8x16xf32>, vector<8x2xf32> -> vector<8x20xf32>
    %930 = vector.extract_strided_slice %136 {offsets = [0, 0], sizes = [4, 16], strides = [1, 1]} : vector<8x16xf32> to vector<4x16xf32>
    %cst_115 = arith.constant 0.000000e+00 : f32
    %931 = vector.broadcast %cst_115 : f32 to vector<2x16xf32>
    %cst_116 = arith.constant 0.000000e+00 : f32
    %932 = vector.broadcast %cst_116 : f32 to vector<2x16xf32>
    %933 = tpu.concatenate %931, %930, %932 in 0 : vector<2x16xf32>, vector<4x16xf32>, vector<2x16xf32> -> vector<8x16xf32>
    %cst_117 = arith.constant 0.000000e+00 : f32
    %934 = vector.broadcast %cst_117 : f32 to vector<8x2xf32>
    %cst_118 = arith.constant 0.000000e+00 : f32
    %935 = vector.broadcast %cst_118 : f32 to vector<8x2xf32>
    %936 = tpu.concatenate %934, %933, %935 in 1 : vector<8x2xf32>, vector<8x16xf32>, vector<8x2xf32> -> vector<8x20xf32>
    %cst_119 = arith.constant 0.000000e+00 : f32
    %937 = vector.broadcast %cst_119 : f32 to vector<4x16xf32>
    %c0_120 = arith.constant 0 : index
    %938 = memref.load %arg8[%c0_120] : memref<50xf32, #tpu.memory_space<smem>>
    %939 = vector.extract_strided_slice %929 {offsets = [0, 0], sizes = [4, 16], strides = [1, 1]} : vector<8x20xf32> to vector<4x16xf32>
    %940 = vector.broadcast %938 : f32 to vector<4x16xf32>
    %941 = arith.mulf %940, %939 : vector<4x16xf32>
    %942 = arith.addf %937, %941 : vector<4x16xf32>
    %c1_121 = arith.constant 1 : index
    %943 = memref.load %arg8[%c1_121] : memref<50xf32, #tpu.memory_space<smem>>
    %944 = vector.extract_strided_slice %929 {offsets = [0, 1], sizes = [4, 16], strides = [1, 1]} : vector<8x20xf32> to vector<4x16xf32>
    %945 = vector.broadcast %943 : f32 to vector<4x16xf32>
    %946 = arith.mulf %945, %944 : vector<4x16xf32>
    %947 = arith.addf %942, %946 : vector<4x16xf32>
    %c2_122 = arith.constant 2 : index
    %948 = memref.load %arg8[%c2_122] : memref<50xf32, #tpu.memory_space<smem>>
    %949 = vector.extract_strided_slice %929 {offsets = [0, 2], sizes = [4, 16], strides = [1, 1]} : vector<8x20xf32> to vector<4x16xf32>
    %950 = vector.broadcast %948 : f32 to vector<4x16xf32>
    %951 = arith.mulf %950, %949 : vector<4x16xf32>
    %952 = arith.addf %947, %951 : vector<4x16xf32>
    %c3_123 = arith.constant 3 : index
    %953 = memref.load %arg8[%c3_123] : memref<50xf32, #tpu.memory_space<smem>>
    %954 = vector.extract_strided_slice %929 {offsets = [0, 3], sizes = [4, 16], strides = [1, 1]} : vector<8x20xf32> to vector<4x16xf32>
    %955 = vector.broadcast %953 : f32 to vector<4x16xf32>
    %956 = arith.mulf %955, %954 : vector<4x16xf32>
    %957 = arith.addf %952, %956 : vector<4x16xf32>
    %c4_124 = arith.constant 4 : index
    %958 = memref.load %arg8[%c4_124] : memref<50xf32, #tpu.memory_space<smem>>
    %959 = vector.extract_strided_slice %929 {offsets = [0, 4], sizes = [4, 16], strides = [1, 1]} : vector<8x20xf32> to vector<4x16xf32>
    %960 = vector.broadcast %958 : f32 to vector<4x16xf32>
    %961 = arith.mulf %960, %959 : vector<4x16xf32>
    %962 = arith.addf %957, %961 : vector<4x16xf32>
    %c5_125 = arith.constant 5 : index
    %963 = memref.load %arg8[%c5_125] : memref<50xf32, #tpu.memory_space<smem>>
    %964 = vector.extract_strided_slice %929 {offsets = [1, 0], sizes = [4, 16], strides = [1, 1]} : vector<8x20xf32> to vector<4x16xf32>
    %965 = vector.broadcast %963 : f32 to vector<4x16xf32>
    %966 = arith.mulf %965, %964 : vector<4x16xf32>
    %967 = arith.addf %962, %966 : vector<4x16xf32>
    %c6_126 = arith.constant 6 : index
    %968 = memref.load %arg8[%c6_126] : memref<50xf32, #tpu.memory_space<smem>>
    %969 = vector.extract_strided_slice %929 {offsets = [1, 1], sizes = [4, 16], strides = [1, 1]} : vector<8x20xf32> to vector<4x16xf32>
    %970 = vector.broadcast %968 : f32 to vector<4x16xf32>
    %971 = arith.mulf %970, %969 : vector<4x16xf32>
    %972 = arith.addf %967, %971 : vector<4x16xf32>
    %c7_127 = arith.constant 7 : index
    %973 = memref.load %arg8[%c7_127] : memref<50xf32, #tpu.memory_space<smem>>
    %974 = vector.extract_strided_slice %929 {offsets = [1, 2], sizes = [4, 16], strides = [1, 1]} : vector<8x20xf32> to vector<4x16xf32>
    %975 = vector.broadcast %973 : f32 to vector<4x16xf32>
    %976 = arith.mulf %975, %974 : vector<4x16xf32>
    %977 = arith.addf %972, %976 : vector<4x16xf32>
    %c8_128 = arith.constant 8 : index
    %978 = memref.load %arg8[%c8_128] : memref<50xf32, #tpu.memory_space<smem>>
    %979 = vector.extract_strided_slice %929 {offsets = [1, 3], sizes = [4, 16], strides = [1, 1]} : vector<8x20xf32> to vector<4x16xf32>
    %980 = vector.broadcast %978 : f32 to vector<4x16xf32>
    %981 = arith.mulf %980, %979 : vector<4x16xf32>
    %982 = arith.addf %977, %981 : vector<4x16xf32>
    %c9_129 = arith.constant 9 : index
    %983 = memref.load %arg8[%c9_129] : memref<50xf32, #tpu.memory_space<smem>>
    %984 = vector.extract_strided_slice %929 {offsets = [1, 4], sizes = [4, 16], strides = [1, 1]} : vector<8x20xf32> to vector<4x16xf32>
    %985 = vector.broadcast %983 : f32 to vector<4x16xf32>
    %986 = arith.mulf %985, %984 : vector<4x16xf32>
    %987 = arith.addf %982, %986 : vector<4x16xf32>
    %c10_130 = arith.constant 10 : index
    %988 = memref.load %arg8[%c10_130] : memref<50xf32, #tpu.memory_space<smem>>
    %989 = vector.extract_strided_slice %929 {offsets = [2, 0], sizes = [4, 16], strides = [1, 1]} : vector<8x20xf32> to vector<4x16xf32>
    %990 = vector.broadcast %988 : f32 to vector<4x16xf32>
    %991 = arith.mulf %990, %989 : vector<4x16xf32>
    %992 = arith.addf %987, %991 : vector<4x16xf32>
    %c11_131 = arith.constant 11 : index
    %993 = memref.load %arg8[%c11_131] : memref<50xf32, #tpu.memory_space<smem>>
    %994 = vector.extract_strided_slice %929 {offsets = [2, 1], sizes = [4, 16], strides = [1, 1]} : vector<8x20xf32> to vector<4x16xf32>
    %995 = vector.broadcast %993 : f32 to vector<4x16xf32>
    %996 = arith.mulf %995, %994 : vector<4x16xf32>
    %997 = arith.addf %992, %996 : vector<4x16xf32>
    %c12_132 = arith.constant 12 : index
    %998 = memref.load %arg8[%c12_132] : memref<50xf32, #tpu.memory_space<smem>>
    %999 = vector.extract_strided_slice %929 {offsets = [2, 2], sizes = [4, 16], strides = [1, 1]} : vector<8x20xf32> to vector<4x16xf32>
    %1000 = vector.broadcast %998 : f32 to vector<4x16xf32>
    %1001 = arith.mulf %1000, %999 : vector<4x16xf32>
    %1002 = arith.addf %997, %1001 : vector<4x16xf32>
    %c13_133 = arith.constant 13 : index
    %1003 = memref.load %arg8[%c13_133] : memref<50xf32, #tpu.memory_space<smem>>
    %1004 = vector.extract_strided_slice %929 {offsets = [2, 3], sizes = [4, 16], strides = [1, 1]} : vector<8x20xf32> to vector<4x16xf32>
    %1005 = vector.broadcast %1003 : f32 to vector<4x16xf32>
    %1006 = arith.mulf %1005, %1004 : vector<4x16xf32>
    %1007 = arith.addf %1002, %1006 : vector<4x16xf32>
    %c14_134 = arith.constant 14 : index
    %1008 = memref.load %arg8[%c14_134] : memref<50xf32, #tpu.memory_space<smem>>
    %1009 = vector.extract_strided_slice %929 {offsets = [2, 4], sizes = [4, 16], strides = [1, 1]} : vector<8x20xf32> to vector<4x16xf32>
    %1010 = vector.broadcast %1008 : f32 to vector<4x16xf32>
    %1011 = arith.mulf %1010, %1009 : vector<4x16xf32>
    %1012 = arith.addf %1007, %1011 : vector<4x16xf32>
    %c15_135 = arith.constant 15 : index
    %1013 = memref.load %arg8[%c15_135] : memref<50xf32, #tpu.memory_space<smem>>
    %1014 = vector.extract_strided_slice %929 {offsets = [3, 0], sizes = [4, 16], strides = [1, 1]} : vector<8x20xf32> to vector<4x16xf32>
    %1015 = vector.broadcast %1013 : f32 to vector<4x16xf32>
    %1016 = arith.mulf %1015, %1014 : vector<4x16xf32>
    %1017 = arith.addf %1012, %1016 : vector<4x16xf32>
    %c16_136 = arith.constant 16 : index
    %1018 = memref.load %arg8[%c16_136] : memref<50xf32, #tpu.memory_space<smem>>
    %1019 = vector.extract_strided_slice %929 {offsets = [3, 1], sizes = [4, 16], strides = [1, 1]} : vector<8x20xf32> to vector<4x16xf32>
    %1020 = vector.broadcast %1018 : f32 to vector<4x16xf32>
    %1021 = arith.mulf %1020, %1019 : vector<4x16xf32>
    %1022 = arith.addf %1017, %1021 : vector<4x16xf32>
    %c17_137 = arith.constant 17 : index
    %1023 = memref.load %arg8[%c17_137] : memref<50xf32, #tpu.memory_space<smem>>
    %1024 = vector.extract_strided_slice %929 {offsets = [3, 2], sizes = [4, 16], strides = [1, 1]} : vector<8x20xf32> to vector<4x16xf32>
    %1025 = vector.broadcast %1023 : f32 to vector<4x16xf32>
    %1026 = arith.mulf %1025, %1024 : vector<4x16xf32>
    %1027 = arith.addf %1022, %1026 : vector<4x16xf32>
    %c18_138 = arith.constant 18 : index
    %1028 = memref.load %arg8[%c18_138] : memref<50xf32, #tpu.memory_space<smem>>
    %1029 = vector.extract_strided_slice %929 {offsets = [3, 3], sizes = [4, 16], strides = [1, 1]} : vector<8x20xf32> to vector<4x16xf32>
    %1030 = vector.broadcast %1028 : f32 to vector<4x16xf32>
    %1031 = arith.mulf %1030, %1029 : vector<4x16xf32>
    %1032 = arith.addf %1027, %1031 : vector<4x16xf32>
    %c19_139 = arith.constant 19 : index
    %1033 = memref.load %arg8[%c19_139] : memref<50xf32, #tpu.memory_space<smem>>
    %1034 = vector.extract_strided_slice %929 {offsets = [3, 4], sizes = [4, 16], strides = [1, 1]} : vector<8x20xf32> to vector<4x16xf32>
    %1035 = vector.broadcast %1033 : f32 to vector<4x16xf32>
    %1036 = arith.mulf %1035, %1034 : vector<4x16xf32>
    %1037 = arith.addf %1032, %1036 : vector<4x16xf32>
    %c20_140 = arith.constant 20 : index
    %1038 = memref.load %arg8[%c20_140] : memref<50xf32, #tpu.memory_space<smem>>
    %1039 = vector.extract_strided_slice %929 {offsets = [4, 0], sizes = [4, 16], strides = [1, 1]} : vector<8x20xf32> to vector<4x16xf32>
    %1040 = vector.broadcast %1038 : f32 to vector<4x16xf32>
    %1041 = arith.mulf %1040, %1039 : vector<4x16xf32>
    %1042 = arith.addf %1037, %1041 : vector<4x16xf32>
    %c21_141 = arith.constant 21 : index
    %1043 = memref.load %arg8[%c21_141] : memref<50xf32, #tpu.memory_space<smem>>
    %1044 = vector.extract_strided_slice %929 {offsets = [4, 1], sizes = [4, 16], strides = [1, 1]} : vector<8x20xf32> to vector<4x16xf32>
    %1045 = vector.broadcast %1043 : f32 to vector<4x16xf32>
    %1046 = arith.mulf %1045, %1044 : vector<4x16xf32>
    %1047 = arith.addf %1042, %1046 : vector<4x16xf32>
    %c22_142 = arith.constant 22 : index
    %1048 = memref.load %arg8[%c22_142] : memref<50xf32, #tpu.memory_space<smem>>
    %1049 = vector.extract_strided_slice %929 {offsets = [4, 2], sizes = [4, 16], strides = [1, 1]} : vector<8x20xf32> to vector<4x16xf32>
    %1050 = vector.broadcast %1048 : f32 to vector<4x16xf32>
    %1051 = arith.mulf %1050, %1049 : vector<4x16xf32>
    %1052 = arith.addf %1047, %1051 : vector<4x16xf32>
    %c23_143 = arith.constant 23 : index
    %1053 = memref.load %arg8[%c23_143] : memref<50xf32, #tpu.memory_space<smem>>
    %1054 = vector.extract_strided_slice %929 {offsets = [4, 3], sizes = [4, 16], strides = [1, 1]} : vector<8x20xf32> to vector<4x16xf32>
    %1055 = vector.broadcast %1053 : f32 to vector<4x16xf32>
    %1056 = arith.mulf %1055, %1054 : vector<4x16xf32>
    %1057 = arith.addf %1052, %1056 : vector<4x16xf32>
    %c24_144 = arith.constant 24 : index
    %1058 = memref.load %arg8[%c24_144] : memref<50xf32, #tpu.memory_space<smem>>
    %1059 = vector.extract_strided_slice %929 {offsets = [4, 4], sizes = [4, 16], strides = [1, 1]} : vector<8x20xf32> to vector<4x16xf32>
    %1060 = vector.broadcast %1058 : f32 to vector<4x16xf32>
    %1061 = arith.mulf %1060, %1059 : vector<4x16xf32>
    %1062 = arith.addf %1057, %1061 : vector<4x16xf32>
    %c25_145 = arith.constant 25 : index
    %1063 = memref.load %arg8[%c25_145] : memref<50xf32, #tpu.memory_space<smem>>
    %1064 = vector.extract_strided_slice %936 {offsets = [0, 0], sizes = [4, 16], strides = [1, 1]} : vector<8x20xf32> to vector<4x16xf32>
    %1065 = vector.broadcast %1063 : f32 to vector<4x16xf32>
    %1066 = arith.mulf %1065, %1064 : vector<4x16xf32>
    %1067 = arith.addf %1062, %1066 : vector<4x16xf32>
    %c26_146 = arith.constant 26 : index
    %1068 = memref.load %arg8[%c26_146] : memref<50xf32, #tpu.memory_space<smem>>
    %1069 = vector.extract_strided_slice %936 {offsets = [0, 1], sizes = [4, 16], strides = [1, 1]} : vector<8x20xf32> to vector<4x16xf32>
    %1070 = vector.broadcast %1068 : f32 to vector<4x16xf32>
    %1071 = arith.mulf %1070, %1069 : vector<4x16xf32>
    %1072 = arith.addf %1067, %1071 : vector<4x16xf32>
    %c27_147 = arith.constant 27 : index
    %1073 = memref.load %arg8[%c27_147] : memref<50xf32, #tpu.memory_space<smem>>
    %1074 = vector.extract_strided_slice %936 {offsets = [0, 2], sizes = [4, 16], strides = [1, 1]} : vector<8x20xf32> to vector<4x16xf32>
    %1075 = vector.broadcast %1073 : f32 to vector<4x16xf32>
    %1076 = arith.mulf %1075, %1074 : vector<4x16xf32>
    %1077 = arith.addf %1072, %1076 : vector<4x16xf32>
    %c28_148 = arith.constant 28 : index
    %1078 = memref.load %arg8[%c28_148] : memref<50xf32, #tpu.memory_space<smem>>
    %1079 = vector.extract_strided_slice %936 {offsets = [0, 3], sizes = [4, 16], strides = [1, 1]} : vector<8x20xf32> to vector<4x16xf32>
    %1080 = vector.broadcast %1078 : f32 to vector<4x16xf32>
    %1081 = arith.mulf %1080, %1079 : vector<4x16xf32>
    %1082 = arith.addf %1077, %1081 : vector<4x16xf32>
    %c29_149 = arith.constant 29 : index
    %1083 = memref.load %arg8[%c29_149] : memref<50xf32, #tpu.memory_space<smem>>
    %1084 = vector.extract_strided_slice %936 {offsets = [0, 4], sizes = [4, 16], strides = [1, 1]} : vector<8x20xf32> to vector<4x16xf32>
    %1085 = vector.broadcast %1083 : f32 to vector<4x16xf32>
    %1086 = arith.mulf %1085, %1084 : vector<4x16xf32>
    %1087 = arith.addf %1082, %1086 : vector<4x16xf32>
    %c30_150 = arith.constant 30 : index
    %1088 = memref.load %arg8[%c30_150] : memref<50xf32, #tpu.memory_space<smem>>
    %1089 = vector.extract_strided_slice %936 {offsets = [1, 0], sizes = [4, 16], strides = [1, 1]} : vector<8x20xf32> to vector<4x16xf32>
    %1090 = vector.broadcast %1088 : f32 to vector<4x16xf32>
    %1091 = arith.mulf %1090, %1089 : vector<4x16xf32>
    %1092 = arith.addf %1087, %1091 : vector<4x16xf32>
    %c31_151 = arith.constant 31 : index
    %1093 = memref.load %arg8[%c31_151] : memref<50xf32, #tpu.memory_space<smem>>
    %1094 = vector.extract_strided_slice %936 {offsets = [1, 1], sizes = [4, 16], strides = [1, 1]} : vector<8x20xf32> to vector<4x16xf32>
    %1095 = vector.broadcast %1093 : f32 to vector<4x16xf32>
    %1096 = arith.mulf %1095, %1094 : vector<4x16xf32>
    %1097 = arith.addf %1092, %1096 : vector<4x16xf32>
    %c32_152 = arith.constant 32 : index
    %1098 = memref.load %arg8[%c32_152] : memref<50xf32, #tpu.memory_space<smem>>
    %1099 = vector.extract_strided_slice %936 {offsets = [1, 2], sizes = [4, 16], strides = [1, 1]} : vector<8x20xf32> to vector<4x16xf32>
    %1100 = vector.broadcast %1098 : f32 to vector<4x16xf32>
    %1101 = arith.mulf %1100, %1099 : vector<4x16xf32>
    %1102 = arith.addf %1097, %1101 : vector<4x16xf32>
    %c33_153 = arith.constant 33 : index
    %1103 = memref.load %arg8[%c33_153] : memref<50xf32, #tpu.memory_space<smem>>
    %1104 = vector.extract_strided_slice %936 {offsets = [1, 3], sizes = [4, 16], strides = [1, 1]} : vector<8x20xf32> to vector<4x16xf32>
    %1105 = vector.broadcast %1103 : f32 to vector<4x16xf32>
    %1106 = arith.mulf %1105, %1104 : vector<4x16xf32>
    %1107 = arith.addf %1102, %1106 : vector<4x16xf32>
    %c34_154 = arith.constant 34 : index
    %1108 = memref.load %arg8[%c34_154] : memref<50xf32, #tpu.memory_space<smem>>
    %1109 = vector.extract_strided_slice %936 {offsets = [1, 4], sizes = [4, 16], strides = [1, 1]} : vector<8x20xf32> to vector<4x16xf32>
    %1110 = vector.broadcast %1108 : f32 to vector<4x16xf32>
    %1111 = arith.mulf %1110, %1109 : vector<4x16xf32>
    %1112 = arith.addf %1107, %1111 : vector<4x16xf32>
    %c35_155 = arith.constant 35 : index
    %1113 = memref.load %arg8[%c35_155] : memref<50xf32, #tpu.memory_space<smem>>
    %1114 = vector.extract_strided_slice %936 {offsets = [2, 0], sizes = [4, 16], strides = [1, 1]} : vector<8x20xf32> to vector<4x16xf32>
    %1115 = vector.broadcast %1113 : f32 to vector<4x16xf32>
    %1116 = arith.mulf %1115, %1114 : vector<4x16xf32>
    %1117 = arith.addf %1112, %1116 : vector<4x16xf32>
    %c36_156 = arith.constant 36 : index
    %1118 = memref.load %arg8[%c36_156] : memref<50xf32, #tpu.memory_space<smem>>
    %1119 = vector.extract_strided_slice %936 {offsets = [2, 1], sizes = [4, 16], strides = [1, 1]} : vector<8x20xf32> to vector<4x16xf32>
    %1120 = vector.broadcast %1118 : f32 to vector<4x16xf32>
    %1121 = arith.mulf %1120, %1119 : vector<4x16xf32>
    %1122 = arith.addf %1117, %1121 : vector<4x16xf32>
    %c37_157 = arith.constant 37 : index
    %1123 = memref.load %arg8[%c37_157] : memref<50xf32, #tpu.memory_space<smem>>
    %1124 = vector.extract_strided_slice %936 {offsets = [2, 2], sizes = [4, 16], strides = [1, 1]} : vector<8x20xf32> to vector<4x16xf32>
    %1125 = vector.broadcast %1123 : f32 to vector<4x16xf32>
    %1126 = arith.mulf %1125, %1124 : vector<4x16xf32>
    %1127 = arith.addf %1122, %1126 : vector<4x16xf32>
    %c38_158 = arith.constant 38 : index
    %1128 = memref.load %arg8[%c38_158] : memref<50xf32, #tpu.memory_space<smem>>
    %1129 = vector.extract_strided_slice %936 {offsets = [2, 3], sizes = [4, 16], strides = [1, 1]} : vector<8x20xf32> to vector<4x16xf32>
    %1130 = vector.broadcast %1128 : f32 to vector<4x16xf32>
    %1131 = arith.mulf %1130, %1129 : vector<4x16xf32>
    %1132 = arith.addf %1127, %1131 : vector<4x16xf32>
    %c39_159 = arith.constant 39 : index
    %1133 = memref.load %arg8[%c39_159] : memref<50xf32, #tpu.memory_space<smem>>
    %1134 = vector.extract_strided_slice %936 {offsets = [2, 4], sizes = [4, 16], strides = [1, 1]} : vector<8x20xf32> to vector<4x16xf32>
    %1135 = vector.broadcast %1133 : f32 to vector<4x16xf32>
    %1136 = arith.mulf %1135, %1134 : vector<4x16xf32>
    %1137 = arith.addf %1132, %1136 : vector<4x16xf32>
    %c40_160 = arith.constant 40 : index
    %1138 = memref.load %arg8[%c40_160] : memref<50xf32, #tpu.memory_space<smem>>
    %1139 = vector.extract_strided_slice %936 {offsets = [3, 0], sizes = [4, 16], strides = [1, 1]} : vector<8x20xf32> to vector<4x16xf32>
    %1140 = vector.broadcast %1138 : f32 to vector<4x16xf32>
    %1141 = arith.mulf %1140, %1139 : vector<4x16xf32>
    %1142 = arith.addf %1137, %1141 : vector<4x16xf32>
    %c41_161 = arith.constant 41 : index
    %1143 = memref.load %arg8[%c41_161] : memref<50xf32, #tpu.memory_space<smem>>
    %1144 = vector.extract_strided_slice %936 {offsets = [3, 1], sizes = [4, 16], strides = [1, 1]} : vector<8x20xf32> to vector<4x16xf32>
    %1145 = vector.broadcast %1143 : f32 to vector<4x16xf32>
    %1146 = arith.mulf %1145, %1144 : vector<4x16xf32>
    %1147 = arith.addf %1142, %1146 : vector<4x16xf32>
    %c42_162 = arith.constant 42 : index
    %1148 = memref.load %arg8[%c42_162] : memref<50xf32, #tpu.memory_space<smem>>
    %1149 = vector.extract_strided_slice %936 {offsets = [3, 2], sizes = [4, 16], strides = [1, 1]} : vector<8x20xf32> to vector<4x16xf32>
    %1150 = vector.broadcast %1148 : f32 to vector<4x16xf32>
    %1151 = arith.mulf %1150, %1149 : vector<4x16xf32>
    %1152 = arith.addf %1147, %1151 : vector<4x16xf32>
    %c43_163 = arith.constant 43 : index
    %1153 = memref.load %arg8[%c43_163] : memref<50xf32, #tpu.memory_space<smem>>
    %1154 = vector.extract_strided_slice %936 {offsets = [3, 3], sizes = [4, 16], strides = [1, 1]} : vector<8x20xf32> to vector<4x16xf32>
    %1155 = vector.broadcast %1153 : f32 to vector<4x16xf32>
    %1156 = arith.mulf %1155, %1154 : vector<4x16xf32>
    %1157 = arith.addf %1152, %1156 : vector<4x16xf32>
    %c44_164 = arith.constant 44 : index
    %1158 = memref.load %arg8[%c44_164] : memref<50xf32, #tpu.memory_space<smem>>
    %1159 = vector.extract_strided_slice %936 {offsets = [3, 4], sizes = [4, 16], strides = [1, 1]} : vector<8x20xf32> to vector<4x16xf32>
    %1160 = vector.broadcast %1158 : f32 to vector<4x16xf32>
    %1161 = arith.mulf %1160, %1159 : vector<4x16xf32>
    %1162 = arith.addf %1157, %1161 : vector<4x16xf32>
    %c45_165 = arith.constant 45 : index
    %1163 = memref.load %arg8[%c45_165] : memref<50xf32, #tpu.memory_space<smem>>
    %1164 = vector.extract_strided_slice %936 {offsets = [4, 0], sizes = [4, 16], strides = [1, 1]} : vector<8x20xf32> to vector<4x16xf32>
    %1165 = vector.broadcast %1163 : f32 to vector<4x16xf32>
    %1166 = arith.mulf %1165, %1164 : vector<4x16xf32>
    %1167 = arith.addf %1162, %1166 : vector<4x16xf32>
    %c46_166 = arith.constant 46 : index
    %1168 = memref.load %arg8[%c46_166] : memref<50xf32, #tpu.memory_space<smem>>
    %1169 = vector.extract_strided_slice %936 {offsets = [4, 1], sizes = [4, 16], strides = [1, 1]} : vector<8x20xf32> to vector<4x16xf32>
    %1170 = vector.broadcast %1168 : f32 to vector<4x16xf32>
    %1171 = arith.mulf %1170, %1169 : vector<4x16xf32>
    %1172 = arith.addf %1167, %1171 : vector<4x16xf32>
    %c47_167 = arith.constant 47 : index
    %1173 = memref.load %arg8[%c47_167] : memref<50xf32, #tpu.memory_space<smem>>
    %1174 = vector.extract_strided_slice %936 {offsets = [4, 2], sizes = [4, 16], strides = [1, 1]} : vector<8x20xf32> to vector<4x16xf32>
    %1175 = vector.broadcast %1173 : f32 to vector<4x16xf32>
    %1176 = arith.mulf %1175, %1174 : vector<4x16xf32>
    %1177 = arith.addf %1172, %1176 : vector<4x16xf32>
    %c48_168 = arith.constant 48 : index
    %1178 = memref.load %arg8[%c48_168] : memref<50xf32, #tpu.memory_space<smem>>
    %1179 = vector.extract_strided_slice %936 {offsets = [4, 3], sizes = [4, 16], strides = [1, 1]} : vector<8x20xf32> to vector<4x16xf32>
    %1180 = vector.broadcast %1178 : f32 to vector<4x16xf32>
    %1181 = arith.mulf %1180, %1179 : vector<4x16xf32>
    %1182 = arith.addf %1177, %1181 : vector<4x16xf32>
    %c49_169 = arith.constant 49 : index
    %1183 = memref.load %arg8[%c49_169] : memref<50xf32, #tpu.memory_space<smem>>
    %1184 = vector.extract_strided_slice %936 {offsets = [4, 4], sizes = [4, 16], strides = [1, 1]} : vector<8x20xf32> to vector<4x16xf32>
    %1185 = vector.broadcast %1183 : f32 to vector<4x16xf32>
    %1186 = arith.mulf %1185, %1184 : vector<4x16xf32>
    %1187 = arith.addf %1182, %1186 : vector<4x16xf32>
    %1188 = vector.extract_strided_slice %405 {offsets = [4, 0], sizes = [4, 16], strides = [1, 1]} : vector<8x16xf32> to vector<4x16xf32>
    %cst_170 = arith.constant 0.000000e+00 : f32
    %1189 = vector.broadcast %cst_170 : f32 to vector<3x16xf32>
    %cst_171 = arith.constant 0.000000e+00 : f32
    %1190 = vector.broadcast %cst_171 : f32 to vector<3x16xf32>
    %1191 = tpu.concatenate %1189, %1188, %1190 in 0 : vector<3x16xf32>, vector<4x16xf32>, vector<3x16xf32> -> vector<10x16xf32>
    %cst_172 = arith.constant 0.000000e+00 : f32
    %1192 = vector.broadcast %cst_172 : f32 to vector<10x3xf32>
    %cst_173 = arith.constant 0.000000e+00 : f32
    %1193 = vector.broadcast %cst_173 : f32 to vector<10x3xf32>
    %1194 = tpu.concatenate %1192, %1191, %1193 in 1 : vector<10x3xf32>, vector<10x16xf32>, vector<10x3xf32> -> vector<10x22xf32>
    %1195 = vector.extract_strided_slice %413 {offsets = [4, 0], sizes = [4, 16], strides = [1, 1]} : vector<8x16xf32> to vector<4x16xf32>
    %cst_174 = arith.constant 0.000000e+00 : f32
    %1196 = vector.broadcast %cst_174 : f32 to vector<3x16xf32>
    %cst_175 = arith.constant 0.000000e+00 : f32
    %1197 = vector.broadcast %cst_175 : f32 to vector<3x16xf32>
    %1198 = tpu.concatenate %1196, %1195, %1197 in 0 : vector<3x16xf32>, vector<4x16xf32>, vector<3x16xf32> -> vector<10x16xf32>
    %cst_176 = arith.constant 0.000000e+00 : f32
    %1199 = vector.broadcast %cst_176 : f32 to vector<10x3xf32>
    %cst_177 = arith.constant 0.000000e+00 : f32
    %1200 = vector.broadcast %cst_177 : f32 to vector<10x3xf32>
    %1201 = tpu.concatenate %1199, %1198, %1200 in 1 : vector<10x3xf32>, vector<10x16xf32>, vector<10x3xf32> -> vector<10x22xf32>
    %cst_178 = arith.constant 0.000000e+00 : f32
    %1202 = vector.broadcast %cst_178 : f32 to vector<4x16xf32>
    %c0_179 = arith.constant 0 : index
    %1203 = memref.load %arg7[%c0_179] : memref<98xf32, #tpu.memory_space<smem>>
    %1204 = vector.extract_strided_slice %1194 {offsets = [0, 0], sizes = [4, 16], strides = [1, 1]} : vector<10x22xf32> to vector<4x16xf32>
    %1205 = vector.broadcast %1203 : f32 to vector<4x16xf32>
    %1206 = arith.mulf %1205, %1204 : vector<4x16xf32>
    %1207 = arith.addf %1202, %1206 : vector<4x16xf32>
    %c1_180 = arith.constant 1 : index
    %1208 = memref.load %arg7[%c1_180] : memref<98xf32, #tpu.memory_space<smem>>
    %1209 = vector.extract_strided_slice %1194 {offsets = [1, 0], sizes = [4, 16], strides = [1, 1]} : vector<10x22xf32> to vector<4x16xf32>
    %1210 = vector.broadcast %1208 : f32 to vector<4x16xf32>
    %1211 = arith.mulf %1210, %1209 : vector<4x16xf32>
    %1212 = arith.addf %1207, %1211 : vector<4x16xf32>
    %c2_181 = arith.constant 2 : index
    %1213 = memref.load %arg7[%c2_181] : memref<98xf32, #tpu.memory_space<smem>>
    %1214 = vector.extract_strided_slice %1194 {offsets = [2, 0], sizes = [4, 16], strides = [1, 1]} : vector<10x22xf32> to vector<4x16xf32>
    %1215 = vector.broadcast %1213 : f32 to vector<4x16xf32>
    %1216 = arith.mulf %1215, %1214 : vector<4x16xf32>
    %1217 = arith.addf %1212, %1216 : vector<4x16xf32>
    %c3_182 = arith.constant 3 : index
    %1218 = memref.load %arg7[%c3_182] : memref<98xf32, #tpu.memory_space<smem>>
    %1219 = vector.extract_strided_slice %1194 {offsets = [3, 0], sizes = [4, 16], strides = [1, 1]} : vector<10x22xf32> to vector<4x16xf32>
    %1220 = vector.broadcast %1218 : f32 to vector<4x16xf32>
    %1221 = arith.mulf %1220, %1219 : vector<4x16xf32>
    %1222 = arith.addf %1217, %1221 : vector<4x16xf32>
    %c4_183 = arith.constant 4 : index
    %1223 = memref.load %arg7[%c4_183] : memref<98xf32, #tpu.memory_space<smem>>
    %1224 = vector.extract_strided_slice %1194 {offsets = [4, 0], sizes = [4, 16], strides = [1, 1]} : vector<10x22xf32> to vector<4x16xf32>
    %1225 = vector.broadcast %1223 : f32 to vector<4x16xf32>
    %1226 = arith.mulf %1225, %1224 : vector<4x16xf32>
    %1227 = arith.addf %1222, %1226 : vector<4x16xf32>
    %c5_184 = arith.constant 5 : index
    %1228 = memref.load %arg7[%c5_184] : memref<98xf32, #tpu.memory_space<smem>>
    %1229 = vector.extract_strided_slice %1194 {offsets = [5, 0], sizes = [4, 16], strides = [1, 1]} : vector<10x22xf32> to vector<4x16xf32>
    %1230 = vector.broadcast %1228 : f32 to vector<4x16xf32>
    %1231 = arith.mulf %1230, %1229 : vector<4x16xf32>
    %1232 = arith.addf %1227, %1231 : vector<4x16xf32>
    %c6_185 = arith.constant 6 : index
    %1233 = memref.load %arg7[%c6_185] : memref<98xf32, #tpu.memory_space<smem>>
    %1234 = vector.extract_strided_slice %1194 {offsets = [6, 0], sizes = [4, 16], strides = [1, 1]} : vector<10x22xf32> to vector<4x16xf32>
    %1235 = vector.broadcast %1233 : f32 to vector<4x16xf32>
    %1236 = arith.mulf %1235, %1234 : vector<4x16xf32>
    %1237 = arith.addf %1232, %1236 : vector<4x16xf32>
    %c7_186 = arith.constant 7 : index
    %1238 = memref.load %arg7[%c7_186] : memref<98xf32, #tpu.memory_space<smem>>
    %1239 = vector.extract_strided_slice %1194 {offsets = [0, 1], sizes = [4, 16], strides = [1, 1]} : vector<10x22xf32> to vector<4x16xf32>
    %1240 = vector.broadcast %1238 : f32 to vector<4x16xf32>
    %1241 = arith.mulf %1240, %1239 : vector<4x16xf32>
    %1242 = arith.addf %1237, %1241 : vector<4x16xf32>
    %c8_187 = arith.constant 8 : index
    %1243 = memref.load %arg7[%c8_187] : memref<98xf32, #tpu.memory_space<smem>>
    %1244 = vector.extract_strided_slice %1194 {offsets = [1, 1], sizes = [4, 16], strides = [1, 1]} : vector<10x22xf32> to vector<4x16xf32>
    %1245 = vector.broadcast %1243 : f32 to vector<4x16xf32>
    %1246 = arith.mulf %1245, %1244 : vector<4x16xf32>
    %1247 = arith.addf %1242, %1246 : vector<4x16xf32>
    %c9_188 = arith.constant 9 : index
    %1248 = memref.load %arg7[%c9_188] : memref<98xf32, #tpu.memory_space<smem>>
    %1249 = vector.extract_strided_slice %1194 {offsets = [2, 1], sizes = [4, 16], strides = [1, 1]} : vector<10x22xf32> to vector<4x16xf32>
    %1250 = vector.broadcast %1248 : f32 to vector<4x16xf32>
    %1251 = arith.mulf %1250, %1249 : vector<4x16xf32>
    %1252 = arith.addf %1247, %1251 : vector<4x16xf32>
    %c10_189 = arith.constant 10 : index
    %1253 = memref.load %arg7[%c10_189] : memref<98xf32, #tpu.memory_space<smem>>
    %1254 = vector.extract_strided_slice %1194 {offsets = [3, 1], sizes = [4, 16], strides = [1, 1]} : vector<10x22xf32> to vector<4x16xf32>
    %1255 = vector.broadcast %1253 : f32 to vector<4x16xf32>
    %1256 = arith.mulf %1255, %1254 : vector<4x16xf32>
    %1257 = arith.addf %1252, %1256 : vector<4x16xf32>
    %c11_190 = arith.constant 11 : index
    %1258 = memref.load %arg7[%c11_190] : memref<98xf32, #tpu.memory_space<smem>>
    %1259 = vector.extract_strided_slice %1194 {offsets = [4, 1], sizes = [4, 16], strides = [1, 1]} : vector<10x22xf32> to vector<4x16xf32>
    %1260 = vector.broadcast %1258 : f32 to vector<4x16xf32>
    %1261 = arith.mulf %1260, %1259 : vector<4x16xf32>
    %1262 = arith.addf %1257, %1261 : vector<4x16xf32>
    %c12_191 = arith.constant 12 : index
    %1263 = memref.load %arg7[%c12_191] : memref<98xf32, #tpu.memory_space<smem>>
    %1264 = vector.extract_strided_slice %1194 {offsets = [5, 1], sizes = [4, 16], strides = [1, 1]} : vector<10x22xf32> to vector<4x16xf32>
    %1265 = vector.broadcast %1263 : f32 to vector<4x16xf32>
    %1266 = arith.mulf %1265, %1264 : vector<4x16xf32>
    %1267 = arith.addf %1262, %1266 : vector<4x16xf32>
    %c13_192 = arith.constant 13 : index
    %1268 = memref.load %arg7[%c13_192] : memref<98xf32, #tpu.memory_space<smem>>
    %1269 = vector.extract_strided_slice %1194 {offsets = [6, 1], sizes = [4, 16], strides = [1, 1]} : vector<10x22xf32> to vector<4x16xf32>
    %1270 = vector.broadcast %1268 : f32 to vector<4x16xf32>
    %1271 = arith.mulf %1270, %1269 : vector<4x16xf32>
    %1272 = arith.addf %1267, %1271 : vector<4x16xf32>
    %c14_193 = arith.constant 14 : index
    %1273 = memref.load %arg7[%c14_193] : memref<98xf32, #tpu.memory_space<smem>>
    %1274 = vector.extract_strided_slice %1194 {offsets = [0, 2], sizes = [4, 16], strides = [1, 1]} : vector<10x22xf32> to vector<4x16xf32>
    %1275 = vector.broadcast %1273 : f32 to vector<4x16xf32>
    %1276 = arith.mulf %1275, %1274 : vector<4x16xf32>
    %1277 = arith.addf %1272, %1276 : vector<4x16xf32>
    %c15_194 = arith.constant 15 : index
    %1278 = memref.load %arg7[%c15_194] : memref<98xf32, #tpu.memory_space<smem>>
    %1279 = vector.extract_strided_slice %1194 {offsets = [1, 2], sizes = [4, 16], strides = [1, 1]} : vector<10x22xf32> to vector<4x16xf32>
    %1280 = vector.broadcast %1278 : f32 to vector<4x16xf32>
    %1281 = arith.mulf %1280, %1279 : vector<4x16xf32>
    %1282 = arith.addf %1277, %1281 : vector<4x16xf32>
    %c16_195 = arith.constant 16 : index
    %1283 = memref.load %arg7[%c16_195] : memref<98xf32, #tpu.memory_space<smem>>
    %1284 = vector.extract_strided_slice %1194 {offsets = [2, 2], sizes = [4, 16], strides = [1, 1]} : vector<10x22xf32> to vector<4x16xf32>
    %1285 = vector.broadcast %1283 : f32 to vector<4x16xf32>
    %1286 = arith.mulf %1285, %1284 : vector<4x16xf32>
    %1287 = arith.addf %1282, %1286 : vector<4x16xf32>
    %c17_196 = arith.constant 17 : index
    %1288 = memref.load %arg7[%c17_196] : memref<98xf32, #tpu.memory_space<smem>>
    %1289 = vector.extract_strided_slice %1194 {offsets = [3, 2], sizes = [4, 16], strides = [1, 1]} : vector<10x22xf32> to vector<4x16xf32>
    %1290 = vector.broadcast %1288 : f32 to vector<4x16xf32>
    %1291 = arith.mulf %1290, %1289 : vector<4x16xf32>
    %1292 = arith.addf %1287, %1291 : vector<4x16xf32>
    %c18_197 = arith.constant 18 : index
    %1293 = memref.load %arg7[%c18_197] : memref<98xf32, #tpu.memory_space<smem>>
    %1294 = vector.extract_strided_slice %1194 {offsets = [4, 2], sizes = [4, 16], strides = [1, 1]} : vector<10x22xf32> to vector<4x16xf32>
    %1295 = vector.broadcast %1293 : f32 to vector<4x16xf32>
    %1296 = arith.mulf %1295, %1294 : vector<4x16xf32>
    %1297 = arith.addf %1292, %1296 : vector<4x16xf32>
    %c19_198 = arith.constant 19 : index
    %1298 = memref.load %arg7[%c19_198] : memref<98xf32, #tpu.memory_space<smem>>
    %1299 = vector.extract_strided_slice %1194 {offsets = [5, 2], sizes = [4, 16], strides = [1, 1]} : vector<10x22xf32> to vector<4x16xf32>
    %1300 = vector.broadcast %1298 : f32 to vector<4x16xf32>
    %1301 = arith.mulf %1300, %1299 : vector<4x16xf32>
    %1302 = arith.addf %1297, %1301 : vector<4x16xf32>
    %c20_199 = arith.constant 20 : index
    %1303 = memref.load %arg7[%c20_199] : memref<98xf32, #tpu.memory_space<smem>>
    %1304 = vector.extract_strided_slice %1194 {offsets = [6, 2], sizes = [4, 16], strides = [1, 1]} : vector<10x22xf32> to vector<4x16xf32>
    %1305 = vector.broadcast %1303 : f32 to vector<4x16xf32>
    %1306 = arith.mulf %1305, %1304 : vector<4x16xf32>
    %1307 = arith.addf %1302, %1306 : vector<4x16xf32>
    %c21_200 = arith.constant 21 : index
    %1308 = memref.load %arg7[%c21_200] : memref<98xf32, #tpu.memory_space<smem>>
    %1309 = vector.extract_strided_slice %1194 {offsets = [0, 3], sizes = [4, 16], strides = [1, 1]} : vector<10x22xf32> to vector<4x16xf32>
    %1310 = vector.broadcast %1308 : f32 to vector<4x16xf32>
    %1311 = arith.mulf %1310, %1309 : vector<4x16xf32>
    %1312 = arith.addf %1307, %1311 : vector<4x16xf32>
    %c22_201 = arith.constant 22 : index
    %1313 = memref.load %arg7[%c22_201] : memref<98xf32, #tpu.memory_space<smem>>
    %1314 = vector.extract_strided_slice %1194 {offsets = [1, 3], sizes = [4, 16], strides = [1, 1]} : vector<10x22xf32> to vector<4x16xf32>
    %1315 = vector.broadcast %1313 : f32 to vector<4x16xf32>
    %1316 = arith.mulf %1315, %1314 : vector<4x16xf32>
    %1317 = arith.addf %1312, %1316 : vector<4x16xf32>
    %c23_202 = arith.constant 23 : index
    %1318 = memref.load %arg7[%c23_202] : memref<98xf32, #tpu.memory_space<smem>>
    %1319 = vector.extract_strided_slice %1194 {offsets = [2, 3], sizes = [4, 16], strides = [1, 1]} : vector<10x22xf32> to vector<4x16xf32>
    %1320 = vector.broadcast %1318 : f32 to vector<4x16xf32>
    %1321 = arith.mulf %1320, %1319 : vector<4x16xf32>
    %1322 = arith.addf %1317, %1321 : vector<4x16xf32>
    %c24_203 = arith.constant 24 : index
    %1323 = memref.load %arg7[%c24_203] : memref<98xf32, #tpu.memory_space<smem>>
    %1324 = vector.extract_strided_slice %1194 {offsets = [3, 3], sizes = [4, 16], strides = [1, 1]} : vector<10x22xf32> to vector<4x16xf32>
    %1325 = vector.broadcast %1323 : f32 to vector<4x16xf32>
    %1326 = arith.mulf %1325, %1324 : vector<4x16xf32>
    %1327 = arith.addf %1322, %1326 : vector<4x16xf32>
    %c25_204 = arith.constant 25 : index
    %1328 = memref.load %arg7[%c25_204] : memref<98xf32, #tpu.memory_space<smem>>
    %1329 = vector.extract_strided_slice %1194 {offsets = [4, 3], sizes = [4, 16], strides = [1, 1]} : vector<10x22xf32> to vector<4x16xf32>
    %1330 = vector.broadcast %1328 : f32 to vector<4x16xf32>
    %1331 = arith.mulf %1330, %1329 : vector<4x16xf32>
    %1332 = arith.addf %1327, %1331 : vector<4x16xf32>
    %c26_205 = arith.constant 26 : index
    %1333 = memref.load %arg7[%c26_205] : memref<98xf32, #tpu.memory_space<smem>>
    %1334 = vector.extract_strided_slice %1194 {offsets = [5, 3], sizes = [4, 16], strides = [1, 1]} : vector<10x22xf32> to vector<4x16xf32>
    %1335 = vector.broadcast %1333 : f32 to vector<4x16xf32>
    %1336 = arith.mulf %1335, %1334 : vector<4x16xf32>
    %1337 = arith.addf %1332, %1336 : vector<4x16xf32>
    %c27_206 = arith.constant 27 : index
    %1338 = memref.load %arg7[%c27_206] : memref<98xf32, #tpu.memory_space<smem>>
    %1339 = vector.extract_strided_slice %1194 {offsets = [6, 3], sizes = [4, 16], strides = [1, 1]} : vector<10x22xf32> to vector<4x16xf32>
    %1340 = vector.broadcast %1338 : f32 to vector<4x16xf32>
    %1341 = arith.mulf %1340, %1339 : vector<4x16xf32>
    %1342 = arith.addf %1337, %1341 : vector<4x16xf32>
    %c28_207 = arith.constant 28 : index
    %1343 = memref.load %arg7[%c28_207] : memref<98xf32, #tpu.memory_space<smem>>
    %1344 = vector.extract_strided_slice %1194 {offsets = [0, 4], sizes = [4, 16], strides = [1, 1]} : vector<10x22xf32> to vector<4x16xf32>
    %1345 = vector.broadcast %1343 : f32 to vector<4x16xf32>
    %1346 = arith.mulf %1345, %1344 : vector<4x16xf32>
    %1347 = arith.addf %1342, %1346 : vector<4x16xf32>
    %c29_208 = arith.constant 29 : index
    %1348 = memref.load %arg7[%c29_208] : memref<98xf32, #tpu.memory_space<smem>>
    %1349 = vector.extract_strided_slice %1194 {offsets = [1, 4], sizes = [4, 16], strides = [1, 1]} : vector<10x22xf32> to vector<4x16xf32>
    %1350 = vector.broadcast %1348 : f32 to vector<4x16xf32>
    %1351 = arith.mulf %1350, %1349 : vector<4x16xf32>
    %1352 = arith.addf %1347, %1351 : vector<4x16xf32>
    %c30_209 = arith.constant 30 : index
    %1353 = memref.load %arg7[%c30_209] : memref<98xf32, #tpu.memory_space<smem>>
    %1354 = vector.extract_strided_slice %1194 {offsets = [2, 4], sizes = [4, 16], strides = [1, 1]} : vector<10x22xf32> to vector<4x16xf32>
    %1355 = vector.broadcast %1353 : f32 to vector<4x16xf32>
    %1356 = arith.mulf %1355, %1354 : vector<4x16xf32>
    %1357 = arith.addf %1352, %1356 : vector<4x16xf32>
    %c31_210 = arith.constant 31 : index
    %1358 = memref.load %arg7[%c31_210] : memref<98xf32, #tpu.memory_space<smem>>
    %1359 = vector.extract_strided_slice %1194 {offsets = [3, 4], sizes = [4, 16], strides = [1, 1]} : vector<10x22xf32> to vector<4x16xf32>
    %1360 = vector.broadcast %1358 : f32 to vector<4x16xf32>
    %1361 = arith.mulf %1360, %1359 : vector<4x16xf32>
    %1362 = arith.addf %1357, %1361 : vector<4x16xf32>
    %c32_211 = arith.constant 32 : index
    %1363 = memref.load %arg7[%c32_211] : memref<98xf32, #tpu.memory_space<smem>>
    %1364 = vector.extract_strided_slice %1194 {offsets = [4, 4], sizes = [4, 16], strides = [1, 1]} : vector<10x22xf32> to vector<4x16xf32>
    %1365 = vector.broadcast %1363 : f32 to vector<4x16xf32>
    %1366 = arith.mulf %1365, %1364 : vector<4x16xf32>
    %1367 = arith.addf %1362, %1366 : vector<4x16xf32>
    %c33_212 = arith.constant 33 : index
    %1368 = memref.load %arg7[%c33_212] : memref<98xf32, #tpu.memory_space<smem>>
    %1369 = vector.extract_strided_slice %1194 {offsets = [5, 4], sizes = [4, 16], strides = [1, 1]} : vector<10x22xf32> to vector<4x16xf32>
    %1370 = vector.broadcast %1368 : f32 to vector<4x16xf32>
    %1371 = arith.mulf %1370, %1369 : vector<4x16xf32>
    %1372 = arith.addf %1367, %1371 : vector<4x16xf32>
    %c34_213 = arith.constant 34 : index
    %1373 = memref.load %arg7[%c34_213] : memref<98xf32, #tpu.memory_space<smem>>
    %1374 = vector.extract_strided_slice %1194 {offsets = [6, 4], sizes = [4, 16], strides = [1, 1]} : vector<10x22xf32> to vector<4x16xf32>
    %1375 = vector.broadcast %1373 : f32 to vector<4x16xf32>
    %1376 = arith.mulf %1375, %1374 : vector<4x16xf32>
    %1377 = arith.addf %1372, %1376 : vector<4x16xf32>
    %c35_214 = arith.constant 35 : index
    %1378 = memref.load %arg7[%c35_214] : memref<98xf32, #tpu.memory_space<smem>>
    %1379 = vector.extract_strided_slice %1194 {offsets = [0, 5], sizes = [4, 16], strides = [1, 1]} : vector<10x22xf32> to vector<4x16xf32>
    %1380 = vector.broadcast %1378 : f32 to vector<4x16xf32>
    %1381 = arith.mulf %1380, %1379 : vector<4x16xf32>
    %1382 = arith.addf %1377, %1381 : vector<4x16xf32>
    %c36_215 = arith.constant 36 : index
    %1383 = memref.load %arg7[%c36_215] : memref<98xf32, #tpu.memory_space<smem>>
    %1384 = vector.extract_strided_slice %1194 {offsets = [1, 5], sizes = [4, 16], strides = [1, 1]} : vector<10x22xf32> to vector<4x16xf32>
    %1385 = vector.broadcast %1383 : f32 to vector<4x16xf32>
    %1386 = arith.mulf %1385, %1384 : vector<4x16xf32>
    %1387 = arith.addf %1382, %1386 : vector<4x16xf32>
    %c37_216 = arith.constant 37 : index
    %1388 = memref.load %arg7[%c37_216] : memref<98xf32, #tpu.memory_space<smem>>
    %1389 = vector.extract_strided_slice %1194 {offsets = [2, 5], sizes = [4, 16], strides = [1, 1]} : vector<10x22xf32> to vector<4x16xf32>
    %1390 = vector.broadcast %1388 : f32 to vector<4x16xf32>
    %1391 = arith.mulf %1390, %1389 : vector<4x16xf32>
    %1392 = arith.addf %1387, %1391 : vector<4x16xf32>
    %c38_217 = arith.constant 38 : index
    %1393 = memref.load %arg7[%c38_217] : memref<98xf32, #tpu.memory_space<smem>>
    %1394 = vector.extract_strided_slice %1194 {offsets = [3, 5], sizes = [4, 16], strides = [1, 1]} : vector<10x22xf32> to vector<4x16xf32>
    %1395 = vector.broadcast %1393 : f32 to vector<4x16xf32>
    %1396 = arith.mulf %1395, %1394 : vector<4x16xf32>
    %1397 = arith.addf %1392, %1396 : vector<4x16xf32>
    %c39_218 = arith.constant 39 : index
    %1398 = memref.load %arg7[%c39_218] : memref<98xf32, #tpu.memory_space<smem>>
    %1399 = vector.extract_strided_slice %1194 {offsets = [4, 5], sizes = [4, 16], strides = [1, 1]} : vector<10x22xf32> to vector<4x16xf32>
    %1400 = vector.broadcast %1398 : f32 to vector<4x16xf32>
    %1401 = arith.mulf %1400, %1399 : vector<4x16xf32>
    %1402 = arith.addf %1397, %1401 : vector<4x16xf32>
    %c40_219 = arith.constant 40 : index
    %1403 = memref.load %arg7[%c40_219] : memref<98xf32, #tpu.memory_space<smem>>
    %1404 = vector.extract_strided_slice %1194 {offsets = [5, 5], sizes = [4, 16], strides = [1, 1]} : vector<10x22xf32> to vector<4x16xf32>
    %1405 = vector.broadcast %1403 : f32 to vector<4x16xf32>
    %1406 = arith.mulf %1405, %1404 : vector<4x16xf32>
    %1407 = arith.addf %1402, %1406 : vector<4x16xf32>
    %c41_220 = arith.constant 41 : index
    %1408 = memref.load %arg7[%c41_220] : memref<98xf32, #tpu.memory_space<smem>>
    %1409 = vector.extract_strided_slice %1194 {offsets = [6, 5], sizes = [4, 16], strides = [1, 1]} : vector<10x22xf32> to vector<4x16xf32>
    %1410 = vector.broadcast %1408 : f32 to vector<4x16xf32>
    %1411 = arith.mulf %1410, %1409 : vector<4x16xf32>
    %1412 = arith.addf %1407, %1411 : vector<4x16xf32>
    %c42_221 = arith.constant 42 : index
    %1413 = memref.load %arg7[%c42_221] : memref<98xf32, #tpu.memory_space<smem>>
    %1414 = vector.extract_strided_slice %1194 {offsets = [0, 6], sizes = [4, 16], strides = [1, 1]} : vector<10x22xf32> to vector<4x16xf32>
    %1415 = vector.broadcast %1413 : f32 to vector<4x16xf32>
    %1416 = arith.mulf %1415, %1414 : vector<4x16xf32>
    %1417 = arith.addf %1412, %1416 : vector<4x16xf32>
    %c43_222 = arith.constant 43 : index
    %1418 = memref.load %arg7[%c43_222] : memref<98xf32, #tpu.memory_space<smem>>
    %1419 = vector.extract_strided_slice %1194 {offsets = [1, 6], sizes = [4, 16], strides = [1, 1]} : vector<10x22xf32> to vector<4x16xf32>
    %1420 = vector.broadcast %1418 : f32 to vector<4x16xf32>
    %1421 = arith.mulf %1420, %1419 : vector<4x16xf32>
    %1422 = arith.addf %1417, %1421 : vector<4x16xf32>
    %c44_223 = arith.constant 44 : index
    %1423 = memref.load %arg7[%c44_223] : memref<98xf32, #tpu.memory_space<smem>>
    %1424 = vector.extract_strided_slice %1194 {offsets = [2, 6], sizes = [4, 16], strides = [1, 1]} : vector<10x22xf32> to vector<4x16xf32>
    %1425 = vector.broadcast %1423 : f32 to vector<4x16xf32>
    %1426 = arith.mulf %1425, %1424 : vector<4x16xf32>
    %1427 = arith.addf %1422, %1426 : vector<4x16xf32>
    %c45_224 = arith.constant 45 : index
    %1428 = memref.load %arg7[%c45_224] : memref<98xf32, #tpu.memory_space<smem>>
    %1429 = vector.extract_strided_slice %1194 {offsets = [3, 6], sizes = [4, 16], strides = [1, 1]} : vector<10x22xf32> to vector<4x16xf32>
    %1430 = vector.broadcast %1428 : f32 to vector<4x16xf32>
    %1431 = arith.mulf %1430, %1429 : vector<4x16xf32>
    %1432 = arith.addf %1427, %1431 : vector<4x16xf32>
    %c46_225 = arith.constant 46 : index
    %1433 = memref.load %arg7[%c46_225] : memref<98xf32, #tpu.memory_space<smem>>
    %1434 = vector.extract_strided_slice %1194 {offsets = [4, 6], sizes = [4, 16], strides = [1, 1]} : vector<10x22xf32> to vector<4x16xf32>
    %1435 = vector.broadcast %1433 : f32 to vector<4x16xf32>
    %1436 = arith.mulf %1435, %1434 : vector<4x16xf32>
    %1437 = arith.addf %1432, %1436 : vector<4x16xf32>
    %c47_226 = arith.constant 47 : index
    %1438 = memref.load %arg7[%c47_226] : memref<98xf32, #tpu.memory_space<smem>>
    %1439 = vector.extract_strided_slice %1194 {offsets = [5, 6], sizes = [4, 16], strides = [1, 1]} : vector<10x22xf32> to vector<4x16xf32>
    %1440 = vector.broadcast %1438 : f32 to vector<4x16xf32>
    %1441 = arith.mulf %1440, %1439 : vector<4x16xf32>
    %1442 = arith.addf %1437, %1441 : vector<4x16xf32>
    %c48_227 = arith.constant 48 : index
    %1443 = memref.load %arg7[%c48_227] : memref<98xf32, #tpu.memory_space<smem>>
    %1444 = vector.extract_strided_slice %1194 {offsets = [6, 6], sizes = [4, 16], strides = [1, 1]} : vector<10x22xf32> to vector<4x16xf32>
    %1445 = vector.broadcast %1443 : f32 to vector<4x16xf32>
    %1446 = arith.mulf %1445, %1444 : vector<4x16xf32>
    %1447 = arith.addf %1442, %1446 : vector<4x16xf32>
    %c49_228 = arith.constant 49 : index
    %1448 = memref.load %arg7[%c49_228] : memref<98xf32, #tpu.memory_space<smem>>
    %1449 = vector.extract_strided_slice %1201 {offsets = [0, 0], sizes = [4, 16], strides = [1, 1]} : vector<10x22xf32> to vector<4x16xf32>
    %1450 = vector.broadcast %1448 : f32 to vector<4x16xf32>
    %1451 = arith.mulf %1450, %1449 : vector<4x16xf32>
    %1452 = arith.addf %1447, %1451 : vector<4x16xf32>
    %c50_229 = arith.constant 50 : index
    %1453 = memref.load %arg7[%c50_229] : memref<98xf32, #tpu.memory_space<smem>>
    %1454 = vector.extract_strided_slice %1201 {offsets = [1, 0], sizes = [4, 16], strides = [1, 1]} : vector<10x22xf32> to vector<4x16xf32>
    %1455 = vector.broadcast %1453 : f32 to vector<4x16xf32>
    %1456 = arith.mulf %1455, %1454 : vector<4x16xf32>
    %1457 = arith.addf %1452, %1456 : vector<4x16xf32>
    %c51_230 = arith.constant 51 : index
    %1458 = memref.load %arg7[%c51_230] : memref<98xf32, #tpu.memory_space<smem>>
    %1459 = vector.extract_strided_slice %1201 {offsets = [2, 0], sizes = [4, 16], strides = [1, 1]} : vector<10x22xf32> to vector<4x16xf32>
    %1460 = vector.broadcast %1458 : f32 to vector<4x16xf32>
    %1461 = arith.mulf %1460, %1459 : vector<4x16xf32>
    %1462 = arith.addf %1457, %1461 : vector<4x16xf32>
    %c52_231 = arith.constant 52 : index
    %1463 = memref.load %arg7[%c52_231] : memref<98xf32, #tpu.memory_space<smem>>
    %1464 = vector.extract_strided_slice %1201 {offsets = [3, 0], sizes = [4, 16], strides = [1, 1]} : vector<10x22xf32> to vector<4x16xf32>
    %1465 = vector.broadcast %1463 : f32 to vector<4x16xf32>
    %1466 = arith.mulf %1465, %1464 : vector<4x16xf32>
    %1467 = arith.addf %1462, %1466 : vector<4x16xf32>
    %c53_232 = arith.constant 53 : index
    %1468 = memref.load %arg7[%c53_232] : memref<98xf32, #tpu.memory_space<smem>>
    %1469 = vector.extract_strided_slice %1201 {offsets = [4, 0], sizes = [4, 16], strides = [1, 1]} : vector<10x22xf32> to vector<4x16xf32>
    %1470 = vector.broadcast %1468 : f32 to vector<4x16xf32>
    %1471 = arith.mulf %1470, %1469 : vector<4x16xf32>
    %1472 = arith.addf %1467, %1471 : vector<4x16xf32>
    %c54_233 = arith.constant 54 : index
    %1473 = memref.load %arg7[%c54_233] : memref<98xf32, #tpu.memory_space<smem>>
    %1474 = vector.extract_strided_slice %1201 {offsets = [5, 0], sizes = [4, 16], strides = [1, 1]} : vector<10x22xf32> to vector<4x16xf32>
    %1475 = vector.broadcast %1473 : f32 to vector<4x16xf32>
    %1476 = arith.mulf %1475, %1474 : vector<4x16xf32>
    %1477 = arith.addf %1472, %1476 : vector<4x16xf32>
    %c55_234 = arith.constant 55 : index
    %1478 = memref.load %arg7[%c55_234] : memref<98xf32, #tpu.memory_space<smem>>
    %1479 = vector.extract_strided_slice %1201 {offsets = [6, 0], sizes = [4, 16], strides = [1, 1]} : vector<10x22xf32> to vector<4x16xf32>
    %1480 = vector.broadcast %1478 : f32 to vector<4x16xf32>
    %1481 = arith.mulf %1480, %1479 : vector<4x16xf32>
    %1482 = arith.addf %1477, %1481 : vector<4x16xf32>
    %c56_235 = arith.constant 56 : index
    %1483 = memref.load %arg7[%c56_235] : memref<98xf32, #tpu.memory_space<smem>>
    %1484 = vector.extract_strided_slice %1201 {offsets = [0, 1], sizes = [4, 16], strides = [1, 1]} : vector<10x22xf32> to vector<4x16xf32>
    %1485 = vector.broadcast %1483 : f32 to vector<4x16xf32>
    %1486 = arith.mulf %1485, %1484 : vector<4x16xf32>
    %1487 = arith.addf %1482, %1486 : vector<4x16xf32>
    %c57_236 = arith.constant 57 : index
    %1488 = memref.load %arg7[%c57_236] : memref<98xf32, #tpu.memory_space<smem>>
    %1489 = vector.extract_strided_slice %1201 {offsets = [1, 1], sizes = [4, 16], strides = [1, 1]} : vector<10x22xf32> to vector<4x16xf32>
    %1490 = vector.broadcast %1488 : f32 to vector<4x16xf32>
    %1491 = arith.mulf %1490, %1489 : vector<4x16xf32>
    %1492 = arith.addf %1487, %1491 : vector<4x16xf32>
    %c58_237 = arith.constant 58 : index
    %1493 = memref.load %arg7[%c58_237] : memref<98xf32, #tpu.memory_space<smem>>
    %1494 = vector.extract_strided_slice %1201 {offsets = [2, 1], sizes = [4, 16], strides = [1, 1]} : vector<10x22xf32> to vector<4x16xf32>
    %1495 = vector.broadcast %1493 : f32 to vector<4x16xf32>
    %1496 = arith.mulf %1495, %1494 : vector<4x16xf32>
    %1497 = arith.addf %1492, %1496 : vector<4x16xf32>
    %c59_238 = arith.constant 59 : index
    %1498 = memref.load %arg7[%c59_238] : memref<98xf32, #tpu.memory_space<smem>>
    %1499 = vector.extract_strided_slice %1201 {offsets = [3, 1], sizes = [4, 16], strides = [1, 1]} : vector<10x22xf32> to vector<4x16xf32>
    %1500 = vector.broadcast %1498 : f32 to vector<4x16xf32>
    %1501 = arith.mulf %1500, %1499 : vector<4x16xf32>
    %1502 = arith.addf %1497, %1501 : vector<4x16xf32>
    %c60_239 = arith.constant 60 : index
    %1503 = memref.load %arg7[%c60_239] : memref<98xf32, #tpu.memory_space<smem>>
    %1504 = vector.extract_strided_slice %1201 {offsets = [4, 1], sizes = [4, 16], strides = [1, 1]} : vector<10x22xf32> to vector<4x16xf32>
    %1505 = vector.broadcast %1503 : f32 to vector<4x16xf32>
    %1506 = arith.mulf %1505, %1504 : vector<4x16xf32>
    %1507 = arith.addf %1502, %1506 : vector<4x16xf32>
    %c61_240 = arith.constant 61 : index
    %1508 = memref.load %arg7[%c61_240] : memref<98xf32, #tpu.memory_space<smem>>
    %1509 = vector.extract_strided_slice %1201 {offsets = [5, 1], sizes = [4, 16], strides = [1, 1]} : vector<10x22xf32> to vector<4x16xf32>
    %1510 = vector.broadcast %1508 : f32 to vector<4x16xf32>
    %1511 = arith.mulf %1510, %1509 : vector<4x16xf32>
    %1512 = arith.addf %1507, %1511 : vector<4x16xf32>
    %c62_241 = arith.constant 62 : index
    %1513 = memref.load %arg7[%c62_241] : memref<98xf32, #tpu.memory_space<smem>>
    %1514 = vector.extract_strided_slice %1201 {offsets = [6, 1], sizes = [4, 16], strides = [1, 1]} : vector<10x22xf32> to vector<4x16xf32>
    %1515 = vector.broadcast %1513 : f32 to vector<4x16xf32>
    %1516 = arith.mulf %1515, %1514 : vector<4x16xf32>
    %1517 = arith.addf %1512, %1516 : vector<4x16xf32>
    %c63_242 = arith.constant 63 : index
    %1518 = memref.load %arg7[%c63_242] : memref<98xf32, #tpu.memory_space<smem>>
    %1519 = vector.extract_strided_slice %1201 {offsets = [0, 2], sizes = [4, 16], strides = [1, 1]} : vector<10x22xf32> to vector<4x16xf32>
    %1520 = vector.broadcast %1518 : f32 to vector<4x16xf32>
    %1521 = arith.mulf %1520, %1519 : vector<4x16xf32>
    %1522 = arith.addf %1517, %1521 : vector<4x16xf32>
    %c64_243 = arith.constant 64 : index
    %1523 = memref.load %arg7[%c64_243] : memref<98xf32, #tpu.memory_space<smem>>
    %1524 = vector.extract_strided_slice %1201 {offsets = [1, 2], sizes = [4, 16], strides = [1, 1]} : vector<10x22xf32> to vector<4x16xf32>
    %1525 = vector.broadcast %1523 : f32 to vector<4x16xf32>
    %1526 = arith.mulf %1525, %1524 : vector<4x16xf32>
    %1527 = arith.addf %1522, %1526 : vector<4x16xf32>
    %c65_244 = arith.constant 65 : index
    %1528 = memref.load %arg7[%c65_244] : memref<98xf32, #tpu.memory_space<smem>>
    %1529 = vector.extract_strided_slice %1201 {offsets = [2, 2], sizes = [4, 16], strides = [1, 1]} : vector<10x22xf32> to vector<4x16xf32>
    %1530 = vector.broadcast %1528 : f32 to vector<4x16xf32>
    %1531 = arith.mulf %1530, %1529 : vector<4x16xf32>
    %1532 = arith.addf %1527, %1531 : vector<4x16xf32>
    %c66_245 = arith.constant 66 : index
    %1533 = memref.load %arg7[%c66_245] : memref<98xf32, #tpu.memory_space<smem>>
    %1534 = vector.extract_strided_slice %1201 {offsets = [3, 2], sizes = [4, 16], strides = [1, 1]} : vector<10x22xf32> to vector<4x16xf32>
    %1535 = vector.broadcast %1533 : f32 to vector<4x16xf32>
    %1536 = arith.mulf %1535, %1534 : vector<4x16xf32>
    %1537 = arith.addf %1532, %1536 : vector<4x16xf32>
    %c67_246 = arith.constant 67 : index
    %1538 = memref.load %arg7[%c67_246] : memref<98xf32, #tpu.memory_space<smem>>
    %1539 = vector.extract_strided_slice %1201 {offsets = [4, 2], sizes = [4, 16], strides = [1, 1]} : vector<10x22xf32> to vector<4x16xf32>
    %1540 = vector.broadcast %1538 : f32 to vector<4x16xf32>
    %1541 = arith.mulf %1540, %1539 : vector<4x16xf32>
    %1542 = arith.addf %1537, %1541 : vector<4x16xf32>
    %c68_247 = arith.constant 68 : index
    %1543 = memref.load %arg7[%c68_247] : memref<98xf32, #tpu.memory_space<smem>>
    %1544 = vector.extract_strided_slice %1201 {offsets = [5, 2], sizes = [4, 16], strides = [1, 1]} : vector<10x22xf32> to vector<4x16xf32>
    %1545 = vector.broadcast %1543 : f32 to vector<4x16xf32>
    %1546 = arith.mulf %1545, %1544 : vector<4x16xf32>
    %1547 = arith.addf %1542, %1546 : vector<4x16xf32>
    %c69_248 = arith.constant 69 : index
    %1548 = memref.load %arg7[%c69_248] : memref<98xf32, #tpu.memory_space<smem>>
    %1549 = vector.extract_strided_slice %1201 {offsets = [6, 2], sizes = [4, 16], strides = [1, 1]} : vector<10x22xf32> to vector<4x16xf32>
    %1550 = vector.broadcast %1548 : f32 to vector<4x16xf32>
    %1551 = arith.mulf %1550, %1549 : vector<4x16xf32>
    %1552 = arith.addf %1547, %1551 : vector<4x16xf32>
    %c70_249 = arith.constant 70 : index
    %1553 = memref.load %arg7[%c70_249] : memref<98xf32, #tpu.memory_space<smem>>
    %1554 = vector.extract_strided_slice %1201 {offsets = [0, 3], sizes = [4, 16], strides = [1, 1]} : vector<10x22xf32> to vector<4x16xf32>
    %1555 = vector.broadcast %1553 : f32 to vector<4x16xf32>
    %1556 = arith.mulf %1555, %1554 : vector<4x16xf32>
    %1557 = arith.addf %1552, %1556 : vector<4x16xf32>
    %c71_250 = arith.constant 71 : index
    %1558 = memref.load %arg7[%c71_250] : memref<98xf32, #tpu.memory_space<smem>>
    %1559 = vector.extract_strided_slice %1201 {offsets = [1, 3], sizes = [4, 16], strides = [1, 1]} : vector<10x22xf32> to vector<4x16xf32>
    %1560 = vector.broadcast %1558 : f32 to vector<4x16xf32>
    %1561 = arith.mulf %1560, %1559 : vector<4x16xf32>
    %1562 = arith.addf %1557, %1561 : vector<4x16xf32>
    %c72_251 = arith.constant 72 : index
    %1563 = memref.load %arg7[%c72_251] : memref<98xf32, #tpu.memory_space<smem>>
    %1564 = vector.extract_strided_slice %1201 {offsets = [2, 3], sizes = [4, 16], strides = [1, 1]} : vector<10x22xf32> to vector<4x16xf32>
    %1565 = vector.broadcast %1563 : f32 to vector<4x16xf32>
    %1566 = arith.mulf %1565, %1564 : vector<4x16xf32>
    %1567 = arith.addf %1562, %1566 : vector<4x16xf32>
    %c73_252 = arith.constant 73 : index
    %1568 = memref.load %arg7[%c73_252] : memref<98xf32, #tpu.memory_space<smem>>
    %1569 = vector.extract_strided_slice %1201 {offsets = [3, 3], sizes = [4, 16], strides = [1, 1]} : vector<10x22xf32> to vector<4x16xf32>
    %1570 = vector.broadcast %1568 : f32 to vector<4x16xf32>
    %1571 = arith.mulf %1570, %1569 : vector<4x16xf32>
    %1572 = arith.addf %1567, %1571 : vector<4x16xf32>
    %c74_253 = arith.constant 74 : index
    %1573 = memref.load %arg7[%c74_253] : memref<98xf32, #tpu.memory_space<smem>>
    %1574 = vector.extract_strided_slice %1201 {offsets = [4, 3], sizes = [4, 16], strides = [1, 1]} : vector<10x22xf32> to vector<4x16xf32>
    %1575 = vector.broadcast %1573 : f32 to vector<4x16xf32>
    %1576 = arith.mulf %1575, %1574 : vector<4x16xf32>
    %1577 = arith.addf %1572, %1576 : vector<4x16xf32>
    %c75_254 = arith.constant 75 : index
    %1578 = memref.load %arg7[%c75_254] : memref<98xf32, #tpu.memory_space<smem>>
    %1579 = vector.extract_strided_slice %1201 {offsets = [5, 3], sizes = [4, 16], strides = [1, 1]} : vector<10x22xf32> to vector<4x16xf32>
    %1580 = vector.broadcast %1578 : f32 to vector<4x16xf32>
    %1581 = arith.mulf %1580, %1579 : vector<4x16xf32>
    %1582 = arith.addf %1577, %1581 : vector<4x16xf32>
    %c76_255 = arith.constant 76 : index
    %1583 = memref.load %arg7[%c76_255] : memref<98xf32, #tpu.memory_space<smem>>
    %1584 = vector.extract_strided_slice %1201 {offsets = [6, 3], sizes = [4, 16], strides = [1, 1]} : vector<10x22xf32> to vector<4x16xf32>
    %1585 = vector.broadcast %1583 : f32 to vector<4x16xf32>
    %1586 = arith.mulf %1585, %1584 : vector<4x16xf32>
    %1587 = arith.addf %1582, %1586 : vector<4x16xf32>
    %c77_256 = arith.constant 77 : index
    %1588 = memref.load %arg7[%c77_256] : memref<98xf32, #tpu.memory_space<smem>>
    %1589 = vector.extract_strided_slice %1201 {offsets = [0, 4], sizes = [4, 16], strides = [1, 1]} : vector<10x22xf32> to vector<4x16xf32>
    %1590 = vector.broadcast %1588 : f32 to vector<4x16xf32>
    %1591 = arith.mulf %1590, %1589 : vector<4x16xf32>
    %1592 = arith.addf %1587, %1591 : vector<4x16xf32>
    %c78_257 = arith.constant 78 : index
    %1593 = memref.load %arg7[%c78_257] : memref<98xf32, #tpu.memory_space<smem>>
    %1594 = vector.extract_strided_slice %1201 {offsets = [1, 4], sizes = [4, 16], strides = [1, 1]} : vector<10x22xf32> to vector<4x16xf32>
    %1595 = vector.broadcast %1593 : f32 to vector<4x16xf32>
    %1596 = arith.mulf %1595, %1594 : vector<4x16xf32>
    %1597 = arith.addf %1592, %1596 : vector<4x16xf32>
    %c79_258 = arith.constant 79 : index
    %1598 = memref.load %arg7[%c79_258] : memref<98xf32, #tpu.memory_space<smem>>
    %1599 = vector.extract_strided_slice %1201 {offsets = [2, 4], sizes = [4, 16], strides = [1, 1]} : vector<10x22xf32> to vector<4x16xf32>
    %1600 = vector.broadcast %1598 : f32 to vector<4x16xf32>
    %1601 = arith.mulf %1600, %1599 : vector<4x16xf32>
    %1602 = arith.addf %1597, %1601 : vector<4x16xf32>
    %c80_259 = arith.constant 80 : index
    %1603 = memref.load %arg7[%c80_259] : memref<98xf32, #tpu.memory_space<smem>>
    %1604 = vector.extract_strided_slice %1201 {offsets = [3, 4], sizes = [4, 16], strides = [1, 1]} : vector<10x22xf32> to vector<4x16xf32>
    %1605 = vector.broadcast %1603 : f32 to vector<4x16xf32>
    %1606 = arith.mulf %1605, %1604 : vector<4x16xf32>
    %1607 = arith.addf %1602, %1606 : vector<4x16xf32>
    %c81_260 = arith.constant 81 : index
    %1608 = memref.load %arg7[%c81_260] : memref<98xf32, #tpu.memory_space<smem>>
    %1609 = vector.extract_strided_slice %1201 {offsets = [4, 4], sizes = [4, 16], strides = [1, 1]} : vector<10x22xf32> to vector<4x16xf32>
    %1610 = vector.broadcast %1608 : f32 to vector<4x16xf32>
    %1611 = arith.mulf %1610, %1609 : vector<4x16xf32>
    %1612 = arith.addf %1607, %1611 : vector<4x16xf32>
    %c82_261 = arith.constant 82 : index
    %1613 = memref.load %arg7[%c82_261] : memref<98xf32, #tpu.memory_space<smem>>
    %1614 = vector.extract_strided_slice %1201 {offsets = [5, 4], sizes = [4, 16], strides = [1, 1]} : vector<10x22xf32> to vector<4x16xf32>
    %1615 = vector.broadcast %1613 : f32 to vector<4x16xf32>
    %1616 = arith.mulf %1615, %1614 : vector<4x16xf32>
    %1617 = arith.addf %1612, %1616 : vector<4x16xf32>
    %c83_262 = arith.constant 83 : index
    %1618 = memref.load %arg7[%c83_262] : memref<98xf32, #tpu.memory_space<smem>>
    %1619 = vector.extract_strided_slice %1201 {offsets = [6, 4], sizes = [4, 16], strides = [1, 1]} : vector<10x22xf32> to vector<4x16xf32>
    %1620 = vector.broadcast %1618 : f32 to vector<4x16xf32>
    %1621 = arith.mulf %1620, %1619 : vector<4x16xf32>
    %1622 = arith.addf %1617, %1621 : vector<4x16xf32>
    %c84_263 = arith.constant 84 : index
    %1623 = memref.load %arg7[%c84_263] : memref<98xf32, #tpu.memory_space<smem>>
    %1624 = vector.extract_strided_slice %1201 {offsets = [0, 5], sizes = [4, 16], strides = [1, 1]} : vector<10x22xf32> to vector<4x16xf32>
    %1625 = vector.broadcast %1623 : f32 to vector<4x16xf32>
    %1626 = arith.mulf %1625, %1624 : vector<4x16xf32>
    %1627 = arith.addf %1622, %1626 : vector<4x16xf32>
    %c85_264 = arith.constant 85 : index
    %1628 = memref.load %arg7[%c85_264] : memref<98xf32, #tpu.memory_space<smem>>
    %1629 = vector.extract_strided_slice %1201 {offsets = [1, 5], sizes = [4, 16], strides = [1, 1]} : vector<10x22xf32> to vector<4x16xf32>
    %1630 = vector.broadcast %1628 : f32 to vector<4x16xf32>
    %1631 = arith.mulf %1630, %1629 : vector<4x16xf32>
    %1632 = arith.addf %1627, %1631 : vector<4x16xf32>
    %c86_265 = arith.constant 86 : index
    %1633 = memref.load %arg7[%c86_265] : memref<98xf32, #tpu.memory_space<smem>>
    %1634 = vector.extract_strided_slice %1201 {offsets = [2, 5], sizes = [4, 16], strides = [1, 1]} : vector<10x22xf32> to vector<4x16xf32>
    %1635 = vector.broadcast %1633 : f32 to vector<4x16xf32>
    %1636 = arith.mulf %1635, %1634 : vector<4x16xf32>
    %1637 = arith.addf %1632, %1636 : vector<4x16xf32>
    %c87_266 = arith.constant 87 : index
    %1638 = memref.load %arg7[%c87_266] : memref<98xf32, #tpu.memory_space<smem>>
    %1639 = vector.extract_strided_slice %1201 {offsets = [3, 5], sizes = [4, 16], strides = [1, 1]} : vector<10x22xf32> to vector<4x16xf32>
    %1640 = vector.broadcast %1638 : f32 to vector<4x16xf32>
    %1641 = arith.mulf %1640, %1639 : vector<4x16xf32>
    %1642 = arith.addf %1637, %1641 : vector<4x16xf32>
    %c88_267 = arith.constant 88 : index
    %1643 = memref.load %arg7[%c88_267] : memref<98xf32, #tpu.memory_space<smem>>
    %1644 = vector.extract_strided_slice %1201 {offsets = [4, 5], sizes = [4, 16], strides = [1, 1]} : vector<10x22xf32> to vector<4x16xf32>
    %1645 = vector.broadcast %1643 : f32 to vector<4x16xf32>
    %1646 = arith.mulf %1645, %1644 : vector<4x16xf32>
    %1647 = arith.addf %1642, %1646 : vector<4x16xf32>
    %c89_268 = arith.constant 89 : index
    %1648 = memref.load %arg7[%c89_268] : memref<98xf32, #tpu.memory_space<smem>>
    %1649 = vector.extract_strided_slice %1201 {offsets = [5, 5], sizes = [4, 16], strides = [1, 1]} : vector<10x22xf32> to vector<4x16xf32>
    %1650 = vector.broadcast %1648 : f32 to vector<4x16xf32>
    %1651 = arith.mulf %1650, %1649 : vector<4x16xf32>
    %1652 = arith.addf %1647, %1651 : vector<4x16xf32>
    %c90_269 = arith.constant 90 : index
    %1653 = memref.load %arg7[%c90_269] : memref<98xf32, #tpu.memory_space<smem>>
    %1654 = vector.extract_strided_slice %1201 {offsets = [6, 5], sizes = [4, 16], strides = [1, 1]} : vector<10x22xf32> to vector<4x16xf32>
    %1655 = vector.broadcast %1653 : f32 to vector<4x16xf32>
    %1656 = arith.mulf %1655, %1654 : vector<4x16xf32>
    %1657 = arith.addf %1652, %1656 : vector<4x16xf32>
    %c91_270 = arith.constant 91 : index
    %1658 = memref.load %arg7[%c91_270] : memref<98xf32, #tpu.memory_space<smem>>
    %1659 = vector.extract_strided_slice %1201 {offsets = [0, 6], sizes = [4, 16], strides = [1, 1]} : vector<10x22xf32> to vector<4x16xf32>
    %1660 = vector.broadcast %1658 : f32 to vector<4x16xf32>
    %1661 = arith.mulf %1660, %1659 : vector<4x16xf32>
    %1662 = arith.addf %1657, %1661 : vector<4x16xf32>
    %c92_271 = arith.constant 92 : index
    %1663 = memref.load %arg7[%c92_271] : memref<98xf32, #tpu.memory_space<smem>>
    %1664 = vector.extract_strided_slice %1201 {offsets = [1, 6], sizes = [4, 16], strides = [1, 1]} : vector<10x22xf32> to vector<4x16xf32>
    %1665 = vector.broadcast %1663 : f32 to vector<4x16xf32>
    %1666 = arith.mulf %1665, %1664 : vector<4x16xf32>
    %1667 = arith.addf %1662, %1666 : vector<4x16xf32>
    %c93_272 = arith.constant 93 : index
    %1668 = memref.load %arg7[%c93_272] : memref<98xf32, #tpu.memory_space<smem>>
    %1669 = vector.extract_strided_slice %1201 {offsets = [2, 6], sizes = [4, 16], strides = [1, 1]} : vector<10x22xf32> to vector<4x16xf32>
    %1670 = vector.broadcast %1668 : f32 to vector<4x16xf32>
    %1671 = arith.mulf %1670, %1669 : vector<4x16xf32>
    %1672 = arith.addf %1667, %1671 : vector<4x16xf32>
    %c94_273 = arith.constant 94 : index
    %1673 = memref.load %arg7[%c94_273] : memref<98xf32, #tpu.memory_space<smem>>
    %1674 = vector.extract_strided_slice %1201 {offsets = [3, 6], sizes = [4, 16], strides = [1, 1]} : vector<10x22xf32> to vector<4x16xf32>
    %1675 = vector.broadcast %1673 : f32 to vector<4x16xf32>
    %1676 = arith.mulf %1675, %1674 : vector<4x16xf32>
    %1677 = arith.addf %1672, %1676 : vector<4x16xf32>
    %c95_274 = arith.constant 95 : index
    %1678 = memref.load %arg7[%c95_274] : memref<98xf32, #tpu.memory_space<smem>>
    %1679 = vector.extract_strided_slice %1201 {offsets = [4, 6], sizes = [4, 16], strides = [1, 1]} : vector<10x22xf32> to vector<4x16xf32>
    %1680 = vector.broadcast %1678 : f32 to vector<4x16xf32>
    %1681 = arith.mulf %1680, %1679 : vector<4x16xf32>
    %1682 = arith.addf %1677, %1681 : vector<4x16xf32>
    %c96_275 = arith.constant 96 : index
    %1683 = memref.load %arg7[%c96_275] : memref<98xf32, #tpu.memory_space<smem>>
    %1684 = vector.extract_strided_slice %1201 {offsets = [5, 6], sizes = [4, 16], strides = [1, 1]} : vector<10x22xf32> to vector<4x16xf32>
    %1685 = vector.broadcast %1683 : f32 to vector<4x16xf32>
    %1686 = arith.mulf %1685, %1684 : vector<4x16xf32>
    %1687 = arith.addf %1682, %1686 : vector<4x16xf32>
    %c97_276 = arith.constant 97 : index
    %1688 = memref.load %arg7[%c97_276] : memref<98xf32, #tpu.memory_space<smem>>
    %1689 = vector.extract_strided_slice %1201 {offsets = [6, 6], sizes = [4, 16], strides = [1, 1]} : vector<10x22xf32> to vector<4x16xf32>
    %1690 = vector.broadcast %1688 : f32 to vector<4x16xf32>
    %1691 = arith.mulf %1690, %1689 : vector<4x16xf32>
    %1692 = arith.addf %1687, %1691 : vector<4x16xf32>
    %1693 = vector.extract_strided_slice %119 {offsets = [4, 0], sizes = [4, 16], strides = [1, 1]} : vector<8x16xf32> to vector<4x16xf32>
    %cst_277 = arith.constant 0.000000e+00 : f32
    %1694 = vector.broadcast %cst_277 : f32 to vector<2x16xf32>
    %cst_278 = arith.constant 0.000000e+00 : f32
    %1695 = vector.broadcast %cst_278 : f32 to vector<2x16xf32>
    %1696 = tpu.concatenate %1694, %1693, %1695 in 0 : vector<2x16xf32>, vector<4x16xf32>, vector<2x16xf32> -> vector<8x16xf32>
    %cst_279 = arith.constant 0.000000e+00 : f32
    %1697 = vector.broadcast %cst_279 : f32 to vector<8x2xf32>
    %cst_280 = arith.constant 0.000000e+00 : f32
    %1698 = vector.broadcast %cst_280 : f32 to vector<8x2xf32>
    %1699 = tpu.concatenate %1697, %1696, %1698 in 1 : vector<8x2xf32>, vector<8x16xf32>, vector<8x2xf32> -> vector<8x20xf32>
    %1700 = vector.extract_strided_slice %136 {offsets = [4, 0], sizes = [4, 16], strides = [1, 1]} : vector<8x16xf32> to vector<4x16xf32>
    %cst_281 = arith.constant 0.000000e+00 : f32
    %1701 = vector.broadcast %cst_281 : f32 to vector<2x16xf32>
    %cst_282 = arith.constant 0.000000e+00 : f32
    %1702 = vector.broadcast %cst_282 : f32 to vector<2x16xf32>
    %1703 = tpu.concatenate %1701, %1700, %1702 in 0 : vector<2x16xf32>, vector<4x16xf32>, vector<2x16xf32> -> vector<8x16xf32>
    %cst_283 = arith.constant 0.000000e+00 : f32
    %1704 = vector.broadcast %cst_283 : f32 to vector<8x2xf32>
    %cst_284 = arith.constant 0.000000e+00 : f32
    %1705 = vector.broadcast %cst_284 : f32 to vector<8x2xf32>
    %1706 = tpu.concatenate %1704, %1703, %1705 in 1 : vector<8x2xf32>, vector<8x16xf32>, vector<8x2xf32> -> vector<8x20xf32>
    %cst_285 = arith.constant 0.000000e+00 : f32
    %1707 = vector.broadcast %cst_285 : f32 to vector<4x16xf32>
    %c0_286 = arith.constant 0 : index
    %1708 = memref.load %arg8[%c0_286] : memref<50xf32, #tpu.memory_space<smem>>
    %1709 = vector.extract_strided_slice %1699 {offsets = [0, 0], sizes = [4, 16], strides = [1, 1]} : vector<8x20xf32> to vector<4x16xf32>
    %1710 = vector.broadcast %1708 : f32 to vector<4x16xf32>
    %1711 = arith.mulf %1710, %1709 : vector<4x16xf32>
    %1712 = arith.addf %1707, %1711 : vector<4x16xf32>
    %c1_287 = arith.constant 1 : index
    %1713 = memref.load %arg8[%c1_287] : memref<50xf32, #tpu.memory_space<smem>>
    %1714 = vector.extract_strided_slice %1699 {offsets = [0, 1], sizes = [4, 16], strides = [1, 1]} : vector<8x20xf32> to vector<4x16xf32>
    %1715 = vector.broadcast %1713 : f32 to vector<4x16xf32>
    %1716 = arith.mulf %1715, %1714 : vector<4x16xf32>
    %1717 = arith.addf %1712, %1716 : vector<4x16xf32>
    %c2_288 = arith.constant 2 : index
    %1718 = memref.load %arg8[%c2_288] : memref<50xf32, #tpu.memory_space<smem>>
    %1719 = vector.extract_strided_slice %1699 {offsets = [0, 2], sizes = [4, 16], strides = [1, 1]} : vector<8x20xf32> to vector<4x16xf32>
    %1720 = vector.broadcast %1718 : f32 to vector<4x16xf32>
    %1721 = arith.mulf %1720, %1719 : vector<4x16xf32>
    %1722 = arith.addf %1717, %1721 : vector<4x16xf32>
    %c3_289 = arith.constant 3 : index
    %1723 = memref.load %arg8[%c3_289] : memref<50xf32, #tpu.memory_space<smem>>
    %1724 = vector.extract_strided_slice %1699 {offsets = [0, 3], sizes = [4, 16], strides = [1, 1]} : vector<8x20xf32> to vector<4x16xf32>
    %1725 = vector.broadcast %1723 : f32 to vector<4x16xf32>
    %1726 = arith.mulf %1725, %1724 : vector<4x16xf32>
    %1727 = arith.addf %1722, %1726 : vector<4x16xf32>
    %c4_290 = arith.constant 4 : index
    %1728 = memref.load %arg8[%c4_290] : memref<50xf32, #tpu.memory_space<smem>>
    %1729 = vector.extract_strided_slice %1699 {offsets = [0, 4], sizes = [4, 16], strides = [1, 1]} : vector<8x20xf32> to vector<4x16xf32>
    %1730 = vector.broadcast %1728 : f32 to vector<4x16xf32>
    %1731 = arith.mulf %1730, %1729 : vector<4x16xf32>
    %1732 = arith.addf %1727, %1731 : vector<4x16xf32>
    %c5_291 = arith.constant 5 : index
    %1733 = memref.load %arg8[%c5_291] : memref<50xf32, #tpu.memory_space<smem>>
    %1734 = vector.extract_strided_slice %1699 {offsets = [1, 0], sizes = [4, 16], strides = [1, 1]} : vector<8x20xf32> to vector<4x16xf32>
    %1735 = vector.broadcast %1733 : f32 to vector<4x16xf32>
    %1736 = arith.mulf %1735, %1734 : vector<4x16xf32>
    %1737 = arith.addf %1732, %1736 : vector<4x16xf32>
    %c6_292 = arith.constant 6 : index
    %1738 = memref.load %arg8[%c6_292] : memref<50xf32, #tpu.memory_space<smem>>
    %1739 = vector.extract_strided_slice %1699 {offsets = [1, 1], sizes = [4, 16], strides = [1, 1]} : vector<8x20xf32> to vector<4x16xf32>
    %1740 = vector.broadcast %1738 : f32 to vector<4x16xf32>
    %1741 = arith.mulf %1740, %1739 : vector<4x16xf32>
    %1742 = arith.addf %1737, %1741 : vector<4x16xf32>
    %c7_293 = arith.constant 7 : index
    %1743 = memref.load %arg8[%c7_293] : memref<50xf32, #tpu.memory_space<smem>>
    %1744 = vector.extract_strided_slice %1699 {offsets = [1, 2], sizes = [4, 16], strides = [1, 1]} : vector<8x20xf32> to vector<4x16xf32>
    %1745 = vector.broadcast %1743 : f32 to vector<4x16xf32>
    %1746 = arith.mulf %1745, %1744 : vector<4x16xf32>
    %1747 = arith.addf %1742, %1746 : vector<4x16xf32>
    %c8_294 = arith.constant 8 : index
    %1748 = memref.load %arg8[%c8_294] : memref<50xf32, #tpu.memory_space<smem>>
    %1749 = vector.extract_strided_slice %1699 {offsets = [1, 3], sizes = [4, 16], strides = [1, 1]} : vector<8x20xf32> to vector<4x16xf32>
    %1750 = vector.broadcast %1748 : f32 to vector<4x16xf32>
    %1751 = arith.mulf %1750, %1749 : vector<4x16xf32>
    %1752 = arith.addf %1747, %1751 : vector<4x16xf32>
    %c9_295 = arith.constant 9 : index
    %1753 = memref.load %arg8[%c9_295] : memref<50xf32, #tpu.memory_space<smem>>
    %1754 = vector.extract_strided_slice %1699 {offsets = [1, 4], sizes = [4, 16], strides = [1, 1]} : vector<8x20xf32> to vector<4x16xf32>
    %1755 = vector.broadcast %1753 : f32 to vector<4x16xf32>
    %1756 = arith.mulf %1755, %1754 : vector<4x16xf32>
    %1757 = arith.addf %1752, %1756 : vector<4x16xf32>
    %c10_296 = arith.constant 10 : index
    %1758 = memref.load %arg8[%c10_296] : memref<50xf32, #tpu.memory_space<smem>>
    %1759 = vector.extract_strided_slice %1699 {offsets = [2, 0], sizes = [4, 16], strides = [1, 1]} : vector<8x20xf32> to vector<4x16xf32>
    %1760 = vector.broadcast %1758 : f32 to vector<4x16xf32>
    %1761 = arith.mulf %1760, %1759 : vector<4x16xf32>
    %1762 = arith.addf %1757, %1761 : vector<4x16xf32>
    %c11_297 = arith.constant 11 : index
    %1763 = memref.load %arg8[%c11_297] : memref<50xf32, #tpu.memory_space<smem>>
    %1764 = vector.extract_strided_slice %1699 {offsets = [2, 1], sizes = [4, 16], strides = [1, 1]} : vector<8x20xf32> to vector<4x16xf32>
    %1765 = vector.broadcast %1763 : f32 to vector<4x16xf32>
    %1766 = arith.mulf %1765, %1764 : vector<4x16xf32>
    %1767 = arith.addf %1762, %1766 : vector<4x16xf32>
    %c12_298 = arith.constant 12 : index
    %1768 = memref.load %arg8[%c12_298] : memref<50xf32, #tpu.memory_space<smem>>
    %1769 = vector.extract_strided_slice %1699 {offsets = [2, 2], sizes = [4, 16], strides = [1, 1]} : vector<8x20xf32> to vector<4x16xf32>
    %1770 = vector.broadcast %1768 : f32 to vector<4x16xf32>
    %1771 = arith.mulf %1770, %1769 : vector<4x16xf32>
    %1772 = arith.addf %1767, %1771 : vector<4x16xf32>
    %c13_299 = arith.constant 13 : index
    %1773 = memref.load %arg8[%c13_299] : memref<50xf32, #tpu.memory_space<smem>>
    %1774 = vector.extract_strided_slice %1699 {offsets = [2, 3], sizes = [4, 16], strides = [1, 1]} : vector<8x20xf32> to vector<4x16xf32>
    %1775 = vector.broadcast %1773 : f32 to vector<4x16xf32>
    %1776 = arith.mulf %1775, %1774 : vector<4x16xf32>
    %1777 = arith.addf %1772, %1776 : vector<4x16xf32>
    %c14_300 = arith.constant 14 : index
    %1778 = memref.load %arg8[%c14_300] : memref<50xf32, #tpu.memory_space<smem>>
    %1779 = vector.extract_strided_slice %1699 {offsets = [2, 4], sizes = [4, 16], strides = [1, 1]} : vector<8x20xf32> to vector<4x16xf32>
    %1780 = vector.broadcast %1778 : f32 to vector<4x16xf32>
    %1781 = arith.mulf %1780, %1779 : vector<4x16xf32>
    %1782 = arith.addf %1777, %1781 : vector<4x16xf32>
    %c15_301 = arith.constant 15 : index
    %1783 = memref.load %arg8[%c15_301] : memref<50xf32, #tpu.memory_space<smem>>
    %1784 = vector.extract_strided_slice %1699 {offsets = [3, 0], sizes = [4, 16], strides = [1, 1]} : vector<8x20xf32> to vector<4x16xf32>
    %1785 = vector.broadcast %1783 : f32 to vector<4x16xf32>
    %1786 = arith.mulf %1785, %1784 : vector<4x16xf32>
    %1787 = arith.addf %1782, %1786 : vector<4x16xf32>
    %c16_302 = arith.constant 16 : index
    %1788 = memref.load %arg8[%c16_302] : memref<50xf32, #tpu.memory_space<smem>>
    %1789 = vector.extract_strided_slice %1699 {offsets = [3, 1], sizes = [4, 16], strides = [1, 1]} : vector<8x20xf32> to vector<4x16xf32>
    %1790 = vector.broadcast %1788 : f32 to vector<4x16xf32>
    %1791 = arith.mulf %1790, %1789 : vector<4x16xf32>
    %1792 = arith.addf %1787, %1791 : vector<4x16xf32>
    %c17_303 = arith.constant 17 : index
    %1793 = memref.load %arg8[%c17_303] : memref<50xf32, #tpu.memory_space<smem>>
    %1794 = vector.extract_strided_slice %1699 {offsets = [3, 2], sizes = [4, 16], strides = [1, 1]} : vector<8x20xf32> to vector<4x16xf32>
    %1795 = vector.broadcast %1793 : f32 to vector<4x16xf32>
    %1796 = arith.mulf %1795, %1794 : vector<4x16xf32>
    %1797 = arith.addf %1792, %1796 : vector<4x16xf32>
    %c18_304 = arith.constant 18 : index
    %1798 = memref.load %arg8[%c18_304] : memref<50xf32, #tpu.memory_space<smem>>
    %1799 = vector.extract_strided_slice %1699 {offsets = [3, 3], sizes = [4, 16], strides = [1, 1]} : vector<8x20xf32> to vector<4x16xf32>
    %1800 = vector.broadcast %1798 : f32 to vector<4x16xf32>
    %1801 = arith.mulf %1800, %1799 : vector<4x16xf32>
    %1802 = arith.addf %1797, %1801 : vector<4x16xf32>
    %c19_305 = arith.constant 19 : index
    %1803 = memref.load %arg8[%c19_305] : memref<50xf32, #tpu.memory_space<smem>>
    %1804 = vector.extract_strided_slice %1699 {offsets = [3, 4], sizes = [4, 16], strides = [1, 1]} : vector<8x20xf32> to vector<4x16xf32>
    %1805 = vector.broadcast %1803 : f32 to vector<4x16xf32>
    %1806 = arith.mulf %1805, %1804 : vector<4x16xf32>
    %1807 = arith.addf %1802, %1806 : vector<4x16xf32>
    %c20_306 = arith.constant 20 : index
    %1808 = memref.load %arg8[%c20_306] : memref<50xf32, #tpu.memory_space<smem>>
    %1809 = vector.extract_strided_slice %1699 {offsets = [4, 0], sizes = [4, 16], strides = [1, 1]} : vector<8x20xf32> to vector<4x16xf32>
    %1810 = vector.broadcast %1808 : f32 to vector<4x16xf32>
    %1811 = arith.mulf %1810, %1809 : vector<4x16xf32>
    %1812 = arith.addf %1807, %1811 : vector<4x16xf32>
    %c21_307 = arith.constant 21 : index
    %1813 = memref.load %arg8[%c21_307] : memref<50xf32, #tpu.memory_space<smem>>
    %1814 = vector.extract_strided_slice %1699 {offsets = [4, 1], sizes = [4, 16], strides = [1, 1]} : vector<8x20xf32> to vector<4x16xf32>
    %1815 = vector.broadcast %1813 : f32 to vector<4x16xf32>
    %1816 = arith.mulf %1815, %1814 : vector<4x16xf32>
    %1817 = arith.addf %1812, %1816 : vector<4x16xf32>
    %c22_308 = arith.constant 22 : index
    %1818 = memref.load %arg8[%c22_308] : memref<50xf32, #tpu.memory_space<smem>>
    %1819 = vector.extract_strided_slice %1699 {offsets = [4, 2], sizes = [4, 16], strides = [1, 1]} : vector<8x20xf32> to vector<4x16xf32>
    %1820 = vector.broadcast %1818 : f32 to vector<4x16xf32>
    %1821 = arith.mulf %1820, %1819 : vector<4x16xf32>
    %1822 = arith.addf %1817, %1821 : vector<4x16xf32>
    %c23_309 = arith.constant 23 : index
    %1823 = memref.load %arg8[%c23_309] : memref<50xf32, #tpu.memory_space<smem>>
    %1824 = vector.extract_strided_slice %1699 {offsets = [4, 3], sizes = [4, 16], strides = [1, 1]} : vector<8x20xf32> to vector<4x16xf32>
    %1825 = vector.broadcast %1823 : f32 to vector<4x16xf32>
    %1826 = arith.mulf %1825, %1824 : vector<4x16xf32>
    %1827 = arith.addf %1822, %1826 : vector<4x16xf32>
    %c24_310 = arith.constant 24 : index
    %1828 = memref.load %arg8[%c24_310] : memref<50xf32, #tpu.memory_space<smem>>
    %1829 = vector.extract_strided_slice %1699 {offsets = [4, 4], sizes = [4, 16], strides = [1, 1]} : vector<8x20xf32> to vector<4x16xf32>
    %1830 = vector.broadcast %1828 : f32 to vector<4x16xf32>
    %1831 = arith.mulf %1830, %1829 : vector<4x16xf32>
    %1832 = arith.addf %1827, %1831 : vector<4x16xf32>
    %c25_311 = arith.constant 25 : index
    %1833 = memref.load %arg8[%c25_311] : memref<50xf32, #tpu.memory_space<smem>>
    %1834 = vector.extract_strided_slice %1706 {offsets = [0, 0], sizes = [4, 16], strides = [1, 1]} : vector<8x20xf32> to vector<4x16xf32>
    %1835 = vector.broadcast %1833 : f32 to vector<4x16xf32>
    %1836 = arith.mulf %1835, %1834 : vector<4x16xf32>
    %1837 = arith.addf %1832, %1836 : vector<4x16xf32>
    %c26_312 = arith.constant 26 : index
    %1838 = memref.load %arg8[%c26_312] : memref<50xf32, #tpu.memory_space<smem>>
    %1839 = vector.extract_strided_slice %1706 {offsets = [0, 1], sizes = [4, 16], strides = [1, 1]} : vector<8x20xf32> to vector<4x16xf32>
    %1840 = vector.broadcast %1838 : f32 to vector<4x16xf32>
    %1841 = arith.mulf %1840, %1839 : vector<4x16xf32>
    %1842 = arith.addf %1837, %1841 : vector<4x16xf32>
    %c27_313 = arith.constant 27 : index
    %1843 = memref.load %arg8[%c27_313] : memref<50xf32, #tpu.memory_space<smem>>
    %1844 = vector.extract_strided_slice %1706 {offsets = [0, 2], sizes = [4, 16], strides = [1, 1]} : vector<8x20xf32> to vector<4x16xf32>
    %1845 = vector.broadcast %1843 : f32 to vector<4x16xf32>
    %1846 = arith.mulf %1845, %1844 : vector<4x16xf32>
    %1847 = arith.addf %1842, %1846 : vector<4x16xf32>
    %c28_314 = arith.constant 28 : index
    %1848 = memref.load %arg8[%c28_314] : memref<50xf32, #tpu.memory_space<smem>>
    %1849 = vector.extract_strided_slice %1706 {offsets = [0, 3], sizes = [4, 16], strides = [1, 1]} : vector<8x20xf32> to vector<4x16xf32>
    %1850 = vector.broadcast %1848 : f32 to vector<4x16xf32>
    %1851 = arith.mulf %1850, %1849 : vector<4x16xf32>
    %1852 = arith.addf %1847, %1851 : vector<4x16xf32>
    %c29_315 = arith.constant 29 : index
    %1853 = memref.load %arg8[%c29_315] : memref<50xf32, #tpu.memory_space<smem>>
    %1854 = vector.extract_strided_slice %1706 {offsets = [0, 4], sizes = [4, 16], strides = [1, 1]} : vector<8x20xf32> to vector<4x16xf32>
    %1855 = vector.broadcast %1853 : f32 to vector<4x16xf32>
    %1856 = arith.mulf %1855, %1854 : vector<4x16xf32>
    %1857 = arith.addf %1852, %1856 : vector<4x16xf32>
    %c30_316 = arith.constant 30 : index
    %1858 = memref.load %arg8[%c30_316] : memref<50xf32, #tpu.memory_space<smem>>
    %1859 = vector.extract_strided_slice %1706 {offsets = [1, 0], sizes = [4, 16], strides = [1, 1]} : vector<8x20xf32> to vector<4x16xf32>
    %1860 = vector.broadcast %1858 : f32 to vector<4x16xf32>
    %1861 = arith.mulf %1860, %1859 : vector<4x16xf32>
    %1862 = arith.addf %1857, %1861 : vector<4x16xf32>
    %c31_317 = arith.constant 31 : index
    %1863 = memref.load %arg8[%c31_317] : memref<50xf32, #tpu.memory_space<smem>>
    %1864 = vector.extract_strided_slice %1706 {offsets = [1, 1], sizes = [4, 16], strides = [1, 1]} : vector<8x20xf32> to vector<4x16xf32>
    %1865 = vector.broadcast %1863 : f32 to vector<4x16xf32>
    %1866 = arith.mulf %1865, %1864 : vector<4x16xf32>
    %1867 = arith.addf %1862, %1866 : vector<4x16xf32>
    %c32_318 = arith.constant 32 : index
    %1868 = memref.load %arg8[%c32_318] : memref<50xf32, #tpu.memory_space<smem>>
    %1869 = vector.extract_strided_slice %1706 {offsets = [1, 2], sizes = [4, 16], strides = [1, 1]} : vector<8x20xf32> to vector<4x16xf32>
    %1870 = vector.broadcast %1868 : f32 to vector<4x16xf32>
    %1871 = arith.mulf %1870, %1869 : vector<4x16xf32>
    %1872 = arith.addf %1867, %1871 : vector<4x16xf32>
    %c33_319 = arith.constant 33 : index
    %1873 = memref.load %arg8[%c33_319] : memref<50xf32, #tpu.memory_space<smem>>
    %1874 = vector.extract_strided_slice %1706 {offsets = [1, 3], sizes = [4, 16], strides = [1, 1]} : vector<8x20xf32> to vector<4x16xf32>
    %1875 = vector.broadcast %1873 : f32 to vector<4x16xf32>
    %1876 = arith.mulf %1875, %1874 : vector<4x16xf32>
    %1877 = arith.addf %1872, %1876 : vector<4x16xf32>
    %c34_320 = arith.constant 34 : index
    %1878 = memref.load %arg8[%c34_320] : memref<50xf32, #tpu.memory_space<smem>>
    %1879 = vector.extract_strided_slice %1706 {offsets = [1, 4], sizes = [4, 16], strides = [1, 1]} : vector<8x20xf32> to vector<4x16xf32>
    %1880 = vector.broadcast %1878 : f32 to vector<4x16xf32>
    %1881 = arith.mulf %1880, %1879 : vector<4x16xf32>
    %1882 = arith.addf %1877, %1881 : vector<4x16xf32>
    %c35_321 = arith.constant 35 : index
    %1883 = memref.load %arg8[%c35_321] : memref<50xf32, #tpu.memory_space<smem>>
    %1884 = vector.extract_strided_slice %1706 {offsets = [2, 0], sizes = [4, 16], strides = [1, 1]} : vector<8x20xf32> to vector<4x16xf32>
    %1885 = vector.broadcast %1883 : f32 to vector<4x16xf32>
    %1886 = arith.mulf %1885, %1884 : vector<4x16xf32>
    %1887 = arith.addf %1882, %1886 : vector<4x16xf32>
    %c36_322 = arith.constant 36 : index
    %1888 = memref.load %arg8[%c36_322] : memref<50xf32, #tpu.memory_space<smem>>
    %1889 = vector.extract_strided_slice %1706 {offsets = [2, 1], sizes = [4, 16], strides = [1, 1]} : vector<8x20xf32> to vector<4x16xf32>
    %1890 = vector.broadcast %1888 : f32 to vector<4x16xf32>
    %1891 = arith.mulf %1890, %1889 : vector<4x16xf32>
    %1892 = arith.addf %1887, %1891 : vector<4x16xf32>
    %c37_323 = arith.constant 37 : index
    %1893 = memref.load %arg8[%c37_323] : memref<50xf32, #tpu.memory_space<smem>>
    %1894 = vector.extract_strided_slice %1706 {offsets = [2, 2], sizes = [4, 16], strides = [1, 1]} : vector<8x20xf32> to vector<4x16xf32>
    %1895 = vector.broadcast %1893 : f32 to vector<4x16xf32>
    %1896 = arith.mulf %1895, %1894 : vector<4x16xf32>
    %1897 = arith.addf %1892, %1896 : vector<4x16xf32>
    %c38_324 = arith.constant 38 : index
    %1898 = memref.load %arg8[%c38_324] : memref<50xf32, #tpu.memory_space<smem>>
    %1899 = vector.extract_strided_slice %1706 {offsets = [2, 3], sizes = [4, 16], strides = [1, 1]} : vector<8x20xf32> to vector<4x16xf32>
    %1900 = vector.broadcast %1898 : f32 to vector<4x16xf32>
    %1901 = arith.mulf %1900, %1899 : vector<4x16xf32>
    %1902 = arith.addf %1897, %1901 : vector<4x16xf32>
    %c39_325 = arith.constant 39 : index
    %1903 = memref.load %arg8[%c39_325] : memref<50xf32, #tpu.memory_space<smem>>
    %1904 = vector.extract_strided_slice %1706 {offsets = [2, 4], sizes = [4, 16], strides = [1, 1]} : vector<8x20xf32> to vector<4x16xf32>
    %1905 = vector.broadcast %1903 : f32 to vector<4x16xf32>
    %1906 = arith.mulf %1905, %1904 : vector<4x16xf32>
    %1907 = arith.addf %1902, %1906 : vector<4x16xf32>
    %c40_326 = arith.constant 40 : index
    %1908 = memref.load %arg8[%c40_326] : memref<50xf32, #tpu.memory_space<smem>>
    %1909 = vector.extract_strided_slice %1706 {offsets = [3, 0], sizes = [4, 16], strides = [1, 1]} : vector<8x20xf32> to vector<4x16xf32>
    %1910 = vector.broadcast %1908 : f32 to vector<4x16xf32>
    %1911 = arith.mulf %1910, %1909 : vector<4x16xf32>
    %1912 = arith.addf %1907, %1911 : vector<4x16xf32>
    %c41_327 = arith.constant 41 : index
    %1913 = memref.load %arg8[%c41_327] : memref<50xf32, #tpu.memory_space<smem>>
    %1914 = vector.extract_strided_slice %1706 {offsets = [3, 1], sizes = [4, 16], strides = [1, 1]} : vector<8x20xf32> to vector<4x16xf32>
    %1915 = vector.broadcast %1913 : f32 to vector<4x16xf32>
    %1916 = arith.mulf %1915, %1914 : vector<4x16xf32>
    %1917 = arith.addf %1912, %1916 : vector<4x16xf32>
    %c42_328 = arith.constant 42 : index
    %1918 = memref.load %arg8[%c42_328] : memref<50xf32, #tpu.memory_space<smem>>
    %1919 = vector.extract_strided_slice %1706 {offsets = [3, 2], sizes = [4, 16], strides = [1, 1]} : vector<8x20xf32> to vector<4x16xf32>
    %1920 = vector.broadcast %1918 : f32 to vector<4x16xf32>
    %1921 = arith.mulf %1920, %1919 : vector<4x16xf32>
    %1922 = arith.addf %1917, %1921 : vector<4x16xf32>
    %c43_329 = arith.constant 43 : index
    %1923 = memref.load %arg8[%c43_329] : memref<50xf32, #tpu.memory_space<smem>>
    %1924 = vector.extract_strided_slice %1706 {offsets = [3, 3], sizes = [4, 16], strides = [1, 1]} : vector<8x20xf32> to vector<4x16xf32>
    %1925 = vector.broadcast %1923 : f32 to vector<4x16xf32>
    %1926 = arith.mulf %1925, %1924 : vector<4x16xf32>
    %1927 = arith.addf %1922, %1926 : vector<4x16xf32>
    %c44_330 = arith.constant 44 : index
    %1928 = memref.load %arg8[%c44_330] : memref<50xf32, #tpu.memory_space<smem>>
    %1929 = vector.extract_strided_slice %1706 {offsets = [3, 4], sizes = [4, 16], strides = [1, 1]} : vector<8x20xf32> to vector<4x16xf32>
    %1930 = vector.broadcast %1928 : f32 to vector<4x16xf32>
    %1931 = arith.mulf %1930, %1929 : vector<4x16xf32>
    %1932 = arith.addf %1927, %1931 : vector<4x16xf32>
    %c45_331 = arith.constant 45 : index
    %1933 = memref.load %arg8[%c45_331] : memref<50xf32, #tpu.memory_space<smem>>
    %1934 = vector.extract_strided_slice %1706 {offsets = [4, 0], sizes = [4, 16], strides = [1, 1]} : vector<8x20xf32> to vector<4x16xf32>
    %1935 = vector.broadcast %1933 : f32 to vector<4x16xf32>
    %1936 = arith.mulf %1935, %1934 : vector<4x16xf32>
    %1937 = arith.addf %1932, %1936 : vector<4x16xf32>
    %c46_332 = arith.constant 46 : index
    %1938 = memref.load %arg8[%c46_332] : memref<50xf32, #tpu.memory_space<smem>>
    %1939 = vector.extract_strided_slice %1706 {offsets = [4, 1], sizes = [4, 16], strides = [1, 1]} : vector<8x20xf32> to vector<4x16xf32>
    %1940 = vector.broadcast %1938 : f32 to vector<4x16xf32>
    %1941 = arith.mulf %1940, %1939 : vector<4x16xf32>
    %1942 = arith.addf %1937, %1941 : vector<4x16xf32>
    %c47_333 = arith.constant 47 : index
    %1943 = memref.load %arg8[%c47_333] : memref<50xf32, #tpu.memory_space<smem>>
    %1944 = vector.extract_strided_slice %1706 {offsets = [4, 2], sizes = [4, 16], strides = [1, 1]} : vector<8x20xf32> to vector<4x16xf32>
    %1945 = vector.broadcast %1943 : f32 to vector<4x16xf32>
    %1946 = arith.mulf %1945, %1944 : vector<4x16xf32>
    %1947 = arith.addf %1942, %1946 : vector<4x16xf32>
    %c48_334 = arith.constant 48 : index
    %1948 = memref.load %arg8[%c48_334] : memref<50xf32, #tpu.memory_space<smem>>
    %1949 = vector.extract_strided_slice %1706 {offsets = [4, 3], sizes = [4, 16], strides = [1, 1]} : vector<8x20xf32> to vector<4x16xf32>
    %1950 = vector.broadcast %1948 : f32 to vector<4x16xf32>
    %1951 = arith.mulf %1950, %1949 : vector<4x16xf32>
    %1952 = arith.addf %1947, %1951 : vector<4x16xf32>
    %c49_335 = arith.constant 49 : index
    %1953 = memref.load %arg8[%c49_335] : memref<50xf32, #tpu.memory_space<smem>>
    %1954 = vector.extract_strided_slice %1706 {offsets = [4, 4], sizes = [4, 16], strides = [1, 1]} : vector<8x20xf32> to vector<4x16xf32>
    %1955 = vector.broadcast %1953 : f32 to vector<4x16xf32>
    %1956 = arith.mulf %1955, %1954 : vector<4x16xf32>
    %1957 = arith.addf %1952, %1956 : vector<4x16xf32>
    %1958 = tpu.concatenate %922, %1692 in 0 : vector<4x16xf32>, vector<4x16xf32> -> vector<8x16xf32>
    %1959 = tpu.concatenate %1187, %1957 in 0 : vector<4x16xf32>, vector<4x16xf32> -> vector<8x16xf32>
    %cst_336 = arith.constant dense<0.000000e+00> : vector<8xf32>
    %1960 = vector.multi_reduction <add>, %1958, %cst_336 [1] : vector<8x16xf32> to vector<8xf32>
    %1961 = vector.shape_cast %1960 : vector<8xf32> to vector<8x1xf32>
    %cst_337 = arith.constant dense<0.000000e+00> : vector<1xf32>
    %1962 = vector.multi_reduction <add>, %1961, %cst_337 [0] : vector<8x1xf32> to vector<1xf32>
    %1963 = vector.shape_cast %1962 : vector<1xf32> to vector<1x1xf32>
    %cst_338 = arith.constant 7.812500e-03 : f32
    %1964 = vector.broadcast %cst_338 : f32 to vector<1x1xf32>
    %1965 = arith.mulf %1963, %1964 : vector<1x1xf32>
    %1966 = vector.broadcast %1965 : vector<1x1xf32> to vector<8x16xf32>
    %1967 = arith.subf %1958, %1966 : vector<8x16xf32>
    %1968 = arith.mulf %1967, %1967 : vector<8x16xf32>
    %cst_339 = arith.constant dense<0.000000e+00> : vector<8xf32>
    %1969 = vector.multi_reduction <add>, %1968, %cst_339 [1] : vector<8x16xf32> to vector<8xf32>
    %1970 = vector.shape_cast %1969 : vector<8xf32> to vector<8x1xf32>
    %cst_340 = arith.constant dense<0.000000e+00> : vector<1xf32>
    %1971 = vector.multi_reduction <add>, %1970, %cst_340 [0] : vector<8x1xf32> to vector<1xf32>
    %1972 = vector.shape_cast %1971 : vector<1xf32> to vector<1x1xf32>
    %cst_341 = arith.constant 7.812500e-03 : f32
    %1973 = vector.broadcast %cst_341 : f32 to vector<1x1xf32>
    %1974 = arith.mulf %1972, %1973 : vector<1x1xf32>
    %1975 = vector.broadcast %1965 : vector<1x1xf32> to vector<8x16xf32>
    %1976 = arith.subf %1958, %1975 : vector<8x16xf32>
    %cst_342 = arith.constant 9.99999974E-6 : f32
    %1977 = vector.broadcast %cst_342 : f32 to vector<1x1xf32>
    %1978 = arith.addf %1974, %1977 : vector<1x1xf32>
    %1979 = math.rsqrt %1978 : vector<1x1xf32>
    %1980 = vector.broadcast %1979 : vector<1x1xf32> to vector<8x16xf32>
    %1981 = arith.mulf %1976, %1980 : vector<8x16xf32>
    %cst_343 = arith.constant dense<0.000000e+00> : vector<8xf32>
    %1982 = vector.multi_reduction <add>, %1959, %cst_343 [1] : vector<8x16xf32> to vector<8xf32>
    %1983 = vector.shape_cast %1982 : vector<8xf32> to vector<8x1xf32>
    %cst_344 = arith.constant dense<0.000000e+00> : vector<1xf32>
    %1984 = vector.multi_reduction <add>, %1983, %cst_344 [0] : vector<8x1xf32> to vector<1xf32>
    %1985 = vector.shape_cast %1984 : vector<1xf32> to vector<1x1xf32>
    %cst_345 = arith.constant 7.812500e-03 : f32
    %1986 = vector.broadcast %cst_345 : f32 to vector<1x1xf32>
    %1987 = arith.mulf %1985, %1986 : vector<1x1xf32>
    %1988 = vector.broadcast %1987 : vector<1x1xf32> to vector<8x16xf32>
    %1989 = arith.subf %1959, %1988 : vector<8x16xf32>
    %1990 = arith.mulf %1989, %1989 : vector<8x16xf32>
    %cst_346 = arith.constant dense<0.000000e+00> : vector<8xf32>
    %1991 = vector.multi_reduction <add>, %1990, %cst_346 [1] : vector<8x16xf32> to vector<8xf32>
    %1992 = vector.shape_cast %1991 : vector<8xf32> to vector<8x1xf32>
    %cst_347 = arith.constant dense<0.000000e+00> : vector<1xf32>
    %1993 = vector.multi_reduction <add>, %1992, %cst_347 [0] : vector<8x1xf32> to vector<1xf32>
    %1994 = vector.shape_cast %1993 : vector<1xf32> to vector<1x1xf32>
    %cst_348 = arith.constant 7.812500e-03 : f32
    %1995 = vector.broadcast %cst_348 : f32 to vector<1x1xf32>
    %1996 = arith.mulf %1994, %1995 : vector<1x1xf32>
    %1997 = vector.broadcast %1987 : vector<1x1xf32> to vector<8x16xf32>
    %1998 = arith.subf %1959, %1997 : vector<8x16xf32>
    %cst_349 = arith.constant 9.99999974E-6 : f32
    %1999 = vector.broadcast %cst_349 : f32 to vector<1x1xf32>
    %2000 = arith.addf %1996, %1999 : vector<1x1xf32>
    %2001 = math.rsqrt %2000 : vector<1x1xf32>
    %2002 = vector.broadcast %2001 : vector<1x1xf32> to vector<8x16xf32>
    %2003 = arith.mulf %1998, %2002 : vector<8x16xf32>
    %2004 = vector.extract_strided_slice %417 {offsets = [0, 0], sizes = [4, 1], strides = [1, 1]} : vector<8x1xf32> to vector<4x1xf32>
    %c0_350 = arith.constant 0 : index
    %c0_351 = arith.constant 0 : index
    %2005 = vector.load %arg9[%c0_350, %c0_351] : memref<4x1xf32, #tpu.memory_space<vmem>>, vector<4x1xf32>
    %2006 = arith.mulf %2004, %2005 : vector<4x1xf32>
    %cst_352 = arith.constant dense<0.000000e+00> : vector<1xf32>
    %2007 = vector.multi_reduction <add>, %2006, %cst_352 [0] : vector<4x1xf32> to vector<1xf32>
    %2008 = vector.shape_cast %2007 : vector<1xf32> to vector<1x1xf32>
    %c0_353 = arith.constant 0 : index
    %c0_354 = arith.constant 0 : index
    %2009 = vector.load %arg10[%c0_353, %c0_354] : memref<1x1xf32, #tpu.memory_space<vmem>>, vector<1x1xf32>
    %2010 = arith.addf %2008, %2009 : vector<1x1xf32>
    %cst_355 = arith.constant 0.000000e+00 : f32
    %2011 = vector.broadcast %cst_355 : f32 to vector<1x1xf32>
    %2012 = arith.maximumf %2010, %2011 : vector<1x1xf32>
    %c0_356 = arith.constant 0 : index
    %c0_357 = arith.constant 0 : index
    %2013 = vector.load %arg11[%c0_356, %c0_357] : memref<4x1xf32, #tpu.memory_space<vmem>>, vector<4x1xf32>
    %2014 = vector.broadcast %2012 : vector<1x1xf32> to vector<4x1xf32>
    %2015 = arith.mulf %2014, %2013 : vector<4x1xf32>
    %c0_358 = arith.constant 0 : index
    %c0_359 = arith.constant 0 : index
    %2016 = vector.load %arg12[%c0_358, %c0_359] : memref<4x1xf32, #tpu.memory_space<vmem>>, vector<4x1xf32>
    %2017 = arith.addf %2015, %2016 : vector<4x1xf32>
    %2018 = arith.negf %2017 : vector<4x1xf32>
    %2019 = math.exp %2018 : vector<4x1xf32>
    %cst_360 = arith.constant 1.000000e+00 : f32
    %2020 = vector.broadcast %cst_360 : f32 to vector<4x1xf32>
    %2021 = arith.addf %2020, %2019 : vector<4x1xf32>
    %2022 = arith.divf %2020, %2021 : vector<4x1xf32>
    %2023 = vector.extract_strided_slice %417 {offsets = [4, 0], sizes = [4, 1], strides = [1, 1]} : vector<8x1xf32> to vector<4x1xf32>
    %c0_361 = arith.constant 0 : index
    %c0_362 = arith.constant 0 : index
    %2024 = vector.load %arg9[%c0_361, %c0_362] : memref<4x1xf32, #tpu.memory_space<vmem>>, vector<4x1xf32>
    %2025 = arith.mulf %2023, %2024 : vector<4x1xf32>
    %cst_363 = arith.constant dense<0.000000e+00> : vector<1xf32>
    %2026 = vector.multi_reduction <add>, %2025, %cst_363 [0] : vector<4x1xf32> to vector<1xf32>
    %2027 = vector.shape_cast %2026 : vector<1xf32> to vector<1x1xf32>
    %c0_364 = arith.constant 0 : index
    %c0_365 = arith.constant 0 : index
    %2028 = vector.load %arg10[%c0_364, %c0_365] : memref<1x1xf32, #tpu.memory_space<vmem>>, vector<1x1xf32>
    %2029 = arith.addf %2027, %2028 : vector<1x1xf32>
    %cst_366 = arith.constant 0.000000e+00 : f32
    %2030 = vector.broadcast %cst_366 : f32 to vector<1x1xf32>
    %2031 = arith.maximumf %2029, %2030 : vector<1x1xf32>
    %c0_367 = arith.constant 0 : index
    %c0_368 = arith.constant 0 : index
    %2032 = vector.load %arg11[%c0_367, %c0_368] : memref<4x1xf32, #tpu.memory_space<vmem>>, vector<4x1xf32>
    %2033 = vector.broadcast %2031 : vector<1x1xf32> to vector<4x1xf32>
    %2034 = arith.mulf %2033, %2032 : vector<4x1xf32>
    %c0_369 = arith.constant 0 : index
    %c0_370 = arith.constant 0 : index
    %2035 = vector.load %arg12[%c0_369, %c0_370] : memref<4x1xf32, #tpu.memory_space<vmem>>, vector<4x1xf32>
    %2036 = arith.addf %2034, %2035 : vector<4x1xf32>
    %2037 = arith.negf %2036 : vector<4x1xf32>
    %2038 = math.exp %2037 : vector<4x1xf32>
    %cst_371 = arith.constant 1.000000e+00 : f32
    %2039 = vector.broadcast %cst_371 : f32 to vector<4x1xf32>
    %2040 = arith.addf %2039, %2038 : vector<4x1xf32>
    %2041 = arith.divf %2039, %2040 : vector<4x1xf32>
    %2042 = tpu.concatenate %2022, %2041 in 0 : vector<4x1xf32>, vector<4x1xf32> -> vector<8x1xf32>
    %2043 = vector.extract_strided_slice %1981 {offsets = [0, 0], sizes = [8, 1], strides = [1, 1]} : vector<8x16xf32> to vector<8x1xf32>
    %2044 = vector.shape_cast %2043 : vector<8x1xf32> to vector<8x1xf32>
    %2045 = vector.broadcast %2044 : vector<8x1xf32> to vector<8x16xf32>
    %2046 = vector.extract_strided_slice %1981 {offsets = [0, 1], sizes = [8, 1], strides = [1, 1]} : vector<8x16xf32> to vector<8x1xf32>
    %2047 = vector.shape_cast %2046 : vector<8x1xf32> to vector<8x1xf32>
    %2048 = vector.broadcast %2047 : vector<8x1xf32> to vector<8x16xf32>
    %2049 = vector.extract_strided_slice %1981 {offsets = [0, 2], sizes = [8, 1], strides = [1, 1]} : vector<8x16xf32> to vector<8x1xf32>
    %2050 = vector.shape_cast %2049 : vector<8x1xf32> to vector<8x1xf32>
    %2051 = vector.broadcast %2050 : vector<8x1xf32> to vector<8x16xf32>
    %2052 = vector.extract_strided_slice %1981 {offsets = [0, 3], sizes = [8, 1], strides = [1, 1]} : vector<8x16xf32> to vector<8x1xf32>
    %2053 = vector.shape_cast %2052 : vector<8x1xf32> to vector<8x1xf32>
    %2054 = vector.broadcast %2053 : vector<8x1xf32> to vector<8x16xf32>
    %2055 = vector.extract_strided_slice %1981 {offsets = [0, 4], sizes = [8, 1], strides = [1, 1]} : vector<8x16xf32> to vector<8x1xf32>
    %2056 = vector.shape_cast %2055 : vector<8x1xf32> to vector<8x1xf32>
    %2057 = vector.broadcast %2056 : vector<8x1xf32> to vector<8x16xf32>
    %2058 = vector.extract_strided_slice %1981 {offsets = [0, 5], sizes = [8, 1], strides = [1, 1]} : vector<8x16xf32> to vector<8x1xf32>
    %2059 = vector.shape_cast %2058 : vector<8x1xf32> to vector<8x1xf32>
    %2060 = vector.broadcast %2059 : vector<8x1xf32> to vector<8x16xf32>
    %2061 = vector.extract_strided_slice %1981 {offsets = [0, 6], sizes = [8, 1], strides = [1, 1]} : vector<8x16xf32> to vector<8x1xf32>
    %2062 = vector.shape_cast %2061 : vector<8x1xf32> to vector<8x1xf32>
    %2063 = vector.broadcast %2062 : vector<8x1xf32> to vector<8x16xf32>
    %2064 = vector.extract_strided_slice %1981 {offsets = [0, 7], sizes = [8, 1], strides = [1, 1]} : vector<8x16xf32> to vector<8x1xf32>
    %2065 = vector.shape_cast %2064 : vector<8x1xf32> to vector<8x1xf32>
    %2066 = vector.broadcast %2065 : vector<8x1xf32> to vector<8x16xf32>
    %2067 = vector.extract_strided_slice %1981 {offsets = [0, 8], sizes = [8, 1], strides = [1, 1]} : vector<8x16xf32> to vector<8x1xf32>
    %2068 = vector.shape_cast %2067 : vector<8x1xf32> to vector<8x1xf32>
    %2069 = vector.broadcast %2068 : vector<8x1xf32> to vector<8x16xf32>
    %2070 = vector.extract_strided_slice %1981 {offsets = [0, 9], sizes = [8, 1], strides = [1, 1]} : vector<8x16xf32> to vector<8x1xf32>
    %2071 = vector.shape_cast %2070 : vector<8x1xf32> to vector<8x1xf32>
    %2072 = vector.broadcast %2071 : vector<8x1xf32> to vector<8x16xf32>
    %2073 = vector.extract_strided_slice %1981 {offsets = [0, 10], sizes = [8, 1], strides = [1, 1]} : vector<8x16xf32> to vector<8x1xf32>
    %2074 = vector.shape_cast %2073 : vector<8x1xf32> to vector<8x1xf32>
    %2075 = vector.broadcast %2074 : vector<8x1xf32> to vector<8x16xf32>
    %2076 = vector.extract_strided_slice %1981 {offsets = [0, 11], sizes = [8, 1], strides = [1, 1]} : vector<8x16xf32> to vector<8x1xf32>
    %2077 = vector.shape_cast %2076 : vector<8x1xf32> to vector<8x1xf32>
    %2078 = vector.broadcast %2077 : vector<8x1xf32> to vector<8x16xf32>
    %2079 = vector.extract_strided_slice %1981 {offsets = [0, 12], sizes = [8, 1], strides = [1, 1]} : vector<8x16xf32> to vector<8x1xf32>
    %2080 = vector.shape_cast %2079 : vector<8x1xf32> to vector<8x1xf32>
    %2081 = vector.broadcast %2080 : vector<8x1xf32> to vector<8x16xf32>
    %2082 = vector.extract_strided_slice %1981 {offsets = [0, 13], sizes = [8, 1], strides = [1, 1]} : vector<8x16xf32> to vector<8x1xf32>
    %2083 = vector.shape_cast %2082 : vector<8x1xf32> to vector<8x1xf32>
    %2084 = vector.broadcast %2083 : vector<8x1xf32> to vector<8x16xf32>
    %2085 = vector.extract_strided_slice %1981 {offsets = [0, 14], sizes = [8, 1], strides = [1, 1]} : vector<8x16xf32> to vector<8x1xf32>
    %2086 = vector.shape_cast %2085 : vector<8x1xf32> to vector<8x1xf32>
    %2087 = vector.broadcast %2086 : vector<8x1xf32> to vector<8x16xf32>
    %2088 = vector.extract_strided_slice %1981 {offsets = [0, 15], sizes = [8, 1], strides = [1, 1]} : vector<8x16xf32> to vector<8x1xf32>
    %2089 = vector.shape_cast %2088 : vector<8x1xf32> to vector<8x1xf32>
    %2090 = vector.broadcast %2089 : vector<8x1xf32> to vector<8x16xf32>
    %2091 = tpu.concatenate %2045, %2048, %2051, %2054, %2057, %2060, %2063, %2066, %2069, %2072, %2075, %2078, %2081, %2084, %2087, %2090 in 1 : vector<8x16xf32>, vector<8x16xf32>, vector<8x16xf32>, vector<8x16xf32>, vector<8x16xf32>, vector<8x16xf32>, vector<8x16xf32>, vector<8x16xf32>, vector<8x16xf32>, vector<8x16xf32>, vector<8x16xf32>, vector<8x16xf32>, vector<8x16xf32>, vector<8x16xf32>, vector<8x16xf32>, vector<8x16xf32> -> vector<8x256xf32>
    %2092 = tpu.concatenate %2003, %2003, %2003, %2003, %2003, %2003, %2003, %2003, %2003, %2003, %2003, %2003, %2003, %2003, %2003, %2003 in 1 : vector<8x16xf32>, vector<8x16xf32>, vector<8x16xf32>, vector<8x16xf32>, vector<8x16xf32>, vector<8x16xf32>, vector<8x16xf32>, vector<8x16xf32>, vector<8x16xf32>, vector<8x16xf32>, vector<8x16xf32>, vector<8x16xf32>, vector<8x16xf32>, vector<8x16xf32>, vector<8x16xf32>, vector<8x16xf32> -> vector<8x256xf32>
    %2093 = vector.broadcast %2042 : vector<8x1xf32> to vector<8x256xf32>
    %2094 = arith.addf %2093, %2091 : vector<8x256xf32>
    %2095 = arith.addf %2094, %2092 : vector<8x256xf32>
    %2096 = arith.mulf %88, %2095 : vector<8x256xf32>
    %2097 = arith.addf %2096, %0 : vector<8x256xf32>
    %c0_372 = arith.constant 0 : index
    %c0_373 = arith.constant 0 : index
    %2098 = vector.load %arg13[%c0_372, %c0_373] : memref<8x256xf32, #tpu.memory_space<vmem>>, vector<8x256xf32>
    tpu.vector_store %arg13[%c0_372, %c0_373], %2097 {strides = array<i32>} : memref<8x256xf32, #tpu.memory_space<vmem>>, vector<8x256xf32>,
    return
  }
  func.func @transform_0(%arg0: i32) -> (i32, i32) {
    %c0_i32 = arith.constant 0 : i32
    %c0_i32_0 = arith.constant 0 : i32
    %c0_i32_1 = arith.constant 0 : i32
    return %c0_i32, %c0_i32_0 : i32, i32
  }
  func.func @transform_1(%arg0: i32) -> (i32, i32) {
    %c0_i32 = arith.constant 0 : i32
    %c0_i32_0 = arith.constant 0 : i32
    %c0_i32_1 = arith.constant 0 : i32
    return %c0_i32, %c0_i32_0 : i32, i32
  }
  func.func @transform_2(%arg0: i32) -> (i32, i32) {
    %c0_i32 = arith.constant 0 : i32
    %c0_i32_0 = arith.constant 0 : i32
    %c0_i32_1 = arith.constant 0 : i32
    return %c0_i32, %c0_i32_0 : i32, i32
  }
  func.func @transform_3(%arg0: i32) -> (i32, i32) {
    %c0_i32 = arith.constant 0 : i32
    %c0_i32_0 = arith.constant 0 : i32
    %c0_i32_1 = arith.constant 0 : i32
    return %c0_i32, %c0_i32_0 : i32, i32
  }
  func.func @transform_4(%arg0: i32) -> (i32, i32) {
    %c0_i32 = arith.constant 0 : i32
    %c0_i32_0 = arith.constant 0 : i32
    %c0_i32_1 = arith.constant 0 : i32
    return %c0_i32, %c0_i32_0 : i32, i32
  }
  func.func @transform_5(%arg0: i32) -> (i32, i32) {
    %c0_i32 = arith.constant 0 : i32
    %c0_i32_0 = arith.constant 0 : i32
    %c0_i32_1 = arith.constant 0 : i32
    return %c0_i32, %c0_i32_0 : i32, i32
  }
  func.func @transform_6(%arg0: i32) -> i32 {
    %c0_i32 = arith.constant 0 : i32
    %c0_i32_0 = arith.constant 0 : i32
    return %c0_i32 : i32
  }
  func.func @transform_7(%arg0: i32) -> i32 {
    %c0_i32 = arith.constant 0 : i32
    %c0_i32_0 = arith.constant 0 : i32
    return %c0_i32 : i32
  }
  func.func @transform_8(%arg0: i32) -> (i32, i32) {
    %c0_i32 = arith.constant 0 : i32
    %c0_i32_0 = arith.constant 0 : i32
    %c0_i32_1 = arith.constant 0 : i32
    return %c0_i32, %c0_i32_0 : i32, i32
  }
  func.func @transform_9(%arg0: i32) -> (i32, i32) {
    %c0_i32 = arith.constant 0 : i32
    %c0_i32_0 = arith.constant 0 : i32
    %c0_i32_1 = arith.constant 0 : i32
    return %c0_i32, %c0_i32_0 : i32, i32
  }
  func.func @transform_10(%arg0: i32) -> (i32, i32) {
    %c0_i32 = arith.constant 0 : i32
    %c0_i32_0 = arith.constant 0 : i32
    %c0_i32_1 = arith.constant 0 : i32
    return %c0_i32, %c0_i32_0 : i32, i32
  }
  func.func @transform_11(%arg0: i32) -> (i32, i32) {
    %c0_i32 = arith.constant 0 : i32
    %c0_i32_0 = arith.constant 0 : i32
    %c0_i32_1 = arith.constant 0 : i32
    return %c0_i32, %c0_i32_0 : i32, i32
  }
  func.func @transform_12(%arg0: i32) -> (i32, i32) {
    %c0_i32 = arith.constant 0 : i32
    %c0_i32_0 = arith.constant 0 : i32
    %c0_i32_1 = arith.constant 0 : i32
    return %c0_i32, %c0_i32_0 : i32, i32
  }
}

</mosaic_0001>

<llo_original>
// kernel: tile.13
$region0: #{tile.13}
  #allocation0 [shape = 's32[1]{0}', space=sflag, size = 0x4, scoped, tag = 'scoped memory for tile.13']
  %s0 = inlined_call_operand.vmem [shape: f32[4], index: 0, kind: input, shape index: {}]
  %s1 = inlined_call_operand.vmem [shape: f32[2,4], index: 1, kind: output, shape index: {}]
  // Predicated region
  $region2: #{tile.13} parent=0 // pred_check
    _
  $region3: #{tile.13} parent=0 // pred_check_branch
    %3 = sbr.rel (0) target = $region5
  $region4: #{tile.13} parent=0 // pred_region
    _
  $region5: #{tile.13} parent=0 // pred_fallthru
    _
  %v4 = vld [vmem:[%s0] ss:$0 sm:$0xff]
  %5 = vst [vmem:[%s1] sm:$0x3] %v4

// kernel: tile.0
$region0: #{tile.0}
  %s0 = inlined_call_operand.vmem [shape: f32[2,4], index: 0, kind: input, shape index: {}]
  %s1 = inlined_call_operand.vmem [shape: f32[8,1], index: 1, kind: output, shape index: {}]
  $region1: #{tile.0} parent=0
    #allocation0 [shape = 'u8[4096]{0}', space=vmem, size = 0x1000, scoped, tag = 'scoped mem for input reshape']
    %s3 = sshllo.u32 0, 2
    %v4 = vld [vmem:[%s0] sm:%s3]
    %5 = vst [vmem:[#allocation0] sm:%s3] %v4
    %v6 = vld [vmem:[#allocation0] sm:$0x3]
    %vm7 = vcmask 7168
    %8 = vst.msk [vmem:[%s1] ss:$4 sm:$0x3] %vm7, %v6
    %v9 = vld [vmem:[#allocation0] sm:$0x3]
    %10 = vrot.lane.b32.xlu0 %v9, 127
    %v11 = vpop.permute.xlu0 %10
    %vm12 = vcmask 7168
    %s13 = scalar_lea.vmem %s1, 1
    %14 = vst.msk [vmem:[%s13] ss:$4 sm:$0x3] %vm12, %v11
    %v15 = vld [vmem:[#allocation0] sm:$0x3]
    %16 = vrot.lane.b32.xlu0 %v15, 126
    %v17 = vpop.permute.xlu0 %16
    %vm18 = vcmask 7168
    %s19 = scalar_lea.vmem %s1, 2
    %20 = vst.msk [vmem:[%s19] ss:$4 sm:$0x3] %vm18, %v17
    %v21 = vld [vmem:[#allocation0] sm:$0x3]
    %22 = vrot.lane.b32.xlu0 %v21, 125
    %v23 = vpop.permute.xlu0 %22
    %vm24 = vcmask 7168
    %s25 = scalar_lea.vmem %s1, 3
    %26 = vst.msk [vmem:[%s25] ss:$4 sm:$0x3] %vm24, %v23

// kernel: resblock_pallas.1
$region0: #{resblock_pallas.1}
  #allocation0 [shape = 'u32[]', space=smem, size = 0x4, offset = 0x4, fixed_abs, tag = 'smem constant byte address 0x4 - core index']
  #allocation1 [shape = 'u32[144,128]{1,0:T(1,128)}', space=vmem, size = 0x12000, scoped, tag = 'internal scratch']
  #allocation2 [shape = 'f32[1,1]{1,0:T(1,128)S(1)}', space=vmem, size = 0x200, scoped, tag = 'scoped memory for resblock_pallas.1']
  %s0 = inlined_call_operand.vmem [shape: f32[8,256], index: 0, kind: input, shape index: {}]
  %s1 = inlined_call_operand.vmem [shape: f32[8,72], index: 1, kind: input, shape index: {}]
  %s2 = inlined_call_operand.vmem [shape: f32[8,1], index: 2, kind: input, shape index: {}]
  %s3 = inlined_call_operand.vmem [shape: f32[8,72], index: 3, kind: input, shape index: {}]
  %s4 = inlined_call_operand.vmem [shape: f32[8,1], index: 4, kind: input, shape index: {}]
  %s5 = inlined_call_operand.vmem [shape: f32[2,256], index: 5, kind: input, shape index: {}]
  %s6 = inlined_call_operand.vmem [shape: f32[98], index: 6, kind: input, shape index: {}]
  %s7 = inlined_call_operand.vmem [shape: f32[50], index: 7, kind: input, shape index: {}]
  %s8 = inlined_call_operand.vmem [shape: f32[4,1], index: 8, kind: input, shape index: {}]
  %s9 = inlined_call_operand.<no memory space> [shape: f32[1,1], index: 9, kind: input, shape index: {}]
  %s10 = inlined_call_operand.vmem [shape: f32[4,1], index: 10, kind: input, shape index: {}]
  %s11 = inlined_call_operand.vmem [shape: f32[4,1], index: 11, kind: input, shape index: {}]
  %s12 = inlined_call_operand.vmem [shape: f32[8,256], index: 12, kind: output, shape index: {}]
  %s13 = sld [smem:[#allocation0]]
  $region66: #{resblock_pallas.1} parent=0
    _
  %s15 = ssub.s32 1, %s13
  %s16 = scalar_select 0, %s15, %s13
  %v17 = vstv %s9
  %18 = vst [vmem:[#allocation2] sm:$0x1] %v17
  $region1: #{resblock_pallas.1} parent=0
    #allocation3 [shape = 'u8[512]{0}', space=smem, size = 0x200, scoped, tag = 'input window, operand 6, single buffered']
    #allocation4 [shape = 's32[1]{0}', space=sflag, size = 0x4, scoped, tag = 'scoped memory for resblock_pallas.1']
    #allocation5 [shape = 'u8[512]{0}', space=smem, size = 0x200, scoped, tag = 'input window, operand 7, single buffered']
    #allocation6 [shape = 's32[1]{0}', space=sflag, size = 0x4, scoped, tag = 'scoped memory for resblock_pallas.1']
    %19 = vsyncpa [#allocation4], 0
    %20 = vsyncpa [#allocation6], 0
    // Predicated region
    $region2: #{resblock_pallas.1} parent=1 // pred_check
      _
    $region3: #{resblock_pallas.1} parent=1 // pred_check_branch
      %22 = sbr.rel (0) target = $region5
    $region4: #{resblock_pallas.1} parent=1 // pred_region
      _
    $region5: #{resblock_pallas.1} parent=1 // pred_fallthru
      _
    // Predicated region
    $region6: #{resblock_pallas.1} parent=1 // pred_check
      _
    $region7: #{resblock_pallas.1} parent=1 // pred_check_branch
      %24 = sbr.rel (0) target = $region9
    $region8: #{resblock_pallas.1} parent=1 // pred_region
      _
    $region9: #{resblock_pallas.1} parent=1 // pred_fallthru
      _
    // Predicated region
    $region10: #{resblock_pallas.1} parent=1 // pred_check
      _
    $region11: #{resblock_pallas.1} parent=1 // pred_check_branch
      %26 = sbr.rel (0) target = $region13
    $region12: #{resblock_pallas.1} parent=1 // pred_region
      _
    $region13: #{resblock_pallas.1} parent=1 // pred_fallthru
      _
    // Predicated region
    $region14: #{resblock_pallas.1} parent=1 // pred_check
      _
    $region15: #{resblock_pallas.1} parent=1 // pred_check_branch
      %28 = sbr.rel (0) target = $region17
    $region16: #{resblock_pallas.1} parent=1 // pred_region
      _
    $region17: #{resblock_pallas.1} parent=1 // pred_fallthru
      _
    // Predicated region
    $region18: #{resblock_pallas.1} parent=1 // pred_check
      _
    $region19: #{resblock_pallas.1} parent=1 // pred_check_branch
      %30 = sbr.rel (0) target = $region21
    $region20: #{resblock_pallas.1} parent=1 // pred_region
      _
    $region21: #{resblock_pallas.1} parent=1 // pred_fallthru
      _
    // Predicated region
    $region22: #{resblock_pallas.1} parent=1 // pred_check
      _
    $region23: #{resblock_pallas.1} parent=1 // pred_check_branch
      %32 = sbr.rel (0) target = $region25
    $region24: #{resblock_pallas.1} parent=1 // pred_region
      _
    $region25: #{resblock_pallas.1} parent=1 // pred_fallthru
      _
    // Predicated region
    $region26: #{resblock_pallas.1} parent=1 // pred_check
      _
    $region27: #{resblock_pallas.1} parent=1 // pred_check_branch
      %34 = sbr.rel (0) target = $region29
    $region28: #{resblock_pallas.1} parent=1 // pred_region
      %s36 = ssub.s32 16, 16
      %37 = vsyncadd [#allocation4], %s36
      %s39 = sshll.u32 %s6, 4
      %s40 = int_to_ptr.vmem [resolvable:$true] %s39
      %42 = dma.vmem_to_smem %s40, 16, [#allocation3], [#allocation4]
    $region29: #{resblock_pallas.1} parent=1 // pred_fallthru
      _
    // Predicated region
    $region30: #{resblock_pallas.1} parent=1 // pred_check
      _
    $region31: #{resblock_pallas.1} parent=1 // pred_check_branch
      %44 = sbr.rel (0) target = $region33
    $region32: #{resblock_pallas.1} parent=1 // pred_region
      %s46 = ssub.s32 16, 16
      %47 = vsyncadd [#allocation6], %s46
      %s49 = sshll.u32 %s7, 4
      %s50 = int_to_ptr.vmem [resolvable:$true] %s49
      %52 = dma.vmem_to_smem %s50, 16, [#allocation5], [#allocation6]
    $region33: #{resblock_pallas.1} parent=1 // pred_fallthru
      _
    // Predicated region
    $region34: #{resblock_pallas.1} parent=1 // pred_check
      _
    $region35: #{resblock_pallas.1} parent=1 // pred_check_branch
      %54 = sbr.rel (0) target = $region37
    $region36: #{resblock_pallas.1} parent=1 // pred_region
      _
    $region37: #{resblock_pallas.1} parent=1 // pred_fallthru
      _
    // Predicated region
    $region38: #{resblock_pallas.1} parent=1 // pred_check
      _
    $region39: #{resblock_pallas.1} parent=1 // pred_check_branch
      %56 = sbr.rel (0) target = $region41
    $region40: #{resblock_pallas.1} parent=1 // pred_region
      _
    $region41: #{resblock_pallas.1} parent=1 // pred_fallthru
      _
    // Predicated region
    $region42: #{resblock_pallas.1} parent=1 // pred_check
      _
    $region43: #{resblock_pallas.1} parent=1 // pred_check_branch
      %58 = sbr.rel (0) target = $region45
    $region44: #{resblock_pallas.1} parent=1 // pred_region
      _
    $region45: #{resblock_pallas.1} parent=1 // pred_fallthru
      _
    // Predicated region
    $region46: #{resblock_pallas.1} parent=1 // pred_check
      _
    $region47: #{resblock_pallas.1} parent=1 // pred_check_branch
      %60 = sbr.rel (0) target = $region49
    $region48: #{resblock_pallas.1} parent=1 // pred_region
      _
    $region49: #{resblock_pallas.1} parent=1 // pred_fallthru
      _
    // Predicated region
    $region50: #{resblock_pallas.1} parent=1 // pred_check
      _
    $region51: #{resblock_pallas.1} parent=1 // pred_check_branch
      %62 = sbr.rel (0) target = $region53
    $region52: #{resblock_pallas.1} parent=1 // pred_region
      %63 = dma.done [#allocation4], 16
    $region53: #{resblock_pallas.1} parent=1 // pred_fallthru
      _
    // Predicated region
    $region54: #{resblock_pallas.1} parent=1 // pred_check
      _
    $region55: #{resblock_pallas.1} parent=1 // pred_check_branch
      %65 = sbr.rel (0) target = $region57
    $region56: #{resblock_pallas.1} parent=1 // pred_region
      %66 = dma.done [#allocation6], 16
    $region57: #{resblock_pallas.1} parent=1 // pred_fallthru
      _
    %67 = sfence
    %v68 = vld [vmem:[%s0] sm:$0xff]
    %v69 = vld [vmem:[%s0 + $0x8] sm:$0xff]
    %v70 = vld [vmem:[%s5] ss:$2 sm:$0x3]
    %s71 = scalar_lea.vmem %s5, 1
    %v72 = vld [vmem:[%s71] ss:$2 sm:$0x3]
    %75 = vrot.lane.b32.xlu0 %v68, 17
    %v76 = vpop.permute.xlu0 %75
    %77 = vrot.lane.b32.xlu0 %v69, 17
    %v78 = vpop.permute.xlu0 %77
    %vm79 = vcmask 138240
    %v80 = vsel %vm79, %v76, %v78
    %v83 = vsel %vm79, 0.0, %v76
    %v85 = vlaneseq
    %v86 = vshrl.u32 %v85, 7
    %v87 = vsub.s32 0, %v86
    %v88 = vrot.slane %v70, %v87
    %v89 = vlaneseq
    %v90 = vshrl.u32 %v89, 7
    %v91 = vsub.s32 1, %v90
    %v92 = vrot.slane %v70, %v91
    %v95 = vmul.f32 %v83, %v88
    %v96 = vmul.f32 %v80, %v92
    %97 = vrot.lane.b32.xlu0 %v68, 16
    %v98 = vpop.permute.xlu0 %97
    %99 = vrot.lane.b32.xlu0 %v69, 16
    %v100 = vpop.permute.xlu0 %99
    %vm101 = vcmask 130048
    %v102 = vsel %vm101, %v98, %v100
    %v105 = vsel %vm101, 0.0, %v98
    %106 = vrot.lane.b32.xlu0 %v68, 15
    %v107 = vpop.permute.xlu0 %106
    %108 = vrot.lane.b32.xlu0 %v69, 15
    %v109 = vpop.permute.xlu0 %108
    %vm110 = vcmask 121856
    %v111 = vsel %vm110, %v107, %v109
    %v114 = vsel %vm110, 0.0, %v107
    %v116 = vlaneseq
    %v117 = vshrl.u32 %v116, 7
    %v118 = vsub.s32 0, %v117
    %v119 = vrot.slane %v72, %v118
    %v120 = vlaneseq
    %v121 = vshrl.u32 %v120, 7
    %v122 = vsub.s32 1, %v121
    %v123 = vrot.slane %v72, %v122
    %v126 = vmul.f32 %v114, %v119
    %v127 = vmul.f32 %v111, %v123
    %128 = vrot.lane.b32.xlu0 %v68, 1
    %v129 = vpop.permute.xlu0 %128
    %130 = vrot.lane.b32.xlu0 %v69, 1
    %v131 = vpop.permute.xlu0 %130
    %vm132 = vcmask 7168
    %v133 = vsel %vm132, %v129, %v131
    %v136 = vsel %vm132, 0.0, %v129
    %v137 = vmul.f32 %v136, %v88
    %v138 = vmul.f32 %v133, %v92
    %139 = vrot.lane.b32.xlu0 %v68, 127
    %v140 = vpop.permute.xlu0 %139
    %141 = vrot.lane.b32.xlu0 %v69, 127
    %v142 = vpop.permute.xlu0 %141
    %vm143 = vcmask 1039360
    %v144 = vsel %vm143, %v140, %v142
    %v147 = vsel %vm143, %v142, 0.0
    %v148 = vmul.f32 %v144, %v119
    %v149 = vmul.f32 %v147, %v123
    %150 = vrot.lane.b32.xlu0 %v68, 113
    %v151 = vpop.permute.xlu0 %150
    %152 = vrot.lane.b32.xlu0 %v69, 113
    %v153 = vpop.permute.xlu0 %152
    %vm154 = vcmask 924672
    %v155 = vsel %vm154, %v151, %v153
    %v158 = vsel %vm154, %v153, 0.0
    %v159 = vmul.f32 %v155, %v88
    %v160 = vmul.f32 %v158, %v92
    %161 = vrot.lane.b32.xlu0 %v68, 112
    %v162 = vpop.permute.xlu0 %161
    %163 = vrot.lane.b32.xlu0 %v69, 112
    %v164 = vpop.permute.xlu0 %163
    %vm165 = vcmask 916480
    %v166 = vsel %vm165, %v162, %v164
    %v169 = vsel %vm165, %v164, 0.0
    %170 = vrot.lane.b32.xlu0 %v68, 111
    %v171 = vpop.permute.xlu0 %170
    %172 = vrot.lane.b32.xlu0 %v69, 111
    %v173 = vpop.permute.xlu0 %172
    %vm174 = vcmask 908288
    %v175 = vsel %vm174, %v171, %v173
    %v178 = vsel %vm174, %v173, 0.0
    %v179 = vmul.f32 %v175, %v119
    %v180 = vmul.f32 %v178, %v123
    %v181 = vld [vmem:[%s1] sm:$0xff]
    %v182 = vld [vmem:[%s2] sm:$0xff]
    %184 = vset.pattern.permute.xlu0 0
    %185 = vperm.xlu0 %184, %v182
    %v186 = vpop.permute.xlu0 %185
    %vm188 = vcmask 588800
    %v190 = vsel %vm188, %v181, 0
    %192 = vmatprep.subr.mxu0 %v96
    %193 = vmatpush1.msra.mxu0 %v95
    %194 = vmatprep.subr.mxu0 %v102
    %195 = vmatpush1.msra.mxu0 %v105
    %196 = vmatprep.subr.mxu0 %v127
    %197 = vmatpush1.msra.mxu0 %v126
    %198 = vmatprep.subr.mxu0 %v138
    %199 = vmatpush1.msra.mxu0 %v137
    %200 = vmatprep.subr.mxu0 %v69
    %201 = vmatpush1.msra.mxu0 %v68
    %202 = vmatprep.subr.mxu0 %v149
    %203 = vmatpush1.msra.mxu0 %v148
    %204 = vmatprep.subr.mxu0 %v160
    %205 = vmatpush1.msra.mxu0 %v159
    %206 = vmatprep.subr.mxu0 %v169
    %207 = vmatpush1.msra.mxu0 %v166
    %208 = vmatprep.subr.mxu0 %v180
    %209 = vmatpush1.msra.mxu0 %v179
    %210 = vmatprep.subr.mxu0 0.0
    %211 = vmatpush1.msra.mxu0 0.0
    %212 = vmatprep.subr.mxu0 0.0
    %213 = vmatpush1.msra.mxu0 0.0
    %214 = vmatprep.subr.mxu0 0.0
    %215 = vmatpush1.msra.mxu0 0.0
    %216 = vmatprep.subr.mxu0 0.0
    %217 = vmatpush1.msra.mxu0 0.0
    %218 = vmatprep.subr.mxu0 0.0
    %219 = vmatpush1.msra.mxu0 0.0
    %220 = vmatprep.subr.mxu0 0.0
    %221 = vmatpush1.msra.mxu0 0.0
    %222 = vmatprep.subr.mxu0 0.0
    %223 = vmatpush1.msra.mxu0 0.0
    %224 = vmatprep.subr.mxu0 0.0
    %225 = vmatpush1.msra.mxu0 0.0
    %226 = vmatprep.subr.mxu0 0.0
    %227 = vmatpush1.msra.mxu0 0.0
    %228 = vmatprep.subr.mxu0 0.0
    %229 = vmatpush1.msra.mxu0 0.0
    %230 = vmatprep.subr.mxu0 0.0
    %231 = vmatpush1.msra.mxu0 0.0
    %232 = vmatprep.subr.mxu0 0.0
    %233 = vmatpush1.msra.mxu0 0.0
    %234 = vmatprep.subr.mxu0 0.0
    %235 = vmatpush1.msra.mxu0 0.0
    %236 = vmatprep.subr.mxu0 0.0
    %237 = vmatpush1.msra.mxu0 0.0
    %238 = vmatprep.subr.mxu0 0.0
    %239 = vmatpush1.msra.mxu0 0.0
    %240 = vmatprep.subr.mxu0 0.0
    %241 = vmatpush1.msra.mxu0 0.0
    %242 = vmatprep.subr.mxu0 0.0
    %243 = vmatpush1.msra.mxu0 0.0
    %244 = vmatprep.subr.mxu0 0.0
    %245 = vmatpush1.msra.mxu0 0.0
    %246 = vmatprep.subr.mxu0 0.0
    %247 = vmatpush1.msra.mxu0 0.0
    %248 = vmatprep.subr.mxu0 0.0
    %249 = vmatpush1.msra.mxu0 0.0
    %250 = vmatprep.subr.mxu0 0.0
    %251 = vmatpush1.msra.mxu0 0.0
    %252 = vmatprep.subr.mxu0 0.0
    %253 = vmatpush1.msra.mxu0 0.0
    %254 = vmatprep.subr.mxu0 0.0
    %255 = vmatpush1.msra.mxu0 0.0
    %256 = vmatprep.mubr.f32.mxu0 0.0
    %257 = vmatmul.mubr.f32.gmra.mrb[0].mxu0 %v190
    %v258 = vpop.f32.mrb[0].mxu0
    %v259 = vadd.f32 %v186, %v258
    %v260 = vpop.f32.mrb[0].mxu0
    %v261 = vadd.f32 %v186, %v260
    %262 = vdwg.mxu0
    %v263 = vmax.f32 %v259, 0.0
    %v264 = vmax.f32 %v261, 0.0
    %267 = vrot.lane.b32.xlu0 %v263, 17
    %v268 = vpop.permute.xlu0 %267
    %269 = vrot.lane.b32.xlu0 %v264, 17
    %v270 = vpop.permute.xlu0 %269
    %v271 = vsel %vm79, %v268, %v270
    %v274 = vsel %vm79, 0.0, %v268
    %v275 = vmul.f32 %v274, %v88
    %v276 = vmul.f32 %v271, %v92
    %277 = vrot.lane.b32.xlu0 %v263, 16
    %v278 = vpop.permute.xlu0 %277
    %279 = vrot.lane.b32.xlu0 %v264, 16
    %v280 = vpop.permute.xlu0 %279
    %v281 = vsel %vm101, %v278, %v280
    %v284 = vsel %vm101, 0.0, %v278
    %285 = vrot.lane.b32.xlu0 %v263, 15
    %v286 = vpop.permute.xlu0 %285
    %287 = vrot.lane.b32.xlu0 %v264, 15
    %v288 = vpop.permute.xlu0 %287
    %v289 = vsel %vm110, %v286, %v288
    %v292 = vsel %vm110, 0.0, %v286
    %v293 = vmul.f32 %v292, %v119
    %v294 = vmul.f32 %v289, %v123
    %295 = vrot.lane.b32.xlu0 %v263, 1
    %v296 = vpop.permute.xlu0 %295
    %297 = vrot.lane.b32.xlu0 %v264, 1
    %v298 = vpop.permute.xlu0 %297
    %v299 = vsel %vm132, %v296, %v298
    %v302 = vsel %vm132, 0.0, %v296
    %v303 = vmul.f32 %v302, %v88
    %v304 = vmul.f32 %v299, %v92
    %305 = vrot.lane.b32.xlu0 %v263, 127
    %v306 = vpop.permute.xlu0 %305
    %307 = vrot.lane.b32.xlu0 %v264, 127
    %v308 = vpop.permute.xlu0 %307
    %v309 = vsel %vm143, %v306, %v308
    %v312 = vsel %vm143, %v308, 0.0
    %v313 = vmul.f32 %v309, %v119
    %v314 = vmul.f32 %v312, %v123
    %315 = vrot.lane.b32.xlu0 %v263, 113
    %v316 = vpop.permute.xlu0 %315
    %317 = vrot.lane.b32.xlu0 %v264, 113
    %v318 = vpop.permute.xlu0 %317
    %v319 = vsel %vm154, %v316, %v318
    %v322 = vsel %vm154, %v318, 0.0
    %v323 = vmul.f32 %v319, %v88
    %v324 = vmul.f32 %v322, %v92
    %325 = vrot.lane.b32.xlu0 %v263, 112
    %v326 = vpop.permute.xlu0 %325
    %327 = vrot.lane.b32.xlu0 %v264, 112
    %v328 = vpop.permute.xlu0 %327
    %v329 = vsel %vm165, %v326, %v328
    %v332 = vsel %vm165, %v328, 0.0
    %333 = vrot.lane.b32.xlu0 %v263, 111
    %v334 = vpop.permute.xlu0 %333
    %335 = vrot.lane.b32.xlu0 %v264, 111
    %v336 = vpop.permute.xlu0 %335
    %v337 = vsel %vm174, %v334, %v336
    %v340 = vsel %vm174, %v336, 0.0
    %v341 = vmul.f32 %v337, %v119
    %v342 = vmul.f32 %v340, %v123
    %v343 = vld [vmem:[%s3] sm:$0xff]
    %v344 = vld [vmem:[%s4] sm:$0xff]
    %346 = vset.pattern.permute.xlu0 0
    %347 = vperm.xlu0 %346, %v344
    %v348 = vpop.permute.xlu0 %347
    %v351 = vsel %vm188, %v343, 0
    %353 = vmatprep.subr.mxu0 %v276
    %354 = vmatpush1.msra.mxu0 %v275
    %355 = vmatprep.subr.mxu0 %v281
    %356 = vmatpush1.msra.mxu0 %v284
    %357 = vmatprep.subr.mxu0 %v294
    %358 = vmatpush1.msra.mxu0 %v293
    %359 = vmatprep.subr.mxu0 %v304
    %360 = vmatpush1.msra.mxu0 %v303
    %361 = vmatprep.subr.mxu0 %v264
    %362 = vmatpush1.msra.mxu0 %v263
    %363 = vmatprep.subr.mxu0 %v314
    %364 = vmatpush1.msra.mxu0 %v313
    %365 = vmatprep.subr.mxu0 %v324
    %366 = vmatpush1.msra.mxu0 %v323
    %367 = vmatprep.subr.mxu0 %v332
    %368 = vmatpush1.msra.mxu0 %v329
    %369 = vmatprep.subr.mxu0 %v342
    %370 = vmatpush1.msra.mxu0 %v341
    %371 = vmatprep.subr.mxu0 0.0
    %372 = vmatpush1.msra.mxu0 0.0
    %373 = vmatprep.subr.mxu0 0.0
    %374 = vmatpush1.msra.mxu0 0.0
    %375 = vmatprep.subr.mxu0 0.0
    %376 = vmatpush1.msra.mxu0 0.0
    %377 = vmatprep.subr.mxu0 0.0
    %378 = vmatpush1.msra.mxu0 0.0
    %379 = vmatprep.subr.mxu0 0.0
    %380 = vmatpush1.msra.mxu0 0.0
    %381 = vmatprep.subr.mxu0 0.0
    %382 = vmatpush1.msra.mxu0 0.0
    %383 = vmatprep.subr.mxu0 0.0
    %384 = vmatpush1.msra.mxu0 0.0
    %385 = vmatprep.subr.mxu0 0.0
    %386 = vmatpush1.msra.mxu0 0.0
    %387 = vmatprep.subr.mxu0 0.0
    %388 = vmatpush1.msra.mxu0 0.0
    %389 = vmatprep.subr.mxu0 0.0
    %390 = vmatpush1.msra.mxu0 0.0
    %391 = vmatprep.subr.mxu0 0.0
    %392 = vmatpush1.msra.mxu0 0.0
    %393 = vmatprep.subr.mxu0 0.0
    %394 = vmatpush1.msra.mxu0 0.0
    %395 = vmatprep.subr.mxu0 0.0
    %396 = vmatpush1.msra.mxu0 0.0
    %397 = vmatprep.subr.mxu0 0.0
    %398 = vmatpush1.msra.mxu0 0.0
    %399 = vmatprep.subr.mxu0 0.0
    %400 = vmatpush1.msra.mxu0 0.0
    %401 = vmatprep.subr.mxu0 0.0
    %402 = vmatpush1.msra.mxu0 0.0
    %403 = vmatprep.subr.mxu0 0.0
    %404 = vmatpush1.msra.mxu0 0.0
    %405 = vmatprep.subr.mxu0 0.0
    %406 = vmatpush1.msra.mxu0 0.0
    %407 = vmatprep.subr.mxu0 0.0
    %408 = vmatpush1.msra.mxu0 0.0
    %409 = vmatprep.subr.mxu0 0.0
    %410 = vmatpush1.msra.mxu0 0.0
    %411 = vmatprep.subr.mxu0 0.0
    %412 = vmatpush1.msra.mxu0 0.0
    %413 = vmatprep.subr.mxu0 0.0
    %414 = vmatpush1.msra.mxu0 0.0
    %415 = vmatprep.subr.mxu0 0.0
    %416 = vmatpush1.msra.mxu0 0.0
    %417 = vmatprep.mubr.f32.mxu0 0.0
    %418 = vmatmul.mubr.f32.gmra.mrb[0].mxu0 %v351
    %v419 = vpop.f32.mrb[0].mxu0
    %v420 = vadd.f32 %v348, %v419
    %v421 = vpop.f32.mrb[0].mxu0
    %v422 = vadd.f32 %v348, %v421
    %423 = vdwg.mxu0
    %425 = vrot.lane.b32.xlu0 %v420, 112
    %v426 = vpop.permute.xlu0 %425
    %v428 = vmax.f32 %v420, %v426
    %429 = vrot.lane.b32.xlu0 %v420, 96
    %v430 = vpop.permute.xlu0 %429
    %v432 = vmax.f32 %v428, %v430
    %433 = vrot.lane.b32.xlu0 %v420, 80
    %v434 = vpop.permute.xlu0 %433
    %v436 = vmax.f32 %v432, %v434
    %437 = vrot.lane.b32.xlu0 %v420, 64
    %v438 = vpop.permute.xlu0 %437
    %v440 = vmax.f32 %v436, %v438
    %441 = vrot.lane.b32.xlu0 %v420, 48
    %v442 = vpop.permute.xlu0 %441
    %v444 = vmax.f32 %v440, %v442
    %445 = vrot.lane.b32.xlu0 %v420, 32
    %v446 = vpop.permute.xlu0 %445
    %v448 = vmax.f32 %v444, %v446
    %449 = vrot.lane.b32.xlu0 %v420, 16
    %v450 = vpop.permute.xlu0 %449
    %v452 = vmax.f32 %v448, %v450
    %v453 = vmax.f32 %v452, %v422
    %455 = vrot.lane.b32.xlu0 %v422, 112
    %v456 = vpop.permute.xlu0 %455
    %v458 = vmax.f32 %v453, %v456
    %459 = vrot.lane.b32.xlu0 %v422, 96
    %v460 = vpop.permute.xlu0 %459
    %v462 = vmax.f32 %v458, %v460
    %463 = vrot.lane.b32.xlu0 %v422, 80
    %v464 = vpop.permute.xlu0 %463
    %v466 = vmax.f32 %v462, %v464
    %467 = vrot.lane.b32.xlu0 %v422, 64
    %v468 = vpop.permute.xlu0 %467
    %v470 = vmax.f32 %v466, %v468
    %471 = vrot.lane.b32.xlu0 %v422, 48
    %v472 = vpop.permute.xlu0 %471
    %v474 = vmax.f32 %v470, %v472
    %475 = vrot.lane.b32.xlu0 %v422, 32
    %v476 = vpop.permute.xlu0 %475
    %v478 = vmax.f32 %v474, %v476
    %479 = vrot.lane.b32.xlu0 %v422, 16
    %v480 = vpop.permute.xlu0 %479
    %v482 = vmax.f32 %v478, %v480
    %v483 = vadd.f32 %v420, %v426
    %v484 = vadd.f32 %v483, %v430
    %v485 = vadd.f32 %v484, %v434
    %v486 = vadd.f32 %v485, %v438
    %v487 = vadd.f32 %v486, %v442
    %v488 = vadd.f32 %v487, %v446
    %v489 = vadd.f32 %v488, %v450
    %v490 = vadd.f32 %v489, %v422
    %v491 = vadd.f32 %v490, %v456
    %v492 = vadd.f32 %v491, %v460
    %v493 = vadd.f32 %v492, %v464
    %v494 = vadd.f32 %v493, %v468
    %v495 = vadd.f32 %v494, %v472
    %v496 = vadd.f32 %v495, %v476
    %v497 = vadd.f32 %v496, %v480
    %v498 = vmul.f32 %v497, 0.0625
    %v499 = vlaneseq
    %v500 = vand.u32 %v499, 127
    %vm501 = vcmp.eq.s32.totalorder %v500, 0
    %v502 = vsel %vm501, 1.0, 0.0
    %v503 = vsel %vm101, %v420, -inf
    %504 = vmax.xlane.f32.xlu0 %v503
    %v505 = vpop.xlane.xlu0 %504
    %v506 = vmul.f32 %v502, %v505
    %v507 = vadd.f32 %v506, 0.0
    %v508 = vsel %vm101, %v420, 0.0
    %509 = vadd.xlane.f32.xlu0 %v508
    %v510 = vpop.xlane.xlu0 %509
    %v511 = vmul.f32 %v502, %v510
    %v512 = vadd.f32 %v511, 0.0
    %vm513 = vcmp.eq.s32.totalorder %v500, 1
    %v514 = vsel %vm513, 1.0, 0.0
    %vm515 = vcmask 261248
    %v516 = vsel %vm515, %v420, -inf
    %517 = vmax.xlane.f32.xlu0 %v516
    %v518 = vpop.xlane.xlu0 %517
    %v519 = vmul.f32 %v514, %v518
    %v520 = vadd.f32 %v507, %v519
    %v521 = vsel %vm101, %v426, 0.0
    %522 = vadd.xlane.f32.xlu0 %v521
    %v523 = vpop.xlane.xlu0 %522
    %v524 = vmul.f32 %v514, %v523
    %v525 = vadd.f32 %v512, %v524
    %vm526 = vcmp.eq.s32.totalorder %v500, 2
    %v527 = vsel %vm526, 1.0, 0.0
    %vm528 = vcmask 392448
    %v529 = vsel %vm528, %v420, -inf
    %530 = vmax.xlane.f32.xlu0 %v529
    %v531 = vpop.xlane.xlu0 %530
    %v532 = vmul.f32 %v527, %v531
    %v533 = vadd.f32 %v520, %v532
    %v534 = vsel %vm101, %v430, 0.0
    %535 = vadd.xlane.f32.xlu0 %v534
    %v536 = vpop.xlane.xlu0 %535
    %v537 = vmul.f32 %v527, %v536
    %v538 = vadd.f32 %v525, %v537
    %vm539 = vcmp.eq.s32.totalorder %v500, 3
    %v540 = vsel %vm539, 1.0, 0.0
    %vm541 = vcmask 523648
    %v542 = vsel %vm541, %v420, -inf
    %543 = vmax.xlane.f32.xlu0 %v542
    %v544 = vpop.xlane.xlu0 %543
    %v545 = vmul.f32 %v540, %v544
    %v546 = vadd.f32 %v533, %v545
    %v547 = vsel %vm101, %v434, 0.0
    %548 = vadd.xlane.f32.xlu0 %v547
    %v549 = vpop.xlane.xlu0 %548
    %v550 = vmul.f32 %v540, %v549
    %v551 = vadd.f32 %v538, %v550
    %vm552 = vcmp.eq.s32.totalorder %v500, 4
    %v553 = vsel %vm552, 1.0, 0.0
    %vm554 = vcmask 654848
    %v555 = vsel %vm554, %v420, -inf
    %556 = vmax.xlane.f32.xlu0 %v555
    %v557 = vpop.xlane.xlu0 %556
    %v558 = vmul.f32 %v553, %v557
    %v559 = vadd.f32 %v546, %v558
    %v560 = vsel %vm101, %v438, 0.0
    %561 = vadd.xlane.f32.xlu0 %v560
    %v562 = vpop.xlane.xlu0 %561
    %v563 = vmul.f32 %v553, %v562
    %v564 = vadd.f32 %v551, %v563
    %vm565 = vcmp.eq.s32.totalorder %v500, 5
    %v566 = vsel %vm565, 1.0, 0.0
    %vm567 = vcmask 786048
    %v568 = vsel %vm567, %v420, -inf
    %569 = vmax.xlane.f32.xlu0 %v568
    %v570 = vpop.xlane.xlu0 %569
    %v571 = vmul.f32 %v566, %v570
    %v572 = vadd.f32 %v559, %v571
    %v573 = vsel %vm101, %v442, 0.0
    %574 = vadd.xlane.f32.xlu0 %v573
    %v575 = vpop.xlane.xlu0 %574
    %v576 = vmul.f32 %v566, %v575
    %v577 = vadd.f32 %v564, %v576
    %vm578 = vcmp.eq.s32.totalorder %v500, 6
    %v579 = vsel %vm578, 1.0, 0.0
    %vm580 = vcmask 917248
    %v581 = vsel %vm580, %v420, -inf
    %582 = vmax.xlane.f32.xlu0 %v581
    %v583 = vpop.xlane.xlu0 %582
    %v584 = vmul.f32 %v579, %v583
    %v585 = vadd.f32 %v572, %v584
    %v586 = vsel %vm101, %v446, 0.0
    %587 = vadd.xlane.f32.xlu0 %v586
    %v588 = vpop.xlane.xlu0 %587
    %v589 = vmul.f32 %v579, %v588
    %v590 = vadd.f32 %v577, %v589
    %vm591 = vcmp.eq.s32.totalorder %v500, 7
    %v592 = vsel %vm591, 1.0, 0.0
    %vm593 = vcmask 1048448
    %v594 = vsel %vm593, %v420, -inf
    %595 = vmax.xlane.f32.xlu0 %v594
    %v596 = vpop.xlane.xlu0 %595
    %v597 = vmul.f32 %v592, %v596
    %v598 = vadd.f32 %v585, %v597
    %v599 = vsel %vm101, %v450, 0.0
    %600 = vadd.xlane.f32.xlu0 %v599
    %v601 = vpop.xlane.xlu0 %600
    %v602 = vmul.f32 %v592, %v601
    %v603 = vadd.f32 %v590, %v602
    %vm604 = vcmp.eq.s32.totalorder %v500, 8
    %v605 = vsel %vm604, 1.0, 0.0
    %v606 = vsel %vm101, %v422, -inf
    %607 = vmax.xlane.f32.xlu0 %v606
    %v608 = vpop.xlane.xlu0 %607
    %v609 = vmul.f32 %v605, %v608
    %v610 = vadd.f32 %v598, %v609
    %v611 = vsel %vm101, %v422, 0.0
    %612 = vadd.xlane.f32.xlu0 %v611
    %v613 = vpop.xlane.xlu0 %612
    %v614 = vmul.f32 %v605, %v613
    %v615 = vadd.f32 %v603, %v614
    %vm616 = vcmp.eq.s32.totalorder %v500, 9
    %v617 = vsel %vm616, 1.0, 0.0
    %v618 = vsel %vm515, %v422, -inf
    %619 = vmax.xlane.f32.xlu0 %v618
    %v620 = vpop.xlane.xlu0 %619
    %v621 = vmul.f32 %v617, %v620
    %v622 = vadd.f32 %v610, %v621
    %v623 = vsel %vm101, %v456, 0.0
    %624 = vadd.xlane.f32.xlu0 %v623
    %v625 = vpop.xlane.xlu0 %624
    %v626 = vmul.f32 %v617, %v625
    %v627 = vadd.f32 %v615, %v626
    %vm628 = vcmp.eq.s32.totalorder %v500, 10
    %v629 = vsel %vm628, 1.0, 0.0
    %v630 = vsel %vm528, %v422, -inf
    %631 = vmax.xlane.f32.xlu0 %v630
    %v632 = vpop.xlane.xlu0 %631
    %v633 = vmul.f32 %v629, %v632
    %v634 = vadd.f32 %v622, %v633
    %v635 = vsel %vm101, %v460, 0.0
    %636 = vadd.xlane.f32.xlu0 %v635
    %v637 = vpop.xlane.xlu0 %636
    %v638 = vmul.f32 %v629, %v637
    %v639 = vadd.f32 %v627, %v638
    %vm640 = vcmp.eq.s32.totalorder %v500, 11
    %v641 = vsel %vm640, 1.0, 0.0
    %v642 = vsel %vm541, %v422, -inf
    %643 = vmax.xlane.f32.xlu0 %v642
    %v644 = vpop.xlane.xlu0 %643
    %v645 = vmul.f32 %v641, %v644
    %v646 = vadd.f32 %v634, %v645
    %v647 = vsel %vm101, %v464, 0.0
    %648 = vadd.xlane.f32.xlu0 %v647
    %v649 = vpop.xlane.xlu0 %648
    %v650 = vmul.f32 %v641, %v649
    %v651 = vadd.f32 %v639, %v650
    %vm652 = vcmp.eq.s32.totalorder %v500, 12
    %v653 = vsel %vm652, 1.0, 0.0
    %v654 = vsel %vm554, %v422, -inf
    %655 = vmax.xlane.f32.xlu0 %v654
    %v656 = vpop.xlane.xlu0 %655
    %v657 = vmul.f32 %v653, %v656
    %v658 = vadd.f32 %v646, %v657
    %v659 = vsel %vm101, %v468, 0.0
    %660 = vadd.xlane.f32.xlu0 %v659
    %v661 = vpop.xlane.xlu0 %660
    %v662 = vmul.f32 %v653, %v661
    %v663 = vadd.f32 %v651, %v662
    %vm664 = vcmp.eq.s32.totalorder %v500, 13
    %v665 = vsel %vm664, 1.0, 0.0
    %v666 = vsel %vm567, %v422, -inf
    %667 = vmax.xlane.f32.xlu0 %v666
    %v668 = vpop.xlane.xlu0 %667
    %v669 = vmul.f32 %v665, %v668
    %v670 = vadd.f32 %v658, %v669
    %v671 = vsel %vm101, %v472, 0.0
    %672 = vadd.xlane.f32.xlu0 %v671
    %v673 = vpop.xlane.xlu0 %672
    %v674 = vmul.f32 %v665, %v673
    %v675 = vadd.f32 %v663, %v674
    %vm676 = vcmp.eq.s32.totalorder %v500, 14
    %v677 = vsel %vm676, 1.0, 0.0
    %v678 = vsel %vm580, %v422, -inf
    %679 = vmax.xlane.f32.xlu0 %v678
    %v680 = vpop.xlane.xlu0 %679
    %v681 = vmul.f32 %v677, %v680
    %v682 = vadd.f32 %v670, %v681
    %v683 = vsel %vm101, %v476, 0.0
    %684 = vadd.xlane.f32.xlu0 %v683
    %v685 = vpop.xlane.xlu0 %684
    %v686 = vmul.f32 %v677, %v685
    %v687 = vadd.f32 %v675, %v686
    %vm688 = vcmp.eq.s32.totalorder %v500, 15
    %v689 = vsel %vm688, 1.0, 0.0
    %v690 = vsel %vm593, %v422, -inf
    %691 = vmax.xlane.f32.xlu0 %v690
    %v692 = vpop.xlane.xlu0 %691
    %v693 = vmul.f32 %v689, %v692
    %v694 = vadd.f32 %v682, %v693
    %v695 = vsel %vm101, %v480, 0.0
    %696 = vadd.xlane.f32.xlu0 %v695
    %v697 = vpop.xlane.xlu0 %696
    %v698 = vmul.f32 %v689, %v697
    %v699 = vadd.f32 %v687, %v698
    %v700 = vmul.f32 %v699, 0.0625
    %v701 = vadd.f32 %v420, %v422
    %702 = vadd.xlane.f32.xlu0 %v701
    %v703 = vpop.xlane.xlu0 %702
    %v704 = vmul.f32 %v703, 0.00390625
    %v706 = vrot.slane %v694, 5
    %vm708 = vcmask 1042432
    %v709 = vsel %vm708, 0.0, %v706
    %vm710 = vcmask 1046528
    %v711 = vsel %vm710, %v709, 0.0
    %714 = vrot.lane.b32.xlu0 %v711, 3
    %v715 = vpop.permute.xlu0 %714
    %716 = vrot.lane.b32.xlu0 0.0, 3
    %v717 = vpop.permute.xlu0 %716
    %vm720 = vcmask 23552
    %v721 = vsel %vm720, 0.0, %v715
    %v722 = vsel %vm720, 0.0, %v717
    %vm723 = vcmask 154624
    %v724 = vsel %vm723, %v721, 0.0
    %v725 = vsel %vm723, %v722, 0.0
    %v727 = vrot.slane %v700, 5
    %v729 = vsel %vm708, 0.0, %v727
    %v730 = vsel %vm710, %v729, 0.0
    %732 = vrot.lane.b32.xlu0 %v730, 3
    %v733 = vpop.permute.xlu0 %732
    %v735 = vsel %vm720, 0.0, %v733
    %v736 = vsel %vm723, %v735, 0.0
    %s737 = sld [smem:[#allocation3]]
    %v738 = vstv %s737
    %v739 = vmul.f32 %v738, %v724
    %v740 = vadd.f32 %v739, 0.0
    %s741 = sld [smem:[#allocation3 + $0x1]]
    %v742 = vstv %s741
    %v743 = vmul.f32 %v742, %v724
    %v745 = vrot.slane %v743, 1
    %v747 = vadd.f32 %v740, %v745
    %s748 = sld [smem:[#allocation3 + $0x2]]
    %v749 = vstv %s748
    %v750 = vmul.f32 %v749, %v724
    %v752 = vrot.slane %v750, 2
    %v754 = vadd.f32 %v747, %v752
    %s755 = sld [smem:[#allocation3 + $0x3]]
    %v756 = vstv %s755
    %v757 = vmul.f32 %v756, %v724
    %v759 = vrot.slane %v757, 3
    %v761 = vadd.f32 %v754, %v759
    %s762 = sld [smem:[#allocation3 + $0x4]]
    %v763 = vstv %s762
    %v764 = vmul.f32 %v763, %v724
    %v766 = vrot.slane %v764, 4
    %v768 = vadd.f32 %v761, %v766
    %s769 = sld [smem:[#allocation3 + $0x5]]
    %v770 = vstv %s769
    %v771 = vmul.f32 %v770, %v724
    %v772 = vmul.f32 %v770, %v725
    %v775 = vrot.slane %v771, 5
    %v776 = vrot.slane %v772, 5
    %v777 = vsel %vm708, %v775, %v776
    %v779 = vadd.f32 %v768, %v777
    %s780 = sld [smem:[#allocation3 + $0x6]]
    %v781 = vstv %s780
    %v782 = vmul.f32 %v781, %v724
    %v783 = vmul.f32 %v781, %v725
    %vm786 = vcmask 1041408
    %v787 = vrot.slane %v782, 6
    %v788 = vrot.slane %v783, 6
    %v789 = vsel %vm786, %v787, %v788
    %v791 = vadd.f32 %v779, %v789
    %s792 = sld [smem:[#allocation3 + $0x7]]
    %v793 = vstv %s792
    %v794 = vmul.f32 %v793, %v724
    %796 = vrot.lane.b32.xlu0 %v794, 127
    %v797 = vpop.permute.xlu0 %796
    %v799 = vadd.f32 %v791, %v797
    %s800 = sld [smem:[#allocation3 + $0x8]]
    %v801 = vstv %s800
    %v802 = vmul.f32 %v801, %v724
    %v804 = vrot.slane %v802, 1
    %805 = vrot.lane.b32.xlu0 %v804, 127
    %v806 = vpop.permute.xlu0 %805
    %v808 = vadd.f32 %v799, %v806
    %s809 = sld [smem:[#allocation3 + $0x9]]
    %v810 = vstv %s809
    %v811 = vmul.f32 %v810, %v724
    %v813 = vrot.slane %v811, 2
    %814 = vrot.lane.b32.xlu0 %v813, 127
    %v815 = vpop.permute.xlu0 %814
    %v817 = vadd.f32 %v808, %v815
    %s818 = sld [smem:[#allocation3 + $0xa]]
    %v819 = vstv %s818
    %v820 = vmul.f32 %v819, %v724
    %v822 = vrot.slane %v820, 3
    %823 = vrot.lane.b32.xlu0 %v822, 127
    %v824 = vpop.permute.xlu0 %823
    %v826 = vadd.f32 %v817, %v824
    %s827 = sld [smem:[#allocation3 + $0xb]]
    %v828 = vstv %s827
    %v829 = vmul.f32 %v828, %v724
    %v831 = vrot.slane %v829, 4
    %832 = vrot.lane.b32.xlu0 %v831, 127
    %v833 = vpop.permute.xlu0 %832
    %v835 = vadd.f32 %v826, %v833
    %s836 = sld [smem:[#allocation3 + $0xc]]
    %v837 = vstv %s836
    %v838 = vmul.f32 %v837, %v724
    %v839 = vmul.f32 %v837, %v725
    %v842 = vrot.slane %v838, 5
    %v843 = vrot.slane %v839, 5
    %v844 = vsel %vm708, %v842, %v843
    %845 = vrot.lane.b32.xlu0 %v844, 127
    %v846 = vpop.permute.xlu0 %845
    %v848 = vadd.f32 %v835, %v846
    %s849 = sld [smem:[#allocation3 + $0xd]]
    %v850 = vstv %s849
    %v851 = vmul.f32 %v850, %v724
    %v852 = vmul.f32 %v850, %v725
    %v855 = vrot.slane %v851, 6
    %v856 = vrot.slane %v852, 6
    %v857 = vsel %vm786, %v855, %v856
    %858 = vrot.lane.b32.xlu0 %v857, 127
    %v859 = vpop.permute.xlu0 %858
    %v861 = vadd.f32 %v848, %v859
    %s862 = sld [smem:[#allocation3 + $0xe]]
    %v863 = vstv %s862
    %v864 = vmul.f32 %v863, %v724
    %866 = vrot.lane.b32.xlu0 %v864, 126
    %v867 = vpop.permute.xlu0 %866
    %v869 = vadd.f32 %v861, %v867
    %s870 = sld [smem:[#allocation3 + $0xf]]
    %v871 = vstv %s870
    %v872 = vmul.f32 %v871, %v724
    %v874 = vrot.slane %v872, 1
    %875 = vrot.lane.b32.xlu0 %v874, 126
    %v876 = vpop.permute.xlu0 %875
    %v878 = vadd.f32 %v869, %v876
    %s879 = sld [smem:[#allocation3 + $0x10]]
    %v880 = vstv %s879
    %v881 = vmul.f32 %v880, %v724
    %v883 = vrot.slane %v881, 2
    %884 = vrot.lane.b32.xlu0 %v883, 126
    %v885 = vpop.permute.xlu0 %884
    %v887 = vadd.f32 %v878, %v885
    %s888 = sld [smem:[#allocation3 + $0x11]]
    %v889 = vstv %s888
    %v890 = vmul.f32 %v889, %v724
    %v892 = vrot.slane %v890, 3
    %893 = vrot.lane.b32.xlu0 %v892, 126
    %v894 = vpop.permute.xlu0 %893
    %v896 = vadd.f32 %v887, %v894
    %s897 = sld [smem:[#allocation3 + $0x12]]
    %v898 = vstv %s897
    %v899 = vmul.f32 %v898, %v724
    %v901 = vrot.slane %v899, 4
    %902 = vrot.lane.b32.xlu0 %v901, 126
    %v903 = vpop.permute.xlu0 %902
    %v905 = vadd.f32 %v896, %v903
    %s906 = sld [smem:[#allocation3 + $0x13]]
    %v907 = vstv %s906
    %v908 = vmul.f32 %v907, %v724
    %v909 = vmul.f32 %v907, %v725
    %v912 = vrot.slane %v908, 5
    %v913 = vrot.slane %v909, 5
    %v914 = vsel %vm708, %v912, %v913
    %915 = vrot.lane.b32.xlu0 %v914, 126
    %v916 = vpop.permute.xlu0 %915
    %v918 = vadd.f32 %v905, %v916
    %s919 = sld [smem:[#allocation3 + $0x14]]
    %v920 = vstv %s919
    %v921 = vmul.f32 %v920, %v724
    %v922 = vmul.f32 %v920, %v725
    %v925 = vrot.slane %v921, 6
    %v926 = vrot.slane %v922, 6
    %v927 = vsel %vm786, %v925, %v926
    %928 = vrot.lane.b32.xlu0 %v927, 126
    %v929 = vpop.permute.xlu0 %928
    %v931 = vadd.f32 %v918, %v929
    %s932 = sld [smem:[#allocation3 + $0x15]]
    %v933 = vstv %s932
    %v934 = vmul.f32 %v933, %v724
    %936 = vrot.lane.b32.xlu0 %v934, 125
    %v937 = vpop.permute.xlu0 %936
    %v939 = vadd.f32 %v931, %v937
    %s940 = sld [smem:[#allocation3 + $0x16]]
    %v941 = vstv %s940
    %v942 = vmul.f32 %v941, %v724
    %v944 = vrot.slane %v942, 1
    %945 = vrot.lane.b32.xlu0 %v944, 125
    %v946 = vpop.permute.xlu0 %945
    %v948 = vadd.f32 %v939, %v946
    %s949 = sld [smem:[#allocation3 + $0x17]]
    %v950 = vstv %s949
    %v951 = vmul.f32 %v950, %v724
    %v953 = vrot.slane %v951, 2
    %954 = vrot.lane.b32.xlu0 %v953, 125
    %v955 = vpop.permute.xlu0 %954
    %v957 = vadd.f32 %v948, %v955
    %s958 = sld [smem:[#allocation3 + $0x18]]
    %v959 = vstv %s958
    %v960 = vmul.f32 %v959, %v724
    %v962 = vrot.slane %v960, 3
    %963 = vrot.lane.b32.xlu0 %v962, 125
    %v964 = vpop.permute.xlu0 %963
    %v966 = vadd.f32 %v957, %v964
    %s967 = sld [smem:[#allocation3 + $0x19]]
    %v968 = vstv %s967
    %v969 = vmul.f32 %v968, %v724
    %v971 = vrot.slane %v969, 4
    %972 = vrot.lane.b32.xlu0 %v971, 125
    %v973 = vpop.permute.xlu0 %972
    %v975 = vadd.f32 %v966, %v973
    %s976 = sld [smem:[#allocation3 + $0x1a]]
    %v977 = vstv %s976
    %v978 = vmul.f32 %v977, %v724
    %v979 = vmul.f32 %v977, %v725
    %v982 = vrot.slane %v978, 5
    %v983 = vrot.slane %v979, 5
    %v984 = vsel %vm708, %v982, %v983
    %985 = vrot.lane.b32.xlu0 %v984, 125
    %v986 = vpop.permute.xlu0 %985
    %v988 = vadd.f32 %v975, %v986
    %s989 = sld [smem:[#allocation3 + $0x1b]]
    %v990 = vstv %s989
    %v991 = vmul.f32 %v990, %v724
    %v992 = vmul.f32 %v990, %v725
    %v995 = vrot.slane %v991, 6
    %v996 = vrot.slane %v992, 6
    %v997 = vsel %vm786, %v995, %v996
    %998 = vrot.lane.b32.xlu0 %v997, 125
    %v999 = vpop.permute.xlu0 %998
    %v1001 = vadd.f32 %v988, %v999
    %s1002 = sld [smem:[#allocation3 + $0x1c]]
    %v1003 = vstv %s1002
    %v1004 = vmul.f32 %v1003, %v724
    %1006 = vrot.lane.b32.xlu0 %v1004, 124
    %v1007 = vpop.permute.xlu0 %1006
    %v1009 = vadd.f32 %v1001, %v1007
    %s1010 = sld [smem:[#allocation3 + $0x1d]]
    %v1011 = vstv %s1010
    %v1012 = vmul.f32 %v1011, %v724
    %v1014 = vrot.slane %v1012, 1
    %1015 = vrot.lane.b32.xlu0 %v1014, 124
    %v1016 = vpop.permute.xlu0 %1015
    %v1018 = vadd.f32 %v1009, %v1016
    %s1019 = sld [smem:[#allocation3 + $0x1e]]
    %v1020 = vstv %s1019
    %v1021 = vmul.f32 %v1020, %v724
    %v1023 = vrot.slane %v1021, 2
    %1024 = vrot.lane.b32.xlu0 %v1023, 124
    %v1025 = vpop.permute.xlu0 %1024
    %v1027 = vadd.f32 %v1018, %v1025
    %s1028 = sld [smem:[#allocation3 + $0x1f]]
    %v1029 = vstv %s1028
    %v1030 = vmul.f32 %v1029, %v724
    %v1032 = vrot.slane %v1030, 3
    %1033 = vrot.lane.b32.xlu0 %v1032, 124
    %v1034 = vpop.permute.xlu0 %1033
    %v1036 = vadd.f32 %v1027, %v1034
    %s1037 = sld [smem:[#allocation3 + $0x20]]
    %v1038 = vstv %s1037
    %v1039 = vmul.f32 %v1038, %v724
    %v1041 = vrot.slane %v1039, 4
    %1042 = vrot.lane.b32.xlu0 %v1041, 124
    %v1043 = vpop.permute.xlu0 %1042
    %v1045 = vadd.f32 %v1036, %v1043
    %s1046 = sld [smem:[#allocation3 + $0x21]]
    %v1047 = vstv %s1046
    %v1048 = vmul.f32 %v1047, %v724
    %v1049 = vmul.f32 %v1047, %v725
    %v1052 = vrot.slane %v1048, 5
    %v1053 = vrot.slane %v1049, 5
    %v1054 = vsel %vm708, %v1052, %v1053
    %1055 = vrot.lane.b32.xlu0 %v1054, 124
    %v1056 = vpop.permute.xlu0 %1055
    %v1058 = vadd.f32 %v1045, %v1056
    %s1059 = sld [smem:[#allocation3 + $0x22]]
    %v1060 = vstv %s1059
    %v1061 = vmul.f32 %v1060, %v724
    %v1062 = vmul.f32 %v1060, %v725
    %v1065 = vrot.slane %v1061, 6
    %v1066 = vrot.slane %v1062, 6
    %v1067 = vsel %vm786, %v1065, %v1066
    %1068 = vrot.lane.b32.xlu0 %v1067, 124
    %v1069 = vpop.permute.xlu0 %1068
    %v1071 = vadd.f32 %v1058, %v1069
    %s1072 = sld [smem:[#allocation3 + $0x23]]
    %v1073 = vstv %s1072
    %v1074 = vmul.f32 %v1073, %v724
    %1076 = vrot.lane.b32.xlu0 %v1074, 123
    %v1077 = vpop.permute.xlu0 %1076
    %v1079 = vadd.f32 %v1071, %v1077
    %s1080 = sld [smem:[#allocation3 + $0x24]]
    %v1081 = vstv %s1080
    %v1082 = vmul.f32 %v1081, %v724
    %v1084 = vrot.slane %v1082, 1
    %1085 = vrot.lane.b32.xlu0 %v1084, 123
    %v1086 = vpop.permute.xlu0 %1085
    %v1088 = vadd.f32 %v1079, %v1086
    %s1089 = sld [smem:[#allocation3 + $0x25]]
    %v1090 = vstv %s1089
    %v1091 = vmul.f32 %v1090, %v724
    %v1093 = vrot.slane %v1091, 2
    %1094 = vrot.lane.b32.xlu0 %v1093, 123
    %v1095 = vpop.permute.xlu0 %1094
    %v1097 = vadd.f32 %v1088, %v1095
    %s1098 = sld [smem:[#allocation3 + $0x26]]
    %v1099 = vstv %s1098
    %v1100 = vmul.f32 %v1099, %v724
    %v1102 = vrot.slane %v1100, 3
    %1103 = vrot.lane.b32.xlu0 %v1102, 123
    %v1104 = vpop.permute.xlu0 %1103
    %v1106 = vadd.f32 %v1097, %v1104
    %s1107 = sld [smem:[#allocation3 + $0x27]]
    %v1108 = vstv %s1107
    %v1109 = vmul.f32 %v1108, %v724
    %v1111 = vrot.slane %v1109, 4
    %1112 = vrot.lane.b32.xlu0 %v1111, 123
    %v1113 = vpop.permute.xlu0 %1112
    %v1115 = vadd.f32 %v1106, %v1113
    %s1116 = sld [smem:[#allocation3 + $0x28]]
    %v1117 = vstv %s1116
    %v1118 = vmul.f32 %v1117, %v724
    %v1119 = vmul.f32 %v1117, %v725
    %v1122 = vrot.slane %v1118, 5
    %v1123 = vrot.slane %v1119, 5
    %v1124 = vsel %vm708, %v1122, %v1123
    %1125 = vrot.lane.b32.xlu0 %v1124, 123
    %v1126 = vpop.permute.xlu0 %1125
    %v1128 = vadd.f32 %v1115, %v1126
    %s1129 = sld [smem:[#allocation3 + $0x29]]
    %v1130 = vstv %s1129
    %v1131 = vmul.f32 %v1130, %v724
    %v1132 = vmul.f32 %v1130, %v725
    %v1135 = vrot.slane %v1131, 6
    %v1136 = vrot.slane %v1132, 6
    %v1137 = vsel %vm786, %v1135, %v1136
    %1138 = vrot.lane.b32.xlu0 %v1137, 123
    %v1139 = vpop.permute.xlu0 %1138
    %v1141 = vadd.f32 %v1128, %v1139
    %s1142 = sld [smem:[#allocation3 + $0x2a]]
    %v1143 = vstv %s1142
    %v1144 = vmul.f32 %v1143, %v724
    %1146 = vrot.lane.b32.xlu0 %v1144, 122
    %v1147 = vpop.permute.xlu0 %1146
    %v1149 = vadd.f32 %v1141, %v1147
    %s1150 = sld [smem:[#allocation3 + $0x2b]]
    %v1151 = vstv %s1150
    %v1152 = vmul.f32 %v1151, %v724
    %v1154 = vrot.slane %v1152, 1
    %1155 = vrot.lane.b32.xlu0 %v1154, 122
    %v1156 = vpop.permute.xlu0 %1155
    %v1158 = vadd.f32 %v1149, %v1156
    %s1159 = sld [smem:[#allocation3 + $0x2c]]
    %v1160 = vstv %s1159
    %v1161 = vmul.f32 %v1160, %v724
    %v1163 = vrot.slane %v1161, 2
    %1164 = vrot.lane.b32.xlu0 %v1163, 122
    %v1165 = vpop.permute.xlu0 %1164
    %v1167 = vadd.f32 %v1158, %v1165
    %s1168 = sld [smem:[#allocation3 + $0x2d]]
    %v1169 = vstv %s1168
    %v1170 = vmul.f32 %v1169, %v724
    %v1172 = vrot.slane %v1170, 3
    %1173 = vrot.lane.b32.xlu0 %v1172, 122
    %v1174 = vpop.permute.xlu0 %1173
    %v1176 = vadd.f32 %v1167, %v1174
    %s1177 = sld [smem:[#allocation3 + $0x2e]]
    %v1178 = vstv %s1177
    %v1179 = vmul.f32 %v1178, %v724
    %v1181 = vrot.slane %v1179, 4
    %1182 = vrot.lane.b32.xlu0 %v1181, 122
    %v1183 = vpop.permute.xlu0 %1182
    %v1185 = vadd.f32 %v1176, %v1183
    %s1186 = sld [smem:[#allocation3 + $0x2f]]
    %v1187 = vstv %s1186
    %v1188 = vmul.f32 %v1187, %v724
    %v1189 = vmul.f32 %v1187, %v725
    %v1192 = vrot.slane %v1188, 5
    %v1193 = vrot.slane %v1189, 5
    %v1194 = vsel %vm708, %v1192, %v1193
    %1195 = vrot.lane.b32.xlu0 %v1194, 122
    %v1196 = vpop.permute.xlu0 %1195
    %v1198 = vadd.f32 %v1185, %v1196
    %s1199 = sld [smem:[#allocation3 + $0x30]]
    %v1200 = vstv %s1199
    %v1201 = vmul.f32 %v1200, %v724
    %v1202 = vmul.f32 %v1200, %v725
    %v1205 = vrot.slane %v1201, 6
    %v1206 = vrot.slane %v1202, 6
    %v1207 = vsel %vm786, %v1205, %v1206
    %1208 = vrot.lane.b32.xlu0 %v1207, 122
    %v1209 = vpop.permute.xlu0 %1208
    %v1211 = vadd.f32 %v1198, %v1209
    %s1212 = sld [smem:[#allocation3 + $0x31]]
    %v1213 = vstv %s1212
    %v1214 = vmul.f32 %v1213, %v736
    %v1215 = vadd.f32 %v1211, %v1214
    %s1216 = sld [smem:[#allocation3 + $0x32]]
    %v1217 = vstv %s1216
    %v1218 = vmul.f32 %v1217, %v736
    %v1220 = vrot.slane %v1218, 1
    %v1222 = vadd.f32 %v1215, %v1220
    %s1223 = sld [smem:[#allocation3 + $0x33]]
    %v1224 = vstv %s1223
    %v1225 = vmul.f32 %v1224, %v736
    %v1227 = vrot.slane %v1225, 2
    %v1229 = vadd.f32 %v1222, %v1227
    %s1230 = sld [smem:[#allocation3 + $0x34]]
    %v1231 = vstv %s1230
    %v1232 = vmul.f32 %v1231, %v736
    %v1234 = vrot.slane %v1232, 3
    %v1236 = vadd.f32 %v1229, %v1234
    %s1237 = sld [smem:[#allocation3 + $0x35]]
    %v1238 = vstv %s1237
    %v1239 = vmul.f32 %v1238, %v736
    %v1241 = vrot.slane %v1239, 4
    %v1243 = vadd.f32 %v1236, %v1241
    %s1244 = sld [smem:[#allocation3 + $0x36]]
    %v1245 = vstv %s1244
    %v1246 = vmul.f32 %v1245, %v736
    %v1247 = vmul.f32 %v1245, %v725
    %v1250 = vrot.slane %v1246, 5
    %v1251 = vrot.slane %v1247, 5
    %v1252 = vsel %vm708, %v1250, %v1251
    %v1254 = vadd.f32 %v1243, %v1252
    %s1255 = sld [smem:[#allocation3 + $0x37]]
    %v1256 = vstv %s1255
    %v1257 = vmul.f32 %v1256, %v736
    %v1258 = vmul.f32 %v1256, %v725
    %v1261 = vrot.slane %v1257, 6
    %v1262 = vrot.slane %v1258, 6
    %v1263 = vsel %vm786, %v1261, %v1262
    %v1265 = vadd.f32 %v1254, %v1263
    %s1266 = sld [smem:[#allocation3 + $0x38]]
    %v1267 = vstv %s1266
    %v1268 = vmul.f32 %v1267, %v736
    %1270 = vrot.lane.b32.xlu0 %v1268, 127
    %v1271 = vpop.permute.xlu0 %1270
    %v1273 = vadd.f32 %v1265, %v1271
    %s1274 = sld [smem:[#allocation3 + $0x39]]
    %v1275 = vstv %s1274
    %v1276 = vmul.f32 %v1275, %v736
    %v1278 = vrot.slane %v1276, 1
    %1279 = vrot.lane.b32.xlu0 %v1278, 127
    %v1280 = vpop.permute.xlu0 %1279
    %v1282 = vadd.f32 %v1273, %v1280
    %s1283 = sld [smem:[#allocation3 + $0x3a]]
    %v1284 = vstv %s1283
    %v1285 = vmul.f32 %v1284, %v736
    %v1287 = vrot.slane %v1285, 2
    %1288 = vrot.lane.b32.xlu0 %v1287, 127
    %v1289 = vpop.permute.xlu0 %1288
    %v1291 = vadd.f32 %v1282, %v1289
    %s1292 = sld [smem:[#allocation3 + $0x3b]]
    %v1293 = vstv %s1292
    %v1294 = vmul.f32 %v1293, %v736
    %v1296 = vrot.slane %v1294, 3
    %1297 = vrot.lane.b32.xlu0 %v1296, 127
    %v1298 = vpop.permute.xlu0 %1297
    %v1300 = vadd.f32 %v1291, %v1298
    %s1301 = sld [smem:[#allocation3 + $0x3c]]
    %v1302 = vstv %s1301
    %v1303 = vmul.f32 %v1302, %v736
    %v1305 = vrot.slane %v1303, 4
    %1306 = vrot.lane.b32.xlu0 %v1305, 127
    %v1307 = vpop.permute.xlu0 %1306
    %v1309 = vadd.f32 %v1300, %v1307
    %s1310 = sld [smem:[#allocation3 + $0x3d]]
    %v1311 = vstv %s1310
    %v1312 = vmul.f32 %v1311, %v736
    %v1313 = vmul.f32 %v1311, %v725
    %v1316 = vrot.slane %v1312, 5
    %v1317 = vrot.slane %v1313, 5
    %v1318 = vsel %vm708, %v1316, %v1317
    %1319 = vrot.lane.b32.xlu0 %v1318, 127
    %v1320 = vpop.permute.xlu0 %1319
    %v1322 = vadd.f32 %v1309, %v1320
    %s1323 = sld [smem:[#allocation3 + $0x3e]]
    %v1324 = vstv %s1323
    %v1325 = vmul.f32 %v1324, %v736
    %v1326 = vmul.f32 %v1324, %v725
    %v1329 = vrot.slane %v1325, 6
    %v1330 = vrot.slane %v1326, 6
    %v1331 = vsel %vm786, %v1329, %v1330
    %1332 = vrot.lane.b32.xlu0 %v1331, 127
    %v1333 = vpop.permute.xlu0 %1332
    %v1335 = vadd.f32 %v1322, %v1333
    %s1336 = sld [smem:[#allocation3 + $0x3f]]
    %v1337 = vstv %s1336
    %v1338 = vmul.f32 %v1337, %v736
    %1340 = vrot.lane.b32.xlu0 %v1338, 126
    %v1341 = vpop.permute.xlu0 %1340
    %v1343 = vadd.f32 %v1335, %v1341
    %s1344 = sld [smem:[#allocation3 + $0x40]]
    %v1345 = vstv %s1344
    %v1346 = vmul.f32 %v1345, %v736
    %v1348 = vrot.slane %v1346, 1
    %1349 = vrot.lane.b32.xlu0 %v1348, 126
    %v1350 = vpop.permute.xlu0 %1349
    %v1352 = vadd.f32 %v1343, %v1350
    %s1353 = sld [smem:[#allocation3 + $0x41]]
    %v1354 = vstv %s1353
    %v1355 = vmul.f32 %v1354, %v736
    %v1357 = vrot.slane %v1355, 2
    %1358 = vrot.lane.b32.xlu0 %v1357, 126
    %v1359 = vpop.permute.xlu0 %1358
    %v1361 = vadd.f32 %v1352, %v1359
    %s1362 = sld [smem:[#allocation3 + $0x42]]
    %v1363 = vstv %s1362
    %v1364 = vmul.f32 %v1363, %v736
    %v1366 = vrot.slane %v1364, 3
    %1367 = vrot.lane.b32.xlu0 %v1366, 126
    %v1368 = vpop.permute.xlu0 %1367
    %v1370 = vadd.f32 %v1361, %v1368
    %s1371 = sld [smem:[#allocation3 + $0x43]]
    %v1372 = vstv %s1371
    %v1373 = vmul.f32 %v1372, %v736
    %v1375 = vrot.slane %v1373, 4
    %1376 = vrot.lane.b32.xlu0 %v1375, 126
    %v1377 = vpop.permute.xlu0 %1376
    %v1379 = vadd.f32 %v1370, %v1377
    %s1380 = sld [smem:[#allocation3 + $0x44]]
    %v1381 = vstv %s1380
    %v1382 = vmul.f32 %v1381, %v736
    %v1383 = vmul.f32 %v1381, %v725
    %v1386 = vrot.slane %v1382, 5
    %v1387 = vrot.slane %v1383, 5
    %v1388 = vsel %vm708, %v1386, %v1387
    %1389 = vrot.lane.b32.xlu0 %v1388, 126
    %v1390 = vpop.permute.xlu0 %1389
    %v1392 = vadd.f32 %v1379, %v1390
    %s1393 = sld [smem:[#allocation3 + $0x45]]
    %v1394 = vstv %s1393
    %v1395 = vmul.f32 %v1394, %v736
    %v1396 = vmul.f32 %v1394, %v725
    %v1399 = vrot.slane %v1395, 6
    %v1400 = vrot.slane %v1396, 6
    %v1401 = vsel %vm786, %v1399, %v1400
    %1402 = vrot.lane.b32.xlu0 %v1401, 126
    %v1403 = vpop.permute.xlu0 %1402
    %v1405 = vadd.f32 %v1392, %v1403
    %s1406 = sld [smem:[#allocation3 + $0x46]]
    %v1407 = vstv %s1406
    %v1408 = vmul.f32 %v1407, %v736
    %1410 = vrot.lane.b32.xlu0 %v1408, 125
    %v1411 = vpop.permute.xlu0 %1410
    %v1413 = vadd.f32 %v1405, %v1411
    %s1414 = sld [smem:[#allocation3 + $0x47]]
    %v1415 = vstv %s1414
    %v1416 = vmul.f32 %v1415, %v736
    %v1418 = vrot.slane %v1416, 1
    %1419 = vrot.lane.b32.xlu0 %v1418, 125
    %v1420 = vpop.permute.xlu0 %1419
    %v1422 = vadd.f32 %v1413, %v1420
    %s1423 = sld [smem:[#allocation3 + $0x48]]
    %v1424 = vstv %s1423
    %v1425 = vmul.f32 %v1424, %v736
    %v1427 = vrot.slane %v1425, 2
    %1428 = vrot.lane.b32.xlu0 %v1427, 125
    %v1429 = vpop.permute.xlu0 %1428
    %v1431 = vadd.f32 %v1422, %v1429
    %s1432 = sld [smem:[#allocation3 + $0x49]]
    %v1433 = vstv %s1432
    %v1434 = vmul.f32 %v1433, %v736
    %v1436 = vrot.slane %v1434, 3
    %1437 = vrot.lane.b32.xlu0 %v1436, 125
    %v1438 = vpop.permute.xlu0 %1437
    %v1440 = vadd.f32 %v1431, %v1438
    %s1441 = sld [smem:[#allocation3 + $0x4a]]
    %v1442 = vstv %s1441
    %v1443 = vmul.f32 %v1442, %v736
    %v1445 = vrot.slane %v1443, 4
    %1446 = vrot.lane.b32.xlu0 %v1445, 125
    %v1447 = vpop.permute.xlu0 %1446
    %v1449 = vadd.f32 %v1440, %v1447
    %s1450 = sld [smem:[#allocation3 + $0x4b]]
    %v1451 = vstv %s1450
    %v1452 = vmul.f32 %v1451, %v736
    %v1453 = vmul.f32 %v1451, %v725
    %v1456 = vrot.slane %v1452, 5
    %v1457 = vrot.slane %v1453, 5
    %v1458 = vsel %vm708, %v1456, %v1457
    %1459 = vrot.lane.b32.xlu0 %v1458, 125
    %v1460 = vpop.permute.xlu0 %1459
    %v1462 = vadd.f32 %v1449, %v1460
    %s1463 = sld [smem:[#allocation3 + $0x4c]]
    %v1464 = vstv %s1463
    %v1465 = vmul.f32 %v1464, %v736
    %v1466 = vmul.f32 %v1464, %v725
    %v1469 = vrot.slane %v1465, 6
    %v1470 = vrot.slane %v1466, 6
    %v1471 = vsel %vm786, %v1469, %v1470
    %1472 = vrot.lane.b32.xlu0 %v1471, 125
    %v1473 = vpop.permute.xlu0 %1472
    %v1475 = vadd.f32 %v1462, %v1473
    %s1476 = sld [smem:[#allocation3 + $0x4d]]
    %v1477 = vstv %s1476
    %v1478 = vmul.f32 %v1477, %v736
    %1480 = vrot.lane.b32.xlu0 %v1478, 124
    %v1481 = vpop.permute.xlu0 %1480
    %v1483 = vadd.f32 %v1475, %v1481
    %s1484 = sld [smem:[#allocation3 + $0x4e]]
    %v1485 = vstv %s1484
    %v1486 = vmul.f32 %v1485, %v736
    %v1488 = vrot.slane %v1486, 1
    %1489 = vrot.lane.b32.xlu0 %v1488, 124
    %v1490 = vpop.permute.xlu0 %1489
    %v1492 = vadd.f32 %v1483, %v1490
    %s1493 = sld [smem:[#allocation3 + $0x4f]]
    %v1494 = vstv %s1493
    %v1495 = vmul.f32 %v1494, %v736
    %v1497 = vrot.slane %v1495, 2
    %1498 = vrot.lane.b32.xlu0 %v1497, 124
    %v1499 = vpop.permute.xlu0 %1498
    %v1501 = vadd.f32 %v1492, %v1499
    %s1502 = sld [smem:[#allocation3 + $0x50]]
    %v1503 = vstv %s1502
    %v1504 = vmul.f32 %v1503, %v736
    %v1506 = vrot.slane %v1504, 3
    %1507 = vrot.lane.b32.xlu0 %v1506, 124
    %v1508 = vpop.permute.xlu0 %1507
    %v1510 = vadd.f32 %v1501, %v1508
    %s1511 = sld [smem:[#allocation3 + $0x51]]
    %v1512 = vstv %s1511
    %v1513 = vmul.f32 %v1512, %v736
    %v1515 = vrot.slane %v1513, 4
    %1516 = vrot.lane.b32.xlu0 %v1515, 124
    %v1517 = vpop.permute.xlu0 %1516
    %v1519 = vadd.f32 %v1510, %v1517
    %s1520 = sld [smem:[#allocation3 + $0x52]]
    %v1521 = vstv %s1520
    %v1522 = vmul.f32 %v1521, %v736
    %v1523 = vmul.f32 %v1521, %v725
    %v1526 = vrot.slane %v1522, 5
    %v1527 = vrot.slane %v1523, 5
    %v1528 = vsel %vm708, %v1526, %v1527
    %1529 = vrot.lane.b32.xlu0 %v1528, 124
    %v1530 = vpop.permute.xlu0 %1529
    %v1532 = vadd.f32 %v1519, %v1530
    %s1533 = sld [smem:[#allocation3 + $0x53]]
    %v1534 = vstv %s1533
    %v1535 = vmul.f32 %v1534, %v736
    %v1536 = vmul.f32 %v1534, %v725
    %v1539 = vrot.slane %v1535, 6
    %v1540 = vrot.slane %v1536, 6
    %v1541 = vsel %vm786, %v1539, %v1540
    %1542 = vrot.lane.b32.xlu0 %v1541, 124
    %v1543 = vpop.permute.xlu0 %1542
    %v1545 = vadd.f32 %v1532, %v1543
    %s1546 = sld [smem:[#allocation3 + $0x54]]
    %v1547 = vstv %s1546
    %v1548 = vmul.f32 %v1547, %v736
    %1550 = vrot.lane.b32.xlu0 %v1548, 123
    %v1551 = vpop.permute.xlu0 %1550
    %v1553 = vadd.f32 %v1545, %v1551
    %s1554 = sld [smem:[#allocation3 + $0x55]]
    %v1555 = vstv %s1554
    %v1556 = vmul.f32 %v1555, %v736
    %v1558 = vrot.slane %v1556, 1
    %1559 = vrot.lane.b32.xlu0 %v1558, 123
    %v1560 = vpop.permute.xlu0 %1559
    %v1562 = vadd.f32 %v1553, %v1560
    %s1563 = sld [smem:[#allocation3 + $0x56]]
    %v1564 = vstv %s1563
    %v1565 = vmul.f32 %v1564, %v736
    %v1567 = vrot.slane %v1565, 2
    %1568 = vrot.lane.b32.xlu0 %v1567, 123
    %v1569 = vpop.permute.xlu0 %1568
    %v1571 = vadd.f32 %v1562, %v1569
    %s1572 = sld [smem:[#allocation3 + $0x57]]
    %v1573 = vstv %s1572
    %v1574 = vmul.f32 %v1573, %v736
    %v1576 = vrot.slane %v1574, 3
    %1577 = vrot.lane.b32.xlu0 %v1576, 123
    %v1578 = vpop.permute.xlu0 %1577
    %v1580 = vadd.f32 %v1571, %v1578
    %s1581 = sld [smem:[#allocation3 + $0x58]]
    %v1582 = vstv %s1581
    %v1583 = vmul.f32 %v1582, %v736
    %v1585 = vrot.slane %v1583, 4
    %1586 = vrot.lane.b32.xlu0 %v1585, 123
    %v1587 = vpop.permute.xlu0 %1586
    %v1589 = vadd.f32 %v1580, %v1587
    %s1590 = sld [smem:[#allocation3 + $0x59]]
    %v1591 = vstv %s1590
    %v1592 = vmul.f32 %v1591, %v736
    %v1593 = vmul.f32 %v1591, %v725
    %v1596 = vrot.slane %v1592, 5
    %v1597 = vrot.slane %v1593, 5
    %v1598 = vsel %vm708, %v1596, %v1597
    %1599 = vrot.lane.b32.xlu0 %v1598, 123
    %v1600 = vpop.permute.xlu0 %1599
    %v1602 = vadd.f32 %v1589, %v1600
    %s1603 = sld [smem:[#allocation3 + $0x5a]]
    %v1604 = vstv %s1603
    %v1605 = vmul.f32 %v1604, %v736
    %v1606 = vmul.f32 %v1604, %v725
    %v1609 = vrot.slane %v1605, 6
    %v1610 = vrot.slane %v1606, 6
    %v1611 = vsel %vm786, %v1609, %v1610
    %1612 = vrot.lane.b32.xlu0 %v1611, 123
    %v1613 = vpop.permute.xlu0 %1612
    %v1615 = vadd.f32 %v1602, %v1613
    %s1616 = sld [smem:[#allocation3 + $0x5b]]
    %v1617 = vstv %s1616
    %v1618 = vmul.f32 %v1617, %v736
    %1620 = vrot.lane.b32.xlu0 %v1618, 122
    %v1621 = vpop.permute.xlu0 %1620
    %v1623 = vadd.f32 %v1615, %v1621
    %s1624 = sld [smem:[#allocation3 + $0x5c]]
    %v1625 = vstv %s1624
    %v1626 = vmul.f32 %v1625, %v736
    %v1628 = vrot.slane %v1626, 1
    %1629 = vrot.lane.b32.xlu0 %v1628, 122
    %v1630 = vpop.permute.xlu0 %1629
    %v1632 = vadd.f32 %v1623, %v1630
    %s1633 = sld [smem:[#allocation3 + $0x5d]]
    %v1634 = vstv %s1633
    %v1635 = vmul.f32 %v1634, %v736
    %v1637 = vrot.slane %v1635, 2
    %1638 = vrot.lane.b32.xlu0 %v1637, 122
    %v1639 = vpop.permute.xlu0 %1638
    %v1641 = vadd.f32 %v1632, %v1639
    %s1642 = sld [smem:[#allocation3 + $0x5e]]
    %v1643 = vstv %s1642
    %v1644 = vmul.f32 %v1643, %v736
    %v1646 = vrot.slane %v1644, 3
    %1647 = vrot.lane.b32.xlu0 %v1646, 122
    %v1648 = vpop.permute.xlu0 %1647
    %v1650 = vadd.f32 %v1641, %v1648
    %s1651 = sld [smem:[#allocation3 + $0x5f]]
    %v1652 = vstv %s1651
    %v1653 = vmul.f32 %v1652, %v736
    %v1655 = vrot.slane %v1653, 4
    %1656 = vrot.lane.b32.xlu0 %v1655, 122
    %v1657 = vpop.permute.xlu0 %1656
    %v1659 = vadd.f32 %v1650, %v1657
    %s1660 = sld [smem:[#allocation3 + $0x60]]
    %v1661 = vstv %s1660
    %v1662 = vmul.f32 %v1661, %v736
    %v1663 = vmul.f32 %v1661, %v725
    %v1666 = vrot.slane %v1662, 5
    %v1667 = vrot.slane %v1663, 5
    %v1668 = vsel %vm708, %v1666, %v1667
    %1669 = vrot.lane.b32.xlu0 %v1668, 122
    %v1670 = vpop.permute.xlu0 %1669
    %v1672 = vadd.f32 %v1659, %v1670
    %s1673 = sld [smem:[#allocation3 + $0x61]]
    %v1674 = vstv %s1673
    %v1675 = vmul.f32 %v1674, %v736
    %v1676 = vmul.f32 %v1674, %v725
    %v1679 = vrot.slane %v1675, 6
    %v1680 = vrot.slane %v1676, 6
    %v1681 = vsel %vm786, %v1679, %v1680
    %1682 = vrot.lane.b32.xlu0 %v1681, 122
    %v1683 = vpop.permute.xlu0 %1682
    %v1685 = vadd.f32 %v1672, %v1683
    %v1687 = vrot.slane %v482, 6
    %v1689 = vsel %vm786, 0.0, %v1687
    %vm1690 = vcmask 1045504
    %v1691 = vsel %vm1690, %v1689, 0.0
    %1693 = vrot.lane.b32.xlu0 %v1691, 2
    %v1694 = vpop.permute.xlu0 %1693
    %vm1696 = vcmask 15360
    %v1697 = vsel %vm1696, 0.0, %v1694
    %vm1698 = vcmask 146432
    %v1699 = vsel %vm1698, %v1697, 0.0
    %v1701 = vrot.slane %v498, 6
    %v1703 = vsel %vm786, 0.0, %v1701
    %v1704 = vsel %vm1690, %v1703, 0.0
    %1706 = vrot.lane.b32.xlu0 %v1704, 2
    %v1707 = vpop.permute.xlu0 %1706
    %v1709 = vsel %vm1696, 0.0, %v1707
    %v1710 = vsel %vm1698, %v1709, 0.0
    %s1711 = sld [smem:[#allocation5]]
    %v1712 = vstv %s1711
    %v1713 = vmul.f32 %v1712, %v1699
    %v1714 = vadd.f32 %v1713, 0.0
    %s1715 = sld [smem:[#allocation5 + $0x1]]
    %v1716 = vstv %s1715
    %v1717 = vmul.f32 %v1716, %v1699
    %1719 = vrot.lane.b32.xlu0 %v1717, 127
    %v1720 = vpop.permute.xlu0 %1719
    %v1722 = vadd.f32 %v1714, %v1720
    %s1723 = sld [smem:[#allocation5 + $0x2]]
    %v1724 = vstv %s1723
    %v1725 = vmul.f32 %v1724, %v1699
    %1727 = vrot.lane.b32.xlu0 %v1725, 126
    %v1728 = vpop.permute.xlu0 %1727
    %v1730 = vadd.f32 %v1722, %v1728
    %s1731 = sld [smem:[#allocation5 + $0x3]]
    %v1732 = vstv %s1731
    %v1733 = vmul.f32 %v1732, %v1699
    %1735 = vrot.lane.b32.xlu0 %v1733, 125
    %v1736 = vpop.permute.xlu0 %1735
    %v1738 = vadd.f32 %v1730, %v1736
    %s1739 = sld [smem:[#allocation5 + $0x4]]
    %v1740 = vstv %s1739
    %v1741 = vmul.f32 %v1740, %v1699
    %1743 = vrot.lane.b32.xlu0 %v1741, 124
    %v1744 = vpop.permute.xlu0 %1743
    %v1746 = vadd.f32 %v1738, %v1744
    %s1747 = sld [smem:[#allocation5 + $0x5]]
    %v1748 = vstv %s1747
    %v1749 = vmul.f32 %v1748, %v1699
    %v1751 = vrot.slane %v1749, 1
    %v1753 = vadd.f32 %v1746, %v1751
    %s1754 = sld [smem:[#allocation5 + $0x6]]
    %v1755 = vstv %s1754
    %v1756 = vmul.f32 %v1755, %v1699
    %v1758 = vrot.slane %v1756, 1
    %1759 = vrot.lane.b32.xlu0 %v1758, 127
    %v1760 = vpop.permute.xlu0 %1759
    %v1762 = vadd.f32 %v1753, %v1760
    %s1763 = sld [smem:[#allocation5 + $0x7]]
    %v1764 = vstv %s1763
    %v1765 = vmul.f32 %v1764, %v1699
    %v1767 = vrot.slane %v1765, 1
    %1768 = vrot.lane.b32.xlu0 %v1767, 126
    %v1769 = vpop.permute.xlu0 %1768
    %v1771 = vadd.f32 %v1762, %v1769
    %s1772 = sld [smem:[#allocation5 + $0x8]]
    %v1773 = vstv %s1772
    %v1774 = vmul.f32 %v1773, %v1699
    %v1776 = vrot.slane %v1774, 1
    %1777 = vrot.lane.b32.xlu0 %v1776, 125
    %v1778 = vpop.permute.xlu0 %1777
    %v1780 = vadd.f32 %v1771, %v1778
    %s1781 = sld [smem:[#allocation5 + $0x9]]
    %v1782 = vstv %s1781
    %v1783 = vmul.f32 %v1782, %v1699
    %v1785 = vrot.slane %v1783, 1
    %1786 = vrot.lane.b32.xlu0 %v1785, 124
    %v1787 = vpop.permute.xlu0 %1786
    %v1789 = vadd.f32 %v1780, %v1787
    %s1790 = sld [smem:[#allocation5 + $0xa]]
    %v1791 = vstv %s1790
    %v1792 = vmul.f32 %v1791, %v1699
    %v1794 = vrot.slane %v1792, 2
    %v1796 = vadd.f32 %v1789, %v1794
    %s1797 = sld [smem:[#allocation5 + $0xb]]
    %v1798 = vstv %s1797
    %v1799 = vmul.f32 %v1798, %v1699
    %v1801 = vrot.slane %v1799, 2
    %1802 = vrot.lane.b32.xlu0 %v1801, 127
    %v1803 = vpop.permute.xlu0 %1802
    %v1805 = vadd.f32 %v1796, %v1803
    %s1806 = sld [smem:[#allocation5 + $0xc]]
    %v1807 = vstv %s1806
    %v1808 = vmul.f32 %v1807, %v1699
    %v1810 = vrot.slane %v1808, 2
    %1811 = vrot.lane.b32.xlu0 %v1810, 126
    %v1812 = vpop.permute.xlu0 %1811
    %v1814 = vadd.f32 %v1805, %v1812
    %s1815 = sld [smem:[#allocation5 + $0xd]]
    %v1816 = vstv %s1815
    %v1817 = vmul.f32 %v1816, %v1699
    %v1819 = vrot.slane %v1817, 2
    %1820 = vrot.lane.b32.xlu0 %v1819, 125
    %v1821 = vpop.permute.xlu0 %1820
    %v1823 = vadd.f32 %v1814, %v1821
    %s1824 = sld [smem:[#allocation5 + $0xe]]
    %v1825 = vstv %s1824
    %v1826 = vmul.f32 %v1825, %v1699
    %v1828 = vrot.slane %v1826, 2
    %1829 = vrot.lane.b32.xlu0 %v1828, 124
    %v1830 = vpop.permute.xlu0 %1829
    %v1832 = vadd.f32 %v1823, %v1830
    %s1833 = sld [smem:[#allocation5 + $0xf]]
    %v1834 = vstv %s1833
    %v1835 = vmul.f32 %v1834, %v1699
    %v1837 = vrot.slane %v1835, 3
    %v1839 = vadd.f32 %v1832, %v1837
    %s1840 = sld [smem:[#allocation5 + $0x10]]
    %v1841 = vstv %s1840
    %v1842 = vmul.f32 %v1841, %v1699
    %v1844 = vrot.slane %v1842, 3
    %1845 = vrot.lane.b32.xlu0 %v1844, 127
    %v1846 = vpop.permute.xlu0 %1845
    %v1848 = vadd.f32 %v1839, %v1846
    %s1849 = sld [smem:[#allocation5 + $0x11]]
    %v1850 = vstv %s1849
    %v1851 = vmul.f32 %v1850, %v1699
    %v1853 = vrot.slane %v1851, 3
    %1854 = vrot.lane.b32.xlu0 %v1853, 126
    %v1855 = vpop.permute.xlu0 %1854
    %v1857 = vadd.f32 %v1848, %v1855
    %s1858 = sld [smem:[#allocation5 + $0x12]]
    %v1859 = vstv %s1858
    %v1860 = vmul.f32 %v1859, %v1699
    %v1862 = vrot.slane %v1860, 3
    %1863 = vrot.lane.b32.xlu0 %v1862, 125
    %v1864 = vpop.permute.xlu0 %1863
    %v1866 = vadd.f32 %v1857, %v1864
    %s1867 = sld [smem:[#allocation5 + $0x13]]
    %v1868 = vstv %s1867
    %v1869 = vmul.f32 %v1868, %v1699
    %v1871 = vrot.slane %v1869, 3
    %1872 = vrot.lane.b32.xlu0 %v1871, 124
    %v1873 = vpop.permute.xlu0 %1872
    %v1875 = vadd.f32 %v1866, %v1873
    %s1876 = sld [smem:[#allocation5 + $0x14]]
    %v1877 = vstv %s1876
    %v1878 = vmul.f32 %v1877, %v1699
    %v1880 = vrot.slane %v1878, 4
    %v1882 = vadd.f32 %v1875, %v1880
    %s1883 = sld [smem:[#allocation5 + $0x15]]
    %v1884 = vstv %s1883
    %v1885 = vmul.f32 %v1884, %v1699
    %v1887 = vrot.slane %v1885, 4
    %1888 = vrot.lane.b32.xlu0 %v1887, 127
    %v1889 = vpop.permute.xlu0 %1888
    %v1891 = vadd.f32 %v1882, %v1889
    %s1892 = sld [smem:[#allocation5 + $0x16]]
    %v1893 = vstv %s1892
    %v1894 = vmul.f32 %v1893, %v1699
    %v1896 = vrot.slane %v1894, 4
    %1897 = vrot.lane.b32.xlu0 %v1896, 126
    %v1898 = vpop.permute.xlu0 %1897
    %v1900 = vadd.f32 %v1891, %v1898
    %s1901 = sld [smem:[#allocation5 + $0x17]]
    %v1902 = vstv %s1901
    %v1903 = vmul.f32 %v1902, %v1699
    %v1905 = vrot.slane %v1903, 4
    %1906 = vrot.lane.b32.xlu0 %v1905, 125
    %v1907 = vpop.permute.xlu0 %1906
    %v1909 = vadd.f32 %v1900, %v1907
    %s1910 = sld [smem:[#allocation5 + $0x18]]
    %v1911 = vstv %s1910
    %v1912 = vmul.f32 %v1911, %v1699
    %v1914 = vrot.slane %v1912, 4
    %1915 = vrot.lane.b32.xlu0 %v1914, 124
    %v1916 = vpop.permute.xlu0 %1915
    %v1918 = vadd.f32 %v1909, %v1916
    %s1919 = sld [smem:[#allocation5 + $0x19]]
    %v1920 = vstv %s1919
    %v1921 = vmul.f32 %v1920, %v1710
    %v1922 = vadd.f32 %v1918, %v1921
    %s1923 = sld [smem:[#allocation5 + $0x1a]]
    %v1924 = vstv %s1923
    %v1925 = vmul.f32 %v1924, %v1710
    %1927 = vrot.lane.b32.xlu0 %v1925, 127
    %v1928 = vpop.permute.xlu0 %1927
    %v1930 = vadd.f32 %v1922, %v1928
    %s1931 = sld [smem:[#allocation5 + $0x1b]]
    %v1932 = vstv %s1931
    %v1933 = vmul.f32 %v1932, %v1710
    %1935 = vrot.lane.b32.xlu0 %v1933, 126
    %v1936 = vpop.permute.xlu0 %1935
    %v1938 = vadd.f32 %v1930, %v1936
    %s1939 = sld [smem:[#allocation5 + $0x1c]]
    %v1940 = vstv %s1939
    %v1941 = vmul.f32 %v1940, %v1710
    %1943 = vrot.lane.b32.xlu0 %v1941, 125
    %v1944 = vpop.permute.xlu0 %1943
    %v1946 = vadd.f32 %v1938, %v1944
    %s1947 = sld [smem:[#allocation5 + $0x1d]]
    %v1948 = vstv %s1947
    %v1949 = vmul.f32 %v1948, %v1710
    %1951 = vrot.lane.b32.xlu0 %v1949, 124
    %v1952 = vpop.permute.xlu0 %1951
    %v1954 = vadd.f32 %v1946, %v1952
    %s1955 = sld [smem:[#allocation5 + $0x1e]]
    %v1956 = vstv %s1955
    %v1957 = vmul.f32 %v1956, %v1710
    %v1959 = vrot.slane %v1957, 1
    %v1961 = vadd.f32 %v1954, %v1959
    %s1962 = sld [smem:[#allocation5 + $0x1f]]
    %v1963 = vstv %s1962
    %v1964 = vmul.f32 %v1963, %v1710
    %v1966 = vrot.slane %v1964, 1
    %1967 = vrot.lane.b32.xlu0 %v1966, 127
    %v1968 = vpop.permute.xlu0 %1967
    %v1970 = vadd.f32 %v1961, %v1968
    %s1971 = sld [smem:[#allocation5 + $0x20]]
    %v1972 = vstv %s1971
    %v1973 = vmul.f32 %v1972, %v1710
    %v1975 = vrot.slane %v1973, 1
    %1976 = vrot.lane.b32.xlu0 %v1975, 126
    %v1977 = vpop.permute.xlu0 %1976
    %v1979 = vadd.f32 %v1970, %v1977
    %s1980 = sld [smem:[#allocation5 + $0x21]]
    %v1981 = vstv %s1980
    %v1982 = vmul.f32 %v1981, %v1710
    %v1984 = vrot.slane %v1982, 1
    %1985 = vrot.lane.b32.xlu0 %v1984, 125
    %v1986 = vpop.permute.xlu0 %1985
    %v1988 = vadd.f32 %v1979, %v1986
    %s1989 = sld [smem:[#allocation5 + $0x22]]
    %v1990 = vstv %s1989
    %v1991 = vmul.f32 %v1990, %v1710
    %v1993 = vrot.slane %v1991, 1
    %1994 = vrot.lane.b32.xlu0 %v1993, 124
    %v1995 = vpop.permute.xlu0 %1994
    %v1997 = vadd.f32 %v1988, %v1995
    %s1998 = sld [smem:[#allocation5 + $0x23]]
    %v1999 = vstv %s1998
    %v2000 = vmul.f32 %v1999, %v1710
    %v2002 = vrot.slane %v2000, 2
    %v2004 = vadd.f32 %v1997, %v2002
    %s2005 = sld [smem:[#allocation5 + $0x24]]
    %v2006 = vstv %s2005
    %v2007 = vmul.f32 %v2006, %v1710
    %v2009 = vrot.slane %v2007, 2
    %2010 = vrot.lane.b32.xlu0 %v2009, 127
    %v2011 = vpop.permute.xlu0 %2010
    %v2013 = vadd.f32 %v2004, %v2011
    %s2014 = sld [smem:[#allocation5 + $0x25]]
    %v2015 = vstv %s2014
    %v2016 = vmul.f32 %v2015, %v1710
    %v2018 = vrot.slane %v2016, 2
    %2019 = vrot.lane.b32.xlu0 %v2018, 126
    %v2020 = vpop.permute.xlu0 %2019
    %v2022 = vadd.f32 %v2013, %v2020
    %s2023 = sld [smem:[#allocation5 + $0x26]]
    %v2024 = vstv %s2023
    %v2025 = vmul.f32 %v2024, %v1710
    %v2027 = vrot.slane %v2025, 2
    %2028 = vrot.lane.b32.xlu0 %v2027, 125
    %v2029 = vpop.permute.xlu0 %2028
    %v2031 = vadd.f32 %v2022, %v2029
    %s2032 = sld [smem:[#allocation5 + $0x27]]
    %v2033 = vstv %s2032
    %v2034 = vmul.f32 %v2033, %v1710
    %v2036 = vrot.slane %v2034, 2
    %2037 = vrot.lane.b32.xlu0 %v2036, 124
    %v2038 = vpop.permute.xlu0 %2037
    %v2040 = vadd.f32 %v2031, %v2038
    %s2041 = sld [smem:[#allocation5 + $0x28]]
    %v2042 = vstv %s2041
    %v2043 = vmul.f32 %v2042, %v1710
    %v2045 = vrot.slane %v2043, 3
    %v2047 = vadd.f32 %v2040, %v2045
    %s2048 = sld [smem:[#allocation5 + $0x29]]
    %v2049 = vstv %s2048
    %v2050 = vmul.f32 %v2049, %v1710
    %v2052 = vrot.slane %v2050, 3
    %2053 = vrot.lane.b32.xlu0 %v2052, 127
    %v2054 = vpop.permute.xlu0 %2053
    %v2056 = vadd.f32 %v2047, %v2054
    %s2057 = sld [smem:[#allocation5 + $0x2a]]
    %v2058 = vstv %s2057
    %v2059 = vmul.f32 %v2058, %v1710
    %v2061 = vrot.slane %v2059, 3
    %2062 = vrot.lane.b32.xlu0 %v2061, 126
    %v2063 = vpop.permute.xlu0 %2062
    %v2065 = vadd.f32 %v2056, %v2063
    %s2066 = sld [smem:[#allocation5 + $0x2b]]
    %v2067 = vstv %s2066
    %v2068 = vmul.f32 %v2067, %v1710
    %v2070 = vrot.slane %v2068, 3
    %2071 = vrot.lane.b32.xlu0 %v2070, 125
    %v2072 = vpop.permute.xlu0 %2071
    %v2074 = vadd.f32 %v2065, %v2072
    %s2075 = sld [smem:[#allocation5 + $0x2c]]
    %v2076 = vstv %s2075
    %v2077 = vmul.f32 %v2076, %v1710
    %v2079 = vrot.slane %v2077, 3
    %2080 = vrot.lane.b32.xlu0 %v2079, 124
    %v2081 = vpop.permute.xlu0 %2080
    %v2083 = vadd.f32 %v2074, %v2081
    %s2084 = sld [smem:[#allocation5 + $0x2d]]
    %v2085 = vstv %s2084
    %v2086 = vmul.f32 %v2085, %v1710
    %v2088 = vrot.slane %v2086, 4
    %v2090 = vadd.f32 %v2083, %v2088
    %s2091 = sld [smem:[#allocation5 + $0x2e]]
    %v2092 = vstv %s2091
    %v2093 = vmul.f32 %v2092, %v1710
    %v2095 = vrot.slane %v2093, 4
    %2096 = vrot.lane.b32.xlu0 %v2095, 127
    %v2097 = vpop.permute.xlu0 %2096
    %v2099 = vadd.f32 %v2090, %v2097
    %s2100 = sld [smem:[#allocation5 + $0x2f]]
    %v2101 = vstv %s2100
    %v2102 = vmul.f32 %v2101, %v1710
    %v2104 = vrot.slane %v2102, 4
    %2105 = vrot.lane.b32.xlu0 %v2104, 126
    %v2106 = vpop.permute.xlu0 %2105
    %v2108 = vadd.f32 %v2099, %v2106
    %s2109 = sld [smem:[#allocation5 + $0x30]]
    %v2110 = vstv %s2109
    %v2111 = vmul.f32 %v2110, %v1710
    %v2113 = vrot.slane %v2111, 4
    %2114 = vrot.lane.b32.xlu0 %v2113, 125
    %v2115 = vpop.permute.xlu0 %2114
    %v2117 = vadd.f32 %v2108, %v2115
    %s2118 = sld [smem:[#allocation5 + $0x31]]
    %v2119 = vstv %s2118
    %v2120 = vmul.f32 %v2119, %v1710
    %v2122 = vrot.slane %v2120, 4
    %2123 = vrot.lane.b32.xlu0 %v2122, 124
    %v2124 = vpop.permute.xlu0 %2123
    %v2126 = vadd.f32 %v2117, %v2124
    %v2127 = vrot.slane %v694, 1
    %v2129 = vsel %vm708, 0.0, %v2127
    %v2130 = vsel %vm710, %v2129, 0.0
    %2132 = vrot.lane.b32.xlu0 %v2130, 3
    %v2133 = vpop.permute.xlu0 %2132
    %v2135 = vsel %vm720, 0.0, %v2133
    %v2136 = vsel %vm723, %v2135, 0.0
    %v2137 = vrot.slane %v700, 1
    %v2139 = vsel %vm708, 0.0, %v2137
    %v2140 = vsel %vm710, %v2139, 0.0
    %2142 = vrot.lane.b32.xlu0 %v2140, 3
    %v2143 = vpop.permute.xlu0 %2142
    %v2145 = vsel %vm720, 0.0, %v2143
    %v2146 = vsel %vm723, %v2145, 0.0
    %v2147 = vmul.f32 %v738, %v2136
    %v2148 = vadd.f32 %v2147, 0.0
    %v2149 = vmul.f32 %v742, %v2136
    %v2151 = vrot.slane %v2149, 1
    %v2153 = vadd.f32 %v2148, %v2151
    %v2154 = vmul.f32 %v749, %v2136
    %v2156 = vrot.slane %v2154, 2
    %v2158 = vadd.f32 %v2153, %v2156
    %v2159 = vmul.f32 %v756, %v2136
    %v2161 = vrot.slane %v2159, 3
    %v2163 = vadd.f32 %v2158, %v2161
    %v2164 = vmul.f32 %v763, %v2136
    %v2166 = vrot.slane %v2164, 4
    %v2168 = vadd.f32 %v2163, %v2166
    %v2169 = vmul.f32 %v770, %v2136
    %v2171 = vrot.slane %v2169, 5
    %v2172 = vsel %vm708, %v2171, %v776
    %v2174 = vadd.f32 %v2168, %v2172
    %v2175 = vmul.f32 %v781, %v2136
    %v2177 = vrot.slane %v2175, 6
    %v2178 = vsel %vm786, %v2177, %v788
    %v2180 = vadd.f32 %v2174, %v2178
    %v2181 = vmul.f32 %v793, %v2136
    %2183 = vrot.lane.b32.xlu0 %v2181, 127
    %v2184 = vpop.permute.xlu0 %2183
    %v2186 = vadd.f32 %v2180, %v2184
    %v2187 = vmul.f32 %v801, %v2136
    %v2189 = vrot.slane %v2187, 1
    %2190 = vrot.lane.b32.xlu0 %v2189, 127
    %v2191 = vpop.permute.xlu0 %2190
    %v2193 = vadd.f32 %v2186, %v2191
    %v2194 = vmul.f32 %v810, %v2136
    %v2196 = vrot.slane %v2194, 2
    %2197 = vrot.lane.b32.xlu0 %v2196, 127
    %v2198 = vpop.permute.xlu0 %2197
    %v2200 = vadd.f32 %v2193, %v2198
    %v2201 = vmul.f32 %v819, %v2136
    %v2203 = vrot.slane %v2201, 3
    %2204 = vrot.lane.b32.xlu0 %v2203, 127
    %v2205 = vpop.permute.xlu0 %2204
    %v2207 = vadd.f32 %v2200, %v2205
    %v2208 = vmul.f32 %v828, %v2136
    %v2210 = vrot.slane %v2208, 4
    %2211 = vrot.lane.b32.xlu0 %v2210, 127
    %v2212 = vpop.permute.xlu0 %2211
    %v2214 = vadd.f32 %v2207, %v2212
    %v2215 = vmul.f32 %v837, %v2136
    %v2217 = vrot.slane %v2215, 5
    %v2218 = vsel %vm708, %v2217, %v843
    %2219 = vrot.lane.b32.xlu0 %v2218, 127
    %v2220 = vpop.permute.xlu0 %2219
    %v2222 = vadd.f32 %v2214, %v2220
    %v2223 = vmul.f32 %v850, %v2136
    %v2225 = vrot.slane %v2223, 6
    %v2226 = vsel %vm786, %v2225, %v856
    %2227 = vrot.lane.b32.xlu0 %v2226, 127
    %v2228 = vpop.permute.xlu0 %2227
    %v2230 = vadd.f32 %v2222, %v2228
    %v2231 = vmul.f32 %v863, %v2136
    %2233 = vrot.lane.b32.xlu0 %v2231, 126
    %v2234 = vpop.permute.xlu0 %2233
    %v2236 = vadd.f32 %v2230, %v2234
    %v2237 = vmul.f32 %v871, %v2136
    %v2239 = vrot.slane %v2237, 1
    %2240 = vrot.lane.b32.xlu0 %v2239, 126
    %v2241 = vpop.permute.xlu0 %2240
    %v2243 = vadd.f32 %v2236, %v2241
    %v2244 = vmul.f32 %v880, %v2136
    %v2246 = vrot.slane %v2244, 2
    %2247 = vrot.lane.b32.xlu0 %v2246, 126
    %v2248 = vpop.permute.xlu0 %2247
    %v2250 = vadd.f32 %v2243, %v2248
    %v2251 = vmul.f32 %v889, %v2136
    %v2253 = vrot.slane %v2251, 3
    %2254 = vrot.lane.b32.xlu0 %v2253, 126
    %v2255 = vpop.permute.xlu0 %2254
    %v2257 = vadd.f32 %v2250, %v2255
    %v2258 = vmul.f32 %v898, %v2136
    %v2260 = vrot.slane %v2258, 4
    %2261 = vrot.lane.b32.xlu0 %v2260, 126
    %v2262 = vpop.permute.xlu0 %2261
    %v2264 = vadd.f32 %v2257, %v2262
    %v2265 = vmul.f32 %v907, %v2136
    %v2267 = vrot.slane %v2265, 5
    %v2268 = vsel %vm708, %v2267, %v913
    %2269 = vrot.lane.b32.xlu0 %v2268, 126
    %v2270 = vpop.permute.xlu0 %2269
    %v2272 = vadd.f32 %v2264, %v2270
    %v2273 = vmul.f32 %v920, %v2136
    %v2275 = vrot.slane %v2273, 6
    %v2276 = vsel %vm786, %v2275, %v926
    %2277 = vrot.lane.b32.xlu0 %v2276, 126
    %v2278 = vpop.permute.xlu0 %2277
    %v2280 = vadd.f32 %v2272, %v2278
    %v2281 = vmul.f32 %v933, %v2136
    %2283 = vrot.lane.b32.xlu0 %v2281, 125
    %v2284 = vpop.permute.xlu0 %2283
    %v2286 = vadd.f32 %v2280, %v2284
    %v2287 = vmul.f32 %v941, %v2136
    %v2289 = vrot.slane %v2287, 1
    %2290 = vrot.lane.b32.xlu0 %v2289, 125
    %v2291 = vpop.permute.xlu0 %2290
    %v2293 = vadd.f32 %v2286, %v2291
    %v2294 = vmul.f32 %v950, %v2136
    %v2296 = vrot.slane %v2294, 2
    %2297 = vrot.lane.b32.xlu0 %v2296, 125
    %v2298 = vpop.permute.xlu0 %2297
    %v2300 = vadd.f32 %v2293, %v2298
    %v2301 = vmul.f32 %v959, %v2136
    %v2303 = vrot.slane %v2301, 3
    %2304 = vrot.lane.b32.xlu0 %v2303, 125
    %v2305 = vpop.permute.xlu0 %2304
    %v2307 = vadd.f32 %v2300, %v2305
    %v2308 = vmul.f32 %v968, %v2136
    %v2310 = vrot.slane %v2308, 4
    %2311 = vrot.lane.b32.xlu0 %v2310, 125
    %v2312 = vpop.permute.xlu0 %2311
    %v2314 = vadd.f32 %v2307, %v2312
    %v2315 = vmul.f32 %v977, %v2136
    %v2317 = vrot.slane %v2315, 5
    %v2318 = vsel %vm708, %v2317, %v983
    %2319 = vrot.lane.b32.xlu0 %v2318, 125
    %v2320 = vpop.permute.xlu0 %2319
    %v2322 = vadd.f32 %v2314, %v2320
    %v2323 = vmul.f32 %v990, %v2136
    %v2325 = vrot.slane %v2323, 6
    %v2326 = vsel %vm786, %v2325, %v996
    %2327 = vrot.lane.b32.xlu0 %v2326, 125
    %v2328 = vpop.permute.xlu0 %2327
    %v2330 = vadd.f32 %v2322, %v2328
    %v2331 = vmul.f32 %v1003, %v2136
    %2333 = vrot.lane.b32.xlu0 %v2331, 124
    %v2334 = vpop.permute.xlu0 %2333
    %v2336 = vadd.f32 %v2330, %v2334
    %v2337 = vmul.f32 %v1011, %v2136
    %v2339 = vrot.slane %v2337, 1
    %2340 = vrot.lane.b32.xlu0 %v2339, 124
    %v2341 = vpop.permute.xlu0 %2340
    %v2343 = vadd.f32 %v2336, %v2341
    %v2344 = vmul.f32 %v1020, %v2136
    %v2346 = vrot.slane %v2344, 2
    %2347 = vrot.lane.b32.xlu0 %v2346, 124
    %v2348 = vpop.permute.xlu0 %2347
    %v2350 = vadd.f32 %v2343, %v2348
    %v2351 = vmul.f32 %v1029, %v2136
    %v2353 = vrot.slane %v2351, 3
    %2354 = vrot.lane.b32.xlu0 %v2353, 124
    %v2355 = vpop.permute.xlu0 %2354
    %v2357 = vadd.f32 %v2350, %v2355
    %v2358 = vmul.f32 %v1038, %v2136
    %v2360 = vrot.slane %v2358, 4
    %2361 = vrot.lane.b32.xlu0 %v2360, 124
    %v2362 = vpop.permute.xlu0 %2361
    %v2364 = vadd.f32 %v2357, %v2362
    %v2365 = vmul.f32 %v1047, %v2136
    %v2367 = vrot.slane %v2365, 5
    %v2368 = vsel %vm708, %v2367, %v1053
    %2369 = vrot.lane.b32.xlu0 %v2368, 124
    %v2370 = vpop.permute.xlu0 %2369
    %v2372 = vadd.f32 %v2364, %v2370
    %v2373 = vmul.f32 %v1060, %v2136
    %v2375 = vrot.slane %v2373, 6
    %v2376 = vsel %vm786, %v2375, %v1066
    %2377 = vrot.lane.b32.xlu0 %v2376, 124
    %v2378 = vpop.permute.xlu0 %2377
    %v2380 = vadd.f32 %v2372, %v2378
    %v2381 = vmul.f32 %v1073, %v2136
    %2383 = vrot.lane.b32.xlu0 %v2381, 123
    %v2384 = vpop.permute.xlu0 %2383
    %v2386 = vadd.f32 %v2380, %v2384
    %v2387 = vmul.f32 %v1081, %v2136
    %v2389 = vrot.slane %v2387, 1
    %2390 = vrot.lane.b32.xlu0 %v2389, 123
    %v2391 = vpop.permute.xlu0 %2390
    %v2393 = vadd.f32 %v2386, %v2391
    %v2394 = vmul.f32 %v1090, %v2136
    %v2396 = vrot.slane %v2394, 2
    %2397 = vrot.lane.b32.xlu0 %v2396, 123
    %v2398 = vpop.permute.xlu0 %2397
    %v2400 = vadd.f32 %v2393, %v2398
    %v2401 = vmul.f32 %v1099, %v2136
    %v2403 = vrot.slane %v2401, 3
    %2404 = vrot.lane.b32.xlu0 %v2403, 123
    %v2405 = vpop.permute.xlu0 %2404
    %v2407 = vadd.f32 %v2400, %v2405
    %v2408 = vmul.f32 %v1108, %v2136
    %v2410 = vrot.slane %v2408, 4
    %2411 = vrot.lane.b32.xlu0 %v2410, 123
    %v2412 = vpop.permute.xlu0 %2411
    %v2414 = vadd.f32 %v2407, %v2412
    %v2415 = vmul.f32 %v1117, %v2136
    %v2417 = vrot.slane %v2415, 5
    %v2418 = vsel %vm708, %v2417, %v1123
    %2419 = vrot.lane.b32.xlu0 %v2418, 123
    %v2420 = vpop.permute.xlu0 %2419
    %v2422 = vadd.f32 %v2414, %v2420
    %v2423 = vmul.f32 %v1130, %v2136
    %v2425 = vrot.slane %v2423, 6
    %v2426 = vsel %vm786, %v2425, %v1136
    %2427 = vrot.lane.b32.xlu0 %v2426, 123
    %v2428 = vpop.permute.xlu0 %2427
    %v2430 = vadd.f32 %v2422, %v2428
    %v2431 = vmul.f32 %v1143, %v2136
    %2433 = vrot.lane.b32.xlu0 %v2431, 122
    %v2434 = vpop.permute.xlu0 %2433
    %v2436 = vadd.f32 %v2430, %v2434
    %v2437 = vmul.f32 %v1151, %v2136
    %v2439 = vrot.slane %v2437, 1
    %2440 = vrot.lane.b32.xlu0 %v2439, 122
    %v2441 = vpop.permute.xlu0 %2440
    %v2443 = vadd.f32 %v2436, %v2441
    %v2444 = vmul.f32 %v1160, %v2136
    %v2446 = vrot.slane %v2444, 2
    %2447 = vrot.lane.b32.xlu0 %v2446, 122
    %v2448 = vpop.permute.xlu0 %2447
    %v2450 = vadd.f32 %v2443, %v2448
    %v2451 = vmul.f32 %v1169, %v2136
    %v2453 = vrot.slane %v2451, 3
    %2454 = vrot.lane.b32.xlu0 %v2453, 122
    %v2455 = vpop.permute.xlu0 %2454
    %v2457 = vadd.f32 %v2450, %v2455
    %v2458 = vmul.f32 %v1178, %v2136
    %v2460 = vrot.slane %v2458, 4
    %2461 = vrot.lane.b32.xlu0 %v2460, 122
    %v2462 = vpop.permute.xlu0 %2461
    %v2464 = vadd.f32 %v2457, %v2462
    %v2465 = vmul.f32 %v1187, %v2136
    %v2467 = vrot.slane %v2465, 5
    %v2468 = vsel %vm708, %v2467, %v1193
    %2469 = vrot.lane.b32.xlu0 %v2468, 122
    %v2470 = vpop.permute.xlu0 %2469
    %v2472 = vadd.f32 %v2464, %v2470
    %v2473 = vmul.f32 %v1200, %v2136
    %v2475 = vrot.slane %v2473, 6
    %v2476 = vsel %vm786, %v2475, %v1206
    %2477 = vrot.lane.b32.xlu0 %v2476, 122
    %v2478 = vpop.permute.xlu0 %2477
    %v2480 = vadd.f32 %v2472, %v2478
    %v2481 = vmul.f32 %v1213, %v2146
    %v2482 = vadd.f32 %v2480, %v2481
    %v2483 = vmul.f32 %v1217, %v2146
    %v2485 = vrot.slane %v2483, 1
    %v2487 = vadd.f32 %v2482, %v2485
    %v2488 = vmul.f32 %v1224, %v2146
    %v2490 = vrot.slane %v2488, 2
    %v2492 = vadd.f32 %v2487, %v2490
    %v2493 = vmul.f32 %v1231, %v2146
    %v2495 = vrot.slane %v2493, 3
    %v2497 = vadd.f32 %v2492, %v2495
    %v2498 = vmul.f32 %v1238, %v2146
    %v2500 = vrot.slane %v2498, 4
    %v2502 = vadd.f32 %v2497, %v2500
    %v2503 = vmul.f32 %v1245, %v2146
    %v2505 = vrot.slane %v2503, 5
    %v2506 = vsel %vm708, %v2505, %v1251
    %v2508 = vadd.f32 %v2502, %v2506
    %v2509 = vmul.f32 %v1256, %v2146
    %v2511 = vrot.slane %v2509, 6
    %v2512 = vsel %vm786, %v2511, %v1262
    %v2514 = vadd.f32 %v2508, %v2512
    %v2515 = vmul.f32 %v1267, %v2146
    %2517 = vrot.lane.b32.xlu0 %v2515, 127
    %v2518 = vpop.permute.xlu0 %2517
    %v2520 = vadd.f32 %v2514, %v2518
    %v2521 = vmul.f32 %v1275, %v2146
    %v2523 = vrot.slane %v2521, 1
    %2524 = vrot.lane.b32.xlu0 %v2523, 127
    %v2525 = vpop.permute.xlu0 %2524
    %v2527 = vadd.f32 %v2520, %v2525
    %v2528 = vmul.f32 %v1284, %v2146
    %v2530 = vrot.slane %v2528, 2
    %2531 = vrot.lane.b32.xlu0 %v2530, 127
    %v2532 = vpop.permute.xlu0 %2531
    %v2534 = vadd.f32 %v2527, %v2532
    %v2535 = vmul.f32 %v1293, %v2146
    %v2537 = vrot.slane %v2535, 3
    %2538 = vrot.lane.b32.xlu0 %v2537, 127
    %v2539 = vpop.permute.xlu0 %2538
    %v2541 = vadd.f32 %v2534, %v2539
    %v2542 = vmul.f32 %v1302, %v2146
    %v2544 = vrot.slane %v2542, 4
    %2545 = vrot.lane.b32.xlu0 %v2544, 127
    %v2546 = vpop.permute.xlu0 %2545
    %v2548 = vadd.f32 %v2541, %v2546
    %v2549 = vmul.f32 %v1311, %v2146
    %v2551 = vrot.slane %v2549, 5
    %v2552 = vsel %vm708, %v2551, %v1317
    %2553 = vrot.lane.b32.xlu0 %v2552, 127
    %v2554 = vpop.permute.xlu0 %2553
    %v2556 = vadd.f32 %v2548, %v2554
    %v2557 = vmul.f32 %v1324, %v2146
    %v2559 = vrot.slane %v2557, 6
    %v2560 = vsel %vm786, %v2559, %v1330
    %2561 = vrot.lane.b32.xlu0 %v2560, 127
    %v2562 = vpop.permute.xlu0 %2561
    %v2564 = vadd.f32 %v2556, %v2562
    %v2565 = vmul.f32 %v1337, %v2146
    %2567 = vrot.lane.b32.xlu0 %v2565, 126
    %v2568 = vpop.permute.xlu0 %2567
    %v2570 = vadd.f32 %v2564, %v2568
    %v2571 = vmul.f32 %v1345, %v2146
    %v2573 = vrot.slane %v2571, 1
    %2574 = vrot.lane.b32.xlu0 %v2573, 126
    %v2575 = vpop.permute.xlu0 %2574
    %v2577 = vadd.f32 %v2570, %v2575
    %v2578 = vmul.f32 %v1354, %v2146
    %v2580 = vrot.slane %v2578, 2
    %2581 = vrot.lane.b32.xlu0 %v2580, 126
    %v2582 = vpop.permute.xlu0 %2581
    %v2584 = vadd.f32 %v2577, %v2582
    %v2585 = vmul.f32 %v1363, %v2146
    %v2587 = vrot.slane %v2585, 3
    %2588 = vrot.lane.b32.xlu0 %v2587, 126
    %v2589 = vpop.permute.xlu0 %2588
    %v2591 = vadd.f32 %v2584, %v2589
    %v2592 = vmul.f32 %v1372, %v2146
    %v2594 = vrot.slane %v2592, 4
    %2595 = vrot.lane.b32.xlu0 %v2594, 126
    %v2596 = vpop.permute.xlu0 %2595
    %v2598 = vadd.f32 %v2591, %v2596
    %v2599 = vmul.f32 %v1381, %v2146
    %v2601 = vrot.slane %v2599, 5
    %v2602 = vsel %vm708, %v2601, %v1387
    %2603 = vrot.lane.b32.xlu0 %v2602, 126
    %v2604 = vpop.permute.xlu0 %2603
    %v2606 = vadd.f32 %v2598, %v2604
    %v2607 = vmul.f32 %v1394, %v2146
    %v2609 = vrot.slane %v2607, 6
    %v2610 = vsel %vm786, %v2609, %v1400
    %2611 = vrot.lane.b32.xlu0 %v2610, 126
    %v2612 = vpop.permute.xlu0 %2611
    %v2614 = vadd.f32 %v2606, %v2612
    %v2615 = vmul.f32 %v1407, %v2146
    %2617 = vrot.lane.b32.xlu0 %v2615, 125
    %v2618 = vpop.permute.xlu0 %2617
    %v2620 = vadd.f32 %v2614, %v2618
    %v2621 = vmul.f32 %v1415, %v2146
    %v2623 = vrot.slane %v2621, 1
    %2624 = vrot.lane.b32.xlu0 %v2623, 125
    %v2625 = vpop.permute.xlu0 %2624
    %v2627 = vadd.f32 %v2620, %v2625
    %v2628 = vmul.f32 %v1424, %v2146
    %v2630 = vrot.slane %v2628, 2
    %2631 = vrot.lane.b32.xlu0 %v2630, 125
    %v2632 = vpop.permute.xlu0 %2631
    %v2634 = vadd.f32 %v2627, %v2632
    %v2635 = vmul.f32 %v1433, %v2146
    %v2637 = vrot.slane %v2635, 3
    %2638 = vrot.lane.b32.xlu0 %v2637, 125
    %v2639 = vpop.permute.xlu0 %2638
    %v2641 = vadd.f32 %v2634, %v2639
    %v2642 = vmul.f32 %v1442, %v2146
    %v2644 = vrot.slane %v2642, 4
    %2645 = vrot.lane.b32.xlu0 %v2644, 125
    %v2646 = vpop.permute.xlu0 %2645
    %v2648 = vadd.f32 %v2641, %v2646
    %v2649 = vmul.f32 %v1451, %v2146
    %v2651 = vrot.slane %v2649, 5
    %v2652 = vsel %vm708, %v2651, %v1457
    %2653 = vrot.lane.b32.xlu0 %v2652, 125
    %v2654 = vpop.permute.xlu0 %2653
    %v2656 = vadd.f32 %v2648, %v2654
    %v2657 = vmul.f32 %v1464, %v2146
    %v2659 = vrot.slane %v2657, 6
    %v2660 = vsel %vm786, %v2659, %v1470
    %2661 = vrot.lane.b32.xlu0 %v2660, 125
    %v2662 = vpop.permute.xlu0 %2661
    %v2664 = vadd.f32 %v2656, %v2662
    %v2665 = vmul.f32 %v1477, %v2146
    %2667 = vrot.lane.b32.xlu0 %v2665, 124
    %v2668 = vpop.permute.xlu0 %2667
    %v2670 = vadd.f32 %v2664, %v2668
    %v2671 = vmul.f32 %v1485, %v2146
    %v2673 = vrot.slane %v2671, 1
    %2674 = vrot.lane.b32.xlu0 %v2673, 124
    %v2675 = vpop.permute.xlu0 %2674
    %v2677 = vadd.f32 %v2670, %v2675
    %v2678 = vmul.f32 %v1494, %v2146
    %v2680 = vrot.slane %v2678, 2
    %2681 = vrot.lane.b32.xlu0 %v2680, 124
    %v2682 = vpop.permute.xlu0 %2681
    %v2684 = vadd.f32 %v2677, %v2682
    %v2685 = vmul.f32 %v1503, %v2146
    %v2687 = vrot.slane %v2685, 3
    %2688 = vrot.lane.b32.xlu0 %v2687, 124
    %v2689 = vpop.permute.xlu0 %2688
    %v2691 = vadd.f32 %v2684, %v2689
    %v2692 = vmul.f32 %v1512, %v2146
    %v2694 = vrot.slane %v2692, 4
    %2695 = vrot.lane.b32.xlu0 %v2694, 124
    %v2696 = vpop.permute.xlu0 %2695
    %v2698 = vadd.f32 %v2691, %v2696
    %v2699 = vmul.f32 %v1521, %v2146
    %v2701 = vrot.slane %v2699, 5
    %v2702 = vsel %vm708, %v2701, %v1527
    %2703 = vrot.lane.b32.xlu0 %v2702, 124
    %v2704 = vpop.permute.xlu0 %2703
    %v2706 = vadd.f32 %v2698, %v2704
    %v2707 = vmul.f32 %v1534, %v2146
    %v2709 = vrot.slane %v2707, 6
    %v2710 = vsel %vm786, %v2709, %v1540
    %2711 = vrot.lane.b32.xlu0 %v2710, 124
    %v2712 = vpop.permute.xlu0 %2711
    %v2714 = vadd.f32 %v2706, %v2712
    %v2715 = vmul.f32 %v1547, %v2146
    %2717 = vrot.lane.b32.xlu0 %v2715, 123
    %v2718 = vpop.permute.xlu0 %2717
    %v2720 = vadd.f32 %v2714, %v2718
    %v2721 = vmul.f32 %v1555, %v2146
    %v2723 = vrot.slane %v2721, 1
    %2724 = vrot.lane.b32.xlu0 %v2723, 123
    %v2725 = vpop.permute.xlu0 %2724
    %v2727 = vadd.f32 %v2720, %v2725
    %v2728 = vmul.f32 %v1564, %v2146
    %v2730 = vrot.slane %v2728, 2
    %2731 = vrot.lane.b32.xlu0 %v2730, 123
    %v2732 = vpop.permute.xlu0 %2731
    %v2734 = vadd.f32 %v2727, %v2732
    %v2735 = vmul.f32 %v1573, %v2146
    %v2737 = vrot.slane %v2735, 3
    %2738 = vrot.lane.b32.xlu0 %v2737, 123
    %v2739 = vpop.permute.xlu0 %2738
    %v2741 = vadd.f32 %v2734, %v2739
    %v2742 = vmul.f32 %v1582, %v2146
    %v2744 = vrot.slane %v2742, 4
    %2745 = vrot.lane.b32.xlu0 %v2744, 123
    %v2746 = vpop.permute.xlu0 %2745
    %v2748 = vadd.f32 %v2741, %v2746
    %v2749 = vmul.f32 %v1591, %v2146
    %v2751 = vrot.slane %v2749, 5
    %v2752 = vsel %vm708, %v2751, %v1597
    %2753 = vrot.lane.b32.xlu0 %v2752, 123
    %v2754 = vpop.permute.xlu0 %2753
    %v2756 = vadd.f32 %v2748, %v2754
    %v2757 = vmul.f32 %v1604, %v2146
    %v2759 = vrot.slane %v2757, 6
    %v2760 = vsel %vm786, %v2759, %v1610
    %2761 = vrot.lane.b32.xlu0 %v2760, 123
    %v2762 = vpop.permute.xlu0 %2761
    %v2764 = vadd.f32 %v2756, %v2762
    %v2765 = vmul.f32 %v1617, %v2146
    %2767 = vrot.lane.b32.xlu0 %v2765, 122
    %v2768 = vpop.permute.xlu0 %2767
    %v2770 = vadd.f32 %v2764, %v2768
    %v2771 = vmul.f32 %v1625, %v2146
    %v2773 = vrot.slane %v2771, 1
    %2774 = vrot.lane.b32.xlu0 %v2773, 122
    %v2775 = vpop.permute.xlu0 %2774
    %v2777 = vadd.f32 %v2770, %v2775
    %v2778 = vmul.f32 %v1634, %v2146
    %v2780 = vrot.slane %v2778, 2
    %2781 = vrot.lane.b32.xlu0 %v2780, 122
    %v2782 = vpop.permute.xlu0 %2781
    %v2784 = vadd.f32 %v2777, %v2782
    %v2785 = vmul.f32 %v1643, %v2146
    %v2787 = vrot.slane %v2785, 3
    %2788 = vrot.lane.b32.xlu0 %v2787, 122
    %v2789 = vpop.permute.xlu0 %2788
    %v2791 = vadd.f32 %v2784, %v2789
    %v2792 = vmul.f32 %v1652, %v2146
    %v2794 = vrot.slane %v2792, 4
    %2795 = vrot.lane.b32.xlu0 %v2794, 122
    %v2796 = vpop.permute.xlu0 %2795
    %v2798 = vadd.f32 %v2791, %v2796
    %v2799 = vmul.f32 %v1661, %v2146
    %v2801 = vrot.slane %v2799, 5
    %v2802 = vsel %vm708, %v2801, %v1667
    %2803 = vrot.lane.b32.xlu0 %v2802, 122
    %v2804 = vpop.permute.xlu0 %2803
    %v2806 = vadd.f32 %v2798, %v2804
    %v2807 = vmul.f32 %v1674, %v2146
    %v2809 = vrot.slane %v2807, 6
    %v2810 = vsel %vm786, %v2809, %v1680
    %2811 = vrot.lane.b32.xlu0 %v2810, 122
    %v2812 = vpop.permute.xlu0 %2811
    %v2814 = vadd.f32 %v2806, %v2812
    %v2815 = vrot.slane %v482, 2
    %v2817 = vsel %vm786, 0.0, %v2815
    %v2818 = vsel %vm1690, %v2817, 0.0
    %2820 = vrot.lane.b32.xlu0 %v2818, 2
    %v2821 = vpop.permute.xlu0 %2820
    %v2823 = vsel %vm1696, 0.0, %v2821
    %v2824 = vsel %vm1698, %v2823, 0.0
    %v2825 = vrot.slane %v498, 2
    %v2827 = vsel %vm786, 0.0, %v2825
    %v2828 = vsel %vm1690, %v2827, 0.0
    %2830 = vrot.lane.b32.xlu0 %v2828, 2
    %v2831 = vpop.permute.xlu0 %2830
    %v2833 = vsel %vm1696, 0.0, %v2831
    %v2834 = vsel %vm1698, %v2833, 0.0
    %v2835 = vmul.f32 %v1712, %v2824
    %v2836 = vadd.f32 %v2835, 0.0
    %v2837 = vmul.f32 %v1716, %v2824
    %2839 = vrot.lane.b32.xlu0 %v2837, 127
    %v2840 = vpop.permute.xlu0 %2839
    %v2842 = vadd.f32 %v2836, %v2840
    %v2843 = vmul.f32 %v1724, %v2824
    %2845 = vrot.lane.b32.xlu0 %v2843, 126
    %v2846 = vpop.permute.xlu0 %2845
    %v2848 = vadd.f32 %v2842, %v2846
    %v2849 = vmul.f32 %v1732, %v2824
    %2851 = vrot.lane.b32.xlu0 %v2849, 125
    %v2852 = vpop.permute.xlu0 %2851
    %v2854 = vadd.f32 %v2848, %v2852
    %v2855 = vmul.f32 %v1740, %v2824
    %2857 = vrot.lane.b32.xlu0 %v2855, 124
    %v2858 = vpop.permute.xlu0 %2857
    %v2860 = vadd.f32 %v2854, %v2858
    %v2861 = vmul.f32 %v1748, %v2824
    %v2863 = vrot.slane %v2861, 1
    %v2865 = vadd.f32 %v2860, %v2863
    %v2866 = vmul.f32 %v1755, %v2824
    %v2868 = vrot.slane %v2866, 1
    %2869 = vrot.lane.b32.xlu0 %v2868, 127
    %v2870 = vpop.permute.xlu0 %2869
    %v2872 = vadd.f32 %v2865, %v2870
    %v2873 = vmul.f32 %v1764, %v2824
    %v2875 = vrot.slane %v2873, 1
    %2876 = vrot.lane.b32.xlu0 %v2875, 126
    %v2877 = vpop.permute.xlu0 %2876
    %v2879 = vadd.f32 %v2872, %v2877
    %v2880 = vmul.f32 %v1773, %v2824
    %v2882 = vrot.slane %v2880, 1
    %2883 = vrot.lane.b32.xlu0 %v2882, 125
    %v2884 = vpop.permute.xlu0 %2883
    %v2886 = vadd.f32 %v2879, %v2884
    %v2887 = vmul.f32 %v1782, %v2824
    %v2889 = vrot.slane %v2887, 1
    %2890 = vrot.lane.b32.xlu0 %v2889, 124
    %v2891 = vpop.permute.xlu0 %2890
    %v2893 = vadd.f32 %v2886, %v2891
    %v2894 = vmul.f32 %v1791, %v2824
    %v2896 = vrot.slane %v2894, 2
    %v2898 = vadd.f32 %v2893, %v2896
    %v2899 = vmul.f32 %v1798, %v2824
    %v2901 = vrot.slane %v2899, 2
    %2902 = vrot.lane.b32.xlu0 %v2901, 127
    %v2903 = vpop.permute.xlu0 %2902
    %v2905 = vadd.f32 %v2898, %v2903
    %v2906 = vmul.f32 %v1807, %v2824
    %v2908 = vrot.slane %v2906, 2
    %2909 = vrot.lane.b32.xlu0 %v2908, 126
    %v2910 = vpop.permute.xlu0 %2909
    %v2912 = vadd.f32 %v2905, %v2910
    %v2913 = vmul.f32 %v1816, %v2824
    %v2915 = vrot.slane %v2913, 2
    %2916 = vrot.lane.b32.xlu0 %v2915, 125
    %v2917 = vpop.permute.xlu0 %2916
    %v2919 = vadd.f32 %v2912, %v2917
    %v2920 = vmul.f32 %v1825, %v2824
    %v2922 = vrot.slane %v2920, 2
    %2923 = vrot.lane.b32.xlu0 %v2922, 124
    %v2924 = vpop.permute.xlu0 %2923
    %v2926 = vadd.f32 %v2919, %v2924
    %v2927 = vmul.f32 %v1834, %v2824
    %v2929 = vrot.slane %v2927, 3
    %v2931 = vadd.f32 %v2926, %v2929
    %v2932 = vmul.f32 %v1841, %v2824
    %v2934 = vrot.slane %v2932, 3
    %2935 = vrot.lane.b32.xlu0 %v2934, 127
    %v2936 = vpop.permute.xlu0 %2935
    %v2938 = vadd.f32 %v2931, %v2936
    %v2939 = vmul.f32 %v1850, %v2824
    %v2941 = vrot.slane %v2939, 3
    %2942 = vrot.lane.b32.xlu0 %v2941, 126
    %v2943 = vpop.permute.xlu0 %2942
    %v2945 = vadd.f32 %v2938, %v2943
    %v2946 = vmul.f32 %v1859, %v2824
    %v2948 = vrot.slane %v2946, 3
    %2949 = vrot.lane.b32.xlu0 %v2948, 125
    %v2950 = vpop.permute.xlu0 %2949
    %v2952 = vadd.f32 %v2945, %v2950
    %v2953 = vmul.f32 %v1868, %v2824
    %v2955 = vrot.slane %v2953, 3
    %2956 = vrot.lane.b32.xlu0 %v2955, 124
    %v2957 = vpop.permute.xlu0 %2956
    %v2959 = vadd.f32 %v2952, %v2957
    %v2960 = vmul.f32 %v1877, %v2824
    %v2962 = vrot.slane %v2960, 4
    %v2964 = vadd.f32 %v2959, %v2962
    %v2965 = vmul.f32 %v1884, %v2824
    %v2967 = vrot.slane %v2965, 4
    %2968 = vrot.lane.b32.xlu0 %v2967, 127
    %v2969 = vpop.permute.xlu0 %2968
    %v2971 = vadd.f32 %v2964, %v2969
    %v2972 = vmul.f32 %v1893, %v2824
    %v2974 = vrot.slane %v2972, 4
    %2975 = vrot.lane.b32.xlu0 %v2974, 126
    %v2976 = vpop.permute.xlu0 %2975
    %v2978 = vadd.f32 %v2971, %v2976
    %v2979 = vmul.f32 %v1902, %v2824
    %v2981 = vrot.slane %v2979, 4
    %2982 = vrot.lane.b32.xlu0 %v2981, 125
    %v2983 = vpop.permute.xlu0 %2982
    %v2985 = vadd.f32 %v2978, %v2983
    %v2986 = vmul.f32 %v1911, %v2824
    %v2988 = vrot.slane %v2986, 4
    %2989 = vrot.lane.b32.xlu0 %v2988, 124
    %v2990 = vpop.permute.xlu0 %2989
    %v2992 = vadd.f32 %v2985, %v2990
    %v2993 = vmul.f32 %v1920, %v2834
    %v2994 = vadd.f32 %v2992, %v2993
    %v2995 = vmul.f32 %v1924, %v2834
    %2997 = vrot.lane.b32.xlu0 %v2995, 127
    %v2998 = vpop.permute.xlu0 %2997
    %v3000 = vadd.f32 %v2994, %v2998
    %v3001 = vmul.f32 %v1932, %v2834
    %3003 = vrot.lane.b32.xlu0 %v3001, 126
    %v3004 = vpop.permute.xlu0 %3003
    %v3006 = vadd.f32 %v3000, %v3004
    %v3007 = vmul.f32 %v1940, %v2834
    %3009 = vrot.lane.b32.xlu0 %v3007, 125
    %v3010 = vpop.permute.xlu0 %3009
    %v3012 = vadd.f32 %v3006, %v3010
    %v3013 = vmul.f32 %v1948, %v2834
    %3015 = vrot.lane.b32.xlu0 %v3013, 124
    %v3016 = vpop.permute.xlu0 %3015
    %v3018 = vadd.f32 %v3012, %v3016
    %v3019 = vmul.f32 %v1956, %v2834
    %v3021 = vrot.slane %v3019, 1
    %v3023 = vadd.f32 %v3018, %v3021
    %v3024 = vmul.f32 %v1963, %v2834
    %v3026 = vrot.slane %v3024, 1
    %3027 = vrot.lane.b32.xlu0 %v3026, 127
    %v3028 = vpop.permute.xlu0 %3027
    %v3030 = vadd.f32 %v3023, %v3028
    %v3031 = vmul.f32 %v1972, %v2834
    %v3033 = vrot.slane %v3031, 1
    %3034 = vrot.lane.b32.xlu0 %v3033, 126
    %v3035 = vpop.permute.xlu0 %3034
    %v3037 = vadd.f32 %v3030, %v3035
    %v3038 = vmul.f32 %v1981, %v2834
    %v3040 = vrot.slane %v3038, 1
    %3041 = vrot.lane.b32.xlu0 %v3040, 125
    %v3042 = vpop.permute.xlu0 %3041
    %v3044 = vadd.f32 %v3037, %v3042
    %v3045 = vmul.f32 %v1990, %v2834
    %v3047 = vrot.slane %v3045, 1
    %3048 = vrot.lane.b32.xlu0 %v3047, 124
    %v3049 = vpop.permute.xlu0 %3048
    %v3051 = vadd.f32 %v3044, %v3049
    %v3052 = vmul.f32 %v1999, %v2834
    %v3054 = vrot.slane %v3052, 2
    %v3056 = vadd.f32 %v3051, %v3054
    %v3057 = vmul.f32 %v2006, %v2834
    %v3059 = vrot.slane %v3057, 2
    %3060 = vrot.lane.b32.xlu0 %v3059, 127
    %v3061 = vpop.permute.xlu0 %3060
    %v3063 = vadd.f32 %v3056, %v3061
    %v3064 = vmul.f32 %v2015, %v2834
    %v3066 = vrot.slane %v3064, 2
    %3067 = vrot.lane.b32.xlu0 %v3066, 126
    %v3068 = vpop.permute.xlu0 %3067
    %v3070 = vadd.f32 %v3063, %v3068
    %v3071 = vmul.f32 %v2024, %v2834
    %v3073 = vrot.slane %v3071, 2
    %3074 = vrot.lane.b32.xlu0 %v3073, 125
    %v3075 = vpop.permute.xlu0 %3074
    %v3077 = vadd.f32 %v3070, %v3075
    %v3078 = vmul.f32 %v2033, %v2834
    %v3080 = vrot.slane %v3078, 2
    %3081 = vrot.lane.b32.xlu0 %v3080, 124
    %v3082 = vpop.permute.xlu0 %3081
    %v3084 = vadd.f32 %v3077, %v3082
    %v3085 = vmul.f32 %v2042, %v2834
    %v3087 = vrot.slane %v3085, 3
    %v3089 = vadd.f32 %v3084, %v3087
    %v3090 = vmul.f32 %v2049, %v2834
    %v3092 = vrot.slane %v3090, 3
    %3093 = vrot.lane.b32.xlu0 %v3092, 127
    %v3094 = vpop.permute.xlu0 %3093
    %v3096 = vadd.f32 %v3089, %v3094
    %v3097 = vmul.f32 %v2058, %v2834
    %v3099 = vrot.slane %v3097, 3
    %3100 = vrot.lane.b32.xlu0 %v3099, 126
    %v3101 = vpop.permute.xlu0 %3100
    %v3103 = vadd.f32 %v3096, %v3101
    %v3104 = vmul.f32 %v2067, %v2834
    %v3106 = vrot.slane %v3104, 3
    %3107 = vrot.lane.b32.xlu0 %v3106, 125
    %v3108 = vpop.permute.xlu0 %3107
    %v3110 = vadd.f32 %v3103, %v3108
    %v3111 = vmul.f32 %v2076, %v2834
    %v3113 = vrot.slane %v3111, 3
    %3114 = vrot.lane.b32.xlu0 %v3113, 124
    %v3115 = vpop.permute.xlu0 %3114
    %v3117 = vadd.f32 %v3110, %v3115
    %v3118 = vmul.f32 %v2085, %v2834
    %v3120 = vrot.slane %v3118, 4
    %v3122 = vadd.f32 %v3117, %v3120
    %v3123 = vmul.f32 %v2092, %v2834
    %v3125 = vrot.slane %v3123, 4
    %3126 = vrot.lane.b32.xlu0 %v3125, 127
    %v3127 = vpop.permute.xlu0 %3126
    %v3129 = vadd.f32 %v3122, %v3127
    %v3130 = vmul.f32 %v2101, %v2834
    %v3132 = vrot.slane %v3130, 4
    %3133 = vrot.lane.b32.xlu0 %v3132, 126
    %v3134 = vpop.permute.xlu0 %3133
    %v3136 = vadd.f32 %v3129, %v3134
    %v3137 = vmul.f32 %v2110, %v2834
    %v3139 = vrot.slane %v3137, 4
    %3140 = vrot.lane.b32.xlu0 %v3139, 125
    %v3141 = vpop.permute.xlu0 %3140
    %v3143 = vadd.f32 %v3136, %v3141
    %v3144 = vmul.f32 %v2119, %v2834
    %v3146 = vrot.slane %v3144, 4
    %3147 = vrot.lane.b32.xlu0 %v3146, 124
    %v3148 = vpop.permute.xlu0 %3147
    %v3150 = vadd.f32 %v3143, %v3148
    %v3152 = vrot.slane %v2814, 4
    %vm3154 = vcmask 1043456
    %v3155 = vsel %vm3154, %v1685, %v3152
    %v3157 = vrot.slane %v3150, 4
    %v3159 = vsel %vm3154, %v2126, %v3157
    %v3160 = vsel %vm101, %v3155, 0.0
    %3161 = vadd.xlane.f32.xlu0 %v3160
    %v3162 = vpop.xlane.xlu0 %3161
    %v3163 = vrot.slane %v3162, 4
    %v3164 = vadd.f32 %v3162, %v3163
    %v3165 = vrot.slane %v3164, 2
    %v3166 = vadd.f32 %v3164, %v3165
    %v3167 = vrot.slane %v3166, 1
    %v3168 = vadd.f32 %v3166, %v3167
    %v3169 = vmul.f32 %v3168, 0.0078125
    %v3170 = vsub.f32 %v3155, %v3169
    %v3171 = vmul.f32 %v3170, %v3170
    %v3172 = vsel %vm101, %v3171, 0.0
    %3173 = vadd.xlane.f32.xlu0 %v3172
    %v3174 = vpop.xlane.xlu0 %3173
    %v3175 = vrot.slane %v3174, 4
    %v3176 = vadd.f32 %v3174, %v3175
    %v3177 = vrot.slane %v3176, 2
    %v3178 = vadd.f32 %v3176, %v3177
    %v3179 = vrot.slane %v3178, 1
    %v3180 = vadd.f32 %v3178, %v3179
    %v3181 = vmul.f32 %v3180, 0.0078125
    %v3182 = vadd.f32 %v3181, 1e-05
    %v3183 = vrsqrt.pop %v3182
    %v3184 = vmul.f32 %v3170, %v3183
    %v3185 = vsel %vm101, %v3159, 0.0
    %3186 = vadd.xlane.f32.xlu0 %v3185
    %v3187 = vpop.xlane.xlu0 %3186
    %v3188 = vrot.slane %v3187, 4
    %v3189 = vadd.f32 %v3187, %v3188
    %v3190 = vrot.slane %v3189, 2
    %v3191 = vadd.f32 %v3189, %v3190
    %v3192 = vrot.slane %v3191, 1
    %v3193 = vadd.f32 %v3191, %v3192
    %v3194 = vmul.f32 %v3193, 0.0078125
    %v3195 = vsub.f32 %v3159, %v3194
    %v3196 = vmul.f32 %v3195, %v3195
    %v3197 = vsel %vm101, %v3196, 0.0
    %3198 = vadd.xlane.f32.xlu0 %v3197
    %v3199 = vpop.xlane.xlu0 %3198
    %v3200 = vrot.slane %v3199, 4
    %v3201 = vadd.f32 %v3199, %v3200
    %v3202 = vrot.slane %v3201, 2
    %v3203 = vadd.f32 %v3201, %v3202
    %v3204 = vrot.slane %v3203, 1
    %v3205 = vadd.f32 %v3203, %v3204
    %v3206 = vmul.f32 %v3205, 0.0078125
    %v3207 = vadd.f32 %v3206, 1e-05
    %v3208 = vrsqrt.pop %v3207
    %v3209 = vmul.f32 %v3195, %v3208
    %v3210 = vld [vmem:[%s8] sm:$0xf]
    %v3211 = vmul.f32 %v704, %v3210
    %vm3212 = vcmask 3072
    %v3213 = vsel %vm3212, %v3211, 0.0
    %v3214 = vrot.slane %v3213, 4
    %v3215 = vadd.f32 %v3213, %v3214
    %v3216 = vrot.slane %v3215, 2
    %v3217 = vadd.f32 %v3215, %v3216
    %v3218 = vrot.slane %v3217, 1
    %v3219 = vadd.f32 %v3217, %v3218
    %v3220 = vld [vmem:[#allocation2] sm:$0x1]
    %v3221 = vadd.f32 %v3219, %v3220
    %v3222 = vmax.f32 %v3221, 0.0
    %v3223 = vld [vmem:[%s10] sm:$0xf]
    %v3224 = vlaneseq
    %v3225 = vshrl.u32 %v3224, 7
    %v3226 = vsub.s32 0, %v3225
    %v3227 = vrot.slane %v3222, %v3226
    %v3228 = vmul.f32 %v3227, %v3223
    %v3229 = vld [vmem:[%s11] sm:$0xf]
    %v3230 = vadd.f32 %v3228, %v3229
    %v3231 = vxor.u32 %v3230, 2147483648
    %v3232 = vmul.f32 %v3231, 1.442695
    %v3233 = vpow.pop %v3232
    %v3234 = vadd.f32 %v3233, 1.0
    %v3235 = vrcp.pop %v3234
    %v3236 = vmul.f32 1.0, %v3235
    %v3238 = vrot.slane %v3210, 4
    %v3240 = vmul.f32 %v704, %v3238
    %v3242 = vrot.slane %v3240, 4
    %v3244 = vsel %vm3212, %v3242, 0.0
    %v3245 = vrot.slane %v3244, 4
    %v3246 = vadd.f32 %v3244, %v3245
    %v3247 = vrot.slane %v3246, 2
    %v3248 = vadd.f32 %v3246, %v3247
    %v3249 = vrot.slane %v3248, 1
    %v3250 = vadd.f32 %v3248, %v3249
    %v3251 = vadd.f32 %v3250, %v3220
    %v3252 = vmax.f32 %v3251, 0.0
    %v3253 = vlaneseq
    %v3254 = vshrl.u32 %v3253, 7
    %v3255 = vsub.s32 0, %v3254
    %v3256 = vrot.slane %v3252, %v3255
    %v3257 = vmul.f32 %v3256, %v3223
    %v3258 = vadd.f32 %v3257, %v3229
    %v3259 = vxor.u32 %v3258, 2147483648
    %v3260 = vmul.f32 %v3259, 1.442695
    %v3261 = vpow.pop %v3260
    %v3262 = vadd.f32 %v3261, 1.0
    %v3263 = vrcp.pop %v3262
    %v3264 = vmul.f32 1.0, %v3263
    %v3266 = vrot.slane %v3264, 4
    %v3268 = vsel %vm3154, %v3236, %v3266
    %3270 = vset.pattern.permute.xlu0 0
    %3271 = vperm.xlu0 %3270, %v3184
    %v3272 = vpop.permute.xlu0 %3271
    %3274 = vset.pattern.permute.xlu0 1
    %3275 = vperm.xlu0 %3274, %v3184
    %v3276 = vpop.permute.xlu0 %3275
    %3278 = vset.pattern.permute.xlu0 2
    %3279 = vperm.xlu0 %3278, %v3184
    %v3280 = vpop.permute.xlu0 %3279
    %3282 = vset.pattern.permute.xlu0 3
    %3283 = vperm.xlu0 %3282, %v3184
    %v3284 = vpop.permute.xlu0 %3283
    %3286 = vset.pattern.permute.xlu0 4
    %3287 = vperm.xlu0 %3286, %v3184
    %v3288 = vpop.permute.xlu0 %3287
    %3290 = vset.pattern.permute.xlu0 5
    %3291 = vperm.xlu0 %3290, %v3184
    %v3292 = vpop.permute.xlu0 %3291
    %3294 = vset.pattern.permute.xlu0 6
    %3295 = vperm.xlu0 %3294, %v3184
    %v3296 = vpop.permute.xlu0 %3295
    %3298 = vset.pattern.permute.xlu0 7
    %3299 = vperm.xlu0 %3298, %v3184
    %v3300 = vpop.permute.xlu0 %3299
    %3302 = vset.pattern.permute.xlu0 8
    %3303 = vperm.xlu0 %3302, %v3184
    %v3304 = vpop.permute.xlu0 %3303
    %3306 = vset.pattern.permute.xlu0 9
    %3307 = vperm.xlu0 %3306, %v3184
    %v3308 = vpop.permute.xlu0 %3307
    %3310 = vset.pattern.permute.xlu0 10
    %3311 = vperm.xlu0 %3310, %v3184
    %v3312 = vpop.permute.xlu0 %3311
    %3314 = vset.pattern.permute.xlu0 11
    %3315 = vperm.xlu0 %3314, %v3184
    %v3316 = vpop.permute.xlu0 %3315
    %3318 = vset.pattern.permute.xlu0 12
    %3319 = vperm.xlu0 %3318, %v3184
    %v3320 = vpop.permute.xlu0 %3319
    %3322 = vset.pattern.permute.xlu0 13
    %3323 = vperm.xlu0 %3322, %v3184
    %v3324 = vpop.permute.xlu0 %3323
    %3326 = vset.pattern.permute.xlu0 14
    %3327 = vperm.xlu0 %3326, %v3184
    %v3328 = vpop.permute.xlu0 %3327
    %3330 = vset.pattern.permute.xlu0 15
    %3331 = vperm.xlu0 %3330, %v3184
    %v3332 = vpop.permute.xlu0 %3331
    %v3334 = vsel %vm101, %v3272, %v3276
    %vm3335 = vcmask 261120
    %v3336 = vsel %vm3335, %v3334, %v3280
    %vm3337 = vcmask 392192
    %v3338 = vsel %vm3337, %v3336, %v3284
    %vm3339 = vcmask 523264
    %v3340 = vsel %vm3339, %v3338, %v3288
    %vm3341 = vcmask 654336
    %v3342 = vsel %vm3341, %v3340, %v3292
    %vm3343 = vcmask 785408
    %v3344 = vsel %vm3343, %v3342, %v3296
    %v3345 = vsel %vm165, %v3344, %v3300
    %v3346 = vsel %vm101, %v3304, %v3308
    %v3347 = vsel %vm3335, %v3346, %v3312
    %v3348 = vsel %vm3337, %v3347, %v3316
    %v3349 = vsel %vm3339, %v3348, %v3320
    %v3350 = vsel %vm3341, %v3349, %v3324
    %v3351 = vsel %vm3343, %v3350, %v3328
    %v3352 = vsel %vm165, %v3351, %v3332
    %3354 = vrot.lane.b32.xlu0 %v3209, 16
    %v3355 = vpop.permute.xlu0 %3354
    %3357 = vrot.lane.b32.xlu0 %v3209, 32
    %v3358 = vpop.permute.xlu0 %3357
    %3360 = vrot.lane.b32.xlu0 %v3209, 48
    %v3361 = vpop.permute.xlu0 %3360
    %3363 = vrot.lane.b32.xlu0 %v3209, 64
    %v3364 = vpop.permute.xlu0 %3363
    %3366 = vrot.lane.b32.xlu0 %v3209, 80
    %v3367 = vpop.permute.xlu0 %3366
    %3369 = vrot.lane.b32.xlu0 %v3209, 96
    %v3370 = vpop.permute.xlu0 %3369
    %3372 = vrot.lane.b32.xlu0 %v3209, 112
    %v3373 = vpop.permute.xlu0 %3372
    %v3375 = vsel %vm101, %v3209, %v3355
    %v3376 = vsel %vm3335, %v3375, %v3358
    %v3377 = vsel %vm3337, %v3376, %v3361
    %v3378 = vsel %vm3339, %v3377, %v3364
    %v3379 = vsel %vm3341, %v3378, %v3367
    %v3380 = vsel %vm3343, %v3379, %v3370
    %v3381 = vsel %vm165, %v3380, %v3373
    %3383 = vset.pattern.permute.xlu0 0
    %3384 = vperm.xlu0 %3383, %v3268
    %v3385 = vpop.permute.xlu0 %3384
    %v3387 = vadd.f32 %v3385, %v3345
    %v3388 = vadd.f32 %v3385, %v3352
    %v3389 = vadd.f32 %v3387, %v3381
    %v3390 = vadd.f32 %v3388, %v3381
    %v3391 = vmul.f32 %v420, %v3389
    %v3392 = vmul.f32 %v422, %v3390
    %v3393 = vadd.f32 %v3391, %v68
    %v3394 = vadd.f32 %v3392, %v69
    %3395 = vst [vmem:[%s12] sm:$0xff] %v3393
    %3396 = vst [vmem:[%s12 + $0x8] sm:$0xff] %v3394
    // Predicated region
    $region58: #{resblock_pallas.1} parent=1 // pred_check
      _
    $region59: #{resblock_pallas.1} parent=1 // pred_check_branch
      %3398 = sbr.rel (0) target = $region61
    $region60: #{resblock_pallas.1} parent=1 // pred_region
      _
    $region61: #{resblock_pallas.1} parent=1 // pred_fallthru
      _
    // Predicated region
    $region62: #{resblock_pallas.1} parent=1 // pred_check
      _
    $region63: #{resblock_pallas.1} parent=1 // pred_check_branch
      %3400 = sbr.rel (0) target = $region65
    $region64: #{resblock_pallas.1} parent=1 // pred_region
      _
    $region65: #{resblock_pallas.1} parent=1 // pred_fallthru
      _
    %3401 = vsyncpa [#allocation4], 1
    %3402 = vsyncpa [#allocation6], 1

</llo_original>
